<compile_context>
chip_gen: v6e
topology: v6e:2x2x1
jax: 0.10.0
libtpu: 0.0.40
codegen_flags: <defaults>
</compile_context>

<pallas_src>
import functools
import numpy as np
import jax
import jax.numpy as jnp
from jax.experimental import pallas as pl
from jax.experimental.pallas import tpu as pltpu

LRELU_SLOPE = 0.2
_MARGIN = 16  # canvas row margin (multiple of 8 -> data-region stores stay tile aligned)


def _lrelu(v):
    return jnp.where(v > 0, v, LRELU_SLOPE * v)


# ------------------------------ fused kernel ------------------------------

def _encoder_fused_kernel(x_ref, m1_ref, m2_ref, wrgb_ref, brgb_ref,
                          wc1_ref, bc1_ref, wc2_ref, bc2_ref, asel_ref,
                          pooled_ref, c0_ref, c1_ref, *, wp):
    """FromRGB -> conv3x3 -> conv3x3 -> AvgPool(2,2) (as one selector matmul).

    Activations are flattened canvases [B*HP*WP, C] (row = (b, i, j), channels
    in lanes).  A 3x3 SAME conv = 9 shifted row-window matmuls against a VMEM
    canvas scratch whose zero ring supplies the padding; the full-lane-width
    interior mask re-zeroes the ring rows after each conv so they keep acting
    as zero padding.
    """
    nc = x_ref.shape[0]                       # B * HP * WP canvas rows
    mg = _MARGIN
    c1 = wrgb_ref.shape[1]
    c2 = wc1_ref.shape[2]
    mmdt = wc1_ref.dtype                      # matmul operand dtype (f32 or bf16)

    # Zero ONLY the canvas margins; the data region is fully overwritten below
    # and its ring rows are re-zeroed by the interior mask.
    c0_ref[0:mg, :] = jnp.zeros((mg, c1), jnp.float32)
    c0_ref[mg + nc:mg + nc + mg, :] = jnp.zeros((mg, c1), jnp.float32)
    c1_ref[0:mg, :] = jnp.zeros((mg, c2), jnp.float32)
    c1_ref[mg + nc:mg + nc + mg, :] = jnp.zeros((mg, c2), jnp.float32)

    m1 = m1_ref[...]                          # [nc, c1] 1.0 on real pixels, 0.0 on ring
    m2 = m2_ref[...]                          # [nc, c2]

    # --- FromRGB: 1x1 conv (K=3 matmul) + bias + LeakyReLU ---
    h0 = _lrelu(jnp.dot(x_ref[...].astype(mmdt), wrgb_ref[...],
                        preferred_element_type=jnp.float32) + brgb_ref[...])
    c0_ref[mg:mg + nc, :] = h0 * m1

    # --- D_Block conv1: 3x3 SAME conv + bias + LeakyReLU (9 shifted matmuls) ---
    acc = None
    for kh in range(3):
        for kw in range(3):
            off = mg + (kh - 1) * wp + (kw - 1)
            t = jnp.dot(c0_ref[off:off + nc, :].astype(mmdt), wc1_ref[kh * 3 + kw],
                        preferred_element_type=jnp.float32)
            acc = t if acc is None else acc + t
    c1_ref[mg:mg + nc, :] = _lrelu(acc + bc1_ref[...]) * m2

    # --- D_Block conv2 ---
    acc = None
    for kh in range(3):
        for kw in range(3):
            off = mg + (kh - 1) * wp + (kw - 1)
            t = jnp.dot(c1_ref[off:off + nc, :].astype(mmdt), wc2_ref[kh * 3 + kw],
                        preferred_element_type=jnp.float32)
            acc = t if acc is None else acc + t
    h2 = _lrelu(acc + bc2_ref[...]) * m2      # re-mask ring rows for robustness

    # --- AvgPool2d(2,2): ONE dense-M matmul against the 0.25 selector ---
    pooled_ref[...] = jnp.dot(asel_ref[...], h2.astype(asel_ref.dtype),
                              preferred_element_type=jnp.float32)


# ------------------------------ wrapper -----------------------------------

def encoder_forward(prep, x_nchw):
    """Encoder.forward with depth=1, alpha=1 (fade branch dead, dropout unused)."""
    B, Cin, H, W = x_nchw.shape
    c1 = prep["w_rgb"].shape[1]
    c2 = prep["w_c1"].shape[2]
    two_l = prep["w_heads"].shape[1]
    L = two_l // 2
    S = (H // 2) * (W // 2)
    mmdt = prep["w_c1"].dtype

    hp, wp = H + 2, W + 2                     # 1-pixel zero ring for the two SAME convs
    nc = B * hp * wp
    nt = nc + 2 * _MARGIN

    # ---- trace-time constants (numpy; folded into the executable) ----
    _, ii, jj = np.meshgrid(np.arange(B), np.arange(hp), np.arange(wp), indexing="ij")
    interior = ((ii >= 1) & (ii <= H) & (jj >= 1) & (jj <= W)).reshape(nc, 1)
    mask1 = jnp.asarray(np.broadcast_to(interior, (nc, c1)).astype(np.float32))
    mask2 = jnp.asarray(np.broadcast_to(interior, (nc, c2)).astype(np.float32))

    # AvgPool2d(2,2) as a 2-D [B*S, nc] selector (b-major rows, 0.25 weights on
    # interior canvas rows only -> ring rows never leak into the pooled output).
    pi, pj, di, dj = np.meshgrid(np.arange(H // 2), np.arange(W // 2),
                                 np.arange(2), np.arange(2), indexing="ij")
    asel_np = np.zeros((B * S, nc), np.float32)
    for b in range(B):
        rows = (b * S + pi * (W // 2) + pj).ravel()
        cols = (b * hp * wp + (1 + 2 * pi + di) * wp + (1 + 2 * pj + dj)).ravel()
        asel_np[rows, cols] = 0.25
    asel = jnp.asarray(asel_np).astype(mmdt)

    # ---- input layout glue: NCHW -> flattened NHWC canvas with the zero ring ----
    x_nhwc = jnp.transpose(x_nchw, (0, 2, 3, 1))
    x_canvas = jnp.pad(x_nhwc, ((0, 0), (1, 1), (1, 1), (0, 0))).reshape(nc, Cin)

    kernel = functools.partial(_encoder_fused_kernel, wp=wp)
    pooled = pl.pallas_call(
        kernel,
        out_shape=jax.ShapeDtypeStruct((B * S, c2), jnp.float32),
        grid=(1,),
        in_specs=[
            pl.BlockSpec((nc, Cin), lambda i: (0, 0)),
            pl.BlockSpec((nc, c1), lambda i: (0, 0)),
            pl.BlockSpec((nc, c2), lambda i: (0, 0)),
            pl.BlockSpec((Cin, c1), lambda i: (0, 0)),
            pl.BlockSpec((1, c1), lambda i: (0, 0)),
            pl.BlockSpec((9, c1, c2), lambda i: (0, 0, 0)),
            pl.BlockSpec((1, c2), lambda i: (0, 0)),
            pl.BlockSpec((9, c2, c2), lambda i: (0, 0, 0)),
            pl.BlockSpec((1, c2), lambda i: (0, 0)),
            pl.BlockSpec((B * S, nc), lambda i: (0, 0)),
        ],
        out_specs=pl.BlockSpec((B * S, c2), lambda i: (0, 0)),
        scratch_shapes=[
            pltpu.VMEM((nt, c1), jnp.float32),   # FromRGB canvas
            pltpu.VMEM((nt, c2), jnp.float32),   # conv1 canvas
        ],
        compiler_params=pltpu.CompilerParams(dimension_semantics=("arbitrary",)),
    )(x_canvas, mask1, mask2, prep["w_rgb"], prep["b_rgb"], prep["w_c1"],
      prep["b_c1"], prep["w_c2"], prep["b_c2"], asel)

    # Head (dense_mu || log_sigma): single lane/sublane-dense [B, S*c2] x [S*c2, 2L]
    # matmul.  Done in XLA right after the kernel: the [B*S, c2] -> [B, S*c2]
    # lane-merging reshape is not reliably lowerable by Mosaic in-kernel, and the
    # intermediate is only B*S*c2*4 = 8 KiB.
    out = jnp.dot(pooled.reshape(B, S * c2), prep["w_heads"],
                  precision=jax.lax.Precision.HIGHEST,
                  preferred_element_type=jnp.float32) + prep["b_heads"]
    return out[:, :L], out[:, L:]


# ------------------------ one-time parameter repack ------------------------

def prepare_params(p, matmul_dtype=jnp.float32):
    """Hoisted, one-time repack of PyTorch-layout params into kernel layout."""
    L = p["w_mu"].shape[0]
    c1 = p["w_rgb"].shape[0]
    c2 = p["w_c1"].shape[0]
    ph = pw = int(round(np.sqrt(p["w_mu"].shape[1] / c2)))   # pooled spatial (4x4)

    def fold_head(w):   # [L, c2*ph*pw] (PyTorch NCHW flatten) -> [(s, c2), L]
        w4 = w.reshape(L, c2, ph, pw)
        return jnp.transpose(w4, (2, 3, 1, 0)).reshape(ph * pw * c2, L)

    return dict(
        w_rgb=p["w_rgb"][:, :, 0, 0].T.astype(matmul_dtype),                   # [Cin, c1]
        b_rgb=p["b_rgb"].reshape(1, c1).astype(jnp.float32),
        w_c1=jnp.transpose(p["w_c1"], (2, 3, 1, 0)).reshape(9, c1, c2).astype(matmul_dtype),
        b_c1=p["b_c1"].reshape(1, c2).astype(jnp.float32),
        w_c2=jnp.transpose(p["w_c2"], (2, 3, 1, 0)).reshape(9, c2, c2).astype(matmul_dtype),
        b_c2=p["b_c2"].reshape(1, c2).astype(jnp.float32),
        # mu and log_sigma concatenated and pre-flattened to [S*c2, 2L] so the
        # head is one lane-dense matmul (0.25 pooling lives in the selector).
        w_heads=jnp.concatenate([fold_head(p["w_mu"]), fold_head(p["w_ls"])],
                                axis=-1).astype(jnp.float32),
        b_heads=jnp.concatenate([p["b_mu"], p["b_ls"]]).reshape(1, 2 * L).astype(jnp.float32),
    )


def init_params(key, latent_dim, channel_num, in_resolution_dim):
    """Deterministic init, PyTorch parameter shapes (weights ~ N(0, 0.02))."""
    R = in_resolution_dim
    d = int(np.log2(R)) - 1                  # depth == 1 -> first ModuleList entry
    c1 = int(R * 2 ** (d - 1) / 2)           # FromRGB out channels
    c2 = int(R * 2 ** (d - 1))               # D_Block out channels
    flat = int(R * 2 ** (np.log2(R) - 2)) * 4 * 4
    assert flat == c2 * 4 * 4
    ks = jax.random.split(key, 10)
    return dict(
        w_rgb=0.02 * jax.random.normal(ks[0], (c1, channel_num, 1, 1), jnp.float32),
        b_rgb=0.01 * jax.random.normal(ks[1], (c1,), jnp.float32),
        w_c1=0.02 * jax.random.normal(ks[2], (c2, c1, 3, 3), jnp.float32),
        b_c1=0.01 * jax.random.normal(ks[3], (c2,), jnp.float32),
        w_c2=0.02 * jax.random.normal(ks[4], (c2, c2, 3, 3), jnp.float32),
        b_c2=0.01 * jax.random.normal(ks[5], (c2,), jnp.float32),
        w_mu=0.02 * jax.random.normal(ks[6], (latent_dim, flat), jnp.float32),
        b_mu=0.01 * jax.random.normal(ks[7], (latent_dim,), jnp.float32),
        w_ls=0.02 * jax.random.normal(ks[8], (latent_dim, flat), jnp.float32),
        b_ls=0.01 * jax.random.normal(ks[9], (latent_dim,), jnp.float32),
    )


# ----------------------- pure-JAX reference (NCHW) -------------------------

def encoder_reference(params, x_nchw):
    lrelu = lambda v: jnp.where(v > 0, v, LRELU_SLOPE * v)
    dn = ("NCHW", "OIHW", "NCHW")
    hi = jax.lax.Precision.HIGHEST
    x = jax.lax.conv_general_dilated(x_nchw, params["w_rgb"], (1, 1), "SAME",
                                     dimension_numbers=dn, precision=hi)
    x = lrelu(x + params["b_rgb"][None, :, None, None])
    x = jax.lax.conv_general_dilated(x, params["w_c1"], (1, 1), "SAME",
                                     dimension_numbers=dn, precision=hi)
    x = lrelu(x + params["b_c1"][None, :, None, None])
    x = jax.lax.conv_general_dilated(x, params["w_c2"], (1, 1), "SAME",
                                     dimension_numbers=dn, precision=hi)
    x = lrelu(x + params["b_c2"][None, :, None, None])
    B, C, H, W = x.shape
    x = x.reshape(B, C, H // 2, 2, W // 2, 2).mean(axis=(3, 5))
    xf = x.reshape(B, -1)                                        # NCHW flatten (c,h,w)
    mu = jnp.dot(xf, params["w_mu"].T, precision=hi) + params["b_mu"]
    ls = jnp.dot(xf, params["w_ls"].T, precision=hi) + params["b_ls"]
    return mu, ls


if __name__ == "__main__":
    latent_dim, channel_num, in_resolution_dim = 32, 3, 16
    key = jax.random.PRNGKey(0)
    kx, kp = jax.random.split(key)
    params = init_params(kp, latent_dim, channel_num, in_resolution_dim)

    # depth == 1: the active branch expects an 8x8 input (D_Block halves it to
    # 4x4, matching flatten_result = 64*4*4 = 1024 for in_resolution_dim=16).
    x = jax.random.normal(kx, (2, channel_num, 8, 8), jnp.float32)

    mu_ref, ls_ref = encoder_reference(params, x)
    fwd = jax.jit(encoder_forward)

    # --- f32 MXU operands: tight check (~50x tighter than before) ---
    prep32 = prepare_params(params, matmul_dtype=jnp.float32)
    mu, log_sigma = fwd(prep32, x)
    jax.block_until_ready((mu, log_sigma))
    assert mu.shape == (2, latent_dim) and log_sigma.shape == (2, latent_dim)
    np.testing.assert_allclose(np.asarray(mu), np.asarray(mu_ref), rtol=2e-4, atol=2e-4)
    np.testing.assert_allclose(np.asarray(log_sigma), np.asarray(ls_ref), rtol=2e-4, atol=2e-4)

    # --- bf16 MXU operands (review: the first lever when shapes grow) ---
    prep16 = prepare_params(params, matmul_dtype=jnp.bfloat16)
    mu16, ls16 = fwd(prep16, x)
    jax.block_until_ready((mu16, ls16))
    np.testing.assert_allclose(np.asarray(mu16), np.asarray(mu_ref), rtol=5e-2, atol=5e-3)
    np.testing.assert_allclose(np.asarray(ls16), np.asarray(ls_ref), rtol=5e-2, atol=5e-3)

    print("KERNEL_OK")
</pallas_src>

<mosaic_0001>
module attributes {stable_mosaic.version = 11 : i64} {
  func.func @_encoder_fused_kernel(%arg0: i32, %arg1: memref<200x3xf32, #tpu.memory_space<vmem>>, %arg2: memref<200x32xf32, #tpu.memory_space<vmem>>, %arg3: memref<200x64xf32, #tpu.memory_space<vmem>>, %arg4: memref<3x32xf32, #tpu.memory_space<vmem>>, %arg5: memref<1x32xf32, #tpu.memory_space<vmem>>, %arg6: memref<9x32x64xf32, #tpu.memory_space<vmem>>, %arg7: memref<1x64xf32, #tpu.memory_space<vmem>>, %arg8: memref<9x64x64xf32, #tpu.memory_space<vmem>>, %arg9: memref<1x64xf32, #tpu.memory_space<vmem>>, %arg10: memref<32x200xf32, #tpu.memory_space<vmem>>, %arg11: memref<32x64xf32, #tpu.memory_space<vmem>>, %arg12: memref<232x32xf32, #tpu.memory_space<vmem>>, %arg13: memref<232x64xf32, #tpu.memory_space<vmem>>) attributes {dimension_semantics = [#tpu.dimension_semantics<arbitrary>], iteration_bounds = array<i64: 1>, scalar_prefetch = 0 : i64, scratch_operands = 2 : i64, tpu.core_type = #tpu.core_type<tc>, window_params = [{pipeline_mode = #tpu.pipeline_mode<synchronous>, transform_indices = @transform_0, window_bounds = array<i64: 200, 3>}, {pipeline_mode = #tpu.pipeline_mode<synchronous>, transform_indices = @transform_1, window_bounds = array<i64: 200, 32>}, {pipeline_mode = #tpu.pipeline_mode<synchronous>, transform_indices = @transform_2, window_bounds = array<i64: 200, 64>}, {pipeline_mode = #tpu.pipeline_mode<synchronous>, transform_indices = @transform_3, window_bounds = array<i64: 3, 32>}, {pipeline_mode = #tpu.pipeline_mode<synchronous>, transform_indices = @transform_4, window_bounds = array<i64: 1, 32>}, {pipeline_mode = #tpu.pipeline_mode<synchronous>, transform_indices = @transform_5, window_bounds = array<i64: 9, 32, 64>}, {pipeline_mode = #tpu.pipeline_mode<synchronous>, transform_indices = @transform_6, window_bounds = array<i64: 1, 64>}, {pipeline_mode = #tpu.pipeline_mode<synchronous>, transform_indices = @transform_7, window_bounds = array<i64: 9, 64, 64>}, {pipeline_mode = #tpu.pipeline_mode<synchronous>, transform_indices = @transform_8, window_bounds = array<i64: 1, 64>}, {pipeline_mode = #tpu.pipeline_mode<synchronous>, transform_indices = @transform_9, window_bounds = array<i64: 32, 200>}, {pipeline_mode = #tpu.pipeline_mode<synchronous>, transform_indices = @transform_10, window_bounds = array<i64: 32, 64>}]} {
    %cst = arith.constant 0.000000e+00 : f32
    %0 = vector.broadcast %cst : f32 to vector<16x32xf32>
    %c0 = arith.constant 0 : index
    %c0_0 = arith.constant 0 : index
    %1 = vector.load %arg12[%c0, %c0_0] : memref<232x32xf32, #tpu.memory_space<vmem>>, vector<16x32xf32>
    tpu.vector_store %arg12[%c0, %c0_0], %0 {strides = array<i32>} : memref<232x32xf32, #tpu.memory_space<vmem>>, vector<16x32xf32>,
    %cst_1 = arith.constant 0.000000e+00 : f32
    %2 = vector.broadcast %cst_1 : f32 to vector<16x32xf32>
    %c216 = arith.constant 216 : index
    %c0_2 = arith.constant 0 : index
    %3 = vector.load %arg12[%c216, %c0_2] : memref<232x32xf32, #tpu.memory_space<vmem>>, vector<16x32xf32>
    tpu.vector_store %arg12[%c216, %c0_2], %2 {strides = array<i32>} : memref<232x32xf32, #tpu.memory_space<vmem>>, vector<16x32xf32>,
    %cst_3 = arith.constant 0.000000e+00 : f32
    %4 = vector.broadcast %cst_3 : f32 to vector<16x64xf32>
    %c0_4 = arith.constant 0 : index
    %c0_5 = arith.constant 0 : index
    %5 = vector.load %arg13[%c0_4, %c0_5] : memref<232x64xf32, #tpu.memory_space<vmem>>, vector<16x64xf32>
    tpu.vector_store %arg13[%c0_4, %c0_5], %4 {strides = array<i32>} : memref<232x64xf32, #tpu.memory_space<vmem>>, vector<16x64xf32>,
    %cst_6 = arith.constant 0.000000e+00 : f32
    %6 = vector.broadcast %cst_6 : f32 to vector<16x64xf32>
    %c216_7 = arith.constant 216 : index
    %c0_8 = arith.constant 0 : index
    %7 = vector.load %arg13[%c216_7, %c0_8] : memref<232x64xf32, #tpu.memory_space<vmem>>, vector<16x64xf32>
    tpu.vector_store %arg13[%c216_7, %c0_8], %6 {strides = array<i32>} : memref<232x64xf32, #tpu.memory_space<vmem>>, vector<16x64xf32>,
    %c0_9 = arith.constant 0 : index
    %c0_10 = arith.constant 0 : index
    %8 = vector.load %arg2[%c0_9, %c0_10] : memref<200x32xf32, #tpu.memory_space<vmem>>, vector<200x32xf32>
    %c0_11 = arith.constant 0 : index
    %c0_12 = arith.constant 0 : index
    %9 = vector.load %arg3[%c0_11, %c0_12] : memref<200x64xf32, #tpu.memory_space<vmem>>, vector<200x64xf32>
    %c0_13 = arith.constant 0 : index
    %c0_14 = arith.constant 0 : index
    %10 = vector.load %arg1[%c0_13, %c0_14] : memref<200x3xf32, #tpu.memory_space<vmem>>, vector<200x3xf32>
    %c0_15 = arith.constant 0 : index
    %c0_16 = arith.constant 0 : index
    %11 = vector.load %arg4[%c0_15, %c0_16] : memref<3x32xf32, #tpu.memory_space<vmem>>, vector<3x32xf32>
    %cst_17 = arith.constant dense<0.000000e+00> : vector<200x32xf32>
    %12 = tpu.matmul %10, %11, %cst_17 {dimension_numbers = #tpu.dot_dimension_numbers<[1], [0], [0], [1], [0, 0, 1, 1], [], []>} : vector<200x3xf32>, vector<3x32xf32>, vector<200x32xf32> -> vector<200x32xf32>
    %c0_18 = arith.constant 0 : index
    %c0_19 = arith.constant 0 : index
    %13 = vector.load %arg5[%c0_18, %c0_19] : memref<1x32xf32, #tpu.memory_space<vmem>>, vector<1x32xf32>
    %14 = vector.broadcast %13 : vector<1x32xf32> to vector<200x32xf32>
    %15 = arith.addf %12, %14 : vector<200x32xf32>
    %cst_20 = arith.constant 0.000000e+00 : f32
    %16 = vector.broadcast %cst_20 : f32 to vector<200x32xf32>
    %17 = arith.cmpf ogt, %15, %16 : vector<200x32xf32>
    %cst_21 = arith.constant 2.000000e-01 : f32
    %18 = vector.broadcast %cst_21 : f32 to vector<200x32xf32>
    %19 = arith.mulf %18, %15 : vector<200x32xf32>
    %20 = arith.select %17, %15, %19 : vector<200x32xi1>, vector<200x32xf32>
    %21 = arith.mulf %20, %8 : vector<200x32xf32>
    %c16 = arith.constant 16 : index
    %c0_22 = arith.constant 0 : index
    %22 = vector.load %arg12[%c16, %c0_22] : memref<232x32xf32, #tpu.memory_space<vmem>>, vector<200x32xf32>
    tpu.vector_store %arg12[%c16, %c0_22], %21 {strides = array<i32>} : memref<232x32xf32, #tpu.memory_space<vmem>>, vector<200x32xf32>,
    %c5 = arith.constant 5 : index
    %c0_23 = arith.constant 0 : index
    %23 = vector.load %arg12[%c5, %c0_23] : memref<232x32xf32, #tpu.memory_space<vmem>>, vector<200x32xf32>
    %c0_24 = arith.constant 0 : index
    %c0_25 = arith.constant 0 : index
    %c0_26 = arith.constant 0 : index
    %24 = vector.load %arg6[%c0_24, %c0_25, %c0_26] : memref<9x32x64xf32, #tpu.memory_space<vmem>>, vector<1x32x64xf32>
    %25 = vector.shape_cast %24 : vector<1x32x64xf32> to vector<32x64xf32>
    %cst_27 = arith.constant dense<0.000000e+00> : vector<200x64xf32>
    %26 = tpu.matmul %23, %25, %cst_27 {dimension_numbers = #tpu.dot_dimension_numbers<[1], [0], [0], [1], [0, 0, 1, 1], [], []>} : vector<200x32xf32>, vector<32x64xf32>, vector<200x64xf32> -> vector<200x64xf32>
    %c6 = arith.constant 6 : index
    %c0_28 = arith.constant 0 : index
    %27 = vector.load %arg12[%c6, %c0_28] : memref<232x32xf32, #tpu.memory_space<vmem>>, vector<200x32xf32>
    %c1 = arith.constant 1 : index
    %c0_29 = arith.constant 0 : index
    %c0_30 = arith.constant 0 : index
    %28 = vector.load %arg6[%c1, %c0_29, %c0_30] : memref<9x32x64xf32, #tpu.memory_space<vmem>>, vector<1x32x64xf32>
    %29 = vector.shape_cast %28 : vector<1x32x64xf32> to vector<32x64xf32>
    %cst_31 = arith.constant dense<0.000000e+00> : vector<200x64xf32>
    %30 = tpu.matmul %27, %29, %cst_31 {dimension_numbers = #tpu.dot_dimension_numbers<[1], [0], [0], [1], [0, 0, 1, 1], [], []>} : vector<200x32xf32>, vector<32x64xf32>, vector<200x64xf32> -> vector<200x64xf32>
    %31 = arith.addf %26, %30 : vector<200x64xf32>
    %c7 = arith.constant 7 : index
    %c0_32 = arith.constant 0 : index
    %32 = vector.load %arg12[%c7, %c0_32] : memref<232x32xf32, #tpu.memory_space<vmem>>, vector<200x32xf32>
    %c2 = arith.constant 2 : index
    %c0_33 = arith.constant 0 : index
    %c0_34 = arith.constant 0 : index
    %33 = vector.load %arg6[%c2, %c0_33, %c0_34] : memref<9x32x64xf32, #tpu.memory_space<vmem>>, vector<1x32x64xf32>
    %34 = vector.shape_cast %33 : vector<1x32x64xf32> to vector<32x64xf32>
    %cst_35 = arith.constant dense<0.000000e+00> : vector<200x64xf32>
    %35 = tpu.matmul %32, %34, %cst_35 {dimension_numbers = #tpu.dot_dimension_numbers<[1], [0], [0], [1], [0, 0, 1, 1], [], []>} : vector<200x32xf32>, vector<32x64xf32>, vector<200x64xf32> -> vector<200x64xf32>
    %36 = arith.addf %31, %35 : vector<200x64xf32>
    %c15 = arith.constant 15 : index
    %c0_36 = arith.constant 0 : index
    %37 = vector.load %arg12[%c15, %c0_36] : memref<232x32xf32, #tpu.memory_space<vmem>>, vector<200x32xf32>
    %c3 = arith.constant 3 : index
    %c0_37 = arith.constant 0 : index
    %c0_38 = arith.constant 0 : index
    %38 = vector.load %arg6[%c3, %c0_37, %c0_38] : memref<9x32x64xf32, #tpu.memory_space<vmem>>, vector<1x32x64xf32>
    %39 = vector.shape_cast %38 : vector<1x32x64xf32> to vector<32x64xf32>
    %cst_39 = arith.constant dense<0.000000e+00> : vector<200x64xf32>
    %40 = tpu.matmul %37, %39, %cst_39 {dimension_numbers = #tpu.dot_dimension_numbers<[1], [0], [0], [1], [0, 0, 1, 1], [], []>} : vector<200x32xf32>, vector<32x64xf32>, vector<200x64xf32> -> vector<200x64xf32>
    %41 = arith.addf %36, %40 : vector<200x64xf32>
    %c16_40 = arith.constant 16 : index
    %c0_41 = arith.constant 0 : index
    %42 = vector.load %arg12[%c16_40, %c0_41] : memref<232x32xf32, #tpu.memory_space<vmem>>, vector<200x32xf32>
    %c4 = arith.constant 4 : index
    %c0_42 = arith.constant 0 : index
    %c0_43 = arith.constant 0 : index
    %43 = vector.load %arg6[%c4, %c0_42, %c0_43] : memref<9x32x64xf32, #tpu.memory_space<vmem>>, vector<1x32x64xf32>
    %44 = vector.shape_cast %43 : vector<1x32x64xf32> to vector<32x64xf32>
    %cst_44 = arith.constant dense<0.000000e+00> : vector<200x64xf32>
    %45 = tpu.matmul %42, %44, %cst_44 {dimension_numbers = #tpu.dot_dimension_numbers<[1], [0], [0], [1], [0, 0, 1, 1], [], []>} : vector<200x32xf32>, vector<32x64xf32>, vector<200x64xf32> -> vector<200x64xf32>
    %46 = arith.addf %41, %45 : vector<200x64xf32>
    %c17 = arith.constant 17 : index
    %c0_45 = arith.constant 0 : index
    %47 = vector.load %arg12[%c17, %c0_45] : memref<232x32xf32, #tpu.memory_space<vmem>>, vector<200x32xf32>
    %c5_46 = arith.constant 5 : index
    %c0_47 = arith.constant 0 : index
    %c0_48 = arith.constant 0 : index
    %48 = vector.load %arg6[%c5_46, %c0_47, %c0_48] : memref<9x32x64xf32, #tpu.memory_space<vmem>>, vector<1x32x64xf32>
    %49 = vector.shape_cast %48 : vector<1x32x64xf32> to vector<32x64xf32>
    %cst_49 = arith.constant dense<0.000000e+00> : vector<200x64xf32>
    %50 = tpu.matmul %47, %49, %cst_49 {dimension_numbers = #tpu.dot_dimension_numbers<[1], [0], [0], [1], [0, 0, 1, 1], [], []>} : vector<200x32xf32>, vector<32x64xf32>, vector<200x64xf32> -> vector<200x64xf32>
    %51 = arith.addf %46, %50 : vector<200x64xf32>
    %c25 = arith.constant 25 : index
    %c0_50 = arith.constant 0 : index
    %52 = vector.load %arg12[%c25, %c0_50] : memref<232x32xf32, #tpu.memory_space<vmem>>, vector<200x32xf32>
    %c6_51 = arith.constant 6 : index
    %c0_52 = arith.constant 0 : index
    %c0_53 = arith.constant 0 : index
    %53 = vector.load %arg6[%c6_51, %c0_52, %c0_53] : memref<9x32x64xf32, #tpu.memory_space<vmem>>, vector<1x32x64xf32>
    %54 = vector.shape_cast %53 : vector<1x32x64xf32> to vector<32x64xf32>
    %cst_54 = arith.constant dense<0.000000e+00> : vector<200x64xf32>
    %55 = tpu.matmul %52, %54, %cst_54 {dimension_numbers = #tpu.dot_dimension_numbers<[1], [0], [0], [1], [0, 0, 1, 1], [], []>} : vector<200x32xf32>, vector<32x64xf32>, vector<200x64xf32> -> vector<200x64xf32>
    %56 = arith.addf %51, %55 : vector<200x64xf32>
    %c26 = arith.constant 26 : index
    %c0_55 = arith.constant 0 : index
    %57 = vector.load %arg12[%c26, %c0_55] : memref<232x32xf32, #tpu.memory_space<vmem>>, vector<200x32xf32>
    %c7_56 = arith.constant 7 : index
    %c0_57 = arith.constant 0 : index
    %c0_58 = arith.constant 0 : index
    %58 = vector.load %arg6[%c7_56, %c0_57, %c0_58] : memref<9x32x64xf32, #tpu.memory_space<vmem>>, vector<1x32x64xf32>
    %59 = vector.shape_cast %58 : vector<1x32x64xf32> to vector<32x64xf32>
    %cst_59 = arith.constant dense<0.000000e+00> : vector<200x64xf32>
    %60 = tpu.matmul %57, %59, %cst_59 {dimension_numbers = #tpu.dot_dimension_numbers<[1], [0], [0], [1], [0, 0, 1, 1], [], []>} : vector<200x32xf32>, vector<32x64xf32>, vector<200x64xf32> -> vector<200x64xf32>
    %61 = arith.addf %56, %60 : vector<200x64xf32>
    %c27 = arith.constant 27 : index
    %c0_60 = arith.constant 0 : index
    %62 = vector.load %arg12[%c27, %c0_60] : memref<232x32xf32, #tpu.memory_space<vmem>>, vector<200x32xf32>
    %c8 = arith.constant 8 : index
    %c0_61 = arith.constant 0 : index
    %c0_62 = arith.constant 0 : index
    %63 = vector.load %arg6[%c8, %c0_61, %c0_62] : memref<9x32x64xf32, #tpu.memory_space<vmem>>, vector<1x32x64xf32>
    %64 = vector.shape_cast %63 : vector<1x32x64xf32> to vector<32x64xf32>
    %cst_63 = arith.constant dense<0.000000e+00> : vector<200x64xf32>
    %65 = tpu.matmul %62, %64, %cst_63 {dimension_numbers = #tpu.dot_dimension_numbers<[1], [0], [0], [1], [0, 0, 1, 1], [], []>} : vector<200x32xf32>, vector<32x64xf32>, vector<200x64xf32> -> vector<200x64xf32>
    %66 = arith.addf %61, %65 : vector<200x64xf32>
    %c0_64 = arith.constant 0 : index
    %c0_65 = arith.constant 0 : index
    %67 = vector.load %arg7[%c0_64, %c0_65] : memref<1x64xf32, #tpu.memory_space<vmem>>, vector<1x64xf32>
    %68 = vector.broadcast %67 : vector<1x64xf32> to vector<200x64xf32>
    %69 = arith.addf %66, %68 : vector<200x64xf32>
    %cst_66 = arith.constant 0.000000e+00 : f32
    %70 = vector.broadcast %cst_66 : f32 to vector<200x64xf32>
    %71 = arith.cmpf ogt, %69, %70 : vector<200x64xf32>
    %cst_67 = arith.constant 2.000000e-01 : f32
    %72 = vector.broadcast %cst_67 : f32 to vector<200x64xf32>
    %73 = arith.mulf %72, %69 : vector<200x64xf32>
    %74 = arith.select %71, %69, %73 : vector<200x64xi1>, vector<200x64xf32>
    %75 = arith.mulf %74, %9 : vector<200x64xf32>
    %c16_68 = arith.constant 16 : index
    %c0_69 = arith.constant 0 : index
    %76 = vector.load %arg13[%c16_68, %c0_69] : memref<232x64xf32, #tpu.memory_space<vmem>>, vector<200x64xf32>
    tpu.vector_store %arg13[%c16_68, %c0_69], %75 {strides = array<i32>} : memref<232x64xf32, #tpu.memory_space<vmem>>, vector<200x64xf32>,
    %c5_70 = arith.constant 5 : index
    %c0_71 = arith.constant 0 : index
    %77 = vector.load %arg13[%c5_70, %c0_71] : memref<232x64xf32, #tpu.memory_space<vmem>>, vector<200x64xf32>
    %c0_72 = arith.constant 0 : index
    %c0_73 = arith.constant 0 : index
    %c0_74 = arith.constant 0 : index
    %78 = vector.load %arg8[%c0_72, %c0_73, %c0_74] : memref<9x64x64xf32, #tpu.memory_space<vmem>>, vector<1x64x64xf32>
    %79 = vector.shape_cast %78 : vector<1x64x64xf32> to vector<64x64xf32>
    %cst_75 = arith.constant dense<0.000000e+00> : vector<200x64xf32>
    %80 = tpu.matmul %77, %79, %cst_75 {dimension_numbers = #tpu.dot_dimension_numbers<[1], [0], [0], [1], [0, 0, 1, 1], [], []>} : vector<200x64xf32>, vector<64x64xf32>, vector<200x64xf32> -> vector<200x64xf32>
    %c6_76 = arith.constant 6 : index
    %c0_77 = arith.constant 0 : index
    %81 = vector.load %arg13[%c6_76, %c0_77] : memref<232x64xf32, #tpu.memory_space<vmem>>, vector<200x64xf32>
    %c1_78 = arith.constant 1 : index
    %c0_79 = arith.constant 0 : index
    %c0_80 = arith.constant 0 : index
    %82 = vector.load %arg8[%c1_78, %c0_79, %c0_80] : memref<9x64x64xf32, #tpu.memory_space<vmem>>, vector<1x64x64xf32>
    %83 = vector.shape_cast %82 : vector<1x64x64xf32> to vector<64x64xf32>
    %cst_81 = arith.constant dense<0.000000e+00> : vector<200x64xf32>
    %84 = tpu.matmul %81, %83, %cst_81 {dimension_numbers = #tpu.dot_dimension_numbers<[1], [0], [0], [1], [0, 0, 1, 1], [], []>} : vector<200x64xf32>, vector<64x64xf32>, vector<200x64xf32> -> vector<200x64xf32>
    %85 = arith.addf %80, %84 : vector<200x64xf32>
    %c7_82 = arith.constant 7 : index
    %c0_83 = arith.constant 0 : index
    %86 = vector.load %arg13[%c7_82, %c0_83] : memref<232x64xf32, #tpu.memory_space<vmem>>, vector<200x64xf32>
    %c2_84 = arith.constant 2 : index
    %c0_85 = arith.constant 0 : index
    %c0_86 = arith.constant 0 : index
    %87 = vector.load %arg8[%c2_84, %c0_85, %c0_86] : memref<9x64x64xf32, #tpu.memory_space<vmem>>, vector<1x64x64xf32>
    %88 = vector.shape_cast %87 : vector<1x64x64xf32> to vector<64x64xf32>
    %cst_87 = arith.constant dense<0.000000e+00> : vector<200x64xf32>
    %89 = tpu.matmul %86, %88, %cst_87 {dimension_numbers = #tpu.dot_dimension_numbers<[1], [0], [0], [1], [0, 0, 1, 1], [], []>} : vector<200x64xf32>, vector<64x64xf32>, vector<200x64xf32> -> vector<200x64xf32>
    %90 = arith.addf %85, %89 : vector<200x64xf32>
    %c15_88 = arith.constant 15 : index
    %c0_89 = arith.constant 0 : index
    %91 = vector.load %arg13[%c15_88, %c0_89] : memref<232x64xf32, #tpu.memory_space<vmem>>, vector<200x64xf32>
    %c3_90 = arith.constant 3 : index
    %c0_91 = arith.constant 0 : index
    %c0_92 = arith.constant 0 : index
    %92 = vector.load %arg8[%c3_90, %c0_91, %c0_92] : memref<9x64x64xf32, #tpu.memory_space<vmem>>, vector<1x64x64xf32>
    %93 = vector.shape_cast %92 : vector<1x64x64xf32> to vector<64x64xf32>
    %cst_93 = arith.constant dense<0.000000e+00> : vector<200x64xf32>
    %94 = tpu.matmul %91, %93, %cst_93 {dimension_numbers = #tpu.dot_dimension_numbers<[1], [0], [0], [1], [0, 0, 1, 1], [], []>} : vector<200x64xf32>, vector<64x64xf32>, vector<200x64xf32> -> vector<200x64xf32>
    %95 = arith.addf %90, %94 : vector<200x64xf32>
    %c16_94 = arith.constant 16 : index
    %c0_95 = arith.constant 0 : index
    %96 = vector.load %arg13[%c16_94, %c0_95] : memref<232x64xf32, #tpu.memory_space<vmem>>, vector<200x64xf32>
    %c4_96 = arith.constant 4 : index
    %c0_97 = arith.constant 0 : index
    %c0_98 = arith.constant 0 : index
    %97 = vector.load %arg8[%c4_96, %c0_97, %c0_98] : memref<9x64x64xf32, #tpu.memory_space<vmem>>, vector<1x64x64xf32>
    %98 = vector.shape_cast %97 : vector<1x64x64xf32> to vector<64x64xf32>
    %cst_99 = arith.constant dense<0.000000e+00> : vector<200x64xf32>
    %99 = tpu.matmul %96, %98, %cst_99 {dimension_numbers = #tpu.dot_dimension_numbers<[1], [0], [0], [1], [0, 0, 1, 1], [], []>} : vector<200x64xf32>, vector<64x64xf32>, vector<200x64xf32> -> vector<200x64xf32>
    %100 = arith.addf %95, %99 : vector<200x64xf32>
    %c17_100 = arith.constant 17 : index
    %c0_101 = arith.constant 0 : index
    %101 = vector.load %arg13[%c17_100, %c0_101] : memref<232x64xf32, #tpu.memory_space<vmem>>, vector<200x64xf32>
    %c5_102 = arith.constant 5 : index
    %c0_103 = arith.constant 0 : index
    %c0_104 = arith.constant 0 : index
    %102 = vector.load %arg8[%c5_102, %c0_103, %c0_104] : memref<9x64x64xf32, #tpu.memory_space<vmem>>, vector<1x64x64xf32>
    %103 = vector.shape_cast %102 : vector<1x64x64xf32> to vector<64x64xf32>
    %cst_105 = arith.constant dense<0.000000e+00> : vector<200x64xf32>
    %104 = tpu.matmul %101, %103, %cst_105 {dimension_numbers = #tpu.dot_dimension_numbers<[1], [0], [0], [1], [0, 0, 1, 1], [], []>} : vector<200x64xf32>, vector<64x64xf32>, vector<200x64xf32> -> vector<200x64xf32>
    %105 = arith.addf %100, %104 : vector<200x64xf32>
    %c25_106 = arith.constant 25 : index
    %c0_107 = arith.constant 0 : index
    %106 = vector.load %arg13[%c25_106, %c0_107] : memref<232x64xf32, #tpu.memory_space<vmem>>, vector<200x64xf32>
    %c6_108 = arith.constant 6 : index
    %c0_109 = arith.constant 0 : index
    %c0_110 = arith.constant 0 : index
    %107 = vector.load %arg8[%c6_108, %c0_109, %c0_110] : memref<9x64x64xf32, #tpu.memory_space<vmem>>, vector<1x64x64xf32>
    %108 = vector.shape_cast %107 : vector<1x64x64xf32> to vector<64x64xf32>
    %cst_111 = arith.constant dense<0.000000e+00> : vector<200x64xf32>
    %109 = tpu.matmul %106, %108, %cst_111 {dimension_numbers = #tpu.dot_dimension_numbers<[1], [0], [0], [1], [0, 0, 1, 1], [], []>} : vector<200x64xf32>, vector<64x64xf32>, vector<200x64xf32> -> vector<200x64xf32>
    %110 = arith.addf %105, %109 : vector<200x64xf32>
    %c26_112 = arith.constant 26 : index
    %c0_113 = arith.constant 0 : index
    %111 = vector.load %arg13[%c26_112, %c0_113] : memref<232x64xf32, #tpu.memory_space<vmem>>, vector<200x64xf32>
    %c7_114 = arith.constant 7 : index
    %c0_115 = arith.constant 0 : index
    %c0_116 = arith.constant 0 : index
    %112 = vector.load %arg8[%c7_114, %c0_115, %c0_116] : memref<9x64x64xf32, #tpu.memory_space<vmem>>, vector<1x64x64xf32>
    %113 = vector.shape_cast %112 : vector<1x64x64xf32> to vector<64x64xf32>
    %cst_117 = arith.constant dense<0.000000e+00> : vector<200x64xf32>
    %114 = tpu.matmul %111, %113, %cst_117 {dimension_numbers = #tpu.dot_dimension_numbers<[1], [0], [0], [1], [0, 0, 1, 1], [], []>} : vector<200x64xf32>, vector<64x64xf32>, vector<200x64xf32> -> vector<200x64xf32>
    %115 = arith.addf %110, %114 : vector<200x64xf32>
    %c27_118 = arith.constant 27 : index
    %c0_119 = arith.constant 0 : index
    %116 = vector.load %arg13[%c27_118, %c0_119] : memref<232x64xf32, #tpu.memory_space<vmem>>, vector<200x64xf32>
    %c8_120 = arith.constant 8 : index
    %c0_121 = arith.constant 0 : index
    %c0_122 = arith.constant 0 : index
    %117 = vector.load %arg8[%c8_120, %c0_121, %c0_122] : memref<9x64x64xf32, #tpu.memory_space<vmem>>, vector<1x64x64xf32>
    %118 = vector.shape_cast %117 : vector<1x64x64xf32> to vector<64x64xf32>
    %cst_123 = arith.constant dense<0.000000e+00> : vector<200x64xf32>
    %119 = tpu.matmul %116, %118, %cst_123 {dimension_numbers = #tpu.dot_dimension_numbers<[1], [0], [0], [1], [0, 0, 1, 1], [], []>} : vector<200x64xf32>, vector<64x64xf32>, vector<200x64xf32> -> vector<200x64xf32>
    %120 = arith.addf %115, %119 : vector<200x64xf32>
    %c0_124 = arith.constant 0 : index
    %c0_125 = arith.constant 0 : index
    %121 = vector.load %arg9[%c0_124, %c0_125] : memref<1x64xf32, #tpu.memory_space<vmem>>, vector<1x64xf32>
    %122 = vector.broadcast %121 : vector<1x64xf32> to vector<200x64xf32>
    %123 = arith.addf %120, %122 : vector<200x64xf32>
    %cst_126 = arith.constant 0.000000e+00 : f32
    %124 = vector.broadcast %cst_126 : f32 to vector<200x64xf32>
    %125 = arith.cmpf ogt, %123, %124 : vector<200x64xf32>
    %cst_127 = arith.constant 2.000000e-01 : f32
    %126 = vector.broadcast %cst_127 : f32 to vector<200x64xf32>
    %127 = arith.mulf %126, %123 : vector<200x64xf32>
    %128 = arith.select %125, %123, %127 : vector<200x64xi1>, vector<200x64xf32>
    %129 = arith.mulf %128, %9 : vector<200x64xf32>
    %c0_128 = arith.constant 0 : index
    %c0_129 = arith.constant 0 : index
    %130 = vector.load %arg10[%c0_128, %c0_129] : memref<32x200xf32, #tpu.memory_space<vmem>>, vector<32x200xf32>
    %cst_130 = arith.constant dense<0.000000e+00> : vector<32x64xf32>
    %131 = tpu.matmul %130, %129, %cst_130 {dimension_numbers = #tpu.dot_dimension_numbers<[1], [0], [0], [1], [0, 0, 1, 1], [], []>} : vector<32x200xf32>, vector<200x64xf32>, vector<32x64xf32> -> vector<32x64xf32>
    %c0_131 = arith.constant 0 : index
    %c0_132 = arith.constant 0 : index
    %132 = vector.load %arg11[%c0_131, %c0_132] : memref<32x64xf32, #tpu.memory_space<vmem>>, vector<32x64xf32>
    tpu.vector_store %arg11[%c0_131, %c0_132], %131 {strides = array<i32>} : memref<32x64xf32, #tpu.memory_space<vmem>>, vector<32x64xf32>,
    return
  }
  func.func @transform_0(%arg0: i32) -> (i32, i32) {
    %c0_i32 = arith.constant 0 : i32
    %c0_i32_0 = arith.constant 0 : i32
    %c0_i32_1 = arith.constant 0 : i32
    return %c0_i32, %c0_i32_0 : i32, i32
  }
  func.func @transform_1(%arg0: i32) -> (i32, i32) {
    %c0_i32 = arith.constant 0 : i32
    %c0_i32_0 = arith.constant 0 : i32
    %c0_i32_1 = arith.constant 0 : i32
    return %c0_i32, %c0_i32_0 : i32, i32
  }
  func.func @transform_2(%arg0: i32) -> (i32, i32) {
    %c0_i32 = arith.constant 0 : i32
    %c0_i32_0 = arith.constant 0 : i32
    %c0_i32_1 = arith.constant 0 : i32
    return %c0_i32, %c0_i32_0 : i32, i32
  }
  func.func @transform_3(%arg0: i32) -> (i32, i32) {
    %c0_i32 = arith.constant 0 : i32
    %c0_i32_0 = arith.constant 0 : i32
    %c0_i32_1 = arith.constant 0 : i32
    return %c0_i32, %c0_i32_0 : i32, i32
  }
  func.func @transform_4(%arg0: i32) -> (i32, i32) {
    %c0_i32 = arith.constant 0 : i32
    %c0_i32_0 = arith.constant 0 : i32
    %c0_i32_1 = arith.constant 0 : i32
    return %c0_i32, %c0_i32_0 : i32, i32
  }
  func.func @transform_5(%arg0: i32) -> (i32, i32, i32) {
    %c0_i32 = arith.constant 0 : i32
    %c0_i32_0 = arith.constant 0 : i32
    %c0_i32_1 = arith.constant 0 : i32
    %c0_i32_2 = arith.constant 0 : i32
    return %c0_i32, %c0_i32_0, %c0_i32_1 : i32, i32, i32
  }
  func.func @transform_6(%arg0: i32) -> (i32, i32) {
    %c0_i32 = arith.constant 0 : i32
    %c0_i32_0 = arith.constant 0 : i32
    %c0_i32_1 = arith.constant 0 : i32
    return %c0_i32, %c0_i32_0 : i32, i32
  }
  func.func @transform_7(%arg0: i32) -> (i32, i32, i32) {
    %c0_i32 = arith.constant 0 : i32
    %c0_i32_0 = arith.constant 0 : i32
    %c0_i32_1 = arith.constant 0 : i32
    %c0_i32_2 = arith.constant 0 : i32
    return %c0_i32, %c0_i32_0, %c0_i32_1 : i32, i32, i32
  }
  func.func @transform_8(%arg0: i32) -> (i32, i32) {
    %c0_i32 = arith.constant 0 : i32
    %c0_i32_0 = arith.constant 0 : i32
    %c0_i32_1 = arith.constant 0 : i32
    return %c0_i32, %c0_i32_0 : i32, i32
  }
  func.func @transform_9(%arg0: i32) -> (i32, i32) {
    %c0_i32 = arith.constant 0 : i32
    %c0_i32_0 = arith.constant 0 : i32
    %c0_i32_1 = arith.constant 0 : i32
    return %c0_i32, %c0_i32_0 : i32, i32
  }
  func.func @transform_10(%arg0: i32) -> (i32, i32) {
    %c0_i32 = arith.constant 0 : i32
    %c0_i32_0 = arith.constant 0 : i32
    %c0_i32_1 = arith.constant 0 : i32
    return %c0_i32, %c0_i32_0 : i32, i32
  }
}

</mosaic_0001>

<llo_original>
// kernel: encoder_forward.1
$region0: #{encoder_forward.1}
  #allocation0 [shape = 'u32[]', space=smem, size = 0x4, offset = 0x4, fixed_abs, tag = 'smem constant byte address 0x4 - core index']
  #allocation1 [shape = 'u32[144,128]{1,0:T(1,128)}', space=vmem, size = 0x12000, scoped, tag = 'internal scratch']
  #allocation2 [shape = 'f32[232,32]{1,0:T(8,128)}', space=vmem, size = 0x1d000, scoped, tag = 'scratch operand']
  #allocation3 [shape = 'f32[232,64]{1,0:T(8,128)}', space=vmem, size = 0x1d000, scoped, tag = 'scratch operand']
  %s0 = inlined_call_operand.vmem [shape: f32[200,3], index: 0, kind: input, shape index: {}]
  %s1 = inlined_call_operand.hbm [shape: f32[200,32], index: 1, kind: input, shape index: {}]
  %s2 = inlined_call_operand.vmem [shape: f32[200,64], index: 2, kind: input, shape index: {}]
  %s3 = inlined_call_operand.vmem [shape: f32[3,32], index: 3, kind: input, shape index: {}]
  %s4 = inlined_call_operand.vmem [shape: f32[1,32], index: 4, kind: input, shape index: {}]
  %s5 = inlined_call_operand.vmem [shape: f32[9,32,64], index: 5, kind: input, shape index: {}]
  %s6 = inlined_call_operand.vmem [shape: f32[1,64], index: 6, kind: input, shape index: {}]
  %s7 = inlined_call_operand.hbm [shape: f32[9,64,64], index: 7, kind: input, shape index: {}]
  %s8 = inlined_call_operand.vmem [shape: f32[1,64], index: 8, kind: input, shape index: {}]
  %s9 = inlined_call_operand.vmem [shape: f32[32,200], index: 9, kind: input, shape index: {}]
  %s10 = inlined_call_operand.vmem [shape: f32[32,64], index: 10, kind: output, shape index: {}]
  %s11 = sld [smem:[#allocation0]]
  $region58: #{encoder_forward.1} parent=0
    _
  %s13 = ssub.s32 1, %s11
  %s14 = scalar_select 0, %s13, %s11
  $region1: #{encoder_forward.1} parent=0
    #allocation4 [shape = 'u8[102400]{0}', space=vmem, size = 0x19000, scoped, tag = 'input window, operand 1, single buffered']
    #allocation5 [shape = 's32[1]{0}', space=sflag, size = 0x4, scoped, tag = 'scoped memory for encoder_forward.1']
    #allocation6 [shape = 'u8[294912]{0}', space=vmem, size = 0x48000, scoped, tag = 'input window, operand 7, single buffered']
    #allocation7 [shape = 's32[1]{0}', space=sflag, size = 0x4, scoped, tag = 'scoped memory for encoder_forward.1']
    %15 = vsyncpa [#allocation5], 0
    %16 = vsyncpa [#allocation7], 0
    // Predicated region
    $region2: #{encoder_forward.1} parent=1 // pred_check
      _
    $region3: #{encoder_forward.1} parent=1 // pred_check_branch
      %18 = sbr.rel (0) target = $region5
    $region4: #{encoder_forward.1} parent=1 // pred_region
      _
    $region5: #{encoder_forward.1} parent=1 // pred_fallthru
      _
    // Predicated region
    $region6: #{encoder_forward.1} parent=1 // pred_check
      _
    $region7: #{encoder_forward.1} parent=1 // pred_check_branch
      %20 = sbr.rel (0) target = $region9
    $region8: #{encoder_forward.1} parent=1 // pred_region
      %s22 = ssub.s32 3200, 3200
      %23 = vsyncadd [#allocation5], %s22
      %s24 = sshll.u32 [#allocation4], 4
      %s25 = int_to_ptr.vmem [resolvable:$true] %s24
      %30 = dma.hbm_to_vmem [thread:$0]  %s1, 3200, %s25, [#allocation5], 128, 128, 8
    $region9: #{encoder_forward.1} parent=1 // pred_fallthru
      _
    // Predicated region
    $region10: #{encoder_forward.1} parent=1 // pred_check
      _
    $region11: #{encoder_forward.1} parent=1 // pred_check_branch
      %32 = sbr.rel (0) target = $region13
    $region12: #{encoder_forward.1} parent=1 // pred_region
      _
    $region13: #{encoder_forward.1} parent=1 // pred_fallthru
      _
    // Predicated region
    $region14: #{encoder_forward.1} parent=1 // pred_check
      _
    $region15: #{encoder_forward.1} parent=1 // pred_check_branch
      %34 = sbr.rel (0) target = $region17
    $region16: #{encoder_forward.1} parent=1 // pred_region
      _
    $region17: #{encoder_forward.1} parent=1 // pred_fallthru
      _
    // Predicated region
    $region18: #{encoder_forward.1} parent=1 // pred_check
      _
    $region19: #{encoder_forward.1} parent=1 // pred_check_branch
      %36 = sbr.rel (0) target = $region21
    $region20: #{encoder_forward.1} parent=1 // pred_region
      _
    $region21: #{encoder_forward.1} parent=1 // pred_fallthru
      _
    // Predicated region
    $region22: #{encoder_forward.1} parent=1 // pred_check
      _
    $region23: #{encoder_forward.1} parent=1 // pred_check_branch
      %38 = sbr.rel (0) target = $region25
    $region24: #{encoder_forward.1} parent=1 // pred_region
      _
    $region25: #{encoder_forward.1} parent=1 // pred_fallthru
      _
    // Predicated region
    $region26: #{encoder_forward.1} parent=1 // pred_check
      _
    $region27: #{encoder_forward.1} parent=1 // pred_check_branch
      %40 = sbr.rel (0) target = $region29
    $region28: #{encoder_forward.1} parent=1 // pred_region
      _
    $region29: #{encoder_forward.1} parent=1 // pred_fallthru
      _
    // Predicated region
    $region30: #{encoder_forward.1} parent=1 // pred_check
      _
    $region31: #{encoder_forward.1} parent=1 // pred_check_branch
      %42 = sbr.rel (0) target = $region33
    $region32: #{encoder_forward.1} parent=1 // pred_region
      %s44 = ssub.s32 9216, 9216
      %45 = vsyncadd [#allocation7], %s44
      %s46 = sshll.u32 [#allocation6], 4
      %s47 = int_to_ptr.vmem [resolvable:$true] %s46
      %52 = dma.hbm_to_vmem [thread:$0]  %s7, 9216, %s47, [#allocation7], 128, 128, 8
    $region33: #{encoder_forward.1} parent=1 // pred_fallthru
      _
    // Predicated region
    $region34: #{encoder_forward.1} parent=1 // pred_check
      _
    $region35: #{encoder_forward.1} parent=1 // pred_check_branch
      %54 = sbr.rel (0) target = $region37
    $region36: #{encoder_forward.1} parent=1 // pred_region
      _
    $region37: #{encoder_forward.1} parent=1 // pred_fallthru
      _
    // Predicated region
    $region38: #{encoder_forward.1} parent=1 // pred_check
      _
    $region39: #{encoder_forward.1} parent=1 // pred_check_branch
      %56 = sbr.rel (0) target = $region41
    $region40: #{encoder_forward.1} parent=1 // pred_region
      _
    $region41: #{encoder_forward.1} parent=1 // pred_fallthru
      _
    // Predicated region
    $region42: #{encoder_forward.1} parent=1 // pred_check
      _
    $region43: #{encoder_forward.1} parent=1 // pred_check_branch
      %58 = sbr.rel (0) target = $region45
    $region44: #{encoder_forward.1} parent=1 // pred_region
      %59 = dma.done [#allocation5], 3200
    $region45: #{encoder_forward.1} parent=1 // pred_fallthru
      _
    // Predicated region
    $region46: #{encoder_forward.1} parent=1 // pred_check
      _
    $region47: #{encoder_forward.1} parent=1 // pred_check_branch
      %61 = sbr.rel (0) target = $region49
    $region48: #{encoder_forward.1} parent=1 // pred_region
      %62 = dma.done [#allocation7], 9216
    $region49: #{encoder_forward.1} parent=1 // pred_fallthru
      _
    %vm63 = vcmask 261120
    %64 = vst.msk [vmem:[#allocation2] sm:$0xff] %vm63, 0.0
    %65 = vst.msk [vmem:[#allocation2 + $0x8] sm:$0xff] %vm63, 0.0
    %66 = vst.msk [vmem:[#allocation2 + $0xd8] sm:$0xff] %vm63, 0.0
    %67 = vst.msk [vmem:[#allocation2 + $0xe0] sm:$0xff] %vm63, 0.0
    %vm68 = vcmask 523264
    %69 = vst.msk [vmem:[#allocation3] sm:$0xff] %vm68, 0.0
    %70 = vst.msk [vmem:[#allocation3 + $0x8] sm:$0xff] %vm68, 0.0
    %71 = vst.msk [vmem:[#allocation3 + $0xd8] sm:$0xff] %vm68, 0.0
    %72 = vst.msk [vmem:[#allocation3 + $0xe0] sm:$0xff] %vm68, 0.0
    %v73 = vld [vmem:[#allocation4] sm:$0xff]
    %v74 = vld [vmem:[#allocation4 + $0x8] sm:$0xff]
    %v75 = vld [vmem:[#allocation4 + $0x10] sm:$0xff]
    %v76 = vld [vmem:[#allocation4 + $0x18] sm:$0xff]
    %v77 = vld [vmem:[#allocation4 + $0x20] sm:$0xff]
    %v78 = vld [vmem:[#allocation4 + $0x28] sm:$0xff]
    %v79 = vld [vmem:[#allocation4 + $0x30] sm:$0xff]
    %v80 = vld [vmem:[#allocation4 + $0x38] sm:$0xff]
    %v81 = vld [vmem:[#allocation4 + $0x40] sm:$0xff]
    %v82 = vld [vmem:[#allocation4 + $0x48] sm:$0xff]
    %v83 = vld [vmem:[#allocation4 + $0x50] sm:$0xff]
    %v84 = vld [vmem:[#allocation4 + $0x58] sm:$0xff]
    %v85 = vld [vmem:[#allocation4 + $0x60] sm:$0xff]
    %v86 = vld [vmem:[#allocation4 + $0x68] sm:$0xff]
    %v87 = vld [vmem:[#allocation4 + $0x70] sm:$0xff]
    %v88 = vld [vmem:[#allocation4 + $0x78] sm:$0xff]
    %v89 = vld [vmem:[#allocation4 + $0x80] sm:$0xff]
    %v90 = vld [vmem:[#allocation4 + $0x88] sm:$0xff]
    %v91 = vld [vmem:[#allocation4 + $0x90] sm:$0xff]
    %v92 = vld [vmem:[#allocation4 + $0x98] sm:$0xff]
    %v93 = vld [vmem:[#allocation4 + $0xa0] sm:$0xff]
    %v94 = vld [vmem:[#allocation4 + $0xa8] sm:$0xff]
    %v95 = vld [vmem:[#allocation4 + $0xb0] sm:$0xff]
    %v96 = vld [vmem:[#allocation4 + $0xb8] sm:$0xff]
    %v97 = vld [vmem:[#allocation4 + $0xc0] sm:$0xff]
    %v98 = vld [vmem:[%s2] sm:$0xff]
    %v99 = vld [vmem:[%s2 + $0x8] sm:$0xff]
    %v100 = vld [vmem:[%s2 + $0x10] sm:$0xff]
    %v101 = vld [vmem:[%s2 + $0x18] sm:$0xff]
    %v102 = vld [vmem:[%s2 + $0x20] sm:$0xff]
    %v103 = vld [vmem:[%s2 + $0x28] sm:$0xff]
    %v104 = vld [vmem:[%s2 + $0x30] sm:$0xff]
    %v105 = vld [vmem:[%s2 + $0x38] sm:$0xff]
    %v106 = vld [vmem:[%s2 + $0x40] sm:$0xff]
    %v107 = vld [vmem:[%s2 + $0x48] sm:$0xff]
    %v108 = vld [vmem:[%s2 + $0x50] sm:$0xff]
    %v109 = vld [vmem:[%s2 + $0x58] sm:$0xff]
    %v110 = vld [vmem:[%s2 + $0x60] sm:$0xff]
    %v111 = vld [vmem:[%s2 + $0x68] sm:$0xff]
    %v112 = vld [vmem:[%s2 + $0x70] sm:$0xff]
    %v113 = vld [vmem:[%s2 + $0x78] sm:$0xff]
    %v114 = vld [vmem:[%s2 + $0x80] sm:$0xff]
    %v115 = vld [vmem:[%s2 + $0x88] sm:$0xff]
    %v116 = vld [vmem:[%s2 + $0x90] sm:$0xff]
    %v117 = vld [vmem:[%s2 + $0x98] sm:$0xff]
    %v118 = vld [vmem:[%s2 + $0xa0] sm:$0xff]
    %v119 = vld [vmem:[%s2 + $0xa8] sm:$0xff]
    %v120 = vld [vmem:[%s2 + $0xb0] sm:$0xff]
    %v121 = vld [vmem:[%s2 + $0xb8] sm:$0xff]
    %v122 = vld [vmem:[%s2 + $0xc0] sm:$0xff]
    %v123 = vld [vmem:[%s0] sm:$0xff]
    %v124 = vld [vmem:[%s0 + $0x8] sm:$0xff]
    %v125 = vld [vmem:[%s0 + $0x10] sm:$0xff]
    %v126 = vld [vmem:[%s0 + $0x18] sm:$0xff]
    %v127 = vld [vmem:[%s0 + $0x20] sm:$0xff]
    %v128 = vld [vmem:[%s0 + $0x28] sm:$0xff]
    %v129 = vld [vmem:[%s0 + $0x30] sm:$0xff]
    %v130 = vld [vmem:[%s0 + $0x38] sm:$0xff]
    %v131 = vld [vmem:[%s0 + $0x40] sm:$0xff]
    %v132 = vld [vmem:[%s0 + $0x48] sm:$0xff]
    %v133 = vld [vmem:[%s0 + $0x50] sm:$0xff]
    %v134 = vld [vmem:[%s0 + $0x58] sm:$0xff]
    %v135 = vld [vmem:[%s0 + $0x60] sm:$0xff]
    %v136 = vld [vmem:[%s0 + $0x68] sm:$0xff]
    %v137 = vld [vmem:[%s0 + $0x70] sm:$0xff]
    %v138 = vld [vmem:[%s0 + $0x78] sm:$0xff]
    %v139 = vld [vmem:[%s0 + $0x80] sm:$0xff]
    %v140 = vld [vmem:[%s0 + $0x88] sm:$0xff]
    %v141 = vld [vmem:[%s0 + $0x90] sm:$0xff]
    %v142 = vld [vmem:[%s0 + $0x98] sm:$0xff]
    %v143 = vld [vmem:[%s0 + $0xa0] sm:$0xff]
    %v144 = vld [vmem:[%s0 + $0xa8] sm:$0xff]
    %v145 = vld [vmem:[%s0 + $0xb0] sm:$0xff]
    %v146 = vld [vmem:[%s0 + $0xb8] sm:$0xff]
    %v147 = vld [vmem:[%s0 + $0xc0] sm:$0xff]
    %v148 = vld [vmem:[%s3] sm:$0x7]
    %v149 = vld [vmem:[%s4] sm:$0x1]
    %v151 = vlaneseq
    %v152 = vshrl.u32 %v151, 7
    %v153 = vsub.s32 0, %v152
    %v154 = vrot.slane %v149, %v153
    %vm156 = vcmask 23552
    %v158 = vsel %vm156, %v123, 0
    %v161 = vsel %vm156, %v124, 0
    %v164 = vsel %vm156, %v125, 0
    %v167 = vsel %vm156, %v126, 0
    %v170 = vsel %vm156, %v127, 0
    %v173 = vsel %vm156, %v128, 0
    %v176 = vsel %vm156, %v129, 0
    %v179 = vsel %vm156, %v130, 0
    %v182 = vsel %vm156, %v131, 0
    %v185 = vsel %vm156, %v132, 0
    %v188 = vsel %vm156, %v133, 0
    %v191 = vsel %vm156, %v134, 0
    %v194 = vsel %vm156, %v135, 0
    %v197 = vsel %vm156, %v136, 0
    %v200 = vsel %vm156, %v137, 0
    %v203 = vsel %vm156, %v138, 0
    %v206 = vsel %vm156, %v139, 0
    %v209 = vsel %vm156, %v140, 0
    %v212 = vsel %vm156, %v141, 0
    %v215 = vsel %vm156, %v142, 0
    %v218 = vsel %vm156, %v143, 0
    %v221 = vsel %vm156, %v144, 0
    %v224 = vsel %vm156, %v145, 0
    %v227 = vsel %vm156, %v146, 0
    %v230 = vsel %vm156, %v147, 0
    %vm232 = vcmask 1042432
    %v234 = vsel %vm232, %v148, 0
    %236 = vmatprep.subr.mxu0 0.0
    %237 = vmatpush1.msra.mxu0 0.0
    %238 = vmatprep.subr.mxu0 0.0
    %239 = vmatpush1.msra.mxu0 0.0
    %240 = vmatprep.subr.mxu0 0.0
    %241 = vmatpush1.msra.mxu0 0.0
    %242 = vmatprep.subr.mxu0 0.0
    %243 = vmatpush1.msra.mxu0 0.0
    %244 = vmatprep.subr.mxu0 0.0
    %245 = vmatpush1.msra.mxu0 0.0
    %246 = vmatprep.subr.mxu0 0.0
    %247 = vmatpush1.msra.mxu0 0.0
    %248 = vmatprep.subr.mxu0 0.0
    %249 = vmatpush1.msra.mxu0 0.0
    %250 = vmatprep.subr.mxu0 0.0
    %251 = vmatpush1.msra.mxu0 0.0
    %252 = vmatprep.subr.mxu0 0.0
    %253 = vmatpush1.msra.mxu0 0.0
    %254 = vmatprep.subr.mxu0 0.0
    %255 = vmatpush1.msra.mxu0 0.0
    %256 = vmatprep.subr.mxu0 0.0
    %257 = vmatpush1.msra.mxu0 0.0
    %258 = vmatprep.subr.mxu0 0.0
    %259 = vmatpush1.msra.mxu0 0.0
    %260 = vmatprep.subr.mxu0 0.0
    %261 = vmatpush1.msra.mxu0 0.0
    %262 = vmatprep.subr.mxu0 0.0
    %263 = vmatpush1.msra.mxu0 0.0
    %264 = vmatprep.subr.mxu0 0.0
    %265 = vmatpush1.msra.mxu0 0.0
    %266 = vmatprep.subr.mxu0 0.0
    %267 = vmatpush1.msra.mxu0 %v234
    %268 = vmatprep.subr.mxu0 0.0
    %269 = vmatpush2.msra.mxu0 0.0
    %270 = vmatprep.subr.mxu0 0.0
    %271 = vmatpush2.msra.mxu0 0.0
    %272 = vmatprep.subr.mxu0 0.0
    %273 = vmatpush2.msra.mxu0 0.0
    %274 = vmatprep.subr.mxu0 0.0
    %275 = vmatpush2.msra.mxu0 0.0
    %276 = vmatprep.subr.mxu0 0.0
    %277 = vmatpush2.msra.mxu0 0.0
    %278 = vmatprep.subr.mxu0 0.0
    %279 = vmatpush2.msra.mxu0 0.0
    %280 = vmatprep.subr.mxu0 0.0
    %281 = vmatpush2.msra.mxu0 0.0
    %282 = vmatprep.subr.mxu0 0.0
    %283 = vmatpush2.msra.mxu0 0.0
    %284 = vmatprep.subr.mxu0 0.0
    %285 = vmatpush2.msra.mxu0 0.0
    %286 = vmatprep.subr.mxu0 0.0
    %287 = vmatpush2.msra.mxu0 0.0
    %288 = vmatprep.subr.mxu0 0.0
    %289 = vmatpush2.msra.mxu0 0.0
    %290 = vmatprep.subr.mxu0 0.0
    %291 = vmatpush2.msra.mxu0 0.0
    %292 = vmatprep.subr.mxu0 0.0
    %293 = vmatpush2.msra.mxu0 0.0
    %294 = vmatprep.subr.mxu0 0.0
    %295 = vmatpush2.msra.mxu0 0.0
    %296 = vmatprep.subr.mxu0 0.0
    %297 = vmatpush2.msra.mxu0 0.0
    %298 = vmatprep.subr.mxu0 0.0
    %299 = vmatpush2.msra.mxu0 0.0
    %300 = vmatprep.mubr.f32.mxu0 0.0
    %301 = vmatmul.mubr.f32.gmra.mxu0 %v158
    %v302 = vpop.f32.mrf.mxu0
    %v303 = vadd.f32 %v154, %v302
    %v304 = vpop.f32.mrf.mxu0
    %305 = vmatprep.mubr.f32.mxu0 0.0
    %306 = vmatmul.mubr.f32.gmra.mxu0 %v161
    %v307 = vpop.f32.mrf.mxu0
    %v308 = vadd.f32 %v154, %v307
    %v309 = vpop.f32.mrf.mxu0
    %310 = vmatprep.mubr.f32.mxu0 0.0
    %311 = vmatmul.mubr.f32.gmra.mxu0 %v164
    %v312 = vpop.f32.mrf.mxu0
    %v313 = vadd.f32 %v154, %v312
    %v314 = vpop.f32.mrf.mxu0
    %315 = vmatprep.mubr.f32.mxu0 0.0
    %316 = vmatmul.mubr.f32.gmra.mxu0 %v167
    %v317 = vpop.f32.mrf.mxu0
    %v318 = vadd.f32 %v154, %v317
    %v319 = vpop.f32.mrf.mxu0
    %320 = vmatprep.mubr.f32.mxu0 0.0
    %321 = vmatmul.mubr.f32.gmra.mxu0 %v170
    %v322 = vpop.f32.mrf.mxu0
    %v323 = vadd.f32 %v154, %v322
    %v324 = vpop.f32.mrf.mxu0
    %325 = vmatprep.mubr.f32.mxu0 0.0
    %326 = vmatmul.mubr.f32.gmra.mxu0 %v173
    %v327 = vpop.f32.mrf.mxu0
    %v328 = vadd.f32 %v154, %v327
    %v329 = vpop.f32.mrf.mxu0
    %330 = vmatprep.mubr.f32.mxu0 0.0
    %331 = vmatmul.mubr.f32.gmra.mxu0 %v176
    %v332 = vpop.f32.mrf.mxu0
    %v333 = vadd.f32 %v154, %v332
    %v334 = vpop.f32.mrf.mxu0
    %335 = vmatprep.mubr.f32.mxu0 0.0
    %336 = vmatmul.mubr.f32.gmra.mxu0 %v179
    %v337 = vpop.f32.mrf.mxu0
    %v338 = vadd.f32 %v154, %v337
    %v339 = vpop.f32.mrf.mxu0
    %340 = vmatprep.mubr.f32.mxu0 0.0
    %341 = vmatmul.mubr.f32.gmra.mxu0 %v182
    %v342 = vpop.f32.mrf.mxu0
    %v343 = vadd.f32 %v154, %v342
    %v344 = vpop.f32.mrf.mxu0
    %345 = vmatprep.mubr.f32.mxu0 0.0
    %346 = vmatmul.mubr.f32.gmra.mxu0 %v185
    %v347 = vpop.f32.mrf.mxu0
    %v348 = vadd.f32 %v154, %v347
    %v349 = vpop.f32.mrf.mxu0
    %350 = vmatprep.mubr.f32.mxu0 0.0
    %351 = vmatmul.mubr.f32.gmra.mxu0 %v188
    %v352 = vpop.f32.mrf.mxu0
    %v353 = vadd.f32 %v154, %v352
    %v354 = vpop.f32.mrf.mxu0
    %355 = vmatprep.mubr.f32.mxu0 0.0
    %356 = vmatmul.mubr.f32.gmra.mxu0 %v191
    %v357 = vpop.f32.mrf.mxu0
    %v358 = vadd.f32 %v154, %v357
    %v359 = vpop.f32.mrf.mxu0
    %360 = vmatprep.mubr.f32.mxu0 0.0
    %361 = vmatmul.mubr.f32.gmra.mxu0 %v194
    %v362 = vpop.f32.mrf.mxu0
    %v363 = vadd.f32 %v154, %v362
    %v364 = vpop.f32.mrf.mxu0
    %365 = vmatprep.mubr.f32.mxu0 0.0
    %366 = vmatmul.mubr.f32.gmra.mxu0 %v197
    %v367 = vpop.f32.mrf.mxu0
    %v368 = vadd.f32 %v154, %v367
    %v369 = vpop.f32.mrf.mxu0
    %370 = vmatprep.mubr.f32.mxu0 0.0
    %371 = vmatmul.mubr.f32.gmra.mxu0 %v200
    %v372 = vpop.f32.mrf.mxu0
    %v373 = vadd.f32 %v154, %v372
    %v374 = vpop.f32.mrf.mxu0
    %375 = vmatprep.mubr.f32.mxu0 0.0
    %376 = vmatmul.mubr.f32.gmra.mxu0 %v203
    %v377 = vpop.f32.mrf.mxu0
    %v378 = vadd.f32 %v154, %v377
    %v379 = vpop.f32.mrf.mxu0
    %380 = vmatprep.mubr.f32.mxu0 0.0
    %381 = vmatmul.mubr.f32.gmra.mxu0 %v206
    %v382 = vpop.f32.mrf.mxu0
    %v383 = vadd.f32 %v154, %v382
    %v384 = vpop.f32.mrf.mxu0
    %385 = vmatprep.mubr.f32.mxu0 0.0
    %386 = vmatmul.mubr.f32.gmra.mxu0 %v209
    %v387 = vpop.f32.mrf.mxu0
    %v388 = vadd.f32 %v154, %v387
    %v389 = vpop.f32.mrf.mxu0
    %390 = vmatprep.mubr.f32.mxu0 0.0
    %391 = vmatmul.mubr.f32.gmra.mxu0 %v212
    %v392 = vpop.f32.mrf.mxu0
    %v393 = vadd.f32 %v154, %v392
    %v394 = vpop.f32.mrf.mxu0
    %395 = vmatprep.mubr.f32.mxu0 0.0
    %396 = vmatmul.mubr.f32.gmra.mxu0 %v215
    %v397 = vpop.f32.mrf.mxu0
    %v398 = vadd.f32 %v154, %v397
    %v399 = vpop.f32.mrf.mxu0
    %400 = vmatprep.mubr.f32.mxu0 0.0
    %401 = vmatmul.mubr.f32.gmra.mxu0 %v218
    %v402 = vpop.f32.mrf.mxu0
    %v403 = vadd.f32 %v154, %v402
    %v404 = vpop.f32.mrf.mxu0
    %405 = vmatprep.mubr.f32.mxu0 0.0
    %406 = vmatmul.mubr.f32.gmra.mxu0 %v221
    %v407 = vpop.f32.mrf.mxu0
    %v408 = vadd.f32 %v154, %v407
    %v409 = vpop.f32.mrf.mxu0
    %410 = vmatprep.mubr.f32.mxu0 0.0
    %411 = vmatmul.mubr.f32.gmra.mxu0 %v224
    %v412 = vpop.f32.mrf.mxu0
    %v413 = vadd.f32 %v154, %v412
    %v414 = vpop.f32.mrf.mxu0
    %415 = vmatprep.mubr.f32.mxu0 0.0
    %416 = vmatmul.mubr.f32.gmra.mxu0 %v227
    %v417 = vpop.f32.mrf.mxu0
    %v418 = vadd.f32 %v154, %v417
    %v419 = vpop.f32.mrf.mxu0
    %420 = vmatprep.mubr.f32.mxu0 0.0
    %421 = vmatmul.mubr.f32.gmra.mxu0 %v230
    %v422 = vpop.f32.mrf.mxu0
    %v423 = vadd.f32 %v154, %v422
    %v424 = vpop.f32.mrf.mxu0
    %425 = vdwg.mxu0
    %vm426 = vcmp.gt.f32.partialorder %v303, 0.0
    %vm427 = vcmp.gt.f32.partialorder %v308, 0.0
    %vm428 = vcmp.gt.f32.partialorder %v313, 0.0
    %vm429 = vcmp.gt.f32.partialorder %v318, 0.0
    %vm430 = vcmp.gt.f32.partialorder %v323, 0.0
    %vm431 = vcmp.gt.f32.partialorder %v328, 0.0
    %vm432 = vcmp.gt.f32.partialorder %v333, 0.0
    %vm433 = vcmp.gt.f32.partialorder %v338, 0.0
    %vm434 = vcmp.gt.f32.partialorder %v343, 0.0
    %vm435 = vcmp.gt.f32.partialorder %v348, 0.0
    %vm436 = vcmp.gt.f32.partialorder %v353, 0.0
    %vm437 = vcmp.gt.f32.partialorder %v358, 0.0
    %vm438 = vcmp.gt.f32.partialorder %v363, 0.0
    %vm439 = vcmp.gt.f32.partialorder %v368, 0.0
    %vm440 = vcmp.gt.f32.partialorder %v373, 0.0
    %vm441 = vcmp.gt.f32.partialorder %v378, 0.0
    %vm442 = vcmp.gt.f32.partialorder %v383, 0.0
    %vm443 = vcmp.gt.f32.partialorder %v388, 0.0
    %vm444 = vcmp.gt.f32.partialorder %v393, 0.0
    %vm445 = vcmp.gt.f32.partialorder %v398, 0.0
    %vm446 = vcmp.gt.f32.partialorder %v403, 0.0
    %vm447 = vcmp.gt.f32.partialorder %v408, 0.0
    %vm448 = vcmp.gt.f32.partialorder %v413, 0.0
    %vm449 = vcmp.gt.f32.partialorder %v418, 0.0
    %vm450 = vcmp.gt.f32.partialorder %v423, 0.0
    %v451 = vmul.f32 %v303, 0.2
    %v452 = vmul.f32 %v308, 0.2
    %v453 = vmul.f32 %v313, 0.2
    %v454 = vmul.f32 %v318, 0.2
    %v455 = vmul.f32 %v323, 0.2
    %v456 = vmul.f32 %v328, 0.2
    %v457 = vmul.f32 %v333, 0.2
    %v458 = vmul.f32 %v338, 0.2
    %v459 = vmul.f32 %v343, 0.2
    %v460 = vmul.f32 %v348, 0.2
    %v461 = vmul.f32 %v353, 0.2
    %v462 = vmul.f32 %v358, 0.2
    %v463 = vmul.f32 %v363, 0.2
    %v464 = vmul.f32 %v368, 0.2
    %v465 = vmul.f32 %v373, 0.2
    %v466 = vmul.f32 %v378, 0.2
    %v467 = vmul.f32 %v383, 0.2
    %v468 = vmul.f32 %v388, 0.2
    %v469 = vmul.f32 %v393, 0.2
    %v470 = vmul.f32 %v398, 0.2
    %v471 = vmul.f32 %v403, 0.2
    %v472 = vmul.f32 %v408, 0.2
    %v473 = vmul.f32 %v413, 0.2
    %v474 = vmul.f32 %v418, 0.2
    %v475 = vmul.f32 %v423, 0.2
    %v476 = vsel %vm426, %v303, %v451
    %v477 = vsel %vm427, %v308, %v452
    %v478 = vsel %vm428, %v313, %v453
    %v479 = vsel %vm429, %v318, %v454
    %v480 = vsel %vm430, %v323, %v455
    %v481 = vsel %vm431, %v328, %v456
    %v482 = vsel %vm432, %v333, %v457
    %v483 = vsel %vm433, %v338, %v458
    %v484 = vsel %vm434, %v343, %v459
    %v485 = vsel %vm435, %v348, %v460
    %v486 = vsel %vm436, %v353, %v461
    %v487 = vsel %vm437, %v358, %v462
    %v488 = vsel %vm438, %v363, %v463
    %v489 = vsel %vm439, %v368, %v464
    %v490 = vsel %vm440, %v373, %v465
    %v491 = vsel %vm441, %v378, %v466
    %v492 = vsel %vm442, %v383, %v467
    %v493 = vsel %vm443, %v388, %v468
    %v494 = vsel %vm444, %v393, %v469
    %v495 = vsel %vm445, %v398, %v470
    %v496 = vsel %vm446, %v403, %v471
    %v497 = vsel %vm447, %v408, %v472
    %v498 = vsel %vm448, %v413, %v473
    %v499 = vsel %vm449, %v418, %v474
    %v500 = vsel %vm450, %v423, %v475
    %v501 = vmul.f32 %v476, %v73
    %v502 = vmul.f32 %v477, %v74
    %v503 = vmul.f32 %v478, %v75
    %v504 = vmul.f32 %v479, %v76
    %v505 = vmul.f32 %v480, %v77
    %v506 = vmul.f32 %v481, %v78
    %v507 = vmul.f32 %v482, %v79
    %v508 = vmul.f32 %v483, %v80
    %v509 = vmul.f32 %v484, %v81
    %v510 = vmul.f32 %v485, %v82
    %v511 = vmul.f32 %v486, %v83
    %v512 = vmul.f32 %v487, %v84
    %v513 = vmul.f32 %v488, %v85
    %v514 = vmul.f32 %v489, %v86
    %v515 = vmul.f32 %v490, %v87
    %v516 = vmul.f32 %v491, %v88
    %v517 = vmul.f32 %v492, %v89
    %v518 = vmul.f32 %v493, %v90
    %v519 = vmul.f32 %v494, %v91
    %v520 = vmul.f32 %v495, %v92
    %v521 = vmul.f32 %v496, %v93
    %v522 = vmul.f32 %v497, %v94
    %v523 = vmul.f32 %v498, %v95
    %v524 = vmul.f32 %v499, %v96
    %v525 = vmul.f32 %v500, %v97
    %526 = vst.msk [vmem:[#allocation2 + $0x10] sm:$0xff] %vm63, %v501
    %527 = vst.msk [vmem:[#allocation2 + $0x18] sm:$0xff] %vm63, %v502
    %528 = vst.msk [vmem:[#allocation2 + $0x20] sm:$0xff] %vm63, %v503
    %529 = vst.msk [vmem:[#allocation2 + $0x28] sm:$0xff] %vm63, %v504
    %530 = vst.msk [vmem:[#allocation2 + $0x30] sm:$0xff] %vm63, %v505
    %531 = vst.msk [vmem:[#allocation2 + $0x38] sm:$0xff] %vm63, %v506
    %532 = vst.msk [vmem:[#allocation2 + $0x40] sm:$0xff] %vm63, %v507
    %533 = vst.msk [vmem:[#allocation2 + $0x48] sm:$0xff] %vm63, %v508
    %534 = vst.msk [vmem:[#allocation2 + $0x50] sm:$0xff] %vm63, %v509
    %535 = vst.msk [vmem:[#allocation2 + $0x58] sm:$0xff] %vm63, %v510
    %536 = vst.msk [vmem:[#allocation2 + $0x60] sm:$0xff] %vm63, %v511
    %537 = vst.msk [vmem:[#allocation2 + $0x68] sm:$0xff] %vm63, %v512
    %538 = vst.msk [vmem:[#allocation2 + $0x70] sm:$0xff] %vm63, %v513
    %539 = vst.msk [vmem:[#allocation2 + $0x78] sm:$0xff] %vm63, %v514
    %540 = vst.msk [vmem:[#allocation2 + $0x80] sm:$0xff] %vm63, %v515
    %541 = vst.msk [vmem:[#allocation2 + $0x88] sm:$0xff] %vm63, %v516
    %542 = vst.msk [vmem:[#allocation2 + $0x90] sm:$0xff] %vm63, %v517
    %543 = vst.msk [vmem:[#allocation2 + $0x98] sm:$0xff] %vm63, %v518
    %544 = vst.msk [vmem:[#allocation2 + $0xa0] sm:$0xff] %vm63, %v519
    %545 = vst.msk [vmem:[#allocation2 + $0xa8] sm:$0xff] %vm63, %v520
    %546 = vst.msk [vmem:[#allocation2 + $0xb0] sm:$0xff] %vm63, %v521
    %547 = vst.msk [vmem:[#allocation2 + $0xb8] sm:$0xff] %vm63, %v522
    %548 = vst.msk [vmem:[#allocation2 + $0xc0] sm:$0xff] %vm63, %v523
    %549 = vst.msk [vmem:[#allocation2 + $0xc8] sm:$0xff] %vm63, %v524
    %550 = vst.msk [vmem:[#allocation2 + $0xd0] sm:$0xff] %vm63, %v525
    %v551 = vld [vmem:[#allocation2 + $0x5] sm:$0xff]
    %v552 = vld [vmem:[#allocation2 + $0xd] sm:$0xff]
    %v553 = vld [vmem:[#allocation2 + $0x15] sm:$0xff]
    %v554 = vld [vmem:[#allocation2 + $0x1d] sm:$0xff]
    %v555 = vld [vmem:[#allocation2 + $0x25] sm:$0xff]
    %v556 = vld [vmem:[#allocation2 + $0x2d] sm:$0xff]
    %v557 = vld [vmem:[#allocation2 + $0x35] sm:$0xff]
    %v558 = vld [vmem:[#allocation2 + $0x3d] sm:$0xff]
    %v559 = vld [vmem:[#allocation2 + $0x45] sm:$0xff]
    %v560 = vld [vmem:[#allocation2 + $0x4d] sm:$0xff]
    %v561 = vld [vmem:[#allocation2 + $0x55] sm:$0xff]
    %v562 = vld [vmem:[#allocation2 + $0x5d] sm:$0xff]
    %v563 = vld [vmem:[#allocation2 + $0x65] sm:$0xff]
    %v564 = vld [vmem:[#allocation2 + $0x6d] sm:$0xff]
    %v565 = vld [vmem:[#allocation2 + $0x75] sm:$0xff]
    %v566 = vld [vmem:[#allocation2 + $0x7d] sm:$0xff]
    %v567 = vld [vmem:[#allocation2 + $0x85] sm:$0xff]
    %v568 = vld [vmem:[#allocation2 + $0x8d] sm:$0xff]
    %v569 = vld [vmem:[#allocation2 + $0x95] sm:$0xff]
    %v570 = vld [vmem:[#allocation2 + $0x9d] sm:$0xff]
    %v571 = vld [vmem:[#allocation2 + $0xa5] sm:$0xff]
    %v572 = vld [vmem:[#allocation2 + $0xad] sm:$0xff]
    %v573 = vld [vmem:[#allocation2 + $0xb5] sm:$0xff]
    %v574 = vld [vmem:[#allocation2 + $0xbd] sm:$0xff]
    %v575 = vld [vmem:[#allocation2 + $0xc5] sm:$0xff]
    %v576 = vld [vmem:[%s5] sm:$0xff]
    %v577 = vld [vmem:[%s5 + $0x8] sm:$0xff]
    %v578 = vld [vmem:[%s5 + $0x10] sm:$0xff]
    %v579 = vld [vmem:[%s5 + $0x18] sm:$0xff]
    %v580 = vld [vmem:[#allocation2 + $0x6] sm:$0xff]
    %v581 = vld [vmem:[#allocation2 + $0xe] sm:$0xff]
    %v582 = vld [vmem:[#allocation2 + $0x16] sm:$0xff]
    %v583 = vld [vmem:[#allocation2 + $0x1e] sm:$0xff]
    %v584 = vld [vmem:[#allocation2 + $0x26] sm:$0xff]
    %v585 = vld [vmem:[#allocation2 + $0x2e] sm:$0xff]
    %v586 = vld [vmem:[#allocation2 + $0x36] sm:$0xff]
    %v587 = vld [vmem:[#allocation2 + $0x3e] sm:$0xff]
    %v588 = vld [vmem:[#allocation2 + $0x46] sm:$0xff]
    %v589 = vld [vmem:[#allocation2 + $0x4e] sm:$0xff]
    %v590 = vld [vmem:[#allocation2 + $0x56] sm:$0xff]
    %v591 = vld [vmem:[#allocation2 + $0x5e] sm:$0xff]
    %v592 = vld [vmem:[#allocation2 + $0x66] sm:$0xff]
    %v593 = vld [vmem:[#allocation2 + $0x6e] sm:$0xff]
    %v594 = vld [vmem:[#allocation2 + $0x76] sm:$0xff]
    %v595 = vld [vmem:[#allocation2 + $0x7e] sm:$0xff]
    %v596 = vld [vmem:[#allocation2 + $0x86] sm:$0xff]
    %v597 = vld [vmem:[#allocation2 + $0x8e] sm:$0xff]
    %v598 = vld [vmem:[#allocation2 + $0x96] sm:$0xff]
    %v599 = vld [vmem:[#allocation2 + $0x9e] sm:$0xff]
    %v600 = vld [vmem:[#allocation2 + $0xa6] sm:$0xff]
    %v601 = vld [vmem:[#allocation2 + $0xae] sm:$0xff]
    %v602 = vld [vmem:[#allocation2 + $0xb6] sm:$0xff]
    %v603 = vld [vmem:[#allocation2 + $0xbe] sm:$0xff]
    %v604 = vld [vmem:[#allocation2 + $0xc6] sm:$0xff]
    %s605 = scalar_lea.vmem %s5, 32
    %v606 = vld [vmem:[%s605] sm:$0xff]
    %v607 = vld [vmem:[%s605 + $0x8] sm:$0xff]
    %v608 = vld [vmem:[%s605 + $0x10] sm:$0xff]
    %v609 = vld [vmem:[%s605 + $0x18] sm:$0xff]
    %v611 = vsel %vm63, %v580, 0
    %v614 = vsel %vm63, %v581, 0
    %v617 = vsel %vm63, %v582, 0
    %v620 = vsel %vm63, %v583, 0
    %v623 = vsel %vm63, %v584, 0
    %v626 = vsel %vm63, %v585, 0
    %v629 = vsel %vm63, %v586, 0
    %v632 = vsel %vm63, %v587, 0
    %v635 = vsel %vm63, %v588, 0
    %v638 = vsel %vm63, %v589, 0
    %v641 = vsel %vm63, %v590, 0
    %v644 = vsel %vm63, %v591, 0
    %v647 = vsel %vm63, %v592, 0
    %v650 = vsel %vm63, %v593, 0
    %v653 = vsel %vm63, %v594, 0
    %v656 = vsel %vm63, %v595, 0
    %v659 = vsel %vm63, %v596, 0
    %v662 = vsel %vm63, %v597, 0
    %v665 = vsel %vm63, %v598, 0
    %v668 = vsel %vm63, %v599, 0
    %v671 = vsel %vm63, %v600, 0
    %v674 = vsel %vm63, %v601, 0
    %v677 = vsel %vm63, %v602, 0
    %v680 = vsel %vm63, %v603, 0
    %v683 = vsel %vm63, %v604, 0
    %685 = vmatprep.subr.mxu0 0.0
    %686 = vmatpush1.msra.mxu0 0.0
    %687 = vmatprep.subr.mxu0 0.0
    %688 = vmatpush1.msra.mxu0 0.0
    %689 = vmatprep.subr.mxu0 0.0
    %690 = vmatpush1.msra.mxu0 0.0
    %691 = vmatprep.subr.mxu0 0.0
    %692 = vmatpush1.msra.mxu0 0.0
    %693 = vmatprep.subr.mxu0 0.0
    %694 = vmatpush1.msra.mxu0 0.0
    %695 = vmatprep.subr.mxu0 0.0
    %696 = vmatpush1.msra.mxu0 0.0
    %697 = vmatprep.subr.mxu0 0.0
    %698 = vmatpush1.msra.mxu0 0.0
    %699 = vmatprep.subr.mxu0 0.0
    %700 = vmatpush1.msra.mxu0 0.0
    %701 = vmatprep.subr.mxu0 0.0
    %702 = vmatpush1.msra.mxu0 0.0
    %703 = vmatprep.subr.mxu0 0.0
    %704 = vmatpush1.msra.mxu0 0.0
    %705 = vmatprep.subr.mxu0 0.0
    %706 = vmatpush1.msra.mxu0 0.0
    %707 = vmatprep.subr.mxu0 0.0
    %708 = vmatpush1.msra.mxu0 0.0
    %709 = vmatprep.subr.mxu0 0.0
    %710 = vmatpush1.msra.mxu0 %v609
    %711 = vmatprep.subr.mxu0 0.0
    %712 = vmatpush1.msra.mxu0 %v608
    %713 = vmatprep.subr.mxu0 0.0
    %714 = vmatpush1.msra.mxu0 %v607
    %715 = vmatprep.subr.mxu0 0.0
    %716 = vmatpush1.msra.mxu0 %v606
    %717 = vmatprep.subr.mxu0 0.0
    %718 = vmatpush2.msra.mxu0 0.0
    %719 = vmatprep.subr.mxu0 0.0
    %720 = vmatpush2.msra.mxu0 0.0
    %721 = vmatprep.subr.mxu0 0.0
    %722 = vmatpush2.msra.mxu0 0.0
    %723 = vmatprep.subr.mxu0 0.0
    %724 = vmatpush2.msra.mxu0 0.0
    %725 = vmatprep.subr.mxu0 0.0
    %726 = vmatpush2.msra.mxu0 0.0
    %727 = vmatprep.subr.mxu0 0.0
    %728 = vmatpush2.msra.mxu0 0.0
    %729 = vmatprep.subr.mxu0 0.0
    %730 = vmatpush2.msra.mxu0 0.0
    %731 = vmatprep.subr.mxu0 0.0
    %732 = vmatpush2.msra.mxu0 0.0
    %733 = vmatprep.subr.mxu0 0.0
    %734 = vmatpush2.msra.mxu0 0.0
    %735 = vmatprep.subr.mxu0 0.0
    %736 = vmatpush2.msra.mxu0 0.0
    %737 = vmatprep.subr.mxu0 0.0
    %738 = vmatpush2.msra.mxu0 0.0
    %739 = vmatprep.subr.mxu0 0.0
    %740 = vmatpush2.msra.mxu0 0.0
    %741 = vmatprep.subr.mxu0 0.0
    %742 = vmatpush2.msra.mxu0 0.0
    %743 = vmatprep.subr.mxu0 0.0
    %744 = vmatpush2.msra.mxu0 0.0
    %745 = vmatprep.subr.mxu0 0.0
    %746 = vmatpush2.msra.mxu0 0.0
    %747 = vmatprep.subr.mxu0 0.0
    %748 = vmatpush2.msra.mxu0 0.0
    %749 = vmatprep.mubr.f32.mxu0 0.0
    %750 = vmatmul.mubr.f32.gmra.mxu0 %v611
    %v751 = vpop.f32.mrf.mxu0
    %v752 = vadd.f32 0.0, %v751
    %v753 = vpop.f32.mrf.mxu0
    %754 = vmatprep.mubr.f32.mxu0 0.0
    %755 = vmatmul.mubr.f32.gmra.mxu0 %v614
    %v756 = vpop.f32.mrf.mxu0
    %v757 = vadd.f32 0.0, %v756
    %v758 = vpop.f32.mrf.mxu0
    %759 = vmatprep.mubr.f32.mxu0 0.0
    %760 = vmatmul.mubr.f32.gmra.mxu0 %v617
    %v761 = vpop.f32.mrf.mxu0
    %v762 = vadd.f32 0.0, %v761
    %v763 = vpop.f32.mrf.mxu0
    %764 = vmatprep.mubr.f32.mxu0 0.0
    %765 = vmatmul.mubr.f32.gmra.mxu0 %v620
    %v766 = vpop.f32.mrf.mxu0
    %v767 = vadd.f32 0.0, %v766
    %v768 = vpop.f32.mrf.mxu0
    %769 = vmatprep.mubr.f32.mxu0 0.0
    %770 = vmatmul.mubr.f32.gmra.mxu0 %v623
    %v771 = vpop.f32.mrf.mxu0
    %v772 = vadd.f32 0.0, %v771
    %v773 = vpop.f32.mrf.mxu0
    %774 = vmatprep.mubr.f32.mxu0 0.0
    %775 = vmatmul.mubr.f32.gmra.mxu0 %v626
    %v776 = vpop.f32.mrf.mxu0
    %v777 = vadd.f32 0.0, %v776
    %v778 = vpop.f32.mrf.mxu0
    %779 = vmatprep.mubr.f32.mxu0 0.0
    %780 = vmatmul.mubr.f32.gmra.mxu0 %v629
    %v781 = vpop.f32.mrf.mxu0
    %v782 = vadd.f32 0.0, %v781
    %v783 = vpop.f32.mrf.mxu0
    %784 = vmatprep.mubr.f32.mxu0 0.0
    %785 = vmatmul.mubr.f32.gmra.mxu0 %v632
    %v786 = vpop.f32.mrf.mxu0
    %v787 = vadd.f32 0.0, %v786
    %v788 = vpop.f32.mrf.mxu0
    %789 = vmatprep.mubr.f32.mxu0 0.0
    %790 = vmatmul.mubr.f32.gmra.mxu0 %v635
    %v791 = vpop.f32.mrf.mxu0
    %v792 = vadd.f32 0.0, %v791
    %v793 = vpop.f32.mrf.mxu0
    %794 = vmatprep.mubr.f32.mxu0 0.0
    %795 = vmatmul.mubr.f32.gmra.mxu0 %v638
    %v796 = vpop.f32.mrf.mxu0
    %v797 = vadd.f32 0.0, %v796
    %v798 = vpop.f32.mrf.mxu0
    %799 = vmatprep.mubr.f32.mxu0 0.0
    %800 = vmatmul.mubr.f32.gmra.mxu0 %v641
    %v801 = vpop.f32.mrf.mxu0
    %v802 = vadd.f32 0.0, %v801
    %v803 = vpop.f32.mrf.mxu0
    %804 = vmatprep.mubr.f32.mxu0 0.0
    %805 = vmatmul.mubr.f32.gmra.mxu0 %v644
    %v806 = vpop.f32.mrf.mxu0
    %v807 = vadd.f32 0.0, %v806
    %v808 = vpop.f32.mrf.mxu0
    %809 = vmatprep.mubr.f32.mxu0 0.0
    %810 = vmatmul.mubr.f32.gmra.mxu0 %v647
    %v811 = vpop.f32.mrf.mxu0
    %v812 = vadd.f32 0.0, %v811
    %v813 = vpop.f32.mrf.mxu0
    %814 = vmatprep.mubr.f32.mxu0 0.0
    %815 = vmatmul.mubr.f32.gmra.mxu0 %v650
    %v816 = vpop.f32.mrf.mxu0
    %v817 = vadd.f32 0.0, %v816
    %v818 = vpop.f32.mrf.mxu0
    %819 = vmatprep.mubr.f32.mxu0 0.0
    %820 = vmatmul.mubr.f32.gmra.mxu0 %v653
    %v821 = vpop.f32.mrf.mxu0
    %v822 = vadd.f32 0.0, %v821
    %v823 = vpop.f32.mrf.mxu0
    %824 = vmatprep.mubr.f32.mxu0 0.0
    %825 = vmatmul.mubr.f32.gmra.mxu0 %v656
    %v826 = vpop.f32.mrf.mxu0
    %v827 = vadd.f32 0.0, %v826
    %v828 = vpop.f32.mrf.mxu0
    %829 = vmatprep.mubr.f32.mxu0 0.0
    %830 = vmatmul.mubr.f32.gmra.mxu0 %v659
    %v831 = vpop.f32.mrf.mxu0
    %v832 = vadd.f32 0.0, %v831
    %v833 = vpop.f32.mrf.mxu0
    %834 = vmatprep.mubr.f32.mxu0 0.0
    %835 = vmatmul.mubr.f32.gmra.mxu0 %v662
    %v836 = vpop.f32.mrf.mxu0
    %v837 = vadd.f32 0.0, %v836
    %v838 = vpop.f32.mrf.mxu0
    %839 = vmatprep.mubr.f32.mxu0 0.0
    %840 = vmatmul.mubr.f32.gmra.mxu0 %v665
    %v841 = vpop.f32.mrf.mxu0
    %v842 = vadd.f32 0.0, %v841
    %v843 = vpop.f32.mrf.mxu0
    %844 = vmatprep.mubr.f32.mxu0 0.0
    %845 = vmatmul.mubr.f32.gmra.mxu0 %v668
    %v846 = vpop.f32.mrf.mxu0
    %v847 = vadd.f32 0.0, %v846
    %v848 = vpop.f32.mrf.mxu0
    %849 = vmatprep.mubr.f32.mxu0 0.0
    %850 = vmatmul.mubr.f32.gmra.mxu0 %v671
    %v851 = vpop.f32.mrf.mxu0
    %v852 = vadd.f32 0.0, %v851
    %v853 = vpop.f32.mrf.mxu0
    %854 = vmatprep.mubr.f32.mxu0 0.0
    %855 = vmatmul.mubr.f32.gmra.mxu0 %v674
    %v856 = vpop.f32.mrf.mxu0
    %v857 = vadd.f32 0.0, %v856
    %v858 = vpop.f32.mrf.mxu0
    %859 = vmatprep.mubr.f32.mxu0 0.0
    %860 = vmatmul.mubr.f32.gmra.mxu0 %v677
    %v861 = vpop.f32.mrf.mxu0
    %v862 = vadd.f32 0.0, %v861
    %v863 = vpop.f32.mrf.mxu0
    %864 = vmatprep.mubr.f32.mxu0 0.0
    %865 = vmatmul.mubr.f32.gmra.mxu0 %v680
    %v866 = vpop.f32.mrf.mxu0
    %v867 = vadd.f32 0.0, %v866
    %v868 = vpop.f32.mrf.mxu0
    %869 = vmatprep.mubr.f32.mxu0 0.0
    %870 = vmatmul.mubr.f32.gmra.mxu0 %v683
    %v871 = vpop.f32.mrf.mxu0
    %v872 = vadd.f32 0.0, %v871
    %v873 = vpop.f32.mrf.mxu0
    %874 = vdwg.mxu0
    %v876 = vsel %vm63, %v551, 0
    %v879 = vsel %vm63, %v552, 0
    %v882 = vsel %vm63, %v553, 0
    %v885 = vsel %vm63, %v554, 0
    %v888 = vsel %vm63, %v555, 0
    %v891 = vsel %vm63, %v556, 0
    %v894 = vsel %vm63, %v557, 0
    %v897 = vsel %vm63, %v558, 0
    %v900 = vsel %vm63, %v559, 0
    %v903 = vsel %vm63, %v560, 0
    %v906 = vsel %vm63, %v561, 0
    %v909 = vsel %vm63, %v562, 0
    %v912 = vsel %vm63, %v563, 0
    %v915 = vsel %vm63, %v564, 0
    %v918 = vsel %vm63, %v565, 0
    %v921 = vsel %vm63, %v566, 0
    %v924 = vsel %vm63, %v567, 0
    %v927 = vsel %vm63, %v568, 0
    %v930 = vsel %vm63, %v569, 0
    %v933 = vsel %vm63, %v570, 0
    %v936 = vsel %vm63, %v571, 0
    %v939 = vsel %vm63, %v572, 0
    %v942 = vsel %vm63, %v573, 0
    %v945 = vsel %vm63, %v574, 0
    %v948 = vsel %vm63, %v575, 0
    %950 = vmatprep.subr.mxu0 0.0
    %951 = vmatpush1.msra.mxu0 0.0
    %952 = vmatprep.subr.mxu0 0.0
    %953 = vmatpush1.msra.mxu0 0.0
    %954 = vmatprep.subr.mxu0 0.0
    %955 = vmatpush1.msra.mxu0 0.0
    %956 = vmatprep.subr.mxu0 0.0
    %957 = vmatpush1.msra.mxu0 0.0
    %958 = vmatprep.subr.mxu0 0.0
    %959 = vmatpush1.msra.mxu0 0.0
    %960 = vmatprep.subr.mxu0 0.0
    %961 = vmatpush1.msra.mxu0 0.0
    %962 = vmatprep.subr.mxu0 0.0
    %963 = vmatpush1.msra.mxu0 0.0
    %964 = vmatprep.subr.mxu0 0.0
    %965 = vmatpush1.msra.mxu0 0.0
    %966 = vmatprep.subr.mxu0 0.0
    %967 = vmatpush1.msra.mxu0 0.0
    %968 = vmatprep.subr.mxu0 0.0
    %969 = vmatpush1.msra.mxu0 0.0
    %970 = vmatprep.subr.mxu0 0.0
    %971 = vmatpush1.msra.mxu0 0.0
    %972 = vmatprep.subr.mxu0 0.0
    %973 = vmatpush1.msra.mxu0 0.0
    %974 = vmatprep.subr.mxu0 0.0
    %975 = vmatpush1.msra.mxu0 %v579
    %976 = vmatprep.subr.mxu0 0.0
    %977 = vmatpush1.msra.mxu0 %v578
    %978 = vmatprep.subr.mxu0 0.0
    %979 = vmatpush1.msra.mxu0 %v577
    %980 = vmatprep.subr.mxu0 0.0
    %981 = vmatpush1.msra.mxu0 %v576
    %982 = vmatprep.subr.mxu0 0.0
    %983 = vmatpush2.msra.mxu0 0.0
    %984 = vmatprep.subr.mxu0 0.0
    %985 = vmatpush2.msra.mxu0 0.0
    %986 = vmatprep.subr.mxu0 0.0
    %987 = vmatpush2.msra.mxu0 0.0
    %988 = vmatprep.subr.mxu0 0.0
    %989 = vmatpush2.msra.mxu0 0.0
    %990 = vmatprep.subr.mxu0 0.0
    %991 = vmatpush2.msra.mxu0 0.0
    %992 = vmatprep.subr.mxu0 0.0
    %993 = vmatpush2.msra.mxu0 0.0
    %994 = vmatprep.subr.mxu0 0.0
    %995 = vmatpush2.msra.mxu0 0.0
    %996 = vmatprep.subr.mxu0 0.0
    %997 = vmatpush2.msra.mxu0 0.0
    %998 = vmatprep.subr.mxu0 0.0
    %999 = vmatpush2.msra.mxu0 0.0
    %1000 = vmatprep.subr.mxu0 0.0
    %1001 = vmatpush2.msra.mxu0 0.0
    %1002 = vmatprep.subr.mxu0 0.0
    %1003 = vmatpush2.msra.mxu0 0.0
    %1004 = vmatprep.subr.mxu0 0.0
    %1005 = vmatpush2.msra.mxu0 0.0
    %1006 = vmatprep.subr.mxu0 0.0
    %1007 = vmatpush2.msra.mxu0 0.0
    %1008 = vmatprep.subr.mxu0 0.0
    %1009 = vmatpush2.msra.mxu0 0.0
    %1010 = vmatprep.subr.mxu0 0.0
    %1011 = vmatpush2.msra.mxu0 0.0
    %1012 = vmatprep.subr.mxu0 0.0
    %1013 = vmatpush2.msra.mxu0 0.0
    %1014 = vmatprep.mubr.f32.mxu0 0.0
    %1015 = vmatmul.mubr.f32.gmra.mxu0 %v876
    %v1016 = vpop.f32.mrf.mxu0
    %v1017 = vadd.f32 %v752, %v1016
    %v1018 = vpop.f32.mrf.mxu0
    %1019 = vmatprep.mubr.f32.mxu0 0.0
    %1020 = vmatmul.mubr.f32.gmra.mxu0 %v879
    %v1021 = vpop.f32.mrf.mxu0
    %v1022 = vadd.f32 %v757, %v1021
    %v1023 = vpop.f32.mrf.mxu0
    %1024 = vmatprep.mubr.f32.mxu0 0.0
    %1025 = vmatmul.mubr.f32.gmra.mxu0 %v882
    %v1026 = vpop.f32.mrf.mxu0
    %v1027 = vadd.f32 %v762, %v1026
    %v1028 = vpop.f32.mrf.mxu0
    %1029 = vmatprep.mubr.f32.mxu0 0.0
    %1030 = vmatmul.mubr.f32.gmra.mxu0 %v885
    %v1031 = vpop.f32.mrf.mxu0
    %v1032 = vadd.f32 %v767, %v1031
    %v1033 = vpop.f32.mrf.mxu0
    %1034 = vmatprep.mubr.f32.mxu0 0.0
    %1035 = vmatmul.mubr.f32.gmra.mxu0 %v888
    %v1036 = vpop.f32.mrf.mxu0
    %v1037 = vadd.f32 %v772, %v1036
    %v1038 = vpop.f32.mrf.mxu0
    %1039 = vmatprep.mubr.f32.mxu0 0.0
    %1040 = vmatmul.mubr.f32.gmra.mxu0 %v891
    %v1041 = vpop.f32.mrf.mxu0
    %v1042 = vadd.f32 %v777, %v1041
    %v1043 = vpop.f32.mrf.mxu0
    %1044 = vmatprep.mubr.f32.mxu0 0.0
    %1045 = vmatmul.mubr.f32.gmra.mxu0 %v894
    %v1046 = vpop.f32.mrf.mxu0
    %v1047 = vadd.f32 %v782, %v1046
    %v1048 = vpop.f32.mrf.mxu0
    %1049 = vmatprep.mubr.f32.mxu0 0.0
    %1050 = vmatmul.mubr.f32.gmra.mxu0 %v897
    %v1051 = vpop.f32.mrf.mxu0
    %v1052 = vadd.f32 %v787, %v1051
    %v1053 = vpop.f32.mrf.mxu0
    %1054 = vmatprep.mubr.f32.mxu0 0.0
    %1055 = vmatmul.mubr.f32.gmra.mxu0 %v900
    %v1056 = vpop.f32.mrf.mxu0
    %v1057 = vadd.f32 %v792, %v1056
    %v1058 = vpop.f32.mrf.mxu0
    %1059 = vmatprep.mubr.f32.mxu0 0.0
    %1060 = vmatmul.mubr.f32.gmra.mxu0 %v903
    %v1061 = vpop.f32.mrf.mxu0
    %v1062 = vadd.f32 %v797, %v1061
    %v1063 = vpop.f32.mrf.mxu0
    %1064 = vmatprep.mubr.f32.mxu0 0.0
    %1065 = vmatmul.mubr.f32.gmra.mxu0 %v906
    %v1066 = vpop.f32.mrf.mxu0
    %v1067 = vadd.f32 %v802, %v1066
    %v1068 = vpop.f32.mrf.mxu0
    %1069 = vmatprep.mubr.f32.mxu0 0.0
    %1070 = vmatmul.mubr.f32.gmra.mxu0 %v909
    %v1071 = vpop.f32.mrf.mxu0
    %v1072 = vadd.f32 %v807, %v1071
    %v1073 = vpop.f32.mrf.mxu0
    %1074 = vmatprep.mubr.f32.mxu0 0.0
    %1075 = vmatmul.mubr.f32.gmra.mxu0 %v912
    %v1076 = vpop.f32.mrf.mxu0
    %v1077 = vadd.f32 %v812, %v1076
    %v1078 = vpop.f32.mrf.mxu0
    %1079 = vmatprep.mubr.f32.mxu0 0.0
    %1080 = vmatmul.mubr.f32.gmra.mxu0 %v915
    %v1081 = vpop.f32.mrf.mxu0
    %v1082 = vadd.f32 %v817, %v1081
    %v1083 = vpop.f32.mrf.mxu0
    %1084 = vmatprep.mubr.f32.mxu0 0.0
    %1085 = vmatmul.mubr.f32.gmra.mxu0 %v918
    %v1086 = vpop.f32.mrf.mxu0
    %v1087 = vadd.f32 %v822, %v1086
    %v1088 = vpop.f32.mrf.mxu0
    %1089 = vmatprep.mubr.f32.mxu0 0.0
    %1090 = vmatmul.mubr.f32.gmra.mxu0 %v921
    %v1091 = vpop.f32.mrf.mxu0
    %v1092 = vadd.f32 %v827, %v1091
    %v1093 = vpop.f32.mrf.mxu0
    %1094 = vmatprep.mubr.f32.mxu0 0.0
    %1095 = vmatmul.mubr.f32.gmra.mxu0 %v924
    %v1096 = vpop.f32.mrf.mxu0
    %v1097 = vadd.f32 %v832, %v1096
    %v1098 = vpop.f32.mrf.mxu0
    %1099 = vmatprep.mubr.f32.mxu0 0.0
    %1100 = vmatmul.mubr.f32.gmra.mxu0 %v927
    %v1101 = vpop.f32.mrf.mxu0
    %v1102 = vadd.f32 %v837, %v1101
    %v1103 = vpop.f32.mrf.mxu0
    %1104 = vmatprep.mubr.f32.mxu0 0.0
    %1105 = vmatmul.mubr.f32.gmra.mxu0 %v930
    %v1106 = vpop.f32.mrf.mxu0
    %v1107 = vadd.f32 %v842, %v1106
    %v1108 = vpop.f32.mrf.mxu0
    %1109 = vmatprep.mubr.f32.mxu0 0.0
    %1110 = vmatmul.mubr.f32.gmra.mxu0 %v933
    %v1111 = vpop.f32.mrf.mxu0
    %v1112 = vadd.f32 %v847, %v1111
    %v1113 = vpop.f32.mrf.mxu0
    %1114 = vmatprep.mubr.f32.mxu0 0.0
    %1115 = vmatmul.mubr.f32.gmra.mxu0 %v936
    %v1116 = vpop.f32.mrf.mxu0
    %v1117 = vadd.f32 %v852, %v1116
    %v1118 = vpop.f32.mrf.mxu0
    %1119 = vmatprep.mubr.f32.mxu0 0.0
    %1120 = vmatmul.mubr.f32.gmra.mxu0 %v939
    %v1121 = vpop.f32.mrf.mxu0
    %v1122 = vadd.f32 %v857, %v1121
    %v1123 = vpop.f32.mrf.mxu0
    %1124 = vmatprep.mubr.f32.mxu0 0.0
    %1125 = vmatmul.mubr.f32.gmra.mxu0 %v942
    %v1126 = vpop.f32.mrf.mxu0
    %v1127 = vadd.f32 %v862, %v1126
    %v1128 = vpop.f32.mrf.mxu0
    %1129 = vmatprep.mubr.f32.mxu0 0.0
    %1130 = vmatmul.mubr.f32.gmra.mxu0 %v945
    %v1131 = vpop.f32.mrf.mxu0
    %v1132 = vadd.f32 %v867, %v1131
    %v1133 = vpop.f32.mrf.mxu0
    %1134 = vmatprep.mubr.f32.mxu0 0.0
    %1135 = vmatmul.mubr.f32.gmra.mxu0 %v948
    %v1136 = vpop.f32.mrf.mxu0
    %v1137 = vadd.f32 %v872, %v1136
    %v1138 = vpop.f32.mrf.mxu0
    %1139 = vdwg.mxu0
    %v1140 = vld [vmem:[#allocation2 + $0x7] sm:$0xff]
    %v1141 = vld [vmem:[#allocation2 + $0xf] sm:$0xff]
    %v1142 = vld [vmem:[#allocation2 + $0x17] sm:$0xff]
    %v1143 = vld [vmem:[#allocation2 + $0x1f] sm:$0xff]
    %v1144 = vld [vmem:[#allocation2 + $0x27] sm:$0xff]
    %v1145 = vld [vmem:[#allocation2 + $0x2f] sm:$0xff]
    %v1146 = vld [vmem:[#allocation2 + $0x37] sm:$0xff]
    %v1147 = vld [vmem:[#allocation2 + $0x3f] sm:$0xff]
    %v1148 = vld [vmem:[#allocation2 + $0x47] sm:$0xff]
    %v1149 = vld [vmem:[#allocation2 + $0x4f] sm:$0xff]
    %v1150 = vld [vmem:[#allocation2 + $0x57] sm:$0xff]
    %v1151 = vld [vmem:[#allocation2 + $0x5f] sm:$0xff]
    %v1152 = vld [vmem:[#allocation2 + $0x67] sm:$0xff]
    %v1153 = vld [vmem:[#allocation2 + $0x6f] sm:$0xff]
    %v1154 = vld [vmem:[#allocation2 + $0x77] sm:$0xff]
    %v1155 = vld [vmem:[#allocation2 + $0x7f] sm:$0xff]
    %v1156 = vld [vmem:[#allocation2 + $0x87] sm:$0xff]
    %v1157 = vld [vmem:[#allocation2 + $0x8f] sm:$0xff]
    %v1158 = vld [vmem:[#allocation2 + $0x97] sm:$0xff]
    %v1159 = vld [vmem:[#allocation2 + $0x9f] sm:$0xff]
    %v1160 = vld [vmem:[#allocation2 + $0xa7] sm:$0xff]
    %v1161 = vld [vmem:[#allocation2 + $0xaf] sm:$0xff]
    %v1162 = vld [vmem:[#allocation2 + $0xb7] sm:$0xff]
    %v1163 = vld [vmem:[#allocation2 + $0xbf] sm:$0xff]
    %v1164 = vld [vmem:[#allocation2 + $0xc7] sm:$0xff]
    %s1165 = scalar_lea.vmem %s5, 64
    %v1166 = vld [vmem:[%s1165] sm:$0xff]
    %v1167 = vld [vmem:[%s1165 + $0x8] sm:$0xff]
    %v1168 = vld [vmem:[%s1165 + $0x10] sm:$0xff]
    %v1169 = vld [vmem:[%s1165 + $0x18] sm:$0xff]
    %v1171 = vsel %vm63, %v1140, 0
    %v1174 = vsel %vm63, %v1141, 0
    %v1177 = vsel %vm63, %v1142, 0
    %v1180 = vsel %vm63, %v1143, 0
    %v1183 = vsel %vm63, %v1144, 0
    %v1186 = vsel %vm63, %v1145, 0
    %v1189 = vsel %vm63, %v1146, 0
    %v1192 = vsel %vm63, %v1147, 0
    %v1195 = vsel %vm63, %v1148, 0
    %v1198 = vsel %vm63, %v1149, 0
    %v1201 = vsel %vm63, %v1150, 0
    %v1204 = vsel %vm63, %v1151, 0
    %v1207 = vsel %vm63, %v1152, 0
    %v1210 = vsel %vm63, %v1153, 0
    %v1213 = vsel %vm63, %v1154, 0
    %v1216 = vsel %vm63, %v1155, 0
    %v1219 = vsel %vm63, %v1156, 0
    %v1222 = vsel %vm63, %v1157, 0
    %v1225 = vsel %vm63, %v1158, 0
    %v1228 = vsel %vm63, %v1159, 0
    %v1231 = vsel %vm63, %v1160, 0
    %v1234 = vsel %vm63, %v1161, 0
    %v1237 = vsel %vm63, %v1162, 0
    %v1240 = vsel %vm63, %v1163, 0
    %v1243 = vsel %vm63, %v1164, 0
    %1245 = vmatprep.subr.mxu0 0.0
    %1246 = vmatpush1.msra.mxu0 0.0
    %1247 = vmatprep.subr.mxu0 0.0
    %1248 = vmatpush1.msra.mxu0 0.0
    %1249 = vmatprep.subr.mxu0 0.0
    %1250 = vmatpush1.msra.mxu0 0.0
    %1251 = vmatprep.subr.mxu0 0.0
    %1252 = vmatpush1.msra.mxu0 0.0
    %1253 = vmatprep.subr.mxu0 0.0
    %1254 = vmatpush1.msra.mxu0 0.0
    %1255 = vmatprep.subr.mxu0 0.0
    %1256 = vmatpush1.msra.mxu0 0.0
    %1257 = vmatprep.subr.mxu0 0.0
    %1258 = vmatpush1.msra.mxu0 0.0
    %1259 = vmatprep.subr.mxu0 0.0
    %1260 = vmatpush1.msra.mxu0 0.0
    %1261 = vmatprep.subr.mxu0 0.0
    %1262 = vmatpush1.msra.mxu0 0.0
    %1263 = vmatprep.subr.mxu0 0.0
    %1264 = vmatpush1.msra.mxu0 0.0
    %1265 = vmatprep.subr.mxu0 0.0
    %1266 = vmatpush1.msra.mxu0 0.0
    %1267 = vmatprep.subr.mxu0 0.0
    %1268 = vmatpush1.msra.mxu0 0.0
    %1269 = vmatprep.subr.mxu0 0.0
    %1270 = vmatpush1.msra.mxu0 %v1169
    %1271 = vmatprep.subr.mxu0 0.0
    %1272 = vmatpush1.msra.mxu0 %v1168
    %1273 = vmatprep.subr.mxu0 0.0
    %1274 = vmatpush1.msra.mxu0 %v1167
    %1275 = vmatprep.subr.mxu0 0.0
    %1276 = vmatpush1.msra.mxu0 %v1166
    %1277 = vmatprep.subr.mxu0 0.0
    %1278 = vmatpush2.msra.mxu0 0.0
    %1279 = vmatprep.subr.mxu0 0.0
    %1280 = vmatpush2.msra.mxu0 0.0
    %1281 = vmatprep.subr.mxu0 0.0
    %1282 = vmatpush2.msra.mxu0 0.0
    %1283 = vmatprep.subr.mxu0 0.0
    %1284 = vmatpush2.msra.mxu0 0.0
    %1285 = vmatprep.subr.mxu0 0.0
    %1286 = vmatpush2.msra.mxu0 0.0
    %1287 = vmatprep.subr.mxu0 0.0
    %1288 = vmatpush2.msra.mxu0 0.0
    %1289 = vmatprep.subr.mxu0 0.0
    %1290 = vmatpush2.msra.mxu0 0.0
    %1291 = vmatprep.subr.mxu0 0.0
    %1292 = vmatpush2.msra.mxu0 0.0
    %1293 = vmatprep.subr.mxu0 0.0
    %1294 = vmatpush2.msra.mxu0 0.0
    %1295 = vmatprep.subr.mxu0 0.0
    %1296 = vmatpush2.msra.mxu0 0.0
    %1297 = vmatprep.subr.mxu0 0.0
    %1298 = vmatpush2.msra.mxu0 0.0
    %1299 = vmatprep.subr.mxu0 0.0
    %1300 = vmatpush2.msra.mxu0 0.0
    %1301 = vmatprep.subr.mxu0 0.0
    %1302 = vmatpush2.msra.mxu0 0.0
    %1303 = vmatprep.subr.mxu0 0.0
    %1304 = vmatpush2.msra.mxu0 0.0
    %1305 = vmatprep.subr.mxu0 0.0
    %1306 = vmatpush2.msra.mxu0 0.0
    %1307 = vmatprep.subr.mxu0 0.0
    %1308 = vmatpush2.msra.mxu0 0.0
    %1309 = vmatprep.mubr.f32.mxu0 0.0
    %1310 = vmatmul.mubr.f32.gmra.mxu0 %v1171
    %v1311 = vpop.f32.mrf.mxu0
    %v1312 = vadd.f32 0.0, %v1311
    %v1313 = vpop.f32.mrf.mxu0
    %1314 = vmatprep.mubr.f32.mxu0 0.0
    %1315 = vmatmul.mubr.f32.gmra.mxu0 %v1174
    %v1316 = vpop.f32.mrf.mxu0
    %v1317 = vadd.f32 0.0, %v1316
    %v1318 = vpop.f32.mrf.mxu0
    %1319 = vmatprep.mubr.f32.mxu0 0.0
    %1320 = vmatmul.mubr.f32.gmra.mxu0 %v1177
    %v1321 = vpop.f32.mrf.mxu0
    %v1322 = vadd.f32 0.0, %v1321
    %v1323 = vpop.f32.mrf.mxu0
    %1324 = vmatprep.mubr.f32.mxu0 0.0
    %1325 = vmatmul.mubr.f32.gmra.mxu0 %v1180
    %v1326 = vpop.f32.mrf.mxu0
    %v1327 = vadd.f32 0.0, %v1326
    %v1328 = vpop.f32.mrf.mxu0
    %1329 = vmatprep.mubr.f32.mxu0 0.0
    %1330 = vmatmul.mubr.f32.gmra.mxu0 %v1183
    %v1331 = vpop.f32.mrf.mxu0
    %v1332 = vadd.f32 0.0, %v1331
    %v1333 = vpop.f32.mrf.mxu0
    %1334 = vmatprep.mubr.f32.mxu0 0.0
    %1335 = vmatmul.mubr.f32.gmra.mxu0 %v1186
    %v1336 = vpop.f32.mrf.mxu0
    %v1337 = vadd.f32 0.0, %v1336
    %v1338 = vpop.f32.mrf.mxu0
    %1339 = vmatprep.mubr.f32.mxu0 0.0
    %1340 = vmatmul.mubr.f32.gmra.mxu0 %v1189
    %v1341 = vpop.f32.mrf.mxu0
    %v1342 = vadd.f32 0.0, %v1341
    %v1343 = vpop.f32.mrf.mxu0
    %1344 = vmatprep.mubr.f32.mxu0 0.0
    %1345 = vmatmul.mubr.f32.gmra.mxu0 %v1192
    %v1346 = vpop.f32.mrf.mxu0
    %v1347 = vadd.f32 0.0, %v1346
    %v1348 = vpop.f32.mrf.mxu0
    %1349 = vmatprep.mubr.f32.mxu0 0.0
    %1350 = vmatmul.mubr.f32.gmra.mxu0 %v1195
    %v1351 = vpop.f32.mrf.mxu0
    %v1352 = vadd.f32 0.0, %v1351
    %v1353 = vpop.f32.mrf.mxu0
    %1354 = vmatprep.mubr.f32.mxu0 0.0
    %1355 = vmatmul.mubr.f32.gmra.mxu0 %v1198
    %v1356 = vpop.f32.mrf.mxu0
    %v1357 = vadd.f32 0.0, %v1356
    %v1358 = vpop.f32.mrf.mxu0
    %1359 = vmatprep.mubr.f32.mxu0 0.0
    %1360 = vmatmul.mubr.f32.gmra.mxu0 %v1201
    %v1361 = vpop.f32.mrf.mxu0
    %v1362 = vadd.f32 0.0, %v1361
    %v1363 = vpop.f32.mrf.mxu0
    %1364 = vmatprep.mubr.f32.mxu0 0.0
    %1365 = vmatmul.mubr.f32.gmra.mxu0 %v1204
    %v1366 = vpop.f32.mrf.mxu0
    %v1367 = vadd.f32 0.0, %v1366
    %v1368 = vpop.f32.mrf.mxu0
    %1369 = vmatprep.mubr.f32.mxu0 0.0
    %1370 = vmatmul.mubr.f32.gmra.mxu0 %v1207
    %v1371 = vpop.f32.mrf.mxu0
    %v1372 = vadd.f32 0.0, %v1371
    %v1373 = vpop.f32.mrf.mxu0
    %1374 = vmatprep.mubr.f32.mxu0 0.0
    %1375 = vmatmul.mubr.f32.gmra.mxu0 %v1210
    %v1376 = vpop.f32.mrf.mxu0
    %v1377 = vadd.f32 0.0, %v1376
    %v1378 = vpop.f32.mrf.mxu0
    %1379 = vmatprep.mubr.f32.mxu0 0.0
    %1380 = vmatmul.mubr.f32.gmra.mxu0 %v1213
    %v1381 = vpop.f32.mrf.mxu0
    %v1382 = vadd.f32 0.0, %v1381
    %v1383 = vpop.f32.mrf.mxu0
    %1384 = vmatprep.mubr.f32.mxu0 0.0
    %1385 = vmatmul.mubr.f32.gmra.mxu0 %v1216
    %v1386 = vpop.f32.mrf.mxu0
    %v1387 = vadd.f32 0.0, %v1386
    %v1388 = vpop.f32.mrf.mxu0
    %1389 = vmatprep.mubr.f32.mxu0 0.0
    %1390 = vmatmul.mubr.f32.gmra.mxu0 %v1219
    %v1391 = vpop.f32.mrf.mxu0
    %v1392 = vadd.f32 0.0, %v1391
    %v1393 = vpop.f32.mrf.mxu0
    %1394 = vmatprep.mubr.f32.mxu0 0.0
    %1395 = vmatmul.mubr.f32.gmra.mxu0 %v1222
    %v1396 = vpop.f32.mrf.mxu0
    %v1397 = vadd.f32 0.0, %v1396
    %v1398 = vpop.f32.mrf.mxu0
    %1399 = vmatprep.mubr.f32.mxu0 0.0
    %1400 = vmatmul.mubr.f32.gmra.mxu0 %v1225
    %v1401 = vpop.f32.mrf.mxu0
    %v1402 = vadd.f32 0.0, %v1401
    %v1403 = vpop.f32.mrf.mxu0
    %1404 = vmatprep.mubr.f32.mxu0 0.0
    %1405 = vmatmul.mubr.f32.gmra.mxu0 %v1228
    %v1406 = vpop.f32.mrf.mxu0
    %v1407 = vadd.f32 0.0, %v1406
    %v1408 = vpop.f32.mrf.mxu0
    %1409 = vmatprep.mubr.f32.mxu0 0.0
    %1410 = vmatmul.mubr.f32.gmra.mxu0 %v1231
    %v1411 = vpop.f32.mrf.mxu0
    %v1412 = vadd.f32 0.0, %v1411
    %v1413 = vpop.f32.mrf.mxu0
    %1414 = vmatprep.mubr.f32.mxu0 0.0
    %1415 = vmatmul.mubr.f32.gmra.mxu0 %v1234
    %v1416 = vpop.f32.mrf.mxu0
    %v1417 = vadd.f32 0.0, %v1416
    %v1418 = vpop.f32.mrf.mxu0
    %1419 = vmatprep.mubr.f32.mxu0 0.0
    %1420 = vmatmul.mubr.f32.gmra.mxu0 %v1237
    %v1421 = vpop.f32.mrf.mxu0
    %v1422 = vadd.f32 0.0, %v1421
    %v1423 = vpop.f32.mrf.mxu0
    %1424 = vmatprep.mubr.f32.mxu0 0.0
    %1425 = vmatmul.mubr.f32.gmra.mxu0 %v1240
    %v1426 = vpop.f32.mrf.mxu0
    %v1427 = vadd.f32 0.0, %v1426
    %v1428 = vpop.f32.mrf.mxu0
    %1429 = vmatprep.mubr.f32.mxu0 0.0
    %1430 = vmatmul.mubr.f32.gmra.mxu0 %v1243
    %v1431 = vpop.f32.mrf.mxu0
    %v1432 = vadd.f32 0.0, %v1431
    %v1433 = vpop.f32.mrf.mxu0
    %1434 = vdwg.mxu0
    %v1435 = vadd.f32 %v1017, %v1312
    %v1436 = vadd.f32 %v1022, %v1317
    %v1437 = vadd.f32 %v1027, %v1322
    %v1438 = vadd.f32 %v1032, %v1327
    %v1439 = vadd.f32 %v1037, %v1332
    %v1440 = vadd.f32 %v1042, %v1337
    %v1441 = vadd.f32 %v1047, %v1342
    %v1442 = vadd.f32 %v1052, %v1347
    %v1443 = vadd.f32 %v1057, %v1352
    %v1444 = vadd.f32 %v1062, %v1357
    %v1445 = vadd.f32 %v1067, %v1362
    %v1446 = vadd.f32 %v1072, %v1367
    %v1447 = vadd.f32 %v1077, %v1372
    %v1448 = vadd.f32 %v1082, %v1377
    %v1449 = vadd.f32 %v1087, %v1382
    %v1450 = vadd.f32 %v1092, %v1387
    %v1451 = vadd.f32 %v1097, %v1392
    %v1452 = vadd.f32 %v1102, %v1397
    %v1453 = vadd.f32 %v1107, %v1402
    %v1454 = vadd.f32 %v1112, %v1407
    %v1455 = vadd.f32 %v1117, %v1412
    %v1456 = vadd.f32 %v1122, %v1417
    %v1457 = vadd.f32 %v1127, %v1422
    %v1458 = vadd.f32 %v1132, %v1427
    %v1459 = vadd.f32 %v1137, %v1432
    %v1460 = vld [vmem:[#allocation2 + $0xf] sm:$0xff]
    %v1461 = vld [vmem:[#allocation2 + $0x17] sm:$0xff]
    %v1462 = vld [vmem:[#allocation2 + $0x1f] sm:$0xff]
    %v1463 = vld [vmem:[#allocation2 + $0x27] sm:$0xff]
    %v1464 = vld [vmem:[#allocation2 + $0x2f] sm:$0xff]
    %v1465 = vld [vmem:[#allocation2 + $0x37] sm:$0xff]
    %v1466 = vld [vmem:[#allocation2 + $0x3f] sm:$0xff]
    %v1467 = vld [vmem:[#allocation2 + $0x47] sm:$0xff]
    %v1468 = vld [vmem:[#allocation2 + $0x4f] sm:$0xff]
    %v1469 = vld [vmem:[#allocation2 + $0x57] sm:$0xff]
    %v1470 = vld [vmem:[#allocation2 + $0x5f] sm:$0xff]
    %v1471 = vld [vmem:[#allocation2 + $0x67] sm:$0xff]
    %v1472 = vld [vmem:[#allocation2 + $0x6f] sm:$0xff]
    %v1473 = vld [vmem:[#allocation2 + $0x77] sm:$0xff]
    %v1474 = vld [vmem:[#allocation2 + $0x7f] sm:$0xff]
    %v1475 = vld [vmem:[#allocation2 + $0x87] sm:$0xff]
    %v1476 = vld [vmem:[#allocation2 + $0x8f] sm:$0xff]
    %v1477 = vld [vmem:[#allocation2 + $0x97] sm:$0xff]
    %v1478 = vld [vmem:[#allocation2 + $0x9f] sm:$0xff]
    %v1479 = vld [vmem:[#allocation2 + $0xa7] sm:$0xff]
    %v1480 = vld [vmem:[#allocation2 + $0xaf] sm:$0xff]
    %v1481 = vld [vmem:[#allocation2 + $0xb7] sm:$0xff]
    %v1482 = vld [vmem:[#allocation2 + $0xbf] sm:$0xff]
    %v1483 = vld [vmem:[#allocation2 + $0xc7] sm:$0xff]
    %v1484 = vld [vmem:[#allocation2 + $0xcf] sm:$0xff]
    %s1485 = scalar_lea.vmem %s5, 96
    %v1486 = vld [vmem:[%s1485] sm:$0xff]
    %v1487 = vld [vmem:[%s1485 + $0x8] sm:$0xff]
    %v1488 = vld [vmem:[%s1485 + $0x10] sm:$0xff]
    %v1489 = vld [vmem:[%s1485 + $0x18] sm:$0xff]
    %v1491 = vsel %vm63, %v1460, 0
    %v1494 = vsel %vm63, %v1461, 0
    %v1497 = vsel %vm63, %v1462, 0
    %v1500 = vsel %vm63, %v1463, 0
    %v1503 = vsel %vm63, %v1464, 0
    %v1506 = vsel %vm63, %v1465, 0
    %v1509 = vsel %vm63, %v1466, 0
    %v1512 = vsel %vm63, %v1467, 0
    %v1515 = vsel %vm63, %v1468, 0
    %v1518 = vsel %vm63, %v1469, 0
    %v1521 = vsel %vm63, %v1470, 0
    %v1524 = vsel %vm63, %v1471, 0
    %v1527 = vsel %vm63, %v1472, 0
    %v1530 = vsel %vm63, %v1473, 0
    %v1533 = vsel %vm63, %v1474, 0
    %v1536 = vsel %vm63, %v1475, 0
    %v1539 = vsel %vm63, %v1476, 0
    %v1542 = vsel %vm63, %v1477, 0
    %v1545 = vsel %vm63, %v1478, 0
    %v1548 = vsel %vm63, %v1479, 0
    %v1551 = vsel %vm63, %v1480, 0
    %v1554 = vsel %vm63, %v1481, 0
    %v1557 = vsel %vm63, %v1482, 0
    %v1560 = vsel %vm63, %v1483, 0
    %v1563 = vsel %vm63, %v1484, 0
    %1565 = vmatprep.subr.mxu0 0.0
    %1566 = vmatpush1.msra.mxu0 0.0
    %1567 = vmatprep.subr.mxu0 0.0
    %1568 = vmatpush1.msra.mxu0 0.0
    %1569 = vmatprep.subr.mxu0 0.0
    %1570 = vmatpush1.msra.mxu0 0.0
    %1571 = vmatprep.subr.mxu0 0.0
    %1572 = vmatpush1.msra.mxu0 0.0
    %1573 = vmatprep.subr.mxu0 0.0
    %1574 = vmatpush1.msra.mxu0 0.0
    %1575 = vmatprep.subr.mxu0 0.0
    %1576 = vmatpush1.msra.mxu0 0.0
    %1577 = vmatprep.subr.mxu0 0.0
    %1578 = vmatpush1.msra.mxu0 0.0
    %1579 = vmatprep.subr.mxu0 0.0
    %1580 = vmatpush1.msra.mxu0 0.0
    %1581 = vmatprep.subr.mxu0 0.0
    %1582 = vmatpush1.msra.mxu0 0.0
    %1583 = vmatprep.subr.mxu0 0.0
    %1584 = vmatpush1.msra.mxu0 0.0
    %1585 = vmatprep.subr.mxu0 0.0
    %1586 = vmatpush1.msra.mxu0 0.0
    %1587 = vmatprep.subr.mxu0 0.0
    %1588 = vmatpush1.msra.mxu0 0.0
    %1589 = vmatprep.subr.mxu0 0.0
    %1590 = vmatpush1.msra.mxu0 %v1489
    %1591 = vmatprep.subr.mxu0 0.0
    %1592 = vmatpush1.msra.mxu0 %v1488
    %1593 = vmatprep.subr.mxu0 0.0
    %1594 = vmatpush1.msra.mxu0 %v1487
    %1595 = vmatprep.subr.mxu0 0.0
    %1596 = vmatpush1.msra.mxu0 %v1486
    %1597 = vmatprep.subr.mxu0 0.0
    %1598 = vmatpush2.msra.mxu0 0.0
    %1599 = vmatprep.subr.mxu0 0.0
    %1600 = vmatpush2.msra.mxu0 0.0
    %1601 = vmatprep.subr.mxu0 0.0
    %1602 = vmatpush2.msra.mxu0 0.0
    %1603 = vmatprep.subr.mxu0 0.0
    %1604 = vmatpush2.msra.mxu0 0.0
    %1605 = vmatprep.subr.mxu0 0.0
    %1606 = vmatpush2.msra.mxu0 0.0
    %1607 = vmatprep.subr.mxu0 0.0
    %1608 = vmatpush2.msra.mxu0 0.0
    %1609 = vmatprep.subr.mxu0 0.0
    %1610 = vmatpush2.msra.mxu0 0.0
    %1611 = vmatprep.subr.mxu0 0.0
    %1612 = vmatpush2.msra.mxu0 0.0
    %1613 = vmatprep.subr.mxu0 0.0
    %1614 = vmatpush2.msra.mxu0 0.0
    %1615 = vmatprep.subr.mxu0 0.0
    %1616 = vmatpush2.msra.mxu0 0.0
    %1617 = vmatprep.subr.mxu0 0.0
    %1618 = vmatpush2.msra.mxu0 0.0
    %1619 = vmatprep.subr.mxu0 0.0
    %1620 = vmatpush2.msra.mxu0 0.0
    %1621 = vmatprep.subr.mxu0 0.0
    %1622 = vmatpush2.msra.mxu0 0.0
    %1623 = vmatprep.subr.mxu0 0.0
    %1624 = vmatpush2.msra.mxu0 0.0
    %1625 = vmatprep.subr.mxu0 0.0
    %1626 = vmatpush2.msra.mxu0 0.0
    %1627 = vmatprep.subr.mxu0 0.0
    %1628 = vmatpush2.msra.mxu0 0.0
    %1629 = vmatprep.mubr.f32.mxu0 0.0
    %1630 = vmatmul.mubr.f32.gmra.mxu0 %v1491
    %v1631 = vpop.f32.mrf.mxu0
    %v1632 = vadd.f32 0.0, %v1631
    %v1633 = vpop.f32.mrf.mxu0
    %1634 = vmatprep.mubr.f32.mxu0 0.0
    %1635 = vmatmul.mubr.f32.gmra.mxu0 %v1494
    %v1636 = vpop.f32.mrf.mxu0
    %v1637 = vadd.f32 0.0, %v1636
    %v1638 = vpop.f32.mrf.mxu0
    %1639 = vmatprep.mubr.f32.mxu0 0.0
    %1640 = vmatmul.mubr.f32.gmra.mxu0 %v1497
    %v1641 = vpop.f32.mrf.mxu0
    %v1642 = vadd.f32 0.0, %v1641
    %v1643 = vpop.f32.mrf.mxu0
    %1644 = vmatprep.mubr.f32.mxu0 0.0
    %1645 = vmatmul.mubr.f32.gmra.mxu0 %v1500
    %v1646 = vpop.f32.mrf.mxu0
    %v1647 = vadd.f32 0.0, %v1646
    %v1648 = vpop.f32.mrf.mxu0
    %1649 = vmatprep.mubr.f32.mxu0 0.0
    %1650 = vmatmul.mubr.f32.gmra.mxu0 %v1503
    %v1651 = vpop.f32.mrf.mxu0
    %v1652 = vadd.f32 0.0, %v1651
    %v1653 = vpop.f32.mrf.mxu0
    %1654 = vmatprep.mubr.f32.mxu0 0.0
    %1655 = vmatmul.mubr.f32.gmra.mxu0 %v1506
    %v1656 = vpop.f32.mrf.mxu0
    %v1657 = vadd.f32 0.0, %v1656
    %v1658 = vpop.f32.mrf.mxu0
    %1659 = vmatprep.mubr.f32.mxu0 0.0
    %1660 = vmatmul.mubr.f32.gmra.mxu0 %v1509
    %v1661 = vpop.f32.mrf.mxu0
    %v1662 = vadd.f32 0.0, %v1661
    %v1663 = vpop.f32.mrf.mxu0
    %1664 = vmatprep.mubr.f32.mxu0 0.0
    %1665 = vmatmul.mubr.f32.gmra.mxu0 %v1512
    %v1666 = vpop.f32.mrf.mxu0
    %v1667 = vadd.f32 0.0, %v1666
    %v1668 = vpop.f32.mrf.mxu0
    %1669 = vmatprep.mubr.f32.mxu0 0.0
    %1670 = vmatmul.mubr.f32.gmra.mxu0 %v1515
    %v1671 = vpop.f32.mrf.mxu0
    %v1672 = vadd.f32 0.0, %v1671
    %v1673 = vpop.f32.mrf.mxu0
    %1674 = vmatprep.mubr.f32.mxu0 0.0
    %1675 = vmatmul.mubr.f32.gmra.mxu0 %v1518
    %v1676 = vpop.f32.mrf.mxu0
    %v1677 = vadd.f32 0.0, %v1676
    %v1678 = vpop.f32.mrf.mxu0
    %1679 = vmatprep.mubr.f32.mxu0 0.0
    %1680 = vmatmul.mubr.f32.gmra.mxu0 %v1521
    %v1681 = vpop.f32.mrf.mxu0
    %v1682 = vadd.f32 0.0, %v1681
    %v1683 = vpop.f32.mrf.mxu0
    %1684 = vmatprep.mubr.f32.mxu0 0.0
    %1685 = vmatmul.mubr.f32.gmra.mxu0 %v1524
    %v1686 = vpop.f32.mrf.mxu0
    %v1687 = vadd.f32 0.0, %v1686
    %v1688 = vpop.f32.mrf.mxu0
    %1689 = vmatprep.mubr.f32.mxu0 0.0
    %1690 = vmatmul.mubr.f32.gmra.mxu0 %v1527
    %v1691 = vpop.f32.mrf.mxu0
    %v1692 = vadd.f32 0.0, %v1691
    %v1693 = vpop.f32.mrf.mxu0
    %1694 = vmatprep.mubr.f32.mxu0 0.0
    %1695 = vmatmul.mubr.f32.gmra.mxu0 %v1530
    %v1696 = vpop.f32.mrf.mxu0
    %v1697 = vadd.f32 0.0, %v1696
    %v1698 = vpop.f32.mrf.mxu0
    %1699 = vmatprep.mubr.f32.mxu0 0.0
    %1700 = vmatmul.mubr.f32.gmra.mxu0 %v1533
    %v1701 = vpop.f32.mrf.mxu0
    %v1702 = vadd.f32 0.0, %v1701
    %v1703 = vpop.f32.mrf.mxu0
    %1704 = vmatprep.mubr.f32.mxu0 0.0
    %1705 = vmatmul.mubr.f32.gmra.mxu0 %v1536
    %v1706 = vpop.f32.mrf.mxu0
    %v1707 = vadd.f32 0.0, %v1706
    %v1708 = vpop.f32.mrf.mxu0
    %1709 = vmatprep.mubr.f32.mxu0 0.0
    %1710 = vmatmul.mubr.f32.gmra.mxu0 %v1539
    %v1711 = vpop.f32.mrf.mxu0
    %v1712 = vadd.f32 0.0, %v1711
    %v1713 = vpop.f32.mrf.mxu0
    %1714 = vmatprep.mubr.f32.mxu0 0.0
    %1715 = vmatmul.mubr.f32.gmra.mxu0 %v1542
    %v1716 = vpop.f32.mrf.mxu0
    %v1717 = vadd.f32 0.0, %v1716
    %v1718 = vpop.f32.mrf.mxu0
    %1719 = vmatprep.mubr.f32.mxu0 0.0
    %1720 = vmatmul.mubr.f32.gmra.mxu0 %v1545
    %v1721 = vpop.f32.mrf.mxu0
    %v1722 = vadd.f32 0.0, %v1721
    %v1723 = vpop.f32.mrf.mxu0
    %1724 = vmatprep.mubr.f32.mxu0 0.0
    %1725 = vmatmul.mubr.f32.gmra.mxu0 %v1548
    %v1726 = vpop.f32.mrf.mxu0
    %v1727 = vadd.f32 0.0, %v1726
    %v1728 = vpop.f32.mrf.mxu0
    %1729 = vmatprep.mubr.f32.mxu0 0.0
    %1730 = vmatmul.mubr.f32.gmra.mxu0 %v1551
    %v1731 = vpop.f32.mrf.mxu0
    %v1732 = vadd.f32 0.0, %v1731
    %v1733 = vpop.f32.mrf.mxu0
    %1734 = vmatprep.mubr.f32.mxu0 0.0
    %1735 = vmatmul.mubr.f32.gmra.mxu0 %v1554
    %v1736 = vpop.f32.mrf.mxu0
    %v1737 = vadd.f32 0.0, %v1736
    %v1738 = vpop.f32.mrf.mxu0
    %1739 = vmatprep.mubr.f32.mxu0 0.0
    %1740 = vmatmul.mubr.f32.gmra.mxu0 %v1557
    %v1741 = vpop.f32.mrf.mxu0
    %v1742 = vadd.f32 0.0, %v1741
    %v1743 = vpop.f32.mrf.mxu0
    %1744 = vmatprep.mubr.f32.mxu0 0.0
    %1745 = vmatmul.mubr.f32.gmra.mxu0 %v1560
    %v1746 = vpop.f32.mrf.mxu0
    %v1747 = vadd.f32 0.0, %v1746
    %v1748 = vpop.f32.mrf.mxu0
    %1749 = vmatprep.mubr.f32.mxu0 0.0
    %1750 = vmatmul.mubr.f32.gmra.mxu0 %v1563
    %v1751 = vpop.f32.mrf.mxu0
    %v1752 = vadd.f32 0.0, %v1751
    %v1753 = vpop.f32.mrf.mxu0
    %1754 = vdwg.mxu0
    %v1755 = vadd.f32 %v1435, %v1632
    %v1756 = vadd.f32 %v1436, %v1637
    %v1757 = vadd.f32 %v1437, %v1642
    %v1758 = vadd.f32 %v1438, %v1647
    %v1759 = vadd.f32 %v1439, %v1652
    %v1760 = vadd.f32 %v1440, %v1657
    %v1761 = vadd.f32 %v1441, %v1662
    %v1762 = vadd.f32 %v1442, %v1667
    %v1763 = vadd.f32 %v1443, %v1672
    %v1764 = vadd.f32 %v1444, %v1677
    %v1765 = vadd.f32 %v1445, %v1682
    %v1766 = vadd.f32 %v1446, %v1687
    %v1767 = vadd.f32 %v1447, %v1692
    %v1768 = vadd.f32 %v1448, %v1697
    %v1769 = vadd.f32 %v1449, %v1702
    %v1770 = vadd.f32 %v1450, %v1707
    %v1771 = vadd.f32 %v1451, %v1712
    %v1772 = vadd.f32 %v1452, %v1717
    %v1773 = vadd.f32 %v1453, %v1722
    %v1774 = vadd.f32 %v1454, %v1727
    %v1775 = vadd.f32 %v1455, %v1732
    %v1776 = vadd.f32 %v1456, %v1737
    %v1777 = vadd.f32 %v1457, %v1742
    %v1778 = vadd.f32 %v1458, %v1747
    %v1779 = vadd.f32 %v1459, %v1752
    %v1780 = vld [vmem:[#allocation2 + $0x10] sm:$0xff]
    %v1781 = vld [vmem:[#allocation2 + $0x18] sm:$0xff]
    %v1782 = vld [vmem:[#allocation2 + $0x20] sm:$0xff]
    %v1783 = vld [vmem:[#allocation2 + $0x28] sm:$0xff]
    %v1784 = vld [vmem:[#allocation2 + $0x30] sm:$0xff]
    %v1785 = vld [vmem:[#allocation2 + $0x38] sm:$0xff]
    %v1786 = vld [vmem:[#allocation2 + $0x40] sm:$0xff]
    %v1787 = vld [vmem:[#allocation2 + $0x48] sm:$0xff]
    %v1788 = vld [vmem:[#allocation2 + $0x50] sm:$0xff]
    %v1789 = vld [vmem:[#allocation2 + $0x58] sm:$0xff]
    %v1790 = vld [vmem:[#allocation2 + $0x60] sm:$0xff]
    %v1791 = vld [vmem:[#allocation2 + $0x68] sm:$0xff]
    %v1792 = vld [vmem:[#allocation2 + $0x70] sm:$0xff]
    %v1793 = vld [vmem:[#allocation2 + $0x78] sm:$0xff]
    %v1794 = vld [vmem:[#allocation2 + $0x80] sm:$0xff]
    %v1795 = vld [vmem:[#allocation2 + $0x88] sm:$0xff]
    %v1796 = vld [vmem:[#allocation2 + $0x90] sm:$0xff]
    %v1797 = vld [vmem:[#allocation2 + $0x98] sm:$0xff]
    %v1798 = vld [vmem:[#allocation2 + $0xa0] sm:$0xff]
    %v1799 = vld [vmem:[#allocation2 + $0xa8] sm:$0xff]
    %v1800 = vld [vmem:[#allocation2 + $0xb0] sm:$0xff]
    %v1801 = vld [vmem:[#allocation2 + $0xb8] sm:$0xff]
    %v1802 = vld [vmem:[#allocation2 + $0xc0] sm:$0xff]
    %v1803 = vld [vmem:[#allocation2 + $0xc8] sm:$0xff]
    %v1804 = vld [vmem:[#allocation2 + $0xd0] sm:$0xff]
    %s1805 = scalar_lea.vmem %s5, 128
    %v1806 = vld [vmem:[%s1805] sm:$0xff]
    %v1807 = vld [vmem:[%s1805 + $0x8] sm:$0xff]
    %v1808 = vld [vmem:[%s1805 + $0x10] sm:$0xff]
    %v1809 = vld [vmem:[%s1805 + $0x18] sm:$0xff]
    %v1811 = vsel %vm63, %v1780, 0
    %v1814 = vsel %vm63, %v1781, 0
    %v1817 = vsel %vm63, %v1782, 0
    %v1820 = vsel %vm63, %v1783, 0
    %v1823 = vsel %vm63, %v1784, 0
    %v1826 = vsel %vm63, %v1785, 0
    %v1829 = vsel %vm63, %v1786, 0
    %v1832 = vsel %vm63, %v1787, 0
    %v1835 = vsel %vm63, %v1788, 0
    %v1838 = vsel %vm63, %v1789, 0
    %v1841 = vsel %vm63, %v1790, 0
    %v1844 = vsel %vm63, %v1791, 0
    %v1847 = vsel %vm63, %v1792, 0
    %v1850 = vsel %vm63, %v1793, 0
    %v1853 = vsel %vm63, %v1794, 0
    %v1856 = vsel %vm63, %v1795, 0
    %v1859 = vsel %vm63, %v1796, 0
    %v1862 = vsel %vm63, %v1797, 0
    %v1865 = vsel %vm63, %v1798, 0
    %v1868 = vsel %vm63, %v1799, 0
    %v1871 = vsel %vm63, %v1800, 0
    %v1874 = vsel %vm63, %v1801, 0
    %v1877 = vsel %vm63, %v1802, 0
    %v1880 = vsel %vm63, %v1803, 0
    %v1883 = vsel %vm63, %v1804, 0
    %1885 = vmatprep.subr.mxu0 0.0
    %1886 = vmatpush1.msra.mxu0 0.0
    %1887 = vmatprep.subr.mxu0 0.0
    %1888 = vmatpush1.msra.mxu0 0.0
    %1889 = vmatprep.subr.mxu0 0.0
    %1890 = vmatpush1.msra.mxu0 0.0
    %1891 = vmatprep.subr.mxu0 0.0
    %1892 = vmatpush1.msra.mxu0 0.0
    %1893 = vmatprep.subr.mxu0 0.0
    %1894 = vmatpush1.msra.mxu0 0.0
    %1895 = vmatprep.subr.mxu0 0.0
    %1896 = vmatpush1.msra.mxu0 0.0
    %1897 = vmatprep.subr.mxu0 0.0
    %1898 = vmatpush1.msra.mxu0 0.0
    %1899 = vmatprep.subr.mxu0 0.0
    %1900 = vmatpush1.msra.mxu0 0.0
    %1901 = vmatprep.subr.mxu0 0.0
    %1902 = vmatpush1.msra.mxu0 0.0
    %1903 = vmatprep.subr.mxu0 0.0
    %1904 = vmatpush1.msra.mxu0 0.0
    %1905 = vmatprep.subr.mxu0 0.0
    %1906 = vmatpush1.msra.mxu0 0.0
    %1907 = vmatprep.subr.mxu0 0.0
    %1908 = vmatpush1.msra.mxu0 0.0
    %1909 = vmatprep.subr.mxu0 0.0
    %1910 = vmatpush1.msra.mxu0 %v1809
    %1911 = vmatprep.subr.mxu0 0.0
    %1912 = vmatpush1.msra.mxu0 %v1808
    %1913 = vmatprep.subr.mxu0 0.0
    %1914 = vmatpush1.msra.mxu0 %v1807
    %1915 = vmatprep.subr.mxu0 0.0
    %1916 = vmatpush1.msra.mxu0 %v1806
    %1917 = vmatprep.subr.mxu0 0.0
    %1918 = vmatpush2.msra.mxu0 0.0
    %1919 = vmatprep.subr.mxu0 0.0
    %1920 = vmatpush2.msra.mxu0 0.0
    %1921 = vmatprep.subr.mxu0 0.0
    %1922 = vmatpush2.msra.mxu0 0.0
    %1923 = vmatprep.subr.mxu0 0.0
    %1924 = vmatpush2.msra.mxu0 0.0
    %1925 = vmatprep.subr.mxu0 0.0
    %1926 = vmatpush2.msra.mxu0 0.0
    %1927 = vmatprep.subr.mxu0 0.0
    %1928 = vmatpush2.msra.mxu0 0.0
    %1929 = vmatprep.subr.mxu0 0.0
    %1930 = vmatpush2.msra.mxu0 0.0
    %1931 = vmatprep.subr.mxu0 0.0
    %1932 = vmatpush2.msra.mxu0 0.0
    %1933 = vmatprep.subr.mxu0 0.0
    %1934 = vmatpush2.msra.mxu0 0.0
    %1935 = vmatprep.subr.mxu0 0.0
    %1936 = vmatpush2.msra.mxu0 0.0
    %1937 = vmatprep.subr.mxu0 0.0
    %1938 = vmatpush2.msra.mxu0 0.0
    %1939 = vmatprep.subr.mxu0 0.0
    %1940 = vmatpush2.msra.mxu0 0.0
    %1941 = vmatprep.subr.mxu0 0.0
    %1942 = vmatpush2.msra.mxu0 0.0
    %1943 = vmatprep.subr.mxu0 0.0
    %1944 = vmatpush2.msra.mxu0 0.0
    %1945 = vmatprep.subr.mxu0 0.0
    %1946 = vmatpush2.msra.mxu0 0.0
    %1947 = vmatprep.subr.mxu0 0.0
    %1948 = vmatpush2.msra.mxu0 0.0
    %1949 = vmatprep.mubr.f32.mxu0 0.0
    %1950 = vmatmul.mubr.f32.gmra.mxu0 %v1811
    %v1951 = vpop.f32.mrf.mxu0
    %v1952 = vadd.f32 0.0, %v1951
    %v1953 = vpop.f32.mrf.mxu0
    %1954 = vmatprep.mubr.f32.mxu0 0.0
    %1955 = vmatmul.mubr.f32.gmra.mxu0 %v1814
    %v1956 = vpop.f32.mrf.mxu0
    %v1957 = vadd.f32 0.0, %v1956
    %v1958 = vpop.f32.mrf.mxu0
    %1959 = vmatprep.mubr.f32.mxu0 0.0
    %1960 = vmatmul.mubr.f32.gmra.mxu0 %v1817
    %v1961 = vpop.f32.mrf.mxu0
    %v1962 = vadd.f32 0.0, %v1961
    %v1963 = vpop.f32.mrf.mxu0
    %1964 = vmatprep.mubr.f32.mxu0 0.0
    %1965 = vmatmul.mubr.f32.gmra.mxu0 %v1820
    %v1966 = vpop.f32.mrf.mxu0
    %v1967 = vadd.f32 0.0, %v1966
    %v1968 = vpop.f32.mrf.mxu0
    %1969 = vmatprep.mubr.f32.mxu0 0.0
    %1970 = vmatmul.mubr.f32.gmra.mxu0 %v1823
    %v1971 = vpop.f32.mrf.mxu0
    %v1972 = vadd.f32 0.0, %v1971
    %v1973 = vpop.f32.mrf.mxu0
    %1974 = vmatprep.mubr.f32.mxu0 0.0
    %1975 = vmatmul.mubr.f32.gmra.mxu0 %v1826
    %v1976 = vpop.f32.mrf.mxu0
    %v1977 = vadd.f32 0.0, %v1976
    %v1978 = vpop.f32.mrf.mxu0
    %1979 = vmatprep.mubr.f32.mxu0 0.0
    %1980 = vmatmul.mubr.f32.gmra.mxu0 %v1829
    %v1981 = vpop.f32.mrf.mxu0
    %v1982 = vadd.f32 0.0, %v1981
    %v1983 = vpop.f32.mrf.mxu0
    %1984 = vmatprep.mubr.f32.mxu0 0.0
    %1985 = vmatmul.mubr.f32.gmra.mxu0 %v1832
    %v1986 = vpop.f32.mrf.mxu0
    %v1987 = vadd.f32 0.0, %v1986
    %v1988 = vpop.f32.mrf.mxu0
    %1989 = vmatprep.mubr.f32.mxu0 0.0
    %1990 = vmatmul.mubr.f32.gmra.mxu0 %v1835
    %v1991 = vpop.f32.mrf.mxu0
    %v1992 = vadd.f32 0.0, %v1991
    %v1993 = vpop.f32.mrf.mxu0
    %1994 = vmatprep.mubr.f32.mxu0 0.0
    %1995 = vmatmul.mubr.f32.gmra.mxu0 %v1838
    %v1996 = vpop.f32.mrf.mxu0
    %v1997 = vadd.f32 0.0, %v1996
    %v1998 = vpop.f32.mrf.mxu0
    %1999 = vmatprep.mubr.f32.mxu0 0.0
    %2000 = vmatmul.mubr.f32.gmra.mxu0 %v1841
    %v2001 = vpop.f32.mrf.mxu0
    %v2002 = vadd.f32 0.0, %v2001
    %v2003 = vpop.f32.mrf.mxu0
    %2004 = vmatprep.mubr.f32.mxu0 0.0
    %2005 = vmatmul.mubr.f32.gmra.mxu0 %v1844
    %v2006 = vpop.f32.mrf.mxu0
    %v2007 = vadd.f32 0.0, %v2006
    %v2008 = vpop.f32.mrf.mxu0
    %2009 = vmatprep.mubr.f32.mxu0 0.0
    %2010 = vmatmul.mubr.f32.gmra.mxu0 %v1847
    %v2011 = vpop.f32.mrf.mxu0
    %v2012 = vadd.f32 0.0, %v2011
    %v2013 = vpop.f32.mrf.mxu0
    %2014 = vmatprep.mubr.f32.mxu0 0.0
    %2015 = vmatmul.mubr.f32.gmra.mxu0 %v1850
    %v2016 = vpop.f32.mrf.mxu0
    %v2017 = vadd.f32 0.0, %v2016
    %v2018 = vpop.f32.mrf.mxu0
    %2019 = vmatprep.mubr.f32.mxu0 0.0
    %2020 = vmatmul.mubr.f32.gmra.mxu0 %v1853
    %v2021 = vpop.f32.mrf.mxu0
    %v2022 = vadd.f32 0.0, %v2021
    %v2023 = vpop.f32.mrf.mxu0
    %2024 = vmatprep.mubr.f32.mxu0 0.0
    %2025 = vmatmul.mubr.f32.gmra.mxu0 %v1856
    %v2026 = vpop.f32.mrf.mxu0
    %v2027 = vadd.f32 0.0, %v2026
    %v2028 = vpop.f32.mrf.mxu0
    %2029 = vmatprep.mubr.f32.mxu0 0.0
    %2030 = vmatmul.mubr.f32.gmra.mxu0 %v1859
    %v2031 = vpop.f32.mrf.mxu0
    %v2032 = vadd.f32 0.0, %v2031
    %v2033 = vpop.f32.mrf.mxu0
    %2034 = vmatprep.mubr.f32.mxu0 0.0
    %2035 = vmatmul.mubr.f32.gmra.mxu0 %v1862
    %v2036 = vpop.f32.mrf.mxu0
    %v2037 = vadd.f32 0.0, %v2036
    %v2038 = vpop.f32.mrf.mxu0
    %2039 = vmatprep.mubr.f32.mxu0 0.0
    %2040 = vmatmul.mubr.f32.gmra.mxu0 %v1865
    %v2041 = vpop.f32.mrf.mxu0
    %v2042 = vadd.f32 0.0, %v2041
    %v2043 = vpop.f32.mrf.mxu0
    %2044 = vmatprep.mubr.f32.mxu0 0.0
    %2045 = vmatmul.mubr.f32.gmra.mxu0 %v1868
    %v2046 = vpop.f32.mrf.mxu0
    %v2047 = vadd.f32 0.0, %v2046
    %v2048 = vpop.f32.mrf.mxu0
    %2049 = vmatprep.mubr.f32.mxu0 0.0
    %2050 = vmatmul.mubr.f32.gmra.mxu0 %v1871
    %v2051 = vpop.f32.mrf.mxu0
    %v2052 = vadd.f32 0.0, %v2051
    %v2053 = vpop.f32.mrf.mxu0
    %2054 = vmatprep.mubr.f32.mxu0 0.0
    %2055 = vmatmul.mubr.f32.gmra.mxu0 %v1874
    %v2056 = vpop.f32.mrf.mxu0
    %v2057 = vadd.f32 0.0, %v2056
    %v2058 = vpop.f32.mrf.mxu0
    %2059 = vmatprep.mubr.f32.mxu0 0.0
    %2060 = vmatmul.mubr.f32.gmra.mxu0 %v1877
    %v2061 = vpop.f32.mrf.mxu0
    %v2062 = vadd.f32 0.0, %v2061
    %v2063 = vpop.f32.mrf.mxu0
    %2064 = vmatprep.mubr.f32.mxu0 0.0
    %2065 = vmatmul.mubr.f32.gmra.mxu0 %v1880
    %v2066 = vpop.f32.mrf.mxu0
    %v2067 = vadd.f32 0.0, %v2066
    %v2068 = vpop.f32.mrf.mxu0
    %2069 = vmatprep.mubr.f32.mxu0 0.0
    %2070 = vmatmul.mubr.f32.gmra.mxu0 %v1883
    %v2071 = vpop.f32.mrf.mxu0
    %v2072 = vadd.f32 0.0, %v2071
    %v2073 = vpop.f32.mrf.mxu0
    %2074 = vdwg.mxu0
    %v2075 = vadd.f32 %v1755, %v1952
    %v2076 = vadd.f32 %v1756, %v1957
    %v2077 = vadd.f32 %v1757, %v1962
    %v2078 = vadd.f32 %v1758, %v1967
    %v2079 = vadd.f32 %v1759, %v1972
    %v2080 = vadd.f32 %v1760, %v1977
    %v2081 = vadd.f32 %v1761, %v1982
    %v2082 = vadd.f32 %v1762, %v1987
    %v2083 = vadd.f32 %v1763, %v1992
    %v2084 = vadd.f32 %v1764, %v1997
    %v2085 = vadd.f32 %v1765, %v2002
    %v2086 = vadd.f32 %v1766, %v2007
    %v2087 = vadd.f32 %v1767, %v2012
    %v2088 = vadd.f32 %v1768, %v2017
    %v2089 = vadd.f32 %v1769, %v2022
    %v2090 = vadd.f32 %v1770, %v2027
    %v2091 = vadd.f32 %v1771, %v2032
    %v2092 = vadd.f32 %v1772, %v2037
    %v2093 = vadd.f32 %v1773, %v2042
    %v2094 = vadd.f32 %v1774, %v2047
    %v2095 = vadd.f32 %v1775, %v2052
    %v2096 = vadd.f32 %v1776, %v2057
    %v2097 = vadd.f32 %v1777, %v2062
    %v2098 = vadd.f32 %v1778, %v2067
    %v2099 = vadd.f32 %v1779, %v2072
    %v2100 = vld [vmem:[#allocation2 + $0x11] sm:$0xff]
    %v2101 = vld [vmem:[#allocation2 + $0x19] sm:$0xff]
    %v2102 = vld [vmem:[#allocation2 + $0x21] sm:$0xff]
    %v2103 = vld [vmem:[#allocation2 + $0x29] sm:$0xff]
    %v2104 = vld [vmem:[#allocation2 + $0x31] sm:$0xff]
    %v2105 = vld [vmem:[#allocation2 + $0x39] sm:$0xff]
    %v2106 = vld [vmem:[#allocation2 + $0x41] sm:$0xff]
    %v2107 = vld [vmem:[#allocation2 + $0x49] sm:$0xff]
    %v2108 = vld [vmem:[#allocation2 + $0x51] sm:$0xff]
    %v2109 = vld [vmem:[#allocation2 + $0x59] sm:$0xff]
    %v2110 = vld [vmem:[#allocation2 + $0x61] sm:$0xff]
    %v2111 = vld [vmem:[#allocation2 + $0x69] sm:$0xff]
    %v2112 = vld [vmem:[#allocation2 + $0x71] sm:$0xff]
    %v2113 = vld [vmem:[#allocation2 + $0x79] sm:$0xff]
    %v2114 = vld [vmem:[#allocation2 + $0x81] sm:$0xff]
    %v2115 = vld [vmem:[#allocation2 + $0x89] sm:$0xff]
    %v2116 = vld [vmem:[#allocation2 + $0x91] sm:$0xff]
    %v2117 = vld [vmem:[#allocation2 + $0x99] sm:$0xff]
    %v2118 = vld [vmem:[#allocation2 + $0xa1] sm:$0xff]
    %v2119 = vld [vmem:[#allocation2 + $0xa9] sm:$0xff]
    %v2120 = vld [vmem:[#allocation2 + $0xb1] sm:$0xff]
    %v2121 = vld [vmem:[#allocation2 + $0xb9] sm:$0xff]
    %v2122 = vld [vmem:[#allocation2 + $0xc1] sm:$0xff]
    %v2123 = vld [vmem:[#allocation2 + $0xc9] sm:$0xff]
    %v2124 = vld [vmem:[#allocation2 + $0xd1] sm:$0xff]
    %s2125 = scalar_lea.vmem %s5, 160
    %v2126 = vld [vmem:[%s2125] sm:$0xff]
    %v2127 = vld [vmem:[%s2125 + $0x8] sm:$0xff]
    %v2128 = vld [vmem:[%s2125 + $0x10] sm:$0xff]
    %v2129 = vld [vmem:[%s2125 + $0x18] sm:$0xff]
    %v2131 = vsel %vm63, %v2100, 0
    %v2134 = vsel %vm63, %v2101, 0
    %v2137 = vsel %vm63, %v2102, 0
    %v2140 = vsel %vm63, %v2103, 0
    %v2143 = vsel %vm63, %v2104, 0
    %v2146 = vsel %vm63, %v2105, 0
    %v2149 = vsel %vm63, %v2106, 0
    %v2152 = vsel %vm63, %v2107, 0
    %v2155 = vsel %vm63, %v2108, 0
    %v2158 = vsel %vm63, %v2109, 0
    %v2161 = vsel %vm63, %v2110, 0
    %v2164 = vsel %vm63, %v2111, 0
    %v2167 = vsel %vm63, %v2112, 0
    %v2170 = vsel %vm63, %v2113, 0
    %v2173 = vsel %vm63, %v2114, 0
    %v2176 = vsel %vm63, %v2115, 0
    %v2179 = vsel %vm63, %v2116, 0
    %v2182 = vsel %vm63, %v2117, 0
    %v2185 = vsel %vm63, %v2118, 0
    %v2188 = vsel %vm63, %v2119, 0
    %v2191 = vsel %vm63, %v2120, 0
    %v2194 = vsel %vm63, %v2121, 0
    %v2197 = vsel %vm63, %v2122, 0
    %v2200 = vsel %vm63, %v2123, 0
    %v2203 = vsel %vm63, %v2124, 0
    %2205 = vmatprep.subr.mxu0 0.0
    %2206 = vmatpush1.msra.mxu0 0.0
    %2207 = vmatprep.subr.mxu0 0.0
    %2208 = vmatpush1.msra.mxu0 0.0
    %2209 = vmatprep.subr.mxu0 0.0
    %2210 = vmatpush1.msra.mxu0 0.0
    %2211 = vmatprep.subr.mxu0 0.0
    %2212 = vmatpush1.msra.mxu0 0.0
    %2213 = vmatprep.subr.mxu0 0.0
    %2214 = vmatpush1.msra.mxu0 0.0
    %2215 = vmatprep.subr.mxu0 0.0
    %2216 = vmatpush1.msra.mxu0 0.0
    %2217 = vmatprep.subr.mxu0 0.0
    %2218 = vmatpush1.msra.mxu0 0.0
    %2219 = vmatprep.subr.mxu0 0.0
    %2220 = vmatpush1.msra.mxu0 0.0
    %2221 = vmatprep.subr.mxu0 0.0
    %2222 = vmatpush1.msra.mxu0 0.0
    %2223 = vmatprep.subr.mxu0 0.0
    %2224 = vmatpush1.msra.mxu0 0.0
    %2225 = vmatprep.subr.mxu0 0.0
    %2226 = vmatpush1.msra.mxu0 0.0
    %2227 = vmatprep.subr.mxu0 0.0
    %2228 = vmatpush1.msra.mxu0 0.0
    %2229 = vmatprep.subr.mxu0 0.0
    %2230 = vmatpush1.msra.mxu0 %v2129
    %2231 = vmatprep.subr.mxu0 0.0
    %2232 = vmatpush1.msra.mxu0 %v2128
    %2233 = vmatprep.subr.mxu0 0.0
    %2234 = vmatpush1.msra.mxu0 %v2127
    %2235 = vmatprep.subr.mxu0 0.0
    %2236 = vmatpush1.msra.mxu0 %v2126
    %2237 = vmatprep.subr.mxu0 0.0
    %2238 = vmatpush2.msra.mxu0 0.0
    %2239 = vmatprep.subr.mxu0 0.0
    %2240 = vmatpush2.msra.mxu0 0.0
    %2241 = vmatprep.subr.mxu0 0.0
    %2242 = vmatpush2.msra.mxu0 0.0
    %2243 = vmatprep.subr.mxu0 0.0
    %2244 = vmatpush2.msra.mxu0 0.0
    %2245 = vmatprep.subr.mxu0 0.0
    %2246 = vmatpush2.msra.mxu0 0.0
    %2247 = vmatprep.subr.mxu0 0.0
    %2248 = vmatpush2.msra.mxu0 0.0
    %2249 = vmatprep.subr.mxu0 0.0
    %2250 = vmatpush2.msra.mxu0 0.0
    %2251 = vmatprep.subr.mxu0 0.0
    %2252 = vmatpush2.msra.mxu0 0.0
    %2253 = vmatprep.subr.mxu0 0.0
    %2254 = vmatpush2.msra.mxu0 0.0
    %2255 = vmatprep.subr.mxu0 0.0
    %2256 = vmatpush2.msra.mxu0 0.0
    %2257 = vmatprep.subr.mxu0 0.0
    %2258 = vmatpush2.msra.mxu0 0.0
    %2259 = vmatprep.subr.mxu0 0.0
    %2260 = vmatpush2.msra.mxu0 0.0
    %2261 = vmatprep.subr.mxu0 0.0
    %2262 = vmatpush2.msra.mxu0 0.0
    %2263 = vmatprep.subr.mxu0 0.0
    %2264 = vmatpush2.msra.mxu0 0.0
    %2265 = vmatprep.subr.mxu0 0.0
    %2266 = vmatpush2.msra.mxu0 0.0
    %2267 = vmatprep.subr.mxu0 0.0
    %2268 = vmatpush2.msra.mxu0 0.0
    %2269 = vmatprep.mubr.f32.mxu0 0.0
    %2270 = vmatmul.mubr.f32.gmra.mxu0 %v2131
    %v2271 = vpop.f32.mrf.mxu0
    %v2272 = vadd.f32 0.0, %v2271
    %v2273 = vpop.f32.mrf.mxu0
    %2274 = vmatprep.mubr.f32.mxu0 0.0
    %2275 = vmatmul.mubr.f32.gmra.mxu0 %v2134
    %v2276 = vpop.f32.mrf.mxu0
    %v2277 = vadd.f32 0.0, %v2276
    %v2278 = vpop.f32.mrf.mxu0
    %2279 = vmatprep.mubr.f32.mxu0 0.0
    %2280 = vmatmul.mubr.f32.gmra.mxu0 %v2137
    %v2281 = vpop.f32.mrf.mxu0
    %v2282 = vadd.f32 0.0, %v2281
    %v2283 = vpop.f32.mrf.mxu0
    %2284 = vmatprep.mubr.f32.mxu0 0.0
    %2285 = vmatmul.mubr.f32.gmra.mxu0 %v2140
    %v2286 = vpop.f32.mrf.mxu0
    %v2287 = vadd.f32 0.0, %v2286
    %v2288 = vpop.f32.mrf.mxu0
    %2289 = vmatprep.mubr.f32.mxu0 0.0
    %2290 = vmatmul.mubr.f32.gmra.mxu0 %v2143
    %v2291 = vpop.f32.mrf.mxu0
    %v2292 = vadd.f32 0.0, %v2291
    %v2293 = vpop.f32.mrf.mxu0
    %2294 = vmatprep.mubr.f32.mxu0 0.0
    %2295 = vmatmul.mubr.f32.gmra.mxu0 %v2146
    %v2296 = vpop.f32.mrf.mxu0
    %v2297 = vadd.f32 0.0, %v2296
    %v2298 = vpop.f32.mrf.mxu0
    %2299 = vmatprep.mubr.f32.mxu0 0.0
    %2300 = vmatmul.mubr.f32.gmra.mxu0 %v2149
    %v2301 = vpop.f32.mrf.mxu0
    %v2302 = vadd.f32 0.0, %v2301
    %v2303 = vpop.f32.mrf.mxu0
    %2304 = vmatprep.mubr.f32.mxu0 0.0
    %2305 = vmatmul.mubr.f32.gmra.mxu0 %v2152
    %v2306 = vpop.f32.mrf.mxu0
    %v2307 = vadd.f32 0.0, %v2306
    %v2308 = vpop.f32.mrf.mxu0
    %2309 = vmatprep.mubr.f32.mxu0 0.0
    %2310 = vmatmul.mubr.f32.gmra.mxu0 %v2155
    %v2311 = vpop.f32.mrf.mxu0
    %v2312 = vadd.f32 0.0, %v2311
    %v2313 = vpop.f32.mrf.mxu0
    %2314 = vmatprep.mubr.f32.mxu0 0.0
    %2315 = vmatmul.mubr.f32.gmra.mxu0 %v2158
    %v2316 = vpop.f32.mrf.mxu0
    %v2317 = vadd.f32 0.0, %v2316
    %v2318 = vpop.f32.mrf.mxu0
    %2319 = vmatprep.mubr.f32.mxu0 0.0
    %2320 = vmatmul.mubr.f32.gmra.mxu0 %v2161
    %v2321 = vpop.f32.mrf.mxu0
    %v2322 = vadd.f32 0.0, %v2321
    %v2323 = vpop.f32.mrf.mxu0
    %2324 = vmatprep.mubr.f32.mxu0 0.0
    %2325 = vmatmul.mubr.f32.gmra.mxu0 %v2164
    %v2326 = vpop.f32.mrf.mxu0
    %v2327 = vadd.f32 0.0, %v2326
    %v2328 = vpop.f32.mrf.mxu0
    %2329 = vmatprep.mubr.f32.mxu0 0.0
    %2330 = vmatmul.mubr.f32.gmra.mxu0 %v2167
    %v2331 = vpop.f32.mrf.mxu0
    %v2332 = vadd.f32 0.0, %v2331
    %v2333 = vpop.f32.mrf.mxu0
    %2334 = vmatprep.mubr.f32.mxu0 0.0
    %2335 = vmatmul.mubr.f32.gmra.mxu0 %v2170
    %v2336 = vpop.f32.mrf.mxu0
    %v2337 = vadd.f32 0.0, %v2336
    %v2338 = vpop.f32.mrf.mxu0
    %2339 = vmatprep.mubr.f32.mxu0 0.0
    %2340 = vmatmul.mubr.f32.gmra.mxu0 %v2173
    %v2341 = vpop.f32.mrf.mxu0
    %v2342 = vadd.f32 0.0, %v2341
    %v2343 = vpop.f32.mrf.mxu0
    %2344 = vmatprep.mubr.f32.mxu0 0.0
    %2345 = vmatmul.mubr.f32.gmra.mxu0 %v2176
    %v2346 = vpop.f32.mrf.mxu0
    %v2347 = vadd.f32 0.0, %v2346
    %v2348 = vpop.f32.mrf.mxu0
    %2349 = vmatprep.mubr.f32.mxu0 0.0
    %2350 = vmatmul.mubr.f32.gmra.mxu0 %v2179
    %v2351 = vpop.f32.mrf.mxu0
    %v2352 = vadd.f32 0.0, %v2351
    %v2353 = vpop.f32.mrf.mxu0
    %2354 = vmatprep.mubr.f32.mxu0 0.0
    %2355 = vmatmul.mubr.f32.gmra.mxu0 %v2182
    %v2356 = vpop.f32.mrf.mxu0
    %v2357 = vadd.f32 0.0, %v2356
    %v2358 = vpop.f32.mrf.mxu0
    %2359 = vmatprep.mubr.f32.mxu0 0.0
    %2360 = vmatmul.mubr.f32.gmra.mxu0 %v2185
    %v2361 = vpop.f32.mrf.mxu0
    %v2362 = vadd.f32 0.0, %v2361
    %v2363 = vpop.f32.mrf.mxu0
    %2364 = vmatprep.mubr.f32.mxu0 0.0
    %2365 = vmatmul.mubr.f32.gmra.mxu0 %v2188
    %v2366 = vpop.f32.mrf.mxu0
    %v2367 = vadd.f32 0.0, %v2366
    %v2368 = vpop.f32.mrf.mxu0
    %2369 = vmatprep.mubr.f32.mxu0 0.0
    %2370 = vmatmul.mubr.f32.gmra.mxu0 %v2191
    %v2371 = vpop.f32.mrf.mxu0
    %v2372 = vadd.f32 0.0, %v2371
    %v2373 = vpop.f32.mrf.mxu0
    %2374 = vmatprep.mubr.f32.mxu0 0.0
    %2375 = vmatmul.mubr.f32.gmra.mxu0 %v2194
    %v2376 = vpop.f32.mrf.mxu0
    %v2377 = vadd.f32 0.0, %v2376
    %v2378 = vpop.f32.mrf.mxu0
    %2379 = vmatprep.mubr.f32.mxu0 0.0
    %2380 = vmatmul.mubr.f32.gmra.mxu0 %v2197
    %v2381 = vpop.f32.mrf.mxu0
    %v2382 = vadd.f32 0.0, %v2381
    %v2383 = vpop.f32.mrf.mxu0
    %2384 = vmatprep.mubr.f32.mxu0 0.0
    %2385 = vmatmul.mubr.f32.gmra.mxu0 %v2200
    %v2386 = vpop.f32.mrf.mxu0
    %v2387 = vadd.f32 0.0, %v2386
    %v2388 = vpop.f32.mrf.mxu0
    %2389 = vmatprep.mubr.f32.mxu0 0.0
    %2390 = vmatmul.mubr.f32.gmra.mxu0 %v2203
    %v2391 = vpop.f32.mrf.mxu0
    %v2392 = vadd.f32 0.0, %v2391
    %v2393 = vpop.f32.mrf.mxu0
    %2394 = vdwg.mxu0
    %v2395 = vadd.f32 %v2075, %v2272
    %v2396 = vadd.f32 %v2076, %v2277
    %v2397 = vadd.f32 %v2077, %v2282
    %v2398 = vadd.f32 %v2078, %v2287
    %v2399 = vadd.f32 %v2079, %v2292
    %v2400 = vadd.f32 %v2080, %v2297
    %v2401 = vadd.f32 %v2081, %v2302
    %v2402 = vadd.f32 %v2082, %v2307
    %v2403 = vadd.f32 %v2083, %v2312
    %v2404 = vadd.f32 %v2084, %v2317
    %v2405 = vadd.f32 %v2085, %v2322
    %v2406 = vadd.f32 %v2086, %v2327
    %v2407 = vadd.f32 %v2087, %v2332
    %v2408 = vadd.f32 %v2088, %v2337
    %v2409 = vadd.f32 %v2089, %v2342
    %v2410 = vadd.f32 %v2090, %v2347
    %v2411 = vadd.f32 %v2091, %v2352
    %v2412 = vadd.f32 %v2092, %v2357
    %v2413 = vadd.f32 %v2093, %v2362
    %v2414 = vadd.f32 %v2094, %v2367
    %v2415 = vadd.f32 %v2095, %v2372
    %v2416 = vadd.f32 %v2096, %v2377
    %v2417 = vadd.f32 %v2097, %v2382
    %v2418 = vadd.f32 %v2098, %v2387
    %v2419 = vadd.f32 %v2099, %v2392
    %v2420 = vld [vmem:[#allocation2 + $0x19] sm:$0xff]
    %v2421 = vld [vmem:[#allocation2 + $0x21] sm:$0xff]
    %v2422 = vld [vmem:[#allocation2 + $0x29] sm:$0xff]
    %v2423 = vld [vmem:[#allocation2 + $0x31] sm:$0xff]
    %v2424 = vld [vmem:[#allocation2 + $0x39] sm:$0xff]
    %v2425 = vld [vmem:[#allocation2 + $0x41] sm:$0xff]
    %v2426 = vld [vmem:[#allocation2 + $0x49] sm:$0xff]
    %v2427 = vld [vmem:[#allocation2 + $0x51] sm:$0xff]
    %v2428 = vld [vmem:[#allocation2 + $0x59] sm:$0xff]
    %v2429 = vld [vmem:[#allocation2 + $0x61] sm:$0xff]
    %v2430 = vld [vmem:[#allocation2 + $0x69] sm:$0xff]
    %v2431 = vld [vmem:[#allocation2 + $0x71] sm:$0xff]
    %v2432 = vld [vmem:[#allocation2 + $0x79] sm:$0xff]
    %v2433 = vld [vmem:[#allocation2 + $0x81] sm:$0xff]
    %v2434 = vld [vmem:[#allocation2 + $0x89] sm:$0xff]
    %v2435 = vld [vmem:[#allocation2 + $0x91] sm:$0xff]
    %v2436 = vld [vmem:[#allocation2 + $0x99] sm:$0xff]
    %v2437 = vld [vmem:[#allocation2 + $0xa1] sm:$0xff]
    %v2438 = vld [vmem:[#allocation2 + $0xa9] sm:$0xff]
    %v2439 = vld [vmem:[#allocation2 + $0xb1] sm:$0xff]
    %v2440 = vld [vmem:[#allocation2 + $0xb9] sm:$0xff]
    %v2441 = vld [vmem:[#allocation2 + $0xc1] sm:$0xff]
    %v2442 = vld [vmem:[#allocation2 + $0xc9] sm:$0xff]
    %v2443 = vld [vmem:[#allocation2 + $0xd1] sm:$0xff]
    %v2444 = vld [vmem:[#allocation2 + $0xd9] sm:$0xff]
    %s2445 = scalar_lea.vmem %s5, 192
    %v2446 = vld [vmem:[%s2445] sm:$0xff]
    %v2447 = vld [vmem:[%s2445 + $0x8] sm:$0xff]
    %v2448 = vld [vmem:[%s2445 + $0x10] sm:$0xff]
    %v2449 = vld [vmem:[%s2445 + $0x18] sm:$0xff]
    %v2451 = vsel %vm63, %v2420, 0
    %v2454 = vsel %vm63, %v2421, 0
    %v2457 = vsel %vm63, %v2422, 0
    %v2460 = vsel %vm63, %v2423, 0
    %v2463 = vsel %vm63, %v2424, 0
    %v2466 = vsel %vm63, %v2425, 0
    %v2469 = vsel %vm63, %v2426, 0
    %v2472 = vsel %vm63, %v2427, 0
    %v2475 = vsel %vm63, %v2428, 0
    %v2478 = vsel %vm63, %v2429, 0
    %v2481 = vsel %vm63, %v2430, 0
    %v2484 = vsel %vm63, %v2431, 0
    %v2487 = vsel %vm63, %v2432, 0
    %v2490 = vsel %vm63, %v2433, 0
    %v2493 = vsel %vm63, %v2434, 0
    %v2496 = vsel %vm63, %v2435, 0
    %v2499 = vsel %vm63, %v2436, 0
    %v2502 = vsel %vm63, %v2437, 0
    %v2505 = vsel %vm63, %v2438, 0
    %v2508 = vsel %vm63, %v2439, 0
    %v2511 = vsel %vm63, %v2440, 0
    %v2514 = vsel %vm63, %v2441, 0
    %v2517 = vsel %vm63, %v2442, 0
    %v2520 = vsel %vm63, %v2443, 0
    %v2523 = vsel %vm63, %v2444, 0
    %2525 = vmatprep.subr.mxu0 0.0
    %2526 = vmatpush1.msra.mxu0 0.0
    %2527 = vmatprep.subr.mxu0 0.0
    %2528 = vmatpush1.msra.mxu0 0.0
    %2529 = vmatprep.subr.mxu0 0.0
    %2530 = vmatpush1.msra.mxu0 0.0
    %2531 = vmatprep.subr.mxu0 0.0
    %2532 = vmatpush1.msra.mxu0 0.0
    %2533 = vmatprep.subr.mxu0 0.0
    %2534 = vmatpush1.msra.mxu0 0.0
    %2535 = vmatprep.subr.mxu0 0.0
    %2536 = vmatpush1.msra.mxu0 0.0
    %2537 = vmatprep.subr.mxu0 0.0
    %2538 = vmatpush1.msra.mxu0 0.0
    %2539 = vmatprep.subr.mxu0 0.0
    %2540 = vmatpush1.msra.mxu0 0.0
    %2541 = vmatprep.subr.mxu0 0.0
    %2542 = vmatpush1.msra.mxu0 0.0
    %2543 = vmatprep.subr.mxu0 0.0
    %2544 = vmatpush1.msra.mxu0 0.0
    %2545 = vmatprep.subr.mxu0 0.0
    %2546 = vmatpush1.msra.mxu0 0.0
    %2547 = vmatprep.subr.mxu0 0.0
    %2548 = vmatpush1.msra.mxu0 0.0
    %2549 = vmatprep.subr.mxu0 0.0
    %2550 = vmatpush1.msra.mxu0 %v2449
    %2551 = vmatprep.subr.mxu0 0.0
    %2552 = vmatpush1.msra.mxu0 %v2448
    %2553 = vmatprep.subr.mxu0 0.0
    %2554 = vmatpush1.msra.mxu0 %v2447
    %2555 = vmatprep.subr.mxu0 0.0
    %2556 = vmatpush1.msra.mxu0 %v2446
    %2557 = vmatprep.subr.mxu0 0.0
    %2558 = vmatpush2.msra.mxu0 0.0
    %2559 = vmatprep.subr.mxu0 0.0
    %2560 = vmatpush2.msra.mxu0 0.0
    %2561 = vmatprep.subr.mxu0 0.0
    %2562 = vmatpush2.msra.mxu0 0.0
    %2563 = vmatprep.subr.mxu0 0.0
    %2564 = vmatpush2.msra.mxu0 0.0
    %2565 = vmatprep.subr.mxu0 0.0
    %2566 = vmatpush2.msra.mxu0 0.0
    %2567 = vmatprep.subr.mxu0 0.0
    %2568 = vmatpush2.msra.mxu0 0.0
    %2569 = vmatprep.subr.mxu0 0.0
    %2570 = vmatpush2.msra.mxu0 0.0
    %2571 = vmatprep.subr.mxu0 0.0
    %2572 = vmatpush2.msra.mxu0 0.0
    %2573 = vmatprep.subr.mxu0 0.0
    %2574 = vmatpush2.msra.mxu0 0.0
    %2575 = vmatprep.subr.mxu0 0.0
    %2576 = vmatpush2.msra.mxu0 0.0
    %2577 = vmatprep.subr.mxu0 0.0
    %2578 = vmatpush2.msra.mxu0 0.0
    %2579 = vmatprep.subr.mxu0 0.0
    %2580 = vmatpush2.msra.mxu0 0.0
    %2581 = vmatprep.subr.mxu0 0.0
    %2582 = vmatpush2.msra.mxu0 0.0
    %2583 = vmatprep.subr.mxu0 0.0
    %2584 = vmatpush2.msra.mxu0 0.0
    %2585 = vmatprep.subr.mxu0 0.0
    %2586 = vmatpush2.msra.mxu0 0.0
    %2587 = vmatprep.subr.mxu0 0.0
    %2588 = vmatpush2.msra.mxu0 0.0
    %2589 = vmatprep.mubr.f32.mxu0 0.0
    %2590 = vmatmul.mubr.f32.gmra.mxu0 %v2451
    %v2591 = vpop.f32.mrf.mxu0
    %v2592 = vadd.f32 0.0, %v2591
    %v2593 = vpop.f32.mrf.mxu0
    %2594 = vmatprep.mubr.f32.mxu0 0.0
    %2595 = vmatmul.mubr.f32.gmra.mxu0 %v2454
    %v2596 = vpop.f32.mrf.mxu0
    %v2597 = vadd.f32 0.0, %v2596
    %v2598 = vpop.f32.mrf.mxu0
    %2599 = vmatprep.mubr.f32.mxu0 0.0
    %2600 = vmatmul.mubr.f32.gmra.mxu0 %v2457
    %v2601 = vpop.f32.mrf.mxu0
    %v2602 = vadd.f32 0.0, %v2601
    %v2603 = vpop.f32.mrf.mxu0
    %2604 = vmatprep.mubr.f32.mxu0 0.0
    %2605 = vmatmul.mubr.f32.gmra.mxu0 %v2460
    %v2606 = vpop.f32.mrf.mxu0
    %v2607 = vadd.f32 0.0, %v2606
    %v2608 = vpop.f32.mrf.mxu0
    %2609 = vmatprep.mubr.f32.mxu0 0.0
    %2610 = vmatmul.mubr.f32.gmra.mxu0 %v2463
    %v2611 = vpop.f32.mrf.mxu0
    %v2612 = vadd.f32 0.0, %v2611
    %v2613 = vpop.f32.mrf.mxu0
    %2614 = vmatprep.mubr.f32.mxu0 0.0
    %2615 = vmatmul.mubr.f32.gmra.mxu0 %v2466
    %v2616 = vpop.f32.mrf.mxu0
    %v2617 = vadd.f32 0.0, %v2616
    %v2618 = vpop.f32.mrf.mxu0
    %2619 = vmatprep.mubr.f32.mxu0 0.0
    %2620 = vmatmul.mubr.f32.gmra.mxu0 %v2469
    %v2621 = vpop.f32.mrf.mxu0
    %v2622 = vadd.f32 0.0, %v2621
    %v2623 = vpop.f32.mrf.mxu0
    %2624 = vmatprep.mubr.f32.mxu0 0.0
    %2625 = vmatmul.mubr.f32.gmra.mxu0 %v2472
    %v2626 = vpop.f32.mrf.mxu0
    %v2627 = vadd.f32 0.0, %v2626
    %v2628 = vpop.f32.mrf.mxu0
    %2629 = vmatprep.mubr.f32.mxu0 0.0
    %2630 = vmatmul.mubr.f32.gmra.mxu0 %v2475
    %v2631 = vpop.f32.mrf.mxu0
    %v2632 = vadd.f32 0.0, %v2631
    %v2633 = vpop.f32.mrf.mxu0
    %2634 = vmatprep.mubr.f32.mxu0 0.0
    %2635 = vmatmul.mubr.f32.gmra.mxu0 %v2478
    %v2636 = vpop.f32.mrf.mxu0
    %v2637 = vadd.f32 0.0, %v2636
    %v2638 = vpop.f32.mrf.mxu0
    %2639 = vmatprep.mubr.f32.mxu0 0.0
    %2640 = vmatmul.mubr.f32.gmra.mxu0 %v2481
    %v2641 = vpop.f32.mrf.mxu0
    %v2642 = vadd.f32 0.0, %v2641
    %v2643 = vpop.f32.mrf.mxu0
    %2644 = vmatprep.mubr.f32.mxu0 0.0
    %2645 = vmatmul.mubr.f32.gmra.mxu0 %v2484
    %v2646 = vpop.f32.mrf.mxu0
    %v2647 = vadd.f32 0.0, %v2646
    %v2648 = vpop.f32.mrf.mxu0
    %2649 = vmatprep.mubr.f32.mxu0 0.0
    %2650 = vmatmul.mubr.f32.gmra.mxu0 %v2487
    %v2651 = vpop.f32.mrf.mxu0
    %v2652 = vadd.f32 0.0, %v2651
    %v2653 = vpop.f32.mrf.mxu0
    %2654 = vmatprep.mubr.f32.mxu0 0.0
    %2655 = vmatmul.mubr.f32.gmra.mxu0 %v2490
    %v2656 = vpop.f32.mrf.mxu0
    %v2657 = vadd.f32 0.0, %v2656
    %v2658 = vpop.f32.mrf.mxu0
    %2659 = vmatprep.mubr.f32.mxu0 0.0
    %2660 = vmatmul.mubr.f32.gmra.mxu0 %v2493
    %v2661 = vpop.f32.mrf.mxu0
    %v2662 = vadd.f32 0.0, %v2661
    %v2663 = vpop.f32.mrf.mxu0
    %2664 = vmatprep.mubr.f32.mxu0 0.0
    %2665 = vmatmul.mubr.f32.gmra.mxu0 %v2496
    %v2666 = vpop.f32.mrf.mxu0
    %v2667 = vadd.f32 0.0, %v2666
    %v2668 = vpop.f32.mrf.mxu0
    %2669 = vmatprep.mubr.f32.mxu0 0.0
    %2670 = vmatmul.mubr.f32.gmra.mxu0 %v2499
    %v2671 = vpop.f32.mrf.mxu0
    %v2672 = vadd.f32 0.0, %v2671
    %v2673 = vpop.f32.mrf.mxu0
    %2674 = vmatprep.mubr.f32.mxu0 0.0
    %2675 = vmatmul.mubr.f32.gmra.mxu0 %v2502
    %v2676 = vpop.f32.mrf.mxu0
    %v2677 = vadd.f32 0.0, %v2676
    %v2678 = vpop.f32.mrf.mxu0
    %2679 = vmatprep.mubr.f32.mxu0 0.0
    %2680 = vmatmul.mubr.f32.gmra.mxu0 %v2505
    %v2681 = vpop.f32.mrf.mxu0
    %v2682 = vadd.f32 0.0, %v2681
    %v2683 = vpop.f32.mrf.mxu0
    %2684 = vmatprep.mubr.f32.mxu0 0.0
    %2685 = vmatmul.mubr.f32.gmra.mxu0 %v2508
    %v2686 = vpop.f32.mrf.mxu0
    %v2687 = vadd.f32 0.0, %v2686
    %v2688 = vpop.f32.mrf.mxu0
    %2689 = vmatprep.mubr.f32.mxu0 0.0
    %2690 = vmatmul.mubr.f32.gmra.mxu0 %v2511
    %v2691 = vpop.f32.mrf.mxu0
    %v2692 = vadd.f32 0.0, %v2691
    %v2693 = vpop.f32.mrf.mxu0
    %2694 = vmatprep.mubr.f32.mxu0 0.0
    %2695 = vmatmul.mubr.f32.gmra.mxu0 %v2514
    %v2696 = vpop.f32.mrf.mxu0
    %v2697 = vadd.f32 0.0, %v2696
    %v2698 = vpop.f32.mrf.mxu0
    %2699 = vmatprep.mubr.f32.mxu0 0.0
    %2700 = vmatmul.mubr.f32.gmra.mxu0 %v2517
    %v2701 = vpop.f32.mrf.mxu0
    %v2702 = vadd.f32 0.0, %v2701
    %v2703 = vpop.f32.mrf.mxu0
    %2704 = vmatprep.mubr.f32.mxu0 0.0
    %2705 = vmatmul.mubr.f32.gmra.mxu0 %v2520
    %v2706 = vpop.f32.mrf.mxu0
    %v2707 = vadd.f32 0.0, %v2706
    %v2708 = vpop.f32.mrf.mxu0
    %2709 = vmatprep.mubr.f32.mxu0 0.0
    %2710 = vmatmul.mubr.f32.gmra.mxu0 %v2523
    %v2711 = vpop.f32.mrf.mxu0
    %v2712 = vadd.f32 0.0, %v2711
    %v2713 = vpop.f32.mrf.mxu0
    %2714 = vdwg.mxu0
    %v2715 = vadd.f32 %v2395, %v2592
    %v2716 = vadd.f32 %v2396, %v2597
    %v2717 = vadd.f32 %v2397, %v2602
    %v2718 = vadd.f32 %v2398, %v2607
    %v2719 = vadd.f32 %v2399, %v2612
    %v2720 = vadd.f32 %v2400, %v2617
    %v2721 = vadd.f32 %v2401, %v2622
    %v2722 = vadd.f32 %v2402, %v2627
    %v2723 = vadd.f32 %v2403, %v2632
    %v2724 = vadd.f32 %v2404, %v2637
    %v2725 = vadd.f32 %v2405, %v2642
    %v2726 = vadd.f32 %v2406, %v2647
    %v2727 = vadd.f32 %v2407, %v2652
    %v2728 = vadd.f32 %v2408, %v2657
    %v2729 = vadd.f32 %v2409, %v2662
    %v2730 = vadd.f32 %v2410, %v2667
    %v2731 = vadd.f32 %v2411, %v2672
    %v2732 = vadd.f32 %v2412, %v2677
    %v2733 = vadd.f32 %v2413, %v2682
    %v2734 = vadd.f32 %v2414, %v2687
    %v2735 = vadd.f32 %v2415, %v2692
    %v2736 = vadd.f32 %v2416, %v2697
    %v2737 = vadd.f32 %v2417, %v2702
    %v2738 = vadd.f32 %v2418, %v2707
    %v2739 = vadd.f32 %v2419, %v2712
    %v2740 = vld [vmem:[#allocation2 + $0x1a] sm:$0xff]
    %v2741 = vld [vmem:[#allocation2 + $0x22] sm:$0xff]
    %v2742 = vld [vmem:[#allocation2 + $0x2a] sm:$0xff]
    %v2743 = vld [vmem:[#allocation2 + $0x32] sm:$0xff]
    %v2744 = vld [vmem:[#allocation2 + $0x3a] sm:$0xff]
    %v2745 = vld [vmem:[#allocation2 + $0x42] sm:$0xff]
    %v2746 = vld [vmem:[#allocation2 + $0x4a] sm:$0xff]
    %v2747 = vld [vmem:[#allocation2 + $0x52] sm:$0xff]
    %v2748 = vld [vmem:[#allocation2 + $0x5a] sm:$0xff]
    %v2749 = vld [vmem:[#allocation2 + $0x62] sm:$0xff]
    %v2750 = vld [vmem:[#allocation2 + $0x6a] sm:$0xff]
    %v2751 = vld [vmem:[#allocation2 + $0x72] sm:$0xff]
    %v2752 = vld [vmem:[#allocation2 + $0x7a] sm:$0xff]
    %v2753 = vld [vmem:[#allocation2 + $0x82] sm:$0xff]
    %v2754 = vld [vmem:[#allocation2 + $0x8a] sm:$0xff]
    %v2755 = vld [vmem:[#allocation2 + $0x92] sm:$0xff]
    %v2756 = vld [vmem:[#allocation2 + $0x9a] sm:$0xff]
    %v2757 = vld [vmem:[#allocation2 + $0xa2] sm:$0xff]
    %v2758 = vld [vmem:[#allocation2 + $0xaa] sm:$0xff]
    %v2759 = vld [vmem:[#allocation2 + $0xb2] sm:$0xff]
    %v2760 = vld [vmem:[#allocation2 + $0xba] sm:$0xff]
    %v2761 = vld [vmem:[#allocation2 + $0xc2] sm:$0xff]
    %v2762 = vld [vmem:[#allocation2 + $0xca] sm:$0xff]
    %v2763 = vld [vmem:[#allocation2 + $0xd2] sm:$0xff]
    %v2764 = vld [vmem:[#allocation2 + $0xda] sm:$0xff]
    %s2765 = scalar_lea.vmem %s5, 224
    %v2766 = vld [vmem:[%s2765] sm:$0xff]
    %v2767 = vld [vmem:[%s2765 + $0x8] sm:$0xff]
    %v2768 = vld [vmem:[%s2765 + $0x10] sm:$0xff]
    %v2769 = vld [vmem:[%s2765 + $0x18] sm:$0xff]
    %v2771 = vsel %vm63, %v2740, 0
    %v2774 = vsel %vm63, %v2741, 0
    %v2777 = vsel %vm63, %v2742, 0
    %v2780 = vsel %vm63, %v2743, 0
    %v2783 = vsel %vm63, %v2744, 0
    %v2786 = vsel %vm63, %v2745, 0
    %v2789 = vsel %vm63, %v2746, 0
    %v2792 = vsel %vm63, %v2747, 0
    %v2795 = vsel %vm63, %v2748, 0
    %v2798 = vsel %vm63, %v2749, 0
    %v2801 = vsel %vm63, %v2750, 0
    %v2804 = vsel %vm63, %v2751, 0
    %v2807 = vsel %vm63, %v2752, 0
    %v2810 = vsel %vm63, %v2753, 0
    %v2813 = vsel %vm63, %v2754, 0
    %v2816 = vsel %vm63, %v2755, 0
    %v2819 = vsel %vm63, %v2756, 0
    %v2822 = vsel %vm63, %v2757, 0
    %v2825 = vsel %vm63, %v2758, 0
    %v2828 = vsel %vm63, %v2759, 0
    %v2831 = vsel %vm63, %v2760, 0
    %v2834 = vsel %vm63, %v2761, 0
    %v2837 = vsel %vm63, %v2762, 0
    %v2840 = vsel %vm63, %v2763, 0
    %v2843 = vsel %vm63, %v2764, 0
    %2845 = vmatprep.subr.mxu0 0.0
    %2846 = vmatpush1.msra.mxu0 0.0
    %2847 = vmatprep.subr.mxu0 0.0
    %2848 = vmatpush1.msra.mxu0 0.0
    %2849 = vmatprep.subr.mxu0 0.0
    %2850 = vmatpush1.msra.mxu0 0.0
    %2851 = vmatprep.subr.mxu0 0.0
    %2852 = vmatpush1.msra.mxu0 0.0
    %2853 = vmatprep.subr.mxu0 0.0
    %2854 = vmatpush1.msra.mxu0 0.0
    %2855 = vmatprep.subr.mxu0 0.0
    %2856 = vmatpush1.msra.mxu0 0.0
    %2857 = vmatprep.subr.mxu0 0.0
    %2858 = vmatpush1.msra.mxu0 0.0
    %2859 = vmatprep.subr.mxu0 0.0
    %2860 = vmatpush1.msra.mxu0 0.0
    %2861 = vmatprep.subr.mxu0 0.0
    %2862 = vmatpush1.msra.mxu0 0.0
    %2863 = vmatprep.subr.mxu0 0.0
    %2864 = vmatpush1.msra.mxu0 0.0
    %2865 = vmatprep.subr.mxu0 0.0
    %2866 = vmatpush1.msra.mxu0 0.0
    %2867 = vmatprep.subr.mxu0 0.0
    %2868 = vmatpush1.msra.mxu0 0.0
    %2869 = vmatprep.subr.mxu0 0.0
    %2870 = vmatpush1.msra.mxu0 %v2769
    %2871 = vmatprep.subr.mxu0 0.0
    %2872 = vmatpush1.msra.mxu0 %v2768
    %2873 = vmatprep.subr.mxu0 0.0
    %2874 = vmatpush1.msra.mxu0 %v2767
    %2875 = vmatprep.subr.mxu0 0.0
    %2876 = vmatpush1.msra.mxu0 %v2766
    %2877 = vmatprep.subr.mxu0 0.0
    %2878 = vmatpush2.msra.mxu0 0.0
    %2879 = vmatprep.subr.mxu0 0.0
    %2880 = vmatpush2.msra.mxu0 0.0
    %2881 = vmatprep.subr.mxu0 0.0
    %2882 = vmatpush2.msra.mxu0 0.0
    %2883 = vmatprep.subr.mxu0 0.0
    %2884 = vmatpush2.msra.mxu0 0.0
    %2885 = vmatprep.subr.mxu0 0.0
    %2886 = vmatpush2.msra.mxu0 0.0
    %2887 = vmatprep.subr.mxu0 0.0
    %2888 = vmatpush2.msra.mxu0 0.0
    %2889 = vmatprep.subr.mxu0 0.0
    %2890 = vmatpush2.msra.mxu0 0.0
    %2891 = vmatprep.subr.mxu0 0.0
    %2892 = vmatpush2.msra.mxu0 0.0
    %2893 = vmatprep.subr.mxu0 0.0
    %2894 = vmatpush2.msra.mxu0 0.0
    %2895 = vmatprep.subr.mxu0 0.0
    %2896 = vmatpush2.msra.mxu0 0.0
    %2897 = vmatprep.subr.mxu0 0.0
    %2898 = vmatpush2.msra.mxu0 0.0
    %2899 = vmatprep.subr.mxu0 0.0
    %2900 = vmatpush2.msra.mxu0 0.0
    %2901 = vmatprep.subr.mxu0 0.0
    %2902 = vmatpush2.msra.mxu0 0.0
    %2903 = vmatprep.subr.mxu0 0.0
    %2904 = vmatpush2.msra.mxu0 0.0
    %2905 = vmatprep.subr.mxu0 0.0
    %2906 = vmatpush2.msra.mxu0 0.0
    %2907 = vmatprep.subr.mxu0 0.0
    %2908 = vmatpush2.msra.mxu0 0.0
    %2909 = vmatprep.mubr.f32.mxu0 0.0
    %2910 = vmatmul.mubr.f32.gmra.mxu0 %v2771
    %v2911 = vpop.f32.mrf.mxu0
    %v2912 = vadd.f32 0.0, %v2911
    %v2913 = vpop.f32.mrf.mxu0
    %2914 = vmatprep.mubr.f32.mxu0 0.0
    %2915 = vmatmul.mubr.f32.gmra.mxu0 %v2774
    %v2916 = vpop.f32.mrf.mxu0
    %v2917 = vadd.f32 0.0, %v2916
    %v2918 = vpop.f32.mrf.mxu0
    %2919 = vmatprep.mubr.f32.mxu0 0.0
    %2920 = vmatmul.mubr.f32.gmra.mxu0 %v2777
    %v2921 = vpop.f32.mrf.mxu0
    %v2922 = vadd.f32 0.0, %v2921
    %v2923 = vpop.f32.mrf.mxu0
    %2924 = vmatprep.mubr.f32.mxu0 0.0
    %2925 = vmatmul.mubr.f32.gmra.mxu0 %v2780
    %v2926 = vpop.f32.mrf.mxu0
    %v2927 = vadd.f32 0.0, %v2926
    %v2928 = vpop.f32.mrf.mxu0
    %2929 = vmatprep.mubr.f32.mxu0 0.0
    %2930 = vmatmul.mubr.f32.gmra.mxu0 %v2783
    %v2931 = vpop.f32.mrf.mxu0
    %v2932 = vadd.f32 0.0, %v2931
    %v2933 = vpop.f32.mrf.mxu0
    %2934 = vmatprep.mubr.f32.mxu0 0.0
    %2935 = vmatmul.mubr.f32.gmra.mxu0 %v2786
    %v2936 = vpop.f32.mrf.mxu0
    %v2937 = vadd.f32 0.0, %v2936
    %v2938 = vpop.f32.mrf.mxu0
    %2939 = vmatprep.mubr.f32.mxu0 0.0
    %2940 = vmatmul.mubr.f32.gmra.mxu0 %v2789
    %v2941 = vpop.f32.mrf.mxu0
    %v2942 = vadd.f32 0.0, %v2941
    %v2943 = vpop.f32.mrf.mxu0
    %2944 = vmatprep.mubr.f32.mxu0 0.0
    %2945 = vmatmul.mubr.f32.gmra.mxu0 %v2792
    %v2946 = vpop.f32.mrf.mxu0
    %v2947 = vadd.f32 0.0, %v2946
    %v2948 = vpop.f32.mrf.mxu0
    %2949 = vmatprep.mubr.f32.mxu0 0.0
    %2950 = vmatmul.mubr.f32.gmra.mxu0 %v2795
    %v2951 = vpop.f32.mrf.mxu0
    %v2952 = vadd.f32 0.0, %v2951
    %v2953 = vpop.f32.mrf.mxu0
    %2954 = vmatprep.mubr.f32.mxu0 0.0
    %2955 = vmatmul.mubr.f32.gmra.mxu0 %v2798
    %v2956 = vpop.f32.mrf.mxu0
    %v2957 = vadd.f32 0.0, %v2956
    %v2958 = vpop.f32.mrf.mxu0
    %2959 = vmatprep.mubr.f32.mxu0 0.0
    %2960 = vmatmul.mubr.f32.gmra.mxu0 %v2801
    %v2961 = vpop.f32.mrf.mxu0
    %v2962 = vadd.f32 0.0, %v2961
    %v2963 = vpop.f32.mrf.mxu0
    %2964 = vmatprep.mubr.f32.mxu0 0.0
    %2965 = vmatmul.mubr.f32.gmra.mxu0 %v2804
    %v2966 = vpop.f32.mrf.mxu0
    %v2967 = vadd.f32 0.0, %v2966
    %v2968 = vpop.f32.mrf.mxu0
    %2969 = vmatprep.mubr.f32.mxu0 0.0
    %2970 = vmatmul.mubr.f32.gmra.mxu0 %v2807
    %v2971 = vpop.f32.mrf.mxu0
    %v2972 = vadd.f32 0.0, %v2971
    %v2973 = vpop.f32.mrf.mxu0
    %2974 = vmatprep.mubr.f32.mxu0 0.0
    %2975 = vmatmul.mubr.f32.gmra.mxu0 %v2810
    %v2976 = vpop.f32.mrf.mxu0
    %v2977 = vadd.f32 0.0, %v2976
    %v2978 = vpop.f32.mrf.mxu0
    %2979 = vmatprep.mubr.f32.mxu0 0.0
    %2980 = vmatmul.mubr.f32.gmra.mxu0 %v2813
    %v2981 = vpop.f32.mrf.mxu0
    %v2982 = vadd.f32 0.0, %v2981
    %v2983 = vpop.f32.mrf.mxu0
    %2984 = vmatprep.mubr.f32.mxu0 0.0
    %2985 = vmatmul.mubr.f32.gmra.mxu0 %v2816
    %v2986 = vpop.f32.mrf.mxu0
    %v2987 = vadd.f32 0.0, %v2986
    %v2988 = vpop.f32.mrf.mxu0
    %2989 = vmatprep.mubr.f32.mxu0 0.0
    %2990 = vmatmul.mubr.f32.gmra.mxu0 %v2819
    %v2991 = vpop.f32.mrf.mxu0
    %v2992 = vadd.f32 0.0, %v2991
    %v2993 = vpop.f32.mrf.mxu0
    %2994 = vmatprep.mubr.f32.mxu0 0.0
    %2995 = vmatmul.mubr.f32.gmra.mxu0 %v2822
    %v2996 = vpop.f32.mrf.mxu0
    %v2997 = vadd.f32 0.0, %v2996
    %v2998 = vpop.f32.mrf.mxu0
    %2999 = vmatprep.mubr.f32.mxu0 0.0
    %3000 = vmatmul.mubr.f32.gmra.mxu0 %v2825
    %v3001 = vpop.f32.mrf.mxu0
    %v3002 = vadd.f32 0.0, %v3001
    %v3003 = vpop.f32.mrf.mxu0
    %3004 = vmatprep.mubr.f32.mxu0 0.0
    %3005 = vmatmul.mubr.f32.gmra.mxu0 %v2828
    %v3006 = vpop.f32.mrf.mxu0
    %v3007 = vadd.f32 0.0, %v3006
    %v3008 = vpop.f32.mrf.mxu0
    %3009 = vmatprep.mubr.f32.mxu0 0.0
    %3010 = vmatmul.mubr.f32.gmra.mxu0 %v2831
    %v3011 = vpop.f32.mrf.mxu0
    %v3012 = vadd.f32 0.0, %v3011
    %v3013 = vpop.f32.mrf.mxu0
    %3014 = vmatprep.mubr.f32.mxu0 0.0
    %3015 = vmatmul.mubr.f32.gmra.mxu0 %v2834
    %v3016 = vpop.f32.mrf.mxu0
    %v3017 = vadd.f32 0.0, %v3016
    %v3018 = vpop.f32.mrf.mxu0
    %3019 = vmatprep.mubr.f32.mxu0 0.0
    %3020 = vmatmul.mubr.f32.gmra.mxu0 %v2837
    %v3021 = vpop.f32.mrf.mxu0
    %v3022 = vadd.f32 0.0, %v3021
    %v3023 = vpop.f32.mrf.mxu0
    %3024 = vmatprep.mubr.f32.mxu0 0.0
    %3025 = vmatmul.mubr.f32.gmra.mxu0 %v2840
    %v3026 = vpop.f32.mrf.mxu0
    %v3027 = vadd.f32 0.0, %v3026
    %v3028 = vpop.f32.mrf.mxu0
    %3029 = vmatprep.mubr.f32.mxu0 0.0
    %3030 = vmatmul.mubr.f32.gmra.mxu0 %v2843
    %v3031 = vpop.f32.mrf.mxu0
    %v3032 = vadd.f32 0.0, %v3031
    %v3033 = vpop.f32.mrf.mxu0
    %3034 = vdwg.mxu0
    %v3035 = vadd.f32 %v2715, %v2912
    %v3036 = vadd.f32 %v2716, %v2917
    %v3037 = vadd.f32 %v2717, %v2922
    %v3038 = vadd.f32 %v2718, %v2927
    %v3039 = vadd.f32 %v2719, %v2932
    %v3040 = vadd.f32 %v2720, %v2937
    %v3041 = vadd.f32 %v2721, %v2942
    %v3042 = vadd.f32 %v2722, %v2947
    %v3043 = vadd.f32 %v2723, %v2952
    %v3044 = vadd.f32 %v2724, %v2957
    %v3045 = vadd.f32 %v2725, %v2962
    %v3046 = vadd.f32 %v2726, %v2967
    %v3047 = vadd.f32 %v2727, %v2972
    %v3048 = vadd.f32 %v2728, %v2977
    %v3049 = vadd.f32 %v2729, %v2982
    %v3050 = vadd.f32 %v2730, %v2987
    %v3051 = vadd.f32 %v2731, %v2992
    %v3052 = vadd.f32 %v2732, %v2997
    %v3053 = vadd.f32 %v2733, %v3002
    %v3054 = vadd.f32 %v2734, %v3007
    %v3055 = vadd.f32 %v2735, %v3012
    %v3056 = vadd.f32 %v2736, %v3017
    %v3057 = vadd.f32 %v2737, %v3022
    %v3058 = vadd.f32 %v2738, %v3027
    %v3059 = vadd.f32 %v2739, %v3032
    %v3060 = vld [vmem:[#allocation2 + $0x1b] sm:$0xff]
    %v3061 = vld [vmem:[#allocation2 + $0x23] sm:$0xff]
    %v3062 = vld [vmem:[#allocation2 + $0x2b] sm:$0xff]
    %v3063 = vld [vmem:[#allocation2 + $0x33] sm:$0xff]
    %v3064 = vld [vmem:[#allocation2 + $0x3b] sm:$0xff]
    %v3065 = vld [vmem:[#allocation2 + $0x43] sm:$0xff]
    %v3066 = vld [vmem:[#allocation2 + $0x4b] sm:$0xff]
    %v3067 = vld [vmem:[#allocation2 + $0x53] sm:$0xff]
    %v3068 = vld [vmem:[#allocation2 + $0x5b] sm:$0xff]
    %v3069 = vld [vmem:[#allocation2 + $0x63] sm:$0xff]
    %v3070 = vld [vmem:[#allocation2 + $0x6b] sm:$0xff]
    %v3071 = vld [vmem:[#allocation2 + $0x73] sm:$0xff]
    %v3072 = vld [vmem:[#allocation2 + $0x7b] sm:$0xff]
    %v3073 = vld [vmem:[#allocation2 + $0x83] sm:$0xff]
    %v3074 = vld [vmem:[#allocation2 + $0x8b] sm:$0xff]
    %v3075 = vld [vmem:[#allocation2 + $0x93] sm:$0xff]
    %v3076 = vld [vmem:[#allocation2 + $0x9b] sm:$0xff]
    %v3077 = vld [vmem:[#allocation2 + $0xa3] sm:$0xff]
    %v3078 = vld [vmem:[#allocation2 + $0xab] sm:$0xff]
    %v3079 = vld [vmem:[#allocation2 + $0xb3] sm:$0xff]
    %v3080 = vld [vmem:[#allocation2 + $0xbb] sm:$0xff]
    %v3081 = vld [vmem:[#allocation2 + $0xc3] sm:$0xff]
    %v3082 = vld [vmem:[#allocation2 + $0xcb] sm:$0xff]
    %v3083 = vld [vmem:[#allocation2 + $0xd3] sm:$0xff]
    %v3084 = vld [vmem:[#allocation2 + $0xdb] sm:$0xff]
    %s3085 = scalar_lea.vmem %s5, 256
    %v3086 = vld [vmem:[%s3085] sm:$0xff]
    %v3087 = vld [vmem:[%s3085 + $0x8] sm:$0xff]
    %v3088 = vld [vmem:[%s3085 + $0x10] sm:$0xff]
    %v3089 = vld [vmem:[%s3085 + $0x18] sm:$0xff]
    %v3091 = vsel %vm63, %v3060, 0
    %v3094 = vsel %vm63, %v3061, 0
    %v3097 = vsel %vm63, %v3062, 0
    %v3100 = vsel %vm63, %v3063, 0
    %v3103 = vsel %vm63, %v3064, 0
    %v3106 = vsel %vm63, %v3065, 0
    %v3109 = vsel %vm63, %v3066, 0
    %v3112 = vsel %vm63, %v3067, 0
    %v3115 = vsel %vm63, %v3068, 0
    %v3118 = vsel %vm63, %v3069, 0
    %v3121 = vsel %vm63, %v3070, 0
    %v3124 = vsel %vm63, %v3071, 0
    %v3127 = vsel %vm63, %v3072, 0
    %v3130 = vsel %vm63, %v3073, 0
    %v3133 = vsel %vm63, %v3074, 0
    %v3136 = vsel %vm63, %v3075, 0
    %v3139 = vsel %vm63, %v3076, 0
    %v3142 = vsel %vm63, %v3077, 0
    %v3145 = vsel %vm63, %v3078, 0
    %v3148 = vsel %vm63, %v3079, 0
    %v3151 = vsel %vm63, %v3080, 0
    %v3154 = vsel %vm63, %v3081, 0
    %v3157 = vsel %vm63, %v3082, 0
    %v3160 = vsel %vm63, %v3083, 0
    %v3163 = vsel %vm63, %v3084, 0
    %3165 = vmatprep.subr.mxu0 0.0
    %3166 = vmatpush1.msra.mxu0 0.0
    %3167 = vmatprep.subr.mxu0 0.0
    %3168 = vmatpush1.msra.mxu0 0.0
    %3169 = vmatprep.subr.mxu0 0.0
    %3170 = vmatpush1.msra.mxu0 0.0
    %3171 = vmatprep.subr.mxu0 0.0
    %3172 = vmatpush1.msra.mxu0 0.0
    %3173 = vmatprep.subr.mxu0 0.0
    %3174 = vmatpush1.msra.mxu0 0.0
    %3175 = vmatprep.subr.mxu0 0.0
    %3176 = vmatpush1.msra.mxu0 0.0
    %3177 = vmatprep.subr.mxu0 0.0
    %3178 = vmatpush1.msra.mxu0 0.0
    %3179 = vmatprep.subr.mxu0 0.0
    %3180 = vmatpush1.msra.mxu0 0.0
    %3181 = vmatprep.subr.mxu0 0.0
    %3182 = vmatpush1.msra.mxu0 0.0
    %3183 = vmatprep.subr.mxu0 0.0
    %3184 = vmatpush1.msra.mxu0 0.0
    %3185 = vmatprep.subr.mxu0 0.0
    %3186 = vmatpush1.msra.mxu0 0.0
    %3187 = vmatprep.subr.mxu0 0.0
    %3188 = vmatpush1.msra.mxu0 0.0
    %3189 = vmatprep.subr.mxu0 0.0
    %3190 = vmatpush1.msra.mxu0 %v3089
    %3191 = vmatprep.subr.mxu0 0.0
    %3192 = vmatpush1.msra.mxu0 %v3088
    %3193 = vmatprep.subr.mxu0 0.0
    %3194 = vmatpush1.msra.mxu0 %v3087
    %3195 = vmatprep.subr.mxu0 0.0
    %3196 = vmatpush1.msra.mxu0 %v3086
    %3197 = vmatprep.subr.mxu0 0.0
    %3198 = vmatpush2.msra.mxu0 0.0
    %3199 = vmatprep.subr.mxu0 0.0
    %3200 = vmatpush2.msra.mxu0 0.0
    %3201 = vmatprep.subr.mxu0 0.0
    %3202 = vmatpush2.msra.mxu0 0.0
    %3203 = vmatprep.subr.mxu0 0.0
    %3204 = vmatpush2.msra.mxu0 0.0
    %3205 = vmatprep.subr.mxu0 0.0
    %3206 = vmatpush2.msra.mxu0 0.0
    %3207 = vmatprep.subr.mxu0 0.0
    %3208 = vmatpush2.msra.mxu0 0.0
    %3209 = vmatprep.subr.mxu0 0.0
    %3210 = vmatpush2.msra.mxu0 0.0
    %3211 = vmatprep.subr.mxu0 0.0
    %3212 = vmatpush2.msra.mxu0 0.0
    %3213 = vmatprep.subr.mxu0 0.0
    %3214 = vmatpush2.msra.mxu0 0.0
    %3215 = vmatprep.subr.mxu0 0.0
    %3216 = vmatpush2.msra.mxu0 0.0
    %3217 = vmatprep.subr.mxu0 0.0
    %3218 = vmatpush2.msra.mxu0 0.0
    %3219 = vmatprep.subr.mxu0 0.0
    %3220 = vmatpush2.msra.mxu0 0.0
    %3221 = vmatprep.subr.mxu0 0.0
    %3222 = vmatpush2.msra.mxu0 0.0
    %3223 = vmatprep.subr.mxu0 0.0
    %3224 = vmatpush2.msra.mxu0 0.0
    %3225 = vmatprep.subr.mxu0 0.0
    %3226 = vmatpush2.msra.mxu0 0.0
    %3227 = vmatprep.subr.mxu0 0.0
    %3228 = vmatpush2.msra.mxu0 0.0
    %3229 = vmatprep.mubr.f32.mxu0 0.0
    %3230 = vmatmul.mubr.f32.gmra.mxu0 %v3091
    %v3231 = vpop.f32.mrf.mxu0
    %v3232 = vadd.f32 0.0, %v3231
    %v3233 = vpop.f32.mrf.mxu0
    %3234 = vmatprep.mubr.f32.mxu0 0.0
    %3235 = vmatmul.mubr.f32.gmra.mxu0 %v3094
    %v3236 = vpop.f32.mrf.mxu0
    %v3237 = vadd.f32 0.0, %v3236
    %v3238 = vpop.f32.mrf.mxu0
    %3239 = vmatprep.mubr.f32.mxu0 0.0
    %3240 = vmatmul.mubr.f32.gmra.mxu0 %v3097
    %v3241 = vpop.f32.mrf.mxu0
    %v3242 = vadd.f32 0.0, %v3241
    %v3243 = vpop.f32.mrf.mxu0
    %3244 = vmatprep.mubr.f32.mxu0 0.0
    %3245 = vmatmul.mubr.f32.gmra.mxu0 %v3100
    %v3246 = vpop.f32.mrf.mxu0
    %v3247 = vadd.f32 0.0, %v3246
    %v3248 = vpop.f32.mrf.mxu0
    %3249 = vmatprep.mubr.f32.mxu0 0.0
    %3250 = vmatmul.mubr.f32.gmra.mxu0 %v3103
    %v3251 = vpop.f32.mrf.mxu0
    %v3252 = vadd.f32 0.0, %v3251
    %v3253 = vpop.f32.mrf.mxu0
    %3254 = vmatprep.mubr.f32.mxu0 0.0
    %3255 = vmatmul.mubr.f32.gmra.mxu0 %v3106
    %v3256 = vpop.f32.mrf.mxu0
    %v3257 = vadd.f32 0.0, %v3256
    %v3258 = vpop.f32.mrf.mxu0
    %3259 = vmatprep.mubr.f32.mxu0 0.0
    %3260 = vmatmul.mubr.f32.gmra.mxu0 %v3109
    %v3261 = vpop.f32.mrf.mxu0
    %v3262 = vadd.f32 0.0, %v3261
    %v3263 = vpop.f32.mrf.mxu0
    %3264 = vmatprep.mubr.f32.mxu0 0.0
    %3265 = vmatmul.mubr.f32.gmra.mxu0 %v3112
    %v3266 = vpop.f32.mrf.mxu0
    %v3267 = vadd.f32 0.0, %v3266
    %v3268 = vpop.f32.mrf.mxu0
    %3269 = vmatprep.mubr.f32.mxu0 0.0
    %3270 = vmatmul.mubr.f32.gmra.mxu0 %v3115
    %v3271 = vpop.f32.mrf.mxu0
    %v3272 = vadd.f32 0.0, %v3271
    %v3273 = vpop.f32.mrf.mxu0
    %3274 = vmatprep.mubr.f32.mxu0 0.0
    %3275 = vmatmul.mubr.f32.gmra.mxu0 %v3118
    %v3276 = vpop.f32.mrf.mxu0
    %v3277 = vadd.f32 0.0, %v3276
    %v3278 = vpop.f32.mrf.mxu0
    %3279 = vmatprep.mubr.f32.mxu0 0.0
    %3280 = vmatmul.mubr.f32.gmra.mxu0 %v3121
    %v3281 = vpop.f32.mrf.mxu0
    %v3282 = vadd.f32 0.0, %v3281
    %v3283 = vpop.f32.mrf.mxu0
    %3284 = vmatprep.mubr.f32.mxu0 0.0
    %3285 = vmatmul.mubr.f32.gmra.mxu0 %v3124
    %v3286 = vpop.f32.mrf.mxu0
    %v3287 = vadd.f32 0.0, %v3286
    %v3288 = vpop.f32.mrf.mxu0
    %3289 = vmatprep.mubr.f32.mxu0 0.0
    %3290 = vmatmul.mubr.f32.gmra.mxu0 %v3127
    %v3291 = vpop.f32.mrf.mxu0
    %v3292 = vadd.f32 0.0, %v3291
    %v3293 = vpop.f32.mrf.mxu0
    %3294 = vmatprep.mubr.f32.mxu0 0.0
    %3295 = vmatmul.mubr.f32.gmra.mxu0 %v3130
    %v3296 = vpop.f32.mrf.mxu0
    %v3297 = vadd.f32 0.0, %v3296
    %v3298 = vpop.f32.mrf.mxu0
    %3299 = vmatprep.mubr.f32.mxu0 0.0
    %3300 = vmatmul.mubr.f32.gmra.mxu0 %v3133
    %v3301 = vpop.f32.mrf.mxu0
    %v3302 = vadd.f32 0.0, %v3301
    %v3303 = vpop.f32.mrf.mxu0
    %3304 = vmatprep.mubr.f32.mxu0 0.0
    %3305 = vmatmul.mubr.f32.gmra.mxu0 %v3136
    %v3306 = vpop.f32.mrf.mxu0
    %v3307 = vadd.f32 0.0, %v3306
    %v3308 = vpop.f32.mrf.mxu0
    %3309 = vmatprep.mubr.f32.mxu0 0.0
    %3310 = vmatmul.mubr.f32.gmra.mxu0 %v3139
    %v3311 = vpop.f32.mrf.mxu0
    %v3312 = vadd.f32 0.0, %v3311
    %v3313 = vpop.f32.mrf.mxu0
    %3314 = vmatprep.mubr.f32.mxu0 0.0
    %3315 = vmatmul.mubr.f32.gmra.mxu0 %v3142
    %v3316 = vpop.f32.mrf.mxu0
    %v3317 = vadd.f32 0.0, %v3316
    %v3318 = vpop.f32.mrf.mxu0
    %3319 = vmatprep.mubr.f32.mxu0 0.0
    %3320 = vmatmul.mubr.f32.gmra.mxu0 %v3145
    %v3321 = vpop.f32.mrf.mxu0
    %v3322 = vadd.f32 0.0, %v3321
    %v3323 = vpop.f32.mrf.mxu0
    %3324 = vmatprep.mubr.f32.mxu0 0.0
    %3325 = vmatmul.mubr.f32.gmra.mxu0 %v3148
    %v3326 = vpop.f32.mrf.mxu0
    %v3327 = vadd.f32 0.0, %v3326
    %v3328 = vpop.f32.mrf.mxu0
    %3329 = vmatprep.mubr.f32.mxu0 0.0
    %3330 = vmatmul.mubr.f32.gmra.mxu0 %v3151
    %v3331 = vpop.f32.mrf.mxu0
    %v3332 = vadd.f32 0.0, %v3331
    %v3333 = vpop.f32.mrf.mxu0
    %3334 = vmatprep.mubr.f32.mxu0 0.0
    %3335 = vmatmul.mubr.f32.gmra.mxu0 %v3154
    %v3336 = vpop.f32.mrf.mxu0
    %v3337 = vadd.f32 0.0, %v3336
    %v3338 = vpop.f32.mrf.mxu0
    %3339 = vmatprep.mubr.f32.mxu0 0.0
    %3340 = vmatmul.mubr.f32.gmra.mxu0 %v3157
    %v3341 = vpop.f32.mrf.mxu0
    %v3342 = vadd.f32 0.0, %v3341
    %v3343 = vpop.f32.mrf.mxu0
    %3344 = vmatprep.mubr.f32.mxu0 0.0
    %3345 = vmatmul.mubr.f32.gmra.mxu0 %v3160
    %v3346 = vpop.f32.mrf.mxu0
    %v3347 = vadd.f32 0.0, %v3346
    %v3348 = vpop.f32.mrf.mxu0
    %3349 = vmatprep.mubr.f32.mxu0 0.0
    %3350 = vmatmul.mubr.f32.gmra.mxu0 %v3163
    %v3351 = vpop.f32.mrf.mxu0
    %v3352 = vadd.f32 0.0, %v3351
    %v3353 = vpop.f32.mrf.mxu0
    %3354 = vdwg.mxu0
    %v3355 = vadd.f32 %v3035, %v3232
    %v3356 = vadd.f32 %v3036, %v3237
    %v3357 = vadd.f32 %v3037, %v3242
    %v3358 = vadd.f32 %v3038, %v3247
    %v3359 = vadd.f32 %v3039, %v3252
    %v3360 = vadd.f32 %v3040, %v3257
    %v3361 = vadd.f32 %v3041, %v3262
    %v3362 = vadd.f32 %v3042, %v3267
    %v3363 = vadd.f32 %v3043, %v3272
    %v3364 = vadd.f32 %v3044, %v3277
    %v3365 = vadd.f32 %v3045, %v3282
    %v3366 = vadd.f32 %v3046, %v3287
    %v3367 = vadd.f32 %v3047, %v3292
    %v3368 = vadd.f32 %v3048, %v3297
    %v3369 = vadd.f32 %v3049, %v3302
    %v3370 = vadd.f32 %v3050, %v3307
    %v3371 = vadd.f32 %v3051, %v3312
    %v3372 = vadd.f32 %v3052, %v3317
    %v3373 = vadd.f32 %v3053, %v3322
    %v3374 = vadd.f32 %v3054, %v3327
    %v3375 = vadd.f32 %v3055, %v3332
    %v3376 = vadd.f32 %v3056, %v3337
    %v3377 = vadd.f32 %v3057, %v3342
    %v3378 = vadd.f32 %v3058, %v3347
    %v3379 = vadd.f32 %v3059, %v3352
    %v3380 = vld [vmem:[%s6] sm:$0x1]
    %v3382 = vlaneseq
    %v3383 = vshrl.u32 %v3382, 7
    %v3384 = vsub.s32 0, %v3383
    %v3385 = vrot.slane %v3380, %v3384
    %v3387 = vadd.f32 %v3355, %v3385
    %v3388 = vadd.f32 %v3356, %v3385
    %v3389 = vadd.f32 %v3357, %v3385
    %v3390 = vadd.f32 %v3358, %v3385
    %v3391 = vadd.f32 %v3359, %v3385
    %v3392 = vadd.f32 %v3360, %v3385
    %v3393 = vadd.f32 %v3361, %v3385
    %v3394 = vadd.f32 %v3362, %v3385
    %v3395 = vadd.f32 %v3363, %v3385
    %v3396 = vadd.f32 %v3364, %v3385
    %v3397 = vadd.f32 %v3365, %v3385
    %v3398 = vadd.f32 %v3366, %v3385
    %v3399 = vadd.f32 %v3367, %v3385
    %v3400 = vadd.f32 %v3368, %v3385
    %v3401 = vadd.f32 %v3369, %v3385
    %v3402 = vadd.f32 %v3370, %v3385
    %v3403 = vadd.f32 %v3371, %v3385
    %v3404 = vadd.f32 %v3372, %v3385
    %v3405 = vadd.f32 %v3373, %v3385
    %v3406 = vadd.f32 %v3374, %v3385
    %v3407 = vadd.f32 %v3375, %v3385
    %v3408 = vadd.f32 %v3376, %v3385
    %v3409 = vadd.f32 %v3377, %v3385
    %v3410 = vadd.f32 %v3378, %v3385
    %v3411 = vadd.f32 %v3379, %v3385
    %vm3412 = vcmp.gt.f32.partialorder %v3387, 0.0
    %vm3413 = vcmp.gt.f32.partialorder %v3388, 0.0
    %vm3414 = vcmp.gt.f32.partialorder %v3389, 0.0
    %vm3415 = vcmp.gt.f32.partialorder %v3390, 0.0
    %vm3416 = vcmp.gt.f32.partialorder %v3391, 0.0
    %vm3417 = vcmp.gt.f32.partialorder %v3392, 0.0
    %vm3418 = vcmp.gt.f32.partialorder %v3393, 0.0
    %vm3419 = vcmp.gt.f32.partialorder %v3394, 0.0
    %vm3420 = vcmp.gt.f32.partialorder %v3395, 0.0
    %vm3421 = vcmp.gt.f32.partialorder %v3396, 0.0
    %vm3422 = vcmp.gt.f32.partialorder %v3397, 0.0
    %vm3423 = vcmp.gt.f32.partialorder %v3398, 0.0
    %vm3424 = vcmp.gt.f32.partialorder %v3399, 0.0
    %vm3425 = vcmp.gt.f32.partialorder %v3400, 0.0
    %vm3426 = vcmp.gt.f32.partialorder %v3401, 0.0
    %vm3427 = vcmp.gt.f32.partialorder %v3402, 0.0
    %vm3428 = vcmp.gt.f32.partialorder %v3403, 0.0
    %vm3429 = vcmp.gt.f32.partialorder %v3404, 0.0
    %vm3430 = vcmp.gt.f32.partialorder %v3405, 0.0
    %vm3431 = vcmp.gt.f32.partialorder %v3406, 0.0
    %vm3432 = vcmp.gt.f32.partialorder %v3407, 0.0
    %vm3433 = vcmp.gt.f32.partialorder %v3408, 0.0
    %vm3434 = vcmp.gt.f32.partialorder %v3409, 0.0
    %vm3435 = vcmp.gt.f32.partialorder %v3410, 0.0
    %vm3436 = vcmp.gt.f32.partialorder %v3411, 0.0
    %v3437 = vmul.f32 %v3387, 0.2
    %v3438 = vmul.f32 %v3388, 0.2
    %v3439 = vmul.f32 %v3389, 0.2
    %v3440 = vmul.f32 %v3390, 0.2
    %v3441 = vmul.f32 %v3391, 0.2
    %v3442 = vmul.f32 %v3392, 0.2
    %v3443 = vmul.f32 %v3393, 0.2
    %v3444 = vmul.f32 %v3394, 0.2
    %v3445 = vmul.f32 %v3395, 0.2
    %v3446 = vmul.f32 %v3396, 0.2
    %v3447 = vmul.f32 %v3397, 0.2
    %v3448 = vmul.f32 %v3398, 0.2
    %v3449 = vmul.f32 %v3399, 0.2
    %v3450 = vmul.f32 %v3400, 0.2
    %v3451 = vmul.f32 %v3401, 0.2
    %v3452 = vmul.f32 %v3402, 0.2
    %v3453 = vmul.f32 %v3403, 0.2
    %v3454 = vmul.f32 %v3404, 0.2
    %v3455 = vmul.f32 %v3405, 0.2
    %v3456 = vmul.f32 %v3406, 0.2
    %v3457 = vmul.f32 %v3407, 0.2
    %v3458 = vmul.f32 %v3408, 0.2
    %v3459 = vmul.f32 %v3409, 0.2
    %v3460 = vmul.f32 %v3410, 0.2
    %v3461 = vmul.f32 %v3411, 0.2
    %v3462 = vsel %vm3412, %v3387, %v3437
    %v3463 = vsel %vm3413, %v3388, %v3438
    %v3464 = vsel %vm3414, %v3389, %v3439
    %v3465 = vsel %vm3415, %v3390, %v3440
    %v3466 = vsel %vm3416, %v3391, %v3441
    %v3467 = vsel %vm3417, %v3392, %v3442
    %v3468 = vsel %vm3418, %v3393, %v3443
    %v3469 = vsel %vm3419, %v3394, %v3444
    %v3470 = vsel %vm3420, %v3395, %v3445
    %v3471 = vsel %vm3421, %v3396, %v3446
    %v3472 = vsel %vm3422, %v3397, %v3447
    %v3473 = vsel %vm3423, %v3398, %v3448
    %v3474 = vsel %vm3424, %v3399, %v3449
    %v3475 = vsel %vm3425, %v3400, %v3450
    %v3476 = vsel %vm3426, %v3401, %v3451
    %v3477 = vsel %vm3427, %v3402, %v3452
    %v3478 = vsel %vm3428, %v3403, %v3453
    %v3479 = vsel %vm3429, %v3404, %v3454
    %v3480 = vsel %vm3430, %v3405, %v3455
    %v3481 = vsel %vm3431, %v3406, %v3456
    %v3482 = vsel %vm3432, %v3407, %v3457
    %v3483 = vsel %vm3433, %v3408, %v3458
    %v3484 = vsel %vm3434, %v3409, %v3459
    %v3485 = vsel %vm3435, %v3410, %v3460
    %v3486 = vsel %vm3436, %v3411, %v3461
    %v3487 = vmul.f32 %v3462, %v98
    %v3488 = vmul.f32 %v3463, %v99
    %v3489 = vmul.f32 %v3464, %v100
    %v3490 = vmul.f32 %v3465, %v101
    %v3491 = vmul.f32 %v3466, %v102
    %v3492 = vmul.f32 %v3467, %v103
    %v3493 = vmul.f32 %v3468, %v104
    %v3494 = vmul.f32 %v3469, %v105
    %v3495 = vmul.f32 %v3470, %v106
    %v3496 = vmul.f32 %v3471, %v107
    %v3497 = vmul.f32 %v3472, %v108
    %v3498 = vmul.f32 %v3473, %v109
    %v3499 = vmul.f32 %v3474, %v110
    %v3500 = vmul.f32 %v3475, %v111
    %v3501 = vmul.f32 %v3476, %v112
    %v3502 = vmul.f32 %v3477, %v113
    %v3503 = vmul.f32 %v3478, %v114
    %v3504 = vmul.f32 %v3479, %v115
    %v3505 = vmul.f32 %v3480, %v116
    %v3506 = vmul.f32 %v3481, %v117
    %v3507 = vmul.f32 %v3482, %v118
    %v3508 = vmul.f32 %v3483, %v119
    %v3509 = vmul.f32 %v3484, %v120
    %v3510 = vmul.f32 %v3485, %v121
    %v3511 = vmul.f32 %v3486, %v122
    %3512 = vst.msk [vmem:[#allocation3 + $0x10] sm:$0xff] %vm68, %v3487
    %3513 = vst.msk [vmem:[#allocation3 + $0x18] sm:$0xff] %vm68, %v3488
    %3514 = vst.msk [vmem:[#allocation3 + $0x20] sm:$0xff] %vm68, %v3489
    %3515 = vst.msk [vmem:[#allocation3 + $0x28] sm:$0xff] %vm68, %v3490
    %3516 = vst.msk [vmem:[#allocation3 + $0x30] sm:$0xff] %vm68, %v3491
    %3517 = vst.msk [vmem:[#allocation3 + $0x38] sm:$0xff] %vm68, %v3492
    %3518 = vst.msk [vmem:[#allocation3 + $0x40] sm:$0xff] %vm68, %v3493
    %3519 = vst.msk [vmem:[#allocation3 + $0x48] sm:$0xff] %vm68, %v3494
    %3520 = vst.msk [vmem:[#allocation3 + $0x50] sm:$0xff] %vm68, %v3495
    %3521 = vst.msk [vmem:[#allocation3 + $0x58] sm:$0xff] %vm68, %v3496
    %3522 = vst.msk [vmem:[#allocation3 + $0x60] sm:$0xff] %vm68, %v3497
    %3523 = vst.msk [vmem:[#allocation3 + $0x68] sm:$0xff] %vm68, %v3498
    %3524 = vst.msk [vmem:[#allocation3 + $0x70] sm:$0xff] %vm68, %v3499
    %3525 = vst.msk [vmem:[#allocation3 + $0x78] sm:$0xff] %vm68, %v3500
    %3526 = vst.msk [vmem:[#allocation3 + $0x80] sm:$0xff] %vm68, %v3501
    %3527 = vst.msk [vmem:[#allocation3 + $0x88] sm:$0xff] %vm68, %v3502
    %3528 = vst.msk [vmem:[#allocation3 + $0x90] sm:$0xff] %vm68, %v3503
    %3529 = vst.msk [vmem:[#allocation3 + $0x98] sm:$0xff] %vm68, %v3504
    %3530 = vst.msk [vmem:[#allocation3 + $0xa0] sm:$0xff] %vm68, %v3505
    %3531 = vst.msk [vmem:[#allocation3 + $0xa8] sm:$0xff] %vm68, %v3506
    %3532 = vst.msk [vmem:[#allocation3 + $0xb0] sm:$0xff] %vm68, %v3507
    %3533 = vst.msk [vmem:[#allocation3 + $0xb8] sm:$0xff] %vm68, %v3508
    %3534 = vst.msk [vmem:[#allocation3 + $0xc0] sm:$0xff] %vm68, %v3509
    %3535 = vst.msk [vmem:[#allocation3 + $0xc8] sm:$0xff] %vm68, %v3510
    %3536 = vst.msk [vmem:[#allocation3 + $0xd0] sm:$0xff] %vm68, %v3511
    %v3537 = vld [vmem:[#allocation3 + $0x5] sm:$0xff]
    %v3538 = vld [vmem:[#allocation3 + $0xd] sm:$0xff]
    %v3539 = vld [vmem:[#allocation3 + $0x15] sm:$0xff]
    %v3540 = vld [vmem:[#allocation3 + $0x1d] sm:$0xff]
    %v3541 = vld [vmem:[#allocation3 + $0x25] sm:$0xff]
    %v3542 = vld [vmem:[#allocation3 + $0x2d] sm:$0xff]
    %v3543 = vld [vmem:[#allocation3 + $0x35] sm:$0xff]
    %v3544 = vld [vmem:[#allocation3 + $0x3d] sm:$0xff]
    %v3545 = vld [vmem:[#allocation3 + $0x45] sm:$0xff]
    %v3546 = vld [vmem:[#allocation3 + $0x4d] sm:$0xff]
    %v3547 = vld [vmem:[#allocation3 + $0x55] sm:$0xff]
    %v3548 = vld [vmem:[#allocation3 + $0x5d] sm:$0xff]
    %v3549 = vld [vmem:[#allocation3 + $0x65] sm:$0xff]
    %v3550 = vld [vmem:[#allocation3 + $0x6d] sm:$0xff]
    %v3551 = vld [vmem:[#allocation3 + $0x75] sm:$0xff]
    %v3552 = vld [vmem:[#allocation3 + $0x7d] sm:$0xff]
    %v3553 = vld [vmem:[#allocation3 + $0x85] sm:$0xff]
    %v3554 = vld [vmem:[#allocation3 + $0x8d] sm:$0xff]
    %v3555 = vld [vmem:[#allocation3 + $0x95] sm:$0xff]
    %v3556 = vld [vmem:[#allocation3 + $0x9d] sm:$0xff]
    %v3557 = vld [vmem:[#allocation3 + $0xa5] sm:$0xff]
    %v3558 = vld [vmem:[#allocation3 + $0xad] sm:$0xff]
    %v3559 = vld [vmem:[#allocation3 + $0xb5] sm:$0xff]
    %v3560 = vld [vmem:[#allocation3 + $0xbd] sm:$0xff]
    %v3561 = vld [vmem:[#allocation3 + $0xc5] sm:$0xff]
    %v3562 = vld [vmem:[#allocation6] sm:$0xff]
    %v3563 = vld [vmem:[#allocation6 + $0x8] sm:$0xff]
    %v3564 = vld [vmem:[#allocation6 + $0x10] sm:$0xff]
    %v3565 = vld [vmem:[#allocation6 + $0x18] sm:$0xff]
    %v3566 = vld [vmem:[#allocation6 + $0x20] sm:$0xff]
    %v3567 = vld [vmem:[#allocation6 + $0x28] sm:$0xff]
    %v3568 = vld [vmem:[#allocation6 + $0x30] sm:$0xff]
    %v3569 = vld [vmem:[#allocation6 + $0x38] sm:$0xff]
    %v3570 = vld [vmem:[#allocation3 + $0x6] sm:$0xff]
    %v3571 = vld [vmem:[#allocation3 + $0xe] sm:$0xff]
    %v3572 = vld [vmem:[#allocation3 + $0x16] sm:$0xff]
    %v3573 = vld [vmem:[#allocation3 + $0x1e] sm:$0xff]
    %v3574 = vld [vmem:[#allocation3 + $0x26] sm:$0xff]
    %v3575 = vld [vmem:[#allocation3 + $0x2e] sm:$0xff]
    %v3576 = vld [vmem:[#allocation3 + $0x36] sm:$0xff]
    %v3577 = vld [vmem:[#allocation3 + $0x3e] sm:$0xff]
    %v3578 = vld [vmem:[#allocation3 + $0x46] sm:$0xff]
    %v3579 = vld [vmem:[#allocation3 + $0x4e] sm:$0xff]
    %v3580 = vld [vmem:[#allocation3 + $0x56] sm:$0xff]
    %v3581 = vld [vmem:[#allocation3 + $0x5e] sm:$0xff]
    %v3582 = vld [vmem:[#allocation3 + $0x66] sm:$0xff]
    %v3583 = vld [vmem:[#allocation3 + $0x6e] sm:$0xff]
    %v3584 = vld [vmem:[#allocation3 + $0x76] sm:$0xff]
    %v3585 = vld [vmem:[#allocation3 + $0x7e] sm:$0xff]
    %v3586 = vld [vmem:[#allocation3 + $0x86] sm:$0xff]
    %v3587 = vld [vmem:[#allocation3 + $0x8e] sm:$0xff]
    %v3588 = vld [vmem:[#allocation3 + $0x96] sm:$0xff]
    %v3589 = vld [vmem:[#allocation3 + $0x9e] sm:$0xff]
    %v3590 = vld [vmem:[#allocation3 + $0xa6] sm:$0xff]
    %v3591 = vld [vmem:[#allocation3 + $0xae] sm:$0xff]
    %v3592 = vld [vmem:[#allocation3 + $0xb6] sm:$0xff]
    %v3593 = vld [vmem:[#allocation3 + $0xbe] sm:$0xff]
    %v3594 = vld [vmem:[#allocation3 + $0xc6] sm:$0xff]
    %s3595 = scalar_lea.vmem [#allocation6], 64
    %v3596 = vld [vmem:[%s3595] sm:$0xff]
    %v3597 = vld [vmem:[%s3595 + $0x8] sm:$0xff]
    %v3598 = vld [vmem:[%s3595 + $0x10] sm:$0xff]
    %v3599 = vld [vmem:[%s3595 + $0x18] sm:$0xff]
    %v3600 = vld [vmem:[%s3595 + $0x20] sm:$0xff]
    %v3601 = vld [vmem:[%s3595 + $0x28] sm:$0xff]
    %v3602 = vld [vmem:[%s3595 + $0x30] sm:$0xff]
    %v3603 = vld [vmem:[%s3595 + $0x38] sm:$0xff]
    %v3605 = vsel %vm68, %v3570, 0
    %v3608 = vsel %vm68, %v3571, 0
    %v3611 = vsel %vm68, %v3572, 0
    %v3614 = vsel %vm68, %v3573, 0
    %v3617 = vsel %vm68, %v3574, 0
    %v3620 = vsel %vm68, %v3575, 0
    %v3623 = vsel %vm68, %v3576, 0
    %v3626 = vsel %vm68, %v3577, 0
    %v3629 = vsel %vm68, %v3578, 0
    %v3632 = vsel %vm68, %v3579, 0
    %v3635 = vsel %vm68, %v3580, 0
    %v3638 = vsel %vm68, %v3581, 0
    %v3641 = vsel %vm68, %v3582, 0
    %v3644 = vsel %vm68, %v3583, 0
    %v3647 = vsel %vm68, %v3584, 0
    %v3650 = vsel %vm68, %v3585, 0
    %v3653 = vsel %vm68, %v3586, 0
    %v3656 = vsel %vm68, %v3587, 0
    %v3659 = vsel %vm68, %v3588, 0
    %v3662 = vsel %vm68, %v3589, 0
    %v3665 = vsel %vm68, %v3590, 0
    %v3668 = vsel %vm68, %v3591, 0
    %v3671 = vsel %vm68, %v3592, 0
    %v3674 = vsel %vm68, %v3593, 0
    %v3677 = vsel %vm68, %v3594, 0
    %3679 = vmatprep.subr.mxu0 0.0
    %3680 = vmatpush1.msra.mxu0 0.0
    %3681 = vmatprep.subr.mxu0 0.0
    %3682 = vmatpush1.msra.mxu0 0.0
    %3683 = vmatprep.subr.mxu0 0.0
    %3684 = vmatpush1.msra.mxu0 0.0
    %3685 = vmatprep.subr.mxu0 0.0
    %3686 = vmatpush1.msra.mxu0 0.0
    %3687 = vmatprep.subr.mxu0 0.0
    %3688 = vmatpush1.msra.mxu0 0.0
    %3689 = vmatprep.subr.mxu0 0.0
    %3690 = vmatpush1.msra.mxu0 0.0
    %3691 = vmatprep.subr.mxu0 0.0
    %3692 = vmatpush1.msra.mxu0 0.0
    %3693 = vmatprep.subr.mxu0 0.0
    %3694 = vmatpush1.msra.mxu0 0.0
    %3695 = vmatprep.subr.mxu0 0.0
    %3696 = vmatpush1.msra.mxu0 %v3603
    %3697 = vmatprep.subr.mxu0 0.0
    %3698 = vmatpush1.msra.mxu0 %v3602
    %3699 = vmatprep.subr.mxu0 0.0
    %3700 = vmatpush1.msra.mxu0 %v3601
    %3701 = vmatprep.subr.mxu0 0.0
    %3702 = vmatpush1.msra.mxu0 %v3600
    %3703 = vmatprep.subr.mxu0 0.0
    %3704 = vmatpush1.msra.mxu0 %v3599
    %3705 = vmatprep.subr.mxu0 0.0
    %3706 = vmatpush1.msra.mxu0 %v3598
    %3707 = vmatprep.subr.mxu0 0.0
    %3708 = vmatpush1.msra.mxu0 %v3597
    %3709 = vmatprep.subr.mxu0 0.0
    %3710 = vmatpush1.msra.mxu0 %v3596
    %3711 = vmatprep.subr.mxu0 0.0
    %3712 = vmatpush2.msra.mxu0 0.0
    %3713 = vmatprep.subr.mxu0 0.0
    %3714 = vmatpush2.msra.mxu0 0.0
    %3715 = vmatprep.subr.mxu0 0.0
    %3716 = vmatpush2.msra.mxu0 0.0
    %3717 = vmatprep.subr.mxu0 0.0
    %3718 = vmatpush2.msra.mxu0 0.0
    %3719 = vmatprep.subr.mxu0 0.0
    %3720 = vmatpush2.msra.mxu0 0.0
    %3721 = vmatprep.subr.mxu0 0.0
    %3722 = vmatpush2.msra.mxu0 0.0
    %3723 = vmatprep.subr.mxu0 0.0
    %3724 = vmatpush2.msra.mxu0 0.0
    %3725 = vmatprep.subr.mxu0 0.0
    %3726 = vmatpush2.msra.mxu0 0.0
    %3727 = vmatprep.subr.mxu0 0.0
    %3728 = vmatpush2.msra.mxu0 0.0
    %3729 = vmatprep.subr.mxu0 0.0
    %3730 = vmatpush2.msra.mxu0 0.0
    %3731 = vmatprep.subr.mxu0 0.0
    %3732 = vmatpush2.msra.mxu0 0.0
    %3733 = vmatprep.subr.mxu0 0.0
    %3734 = vmatpush2.msra.mxu0 0.0
    %3735 = vmatprep.subr.mxu0 0.0
    %3736 = vmatpush2.msra.mxu0 0.0
    %3737 = vmatprep.subr.mxu0 0.0
    %3738 = vmatpush2.msra.mxu0 0.0
    %3739 = vmatprep.subr.mxu0 0.0
    %3740 = vmatpush2.msra.mxu0 0.0
    %3741 = vmatprep.subr.mxu0 0.0
    %3742 = vmatpush2.msra.mxu0 0.0
    %3743 = vmatprep.mubr.f32.mxu0 0.0
    %3744 = vmatmul.mubr.f32.gmra.mxu0 %v3605
    %v3745 = vpop.f32.mrf.mxu0
    %v3746 = vadd.f32 0.0, %v3745
    %v3747 = vpop.f32.mrf.mxu0
    %3748 = vmatprep.mubr.f32.mxu0 0.0
    %3749 = vmatmul.mubr.f32.gmra.mxu0 %v3608
    %v3750 = vpop.f32.mrf.mxu0
    %v3751 = vadd.f32 0.0, %v3750
    %v3752 = vpop.f32.mrf.mxu0
    %3753 = vmatprep.mubr.f32.mxu0 0.0
    %3754 = vmatmul.mubr.f32.gmra.mxu0 %v3611
    %v3755 = vpop.f32.mrf.mxu0
    %v3756 = vadd.f32 0.0, %v3755
    %v3757 = vpop.f32.mrf.mxu0
    %3758 = vmatprep.mubr.f32.mxu0 0.0
    %3759 = vmatmul.mubr.f32.gmra.mxu0 %v3614
    %v3760 = vpop.f32.mrf.mxu0
    %v3761 = vadd.f32 0.0, %v3760
    %v3762 = vpop.f32.mrf.mxu0
    %3763 = vmatprep.mubr.f32.mxu0 0.0
    %3764 = vmatmul.mubr.f32.gmra.mxu0 %v3617
    %v3765 = vpop.f32.mrf.mxu0
    %v3766 = vadd.f32 0.0, %v3765
    %v3767 = vpop.f32.mrf.mxu0
    %3768 = vmatprep.mubr.f32.mxu0 0.0
    %3769 = vmatmul.mubr.f32.gmra.mxu0 %v3620
    %v3770 = vpop.f32.mrf.mxu0
    %v3771 = vadd.f32 0.0, %v3770
    %v3772 = vpop.f32.mrf.mxu0
    %3773 = vmatprep.mubr.f32.mxu0 0.0
    %3774 = vmatmul.mubr.f32.gmra.mxu0 %v3623
    %v3775 = vpop.f32.mrf.mxu0
    %v3776 = vadd.f32 0.0, %v3775
    %v3777 = vpop.f32.mrf.mxu0
    %3778 = vmatprep.mubr.f32.mxu0 0.0
    %3779 = vmatmul.mubr.f32.gmra.mxu0 %v3626
    %v3780 = vpop.f32.mrf.mxu0
    %v3781 = vadd.f32 0.0, %v3780
    %v3782 = vpop.f32.mrf.mxu0
    %3783 = vmatprep.mubr.f32.mxu0 0.0
    %3784 = vmatmul.mubr.f32.gmra.mxu0 %v3629
    %v3785 = vpop.f32.mrf.mxu0
    %v3786 = vadd.f32 0.0, %v3785
    %v3787 = vpop.f32.mrf.mxu0
    %3788 = vmatprep.mubr.f32.mxu0 0.0
    %3789 = vmatmul.mubr.f32.gmra.mxu0 %v3632
    %v3790 = vpop.f32.mrf.mxu0
    %v3791 = vadd.f32 0.0, %v3790
    %v3792 = vpop.f32.mrf.mxu0
    %3793 = vmatprep.mubr.f32.mxu0 0.0
    %3794 = vmatmul.mubr.f32.gmra.mxu0 %v3635
    %v3795 = vpop.f32.mrf.mxu0
    %v3796 = vadd.f32 0.0, %v3795
    %v3797 = vpop.f32.mrf.mxu0
    %3798 = vmatprep.mubr.f32.mxu0 0.0
    %3799 = vmatmul.mubr.f32.gmra.mxu0 %v3638
    %v3800 = vpop.f32.mrf.mxu0
    %v3801 = vadd.f32 0.0, %v3800
    %v3802 = vpop.f32.mrf.mxu0
    %3803 = vmatprep.mubr.f32.mxu0 0.0
    %3804 = vmatmul.mubr.f32.gmra.mxu0 %v3641
    %v3805 = vpop.f32.mrf.mxu0
    %v3806 = vadd.f32 0.0, %v3805
    %v3807 = vpop.f32.mrf.mxu0
    %3808 = vmatprep.mubr.f32.mxu0 0.0
    %3809 = vmatmul.mubr.f32.gmra.mxu0 %v3644
    %v3810 = vpop.f32.mrf.mxu0
    %v3811 = vadd.f32 0.0, %v3810
    %v3812 = vpop.f32.mrf.mxu0
    %3813 = vmatprep.mubr.f32.mxu0 0.0
    %3814 = vmatmul.mubr.f32.gmra.mxu0 %v3647
    %v3815 = vpop.f32.mrf.mxu0
    %v3816 = vadd.f32 0.0, %v3815
    %v3817 = vpop.f32.mrf.mxu0
    %3818 = vmatprep.mubr.f32.mxu0 0.0
    %3819 = vmatmul.mubr.f32.gmra.mxu0 %v3650
    %v3820 = vpop.f32.mrf.mxu0
    %v3821 = vadd.f32 0.0, %v3820
    %v3822 = vpop.f32.mrf.mxu0
    %3823 = vmatprep.mubr.f32.mxu0 0.0
    %3824 = vmatmul.mubr.f32.gmra.mxu0 %v3653
    %v3825 = vpop.f32.mrf.mxu0
    %v3826 = vadd.f32 0.0, %v3825
    %v3827 = vpop.f32.mrf.mxu0
    %3828 = vmatprep.mubr.f32.mxu0 0.0
    %3829 = vmatmul.mubr.f32.gmra.mxu0 %v3656
    %v3830 = vpop.f32.mrf.mxu0
    %v3831 = vadd.f32 0.0, %v3830
    %v3832 = vpop.f32.mrf.mxu0
    %3833 = vmatprep.mubr.f32.mxu0 0.0
    %3834 = vmatmul.mubr.f32.gmra.mxu0 %v3659
    %v3835 = vpop.f32.mrf.mxu0
    %v3836 = vadd.f32 0.0, %v3835
    %v3837 = vpop.f32.mrf.mxu0
    %3838 = vmatprep.mubr.f32.mxu0 0.0
    %3839 = vmatmul.mubr.f32.gmra.mxu0 %v3662
    %v3840 = vpop.f32.mrf.mxu0
    %v3841 = vadd.f32 0.0, %v3840
    %v3842 = vpop.f32.mrf.mxu0
    %3843 = vmatprep.mubr.f32.mxu0 0.0
    %3844 = vmatmul.mubr.f32.gmra.mxu0 %v3665
    %v3845 = vpop.f32.mrf.mxu0
    %v3846 = vadd.f32 0.0, %v3845
    %v3847 = vpop.f32.mrf.mxu0
    %3848 = vmatprep.mubr.f32.mxu0 0.0
    %3849 = vmatmul.mubr.f32.gmra.mxu0 %v3668
    %v3850 = vpop.f32.mrf.mxu0
    %v3851 = vadd.f32 0.0, %v3850
    %v3852 = vpop.f32.mrf.mxu0
    %3853 = vmatprep.mubr.f32.mxu0 0.0
    %3854 = vmatmul.mubr.f32.gmra.mxu0 %v3671
    %v3855 = vpop.f32.mrf.mxu0
    %v3856 = vadd.f32 0.0, %v3855
    %v3857 = vpop.f32.mrf.mxu0
    %3858 = vmatprep.mubr.f32.mxu0 0.0
    %3859 = vmatmul.mubr.f32.gmra.mxu0 %v3674
    %v3860 = vpop.f32.mrf.mxu0
    %v3861 = vadd.f32 0.0, %v3860
    %v3862 = vpop.f32.mrf.mxu0
    %3863 = vmatprep.mubr.f32.mxu0 0.0
    %3864 = vmatmul.mubr.f32.gmra.mxu0 %v3677
    %v3865 = vpop.f32.mrf.mxu0
    %v3866 = vadd.f32 0.0, %v3865
    %v3867 = vpop.f32.mrf.mxu0
    %3868 = vdwg.mxu0
    %v3870 = vsel %vm68, %v3537, 0
    %v3873 = vsel %vm68, %v3538, 0
    %v3876 = vsel %vm68, %v3539, 0
    %v3879 = vsel %vm68, %v3540, 0
    %v3882 = vsel %vm68, %v3541, 0
    %v3885 = vsel %vm68, %v3542, 0
    %v3888 = vsel %vm68, %v3543, 0
    %v3891 = vsel %vm68, %v3544, 0
    %v3894 = vsel %vm68, %v3545, 0
    %v3897 = vsel %vm68, %v3546, 0
    %v3900 = vsel %vm68, %v3547, 0
    %v3903 = vsel %vm68, %v3548, 0
    %v3906 = vsel %vm68, %v3549, 0
    %v3909 = vsel %vm68, %v3550, 0
    %v3912 = vsel %vm68, %v3551, 0
    %v3915 = vsel %vm68, %v3552, 0
    %v3918 = vsel %vm68, %v3553, 0
    %v3921 = vsel %vm68, %v3554, 0
    %v3924 = vsel %vm68, %v3555, 0
    %v3927 = vsel %vm68, %v3556, 0
    %v3930 = vsel %vm68, %v3557, 0
    %v3933 = vsel %vm68, %v3558, 0
    %v3936 = vsel %vm68, %v3559, 0
    %v3939 = vsel %vm68, %v3560, 0
    %v3942 = vsel %vm68, %v3561, 0
    %3944 = vmatprep.subr.mxu0 0.0
    %3945 = vmatpush1.msra.mxu0 0.0
    %3946 = vmatprep.subr.mxu0 0.0
    %3947 = vmatpush1.msra.mxu0 0.0
    %3948 = vmatprep.subr.mxu0 0.0
    %3949 = vmatpush1.msra.mxu0 0.0
    %3950 = vmatprep.subr.mxu0 0.0
    %3951 = vmatpush1.msra.mxu0 0.0
    %3952 = vmatprep.subr.mxu0 0.0
    %3953 = vmatpush1.msra.mxu0 0.0
    %3954 = vmatprep.subr.mxu0 0.0
    %3955 = vmatpush1.msra.mxu0 0.0
    %3956 = vmatprep.subr.mxu0 0.0
    %3957 = vmatpush1.msra.mxu0 0.0
    %3958 = vmatprep.subr.mxu0 0.0
    %3959 = vmatpush1.msra.mxu0 0.0
    %3960 = vmatprep.subr.mxu0 0.0
    %3961 = vmatpush1.msra.mxu0 %v3569
    %3962 = vmatprep.subr.mxu0 0.0
    %3963 = vmatpush1.msra.mxu0 %v3568
    %3964 = vmatprep.subr.mxu0 0.0
    %3965 = vmatpush1.msra.mxu0 %v3567
    %3966 = vmatprep.subr.mxu0 0.0
    %3967 = vmatpush1.msra.mxu0 %v3566
    %3968 = vmatprep.subr.mxu0 0.0
    %3969 = vmatpush1.msra.mxu0 %v3565
    %3970 = vmatprep.subr.mxu0 0.0
    %3971 = vmatpush1.msra.mxu0 %v3564
    %3972 = vmatprep.subr.mxu0 0.0
    %3973 = vmatpush1.msra.mxu0 %v3563
    %3974 = vmatprep.subr.mxu0 0.0
    %3975 = vmatpush1.msra.mxu0 %v3562
    %3976 = vmatprep.subr.mxu0 0.0
    %3977 = vmatpush2.msra.mxu0 0.0
    %3978 = vmatprep.subr.mxu0 0.0
    %3979 = vmatpush2.msra.mxu0 0.0
    %3980 = vmatprep.subr.mxu0 0.0
    %3981 = vmatpush2.msra.mxu0 0.0
    %3982 = vmatprep.subr.mxu0 0.0
    %3983 = vmatpush2.msra.mxu0 0.0
    %3984 = vmatprep.subr.mxu0 0.0
    %3985 = vmatpush2.msra.mxu0 0.0
    %3986 = vmatprep.subr.mxu0 0.0
    %3987 = vmatpush2.msra.mxu0 0.0
    %3988 = vmatprep.subr.mxu0 0.0
    %3989 = vmatpush2.msra.mxu0 0.0
    %3990 = vmatprep.subr.mxu0 0.0
    %3991 = vmatpush2.msra.mxu0 0.0
    %3992 = vmatprep.subr.mxu0 0.0
    %3993 = vmatpush2.msra.mxu0 0.0
    %3994 = vmatprep.subr.mxu0 0.0
    %3995 = vmatpush2.msra.mxu0 0.0
    %3996 = vmatprep.subr.mxu0 0.0
    %3997 = vmatpush2.msra.mxu0 0.0
    %3998 = vmatprep.subr.mxu0 0.0
    %3999 = vmatpush2.msra.mxu0 0.0
    %4000 = vmatprep.subr.mxu0 0.0
    %4001 = vmatpush2.msra.mxu0 0.0
    %4002 = vmatprep.subr.mxu0 0.0
    %4003 = vmatpush2.msra.mxu0 0.0
    %4004 = vmatprep.subr.mxu0 0.0
    %4005 = vmatpush2.msra.mxu0 0.0
    %4006 = vmatprep.subr.mxu0 0.0
    %4007 = vmatpush2.msra.mxu0 0.0
    %4008 = vmatprep.mubr.f32.mxu0 0.0
    %4009 = vmatmul.mubr.f32.gmra.mxu0 %v3870
    %v4010 = vpop.f32.mrf.mxu0
    %v4011 = vadd.f32 %v3746, %v4010
    %v4012 = vpop.f32.mrf.mxu0
    %4013 = vmatprep.mubr.f32.mxu0 0.0
    %4014 = vmatmul.mubr.f32.gmra.mxu0 %v3873
    %v4015 = vpop.f32.mrf.mxu0
    %v4016 = vadd.f32 %v3751, %v4015
    %v4017 = vpop.f32.mrf.mxu0
    %4018 = vmatprep.mubr.f32.mxu0 0.0
    %4019 = vmatmul.mubr.f32.gmra.mxu0 %v3876
    %v4020 = vpop.f32.mrf.mxu0
    %v4021 = vadd.f32 %v3756, %v4020
    %v4022 = vpop.f32.mrf.mxu0
    %4023 = vmatprep.mubr.f32.mxu0 0.0
    %4024 = vmatmul.mubr.f32.gmra.mxu0 %v3879
    %v4025 = vpop.f32.mrf.mxu0
    %v4026 = vadd.f32 %v3761, %v4025
    %v4027 = vpop.f32.mrf.mxu0
    %4028 = vmatprep.mubr.f32.mxu0 0.0
    %4029 = vmatmul.mubr.f32.gmra.mxu0 %v3882
    %v4030 = vpop.f32.mrf.mxu0
    %v4031 = vadd.f32 %v3766, %v4030
    %v4032 = vpop.f32.mrf.mxu0
    %4033 = vmatprep.mubr.f32.mxu0 0.0
    %4034 = vmatmul.mubr.f32.gmra.mxu0 %v3885
    %v4035 = vpop.f32.mrf.mxu0
    %v4036 = vadd.f32 %v3771, %v4035
    %v4037 = vpop.f32.mrf.mxu0
    %4038 = vmatprep.mubr.f32.mxu0 0.0
    %4039 = vmatmul.mubr.f32.gmra.mxu0 %v3888
    %v4040 = vpop.f32.mrf.mxu0
    %v4041 = vadd.f32 %v3776, %v4040
    %v4042 = vpop.f32.mrf.mxu0
    %4043 = vmatprep.mubr.f32.mxu0 0.0
    %4044 = vmatmul.mubr.f32.gmra.mxu0 %v3891
    %v4045 = vpop.f32.mrf.mxu0
    %v4046 = vadd.f32 %v3781, %v4045
    %v4047 = vpop.f32.mrf.mxu0
    %4048 = vmatprep.mubr.f32.mxu0 0.0
    %4049 = vmatmul.mubr.f32.gmra.mxu0 %v3894
    %v4050 = vpop.f32.mrf.mxu0
    %v4051 = vadd.f32 %v3786, %v4050
    %v4052 = vpop.f32.mrf.mxu0
    %4053 = vmatprep.mubr.f32.mxu0 0.0
    %4054 = vmatmul.mubr.f32.gmra.mxu0 %v3897
    %v4055 = vpop.f32.mrf.mxu0
    %v4056 = vadd.f32 %v3791, %v4055
    %v4057 = vpop.f32.mrf.mxu0
    %4058 = vmatprep.mubr.f32.mxu0 0.0
    %4059 = vmatmul.mubr.f32.gmra.mxu0 %v3900
    %v4060 = vpop.f32.mrf.mxu0
    %v4061 = vadd.f32 %v3796, %v4060
    %v4062 = vpop.f32.mrf.mxu0
    %4063 = vmatprep.mubr.f32.mxu0 0.0
    %4064 = vmatmul.mubr.f32.gmra.mxu0 %v3903
    %v4065 = vpop.f32.mrf.mxu0
    %v4066 = vadd.f32 %v3801, %v4065
    %v4067 = vpop.f32.mrf.mxu0
    %4068 = vmatprep.mubr.f32.mxu0 0.0
    %4069 = vmatmul.mubr.f32.gmra.mxu0 %v3906
    %v4070 = vpop.f32.mrf.mxu0
    %v4071 = vadd.f32 %v3806, %v4070
    %v4072 = vpop.f32.mrf.mxu0
    %4073 = vmatprep.mubr.f32.mxu0 0.0
    %4074 = vmatmul.mubr.f32.gmra.mxu0 %v3909
    %v4075 = vpop.f32.mrf.mxu0
    %v4076 = vadd.f32 %v3811, %v4075
    %v4077 = vpop.f32.mrf.mxu0
    %4078 = vmatprep.mubr.f32.mxu0 0.0
    %4079 = vmatmul.mubr.f32.gmra.mxu0 %v3912
    %v4080 = vpop.f32.mrf.mxu0
    %v4081 = vadd.f32 %v3816, %v4080
    %v4082 = vpop.f32.mrf.mxu0
    %4083 = vmatprep.mubr.f32.mxu0 0.0
    %4084 = vmatmul.mubr.f32.gmra.mxu0 %v3915
    %v4085 = vpop.f32.mrf.mxu0
    %v4086 = vadd.f32 %v3821, %v4085
    %v4087 = vpop.f32.mrf.mxu0
    %4088 = vmatprep.mubr.f32.mxu0 0.0
    %4089 = vmatmul.mubr.f32.gmra.mxu0 %v3918
    %v4090 = vpop.f32.mrf.mxu0
    %v4091 = vadd.f32 %v3826, %v4090
    %v4092 = vpop.f32.mrf.mxu0
    %4093 = vmatprep.mubr.f32.mxu0 0.0
    %4094 = vmatmul.mubr.f32.gmra.mxu0 %v3921
    %v4095 = vpop.f32.mrf.mxu0
    %v4096 = vadd.f32 %v3831, %v4095
    %v4097 = vpop.f32.mrf.mxu0
    %4098 = vmatprep.mubr.f32.mxu0 0.0
    %4099 = vmatmul.mubr.f32.gmra.mxu0 %v3924
    %v4100 = vpop.f32.mrf.mxu0
    %v4101 = vadd.f32 %v3836, %v4100
    %v4102 = vpop.f32.mrf.mxu0
    %4103 = vmatprep.mubr.f32.mxu0 0.0
    %4104 = vmatmul.mubr.f32.gmra.mxu0 %v3927
    %v4105 = vpop.f32.mrf.mxu0
    %v4106 = vadd.f32 %v3841, %v4105
    %v4107 = vpop.f32.mrf.mxu0
    %4108 = vmatprep.mubr.f32.mxu0 0.0
    %4109 = vmatmul.mubr.f32.gmra.mxu0 %v3930
    %v4110 = vpop.f32.mrf.mxu0
    %v4111 = vadd.f32 %v3846, %v4110
    %v4112 = vpop.f32.mrf.mxu0
    %4113 = vmatprep.mubr.f32.mxu0 0.0
    %4114 = vmatmul.mubr.f32.gmra.mxu0 %v3933
    %v4115 = vpop.f32.mrf.mxu0
    %v4116 = vadd.f32 %v3851, %v4115
    %v4117 = vpop.f32.mrf.mxu0
    %4118 = vmatprep.mubr.f32.mxu0 0.0
    %4119 = vmatmul.mubr.f32.gmra.mxu0 %v3936
    %v4120 = vpop.f32.mrf.mxu0
    %v4121 = vadd.f32 %v3856, %v4120
    %v4122 = vpop.f32.mrf.mxu0
    %4123 = vmatprep.mubr.f32.mxu0 0.0
    %4124 = vmatmul.mubr.f32.gmra.mxu0 %v3939
    %v4125 = vpop.f32.mrf.mxu0
    %v4126 = vadd.f32 %v3861, %v4125
    %v4127 = vpop.f32.mrf.mxu0
    %4128 = vmatprep.mubr.f32.mxu0 0.0
    %4129 = vmatmul.mubr.f32.gmra.mxu0 %v3942
    %v4130 = vpop.f32.mrf.mxu0
    %v4131 = vadd.f32 %v3866, %v4130
    %v4132 = vpop.f32.mrf.mxu0
    %4133 = vdwg.mxu0
    %v4134 = vld [vmem:[#allocation3 + $0x7] sm:$0xff]
    %v4135 = vld [vmem:[#allocation3 + $0xf] sm:$0xff]
    %v4136 = vld [vmem:[#allocation3 + $0x17] sm:$0xff]
    %v4137 = vld [vmem:[#allocation3 + $0x1f] sm:$0xff]
    %v4138 = vld [vmem:[#allocation3 + $0x27] sm:$0xff]
    %v4139 = vld [vmem:[#allocation3 + $0x2f] sm:$0xff]
    %v4140 = vld [vmem:[#allocation3 + $0x37] sm:$0xff]
    %v4141 = vld [vmem:[#allocation3 + $0x3f] sm:$0xff]
    %v4142 = vld [vmem:[#allocation3 + $0x47] sm:$0xff]
    %v4143 = vld [vmem:[#allocation3 + $0x4f] sm:$0xff]
    %v4144 = vld [vmem:[#allocation3 + $0x57] sm:$0xff]
    %v4145 = vld [vmem:[#allocation3 + $0x5f] sm:$0xff]
    %v4146 = vld [vmem:[#allocation3 + $0x67] sm:$0xff]
    %v4147 = vld [vmem:[#allocation3 + $0x6f] sm:$0xff]
    %v4148 = vld [vmem:[#allocation3 + $0x77] sm:$0xff]
    %v4149 = vld [vmem:[#allocation3 + $0x7f] sm:$0xff]
    %v4150 = vld [vmem:[#allocation3 + $0x87] sm:$0xff]
    %v4151 = vld [vmem:[#allocation3 + $0x8f] sm:$0xff]
    %v4152 = vld [vmem:[#allocation3 + $0x97] sm:$0xff]
    %v4153 = vld [vmem:[#allocation3 + $0x9f] sm:$0xff]
    %v4154 = vld [vmem:[#allocation3 + $0xa7] sm:$0xff]
    %v4155 = vld [vmem:[#allocation3 + $0xaf] sm:$0xff]
    %v4156 = vld [vmem:[#allocation3 + $0xb7] sm:$0xff]
    %v4157 = vld [vmem:[#allocation3 + $0xbf] sm:$0xff]
    %v4158 = vld [vmem:[#allocation3 + $0xc7] sm:$0xff]
    %s4159 = scalar_lea.vmem [#allocation6], 128
    %v4160 = vld [vmem:[%s4159] sm:$0xff]
    %v4161 = vld [vmem:[%s4159 + $0x8] sm:$0xff]
    %v4162 = vld [vmem:[%s4159 + $0x10] sm:$0xff]
    %v4163 = vld [vmem:[%s4159 + $0x18] sm:$0xff]
    %v4164 = vld [vmem:[%s4159 + $0x20] sm:$0xff]
    %v4165 = vld [vmem:[%s4159 + $0x28] sm:$0xff]
    %v4166 = vld [vmem:[%s4159 + $0x30] sm:$0xff]
    %v4167 = vld [vmem:[%s4159 + $0x38] sm:$0xff]
    %v4169 = vsel %vm68, %v4134, 0
    %v4172 = vsel %vm68, %v4135, 0
    %v4175 = vsel %vm68, %v4136, 0
    %v4178 = vsel %vm68, %v4137, 0
    %v4181 = vsel %vm68, %v4138, 0
    %v4184 = vsel %vm68, %v4139, 0
    %v4187 = vsel %vm68, %v4140, 0
    %v4190 = vsel %vm68, %v4141, 0
    %v4193 = vsel %vm68, %v4142, 0
    %v4196 = vsel %vm68, %v4143, 0
    %v4199 = vsel %vm68, %v4144, 0
    %v4202 = vsel %vm68, %v4145, 0
    %v4205 = vsel %vm68, %v4146, 0
    %v4208 = vsel %vm68, %v4147, 0
    %v4211 = vsel %vm68, %v4148, 0
    %v4214 = vsel %vm68, %v4149, 0
    %v4217 = vsel %vm68, %v4150, 0
    %v4220 = vsel %vm68, %v4151, 0
    %v4223 = vsel %vm68, %v4152, 0
    %v4226 = vsel %vm68, %v4153, 0
    %v4229 = vsel %vm68, %v4154, 0
    %v4232 = vsel %vm68, %v4155, 0
    %v4235 = vsel %vm68, %v4156, 0
    %v4238 = vsel %vm68, %v4157, 0
    %v4241 = vsel %vm68, %v4158, 0
    %4243 = vmatprep.subr.mxu0 0.0
    %4244 = vmatpush1.msra.mxu0 0.0
    %4245 = vmatprep.subr.mxu0 0.0
    %4246 = vmatpush1.msra.mxu0 0.0
    %4247 = vmatprep.subr.mxu0 0.0
    %4248 = vmatpush1.msra.mxu0 0.0
    %4249 = vmatprep.subr.mxu0 0.0
    %4250 = vmatpush1.msra.mxu0 0.0
    %4251 = vmatprep.subr.mxu0 0.0
    %4252 = vmatpush1.msra.mxu0 0.0
    %4253 = vmatprep.subr.mxu0 0.0
    %4254 = vmatpush1.msra.mxu0 0.0
    %4255 = vmatprep.subr.mxu0 0.0
    %4256 = vmatpush1.msra.mxu0 0.0
    %4257 = vmatprep.subr.mxu0 0.0
    %4258 = vmatpush1.msra.mxu0 0.0
    %4259 = vmatprep.subr.mxu0 0.0
    %4260 = vmatpush1.msra.mxu0 %v4167
    %4261 = vmatprep.subr.mxu0 0.0
    %4262 = vmatpush1.msra.mxu0 %v4166
    %4263 = vmatprep.subr.mxu0 0.0
    %4264 = vmatpush1.msra.mxu0 %v4165
    %4265 = vmatprep.subr.mxu0 0.0
    %4266 = vmatpush1.msra.mxu0 %v4164
    %4267 = vmatprep.subr.mxu0 0.0
    %4268 = vmatpush1.msra.mxu0 %v4163
    %4269 = vmatprep.subr.mxu0 0.0
    %4270 = vmatpush1.msra.mxu0 %v4162
    %4271 = vmatprep.subr.mxu0 0.0
    %4272 = vmatpush1.msra.mxu0 %v4161
    %4273 = vmatprep.subr.mxu0 0.0
    %4274 = vmatpush1.msra.mxu0 %v4160
    %4275 = vmatprep.subr.mxu0 0.0
    %4276 = vmatpush2.msra.mxu0 0.0
    %4277 = vmatprep.subr.mxu0 0.0
    %4278 = vmatpush2.msra.mxu0 0.0
    %4279 = vmatprep.subr.mxu0 0.0
    %4280 = vmatpush2.msra.mxu0 0.0
    %4281 = vmatprep.subr.mxu0 0.0
    %4282 = vmatpush2.msra.mxu0 0.0
    %4283 = vmatprep.subr.mxu0 0.0
    %4284 = vmatpush2.msra.mxu0 0.0
    %4285 = vmatprep.subr.mxu0 0.0
    %4286 = vmatpush2.msra.mxu0 0.0
    %4287 = vmatprep.subr.mxu0 0.0
    %4288 = vmatpush2.msra.mxu0 0.0
    %4289 = vmatprep.subr.mxu0 0.0
    %4290 = vmatpush2.msra.mxu0 0.0
    %4291 = vmatprep.subr.mxu0 0.0
    %4292 = vmatpush2.msra.mxu0 0.0
    %4293 = vmatprep.subr.mxu0 0.0
    %4294 = vmatpush2.msra.mxu0 0.0
    %4295 = vmatprep.subr.mxu0 0.0
    %4296 = vmatpush2.msra.mxu0 0.0
    %4297 = vmatprep.subr.mxu0 0.0
    %4298 = vmatpush2.msra.mxu0 0.0
    %4299 = vmatprep.subr.mxu0 0.0
    %4300 = vmatpush2.msra.mxu0 0.0
    %4301 = vmatprep.subr.mxu0 0.0
    %4302 = vmatpush2.msra.mxu0 0.0
    %4303 = vmatprep.subr.mxu0 0.0
    %4304 = vmatpush2.msra.mxu0 0.0
    %4305 = vmatprep.subr.mxu0 0.0
    %4306 = vmatpush2.msra.mxu0 0.0
    %4307 = vmatprep.mubr.f32.mxu0 0.0
    %4308 = vmatmul.mubr.f32.gmra.mxu0 %v4169
    %v4309 = vpop.f32.mrf.mxu0
    %v4310 = vadd.f32 0.0, %v4309
    %v4311 = vpop.f32.mrf.mxu0
    %4312 = vmatprep.mubr.f32.mxu0 0.0
    %4313 = vmatmul.mubr.f32.gmra.mxu0 %v4172
    %v4314 = vpop.f32.mrf.mxu0
    %v4315 = vadd.f32 0.0, %v4314
    %v4316 = vpop.f32.mrf.mxu0
    %4317 = vmatprep.mubr.f32.mxu0 0.0
    %4318 = vmatmul.mubr.f32.gmra.mxu0 %v4175
    %v4319 = vpop.f32.mrf.mxu0
    %v4320 = vadd.f32 0.0, %v4319
    %v4321 = vpop.f32.mrf.mxu0
    %4322 = vmatprep.mubr.f32.mxu0 0.0
    %4323 = vmatmul.mubr.f32.gmra.mxu0 %v4178
    %v4324 = vpop.f32.mrf.mxu0
    %v4325 = vadd.f32 0.0, %v4324
    %v4326 = vpop.f32.mrf.mxu0
    %4327 = vmatprep.mubr.f32.mxu0 0.0
    %4328 = vmatmul.mubr.f32.gmra.mxu0 %v4181
    %v4329 = vpop.f32.mrf.mxu0
    %v4330 = vadd.f32 0.0, %v4329
    %v4331 = vpop.f32.mrf.mxu0
    %4332 = vmatprep.mubr.f32.mxu0 0.0
    %4333 = vmatmul.mubr.f32.gmra.mxu0 %v4184
    %v4334 = vpop.f32.mrf.mxu0
    %v4335 = vadd.f32 0.0, %v4334
    %v4336 = vpop.f32.mrf.mxu0
    %4337 = vmatprep.mubr.f32.mxu0 0.0
    %4338 = vmatmul.mubr.f32.gmra.mxu0 %v4187
    %v4339 = vpop.f32.mrf.mxu0
    %v4340 = vadd.f32 0.0, %v4339
    %v4341 = vpop.f32.mrf.mxu0
    %4342 = vmatprep.mubr.f32.mxu0 0.0
    %4343 = vmatmul.mubr.f32.gmra.mxu0 %v4190
    %v4344 = vpop.f32.mrf.mxu0
    %v4345 = vadd.f32 0.0, %v4344
    %v4346 = vpop.f32.mrf.mxu0
    %4347 = vmatprep.mubr.f32.mxu0 0.0
    %4348 = vmatmul.mubr.f32.gmra.mxu0 %v4193
    %v4349 = vpop.f32.mrf.mxu0
    %v4350 = vadd.f32 0.0, %v4349
    %v4351 = vpop.f32.mrf.mxu0
    %4352 = vmatprep.mubr.f32.mxu0 0.0
    %4353 = vmatmul.mubr.f32.gmra.mxu0 %v4196
    %v4354 = vpop.f32.mrf.mxu0
    %v4355 = vadd.f32 0.0, %v4354
    %v4356 = vpop.f32.mrf.mxu0
    %4357 = vmatprep.mubr.f32.mxu0 0.0
    %4358 = vmatmul.mubr.f32.gmra.mxu0 %v4199
    %v4359 = vpop.f32.mrf.mxu0
    %v4360 = vadd.f32 0.0, %v4359
    %v4361 = vpop.f32.mrf.mxu0
    %4362 = vmatprep.mubr.f32.mxu0 0.0
    %4363 = vmatmul.mubr.f32.gmra.mxu0 %v4202
    %v4364 = vpop.f32.mrf.mxu0
    %v4365 = vadd.f32 0.0, %v4364
    %v4366 = vpop.f32.mrf.mxu0
    %4367 = vmatprep.mubr.f32.mxu0 0.0
    %4368 = vmatmul.mubr.f32.gmra.mxu0 %v4205
    %v4369 = vpop.f32.mrf.mxu0
    %v4370 = vadd.f32 0.0, %v4369
    %v4371 = vpop.f32.mrf.mxu0
    %4372 = vmatprep.mubr.f32.mxu0 0.0
    %4373 = vmatmul.mubr.f32.gmra.mxu0 %v4208
    %v4374 = vpop.f32.mrf.mxu0
    %v4375 = vadd.f32 0.0, %v4374
    %v4376 = vpop.f32.mrf.mxu0
    %4377 = vmatprep.mubr.f32.mxu0 0.0
    %4378 = vmatmul.mubr.f32.gmra.mxu0 %v4211
    %v4379 = vpop.f32.mrf.mxu0
    %v4380 = vadd.f32 0.0, %v4379
    %v4381 = vpop.f32.mrf.mxu0
    %4382 = vmatprep.mubr.f32.mxu0 0.0
    %4383 = vmatmul.mubr.f32.gmra.mxu0 %v4214
    %v4384 = vpop.f32.mrf.mxu0
    %v4385 = vadd.f32 0.0, %v4384
    %v4386 = vpop.f32.mrf.mxu0
    %4387 = vmatprep.mubr.f32.mxu0 0.0
    %4388 = vmatmul.mubr.f32.gmra.mxu0 %v4217
    %v4389 = vpop.f32.mrf.mxu0
    %v4390 = vadd.f32 0.0, %v4389
    %v4391 = vpop.f32.mrf.mxu0
    %4392 = vmatprep.mubr.f32.mxu0 0.0
    %4393 = vmatmul.mubr.f32.gmra.mxu0 %v4220
    %v4394 = vpop.f32.mrf.mxu0
    %v4395 = vadd.f32 0.0, %v4394
    %v4396 = vpop.f32.mrf.mxu0
    %4397 = vmatprep.mubr.f32.mxu0 0.0
    %4398 = vmatmul.mubr.f32.gmra.mxu0 %v4223
    %v4399 = vpop.f32.mrf.mxu0
    %v4400 = vadd.f32 0.0, %v4399
    %v4401 = vpop.f32.mrf.mxu0
    %4402 = vmatprep.mubr.f32.mxu0 0.0
    %4403 = vmatmul.mubr.f32.gmra.mxu0 %v4226
    %v4404 = vpop.f32.mrf.mxu0
    %v4405 = vadd.f32 0.0, %v4404
    %v4406 = vpop.f32.mrf.mxu0
    %4407 = vmatprep.mubr.f32.mxu0 0.0
    %4408 = vmatmul.mubr.f32.gmra.mxu0 %v4229
    %v4409 = vpop.f32.mrf.mxu0
    %v4410 = vadd.f32 0.0, %v4409
    %v4411 = vpop.f32.mrf.mxu0
    %4412 = vmatprep.mubr.f32.mxu0 0.0
    %4413 = vmatmul.mubr.f32.gmra.mxu0 %v4232
    %v4414 = vpop.f32.mrf.mxu0
    %v4415 = vadd.f32 0.0, %v4414
    %v4416 = vpop.f32.mrf.mxu0
    %4417 = vmatprep.mubr.f32.mxu0 0.0
    %4418 = vmatmul.mubr.f32.gmra.mxu0 %v4235
    %v4419 = vpop.f32.mrf.mxu0
    %v4420 = vadd.f32 0.0, %v4419
    %v4421 = vpop.f32.mrf.mxu0
    %4422 = vmatprep.mubr.f32.mxu0 0.0
    %4423 = vmatmul.mubr.f32.gmra.mxu0 %v4238
    %v4424 = vpop.f32.mrf.mxu0
    %v4425 = vadd.f32 0.0, %v4424
    %v4426 = vpop.f32.mrf.mxu0
    %4427 = vmatprep.mubr.f32.mxu0 0.0
    %4428 = vmatmul.mubr.f32.gmra.mxu0 %v4241
    %v4429 = vpop.f32.mrf.mxu0
    %v4430 = vadd.f32 0.0, %v4429
    %v4431 = vpop.f32.mrf.mxu0
    %4432 = vdwg.mxu0
    %v4433 = vadd.f32 %v4011, %v4310
    %v4434 = vadd.f32 %v4016, %v4315
    %v4435 = vadd.f32 %v4021, %v4320
    %v4436 = vadd.f32 %v4026, %v4325
    %v4437 = vadd.f32 %v4031, %v4330
    %v4438 = vadd.f32 %v4036, %v4335
    %v4439 = vadd.f32 %v4041, %v4340
    %v4440 = vadd.f32 %v4046, %v4345
    %v4441 = vadd.f32 %v4051, %v4350
    %v4442 = vadd.f32 %v4056, %v4355
    %v4443 = vadd.f32 %v4061, %v4360
    %v4444 = vadd.f32 %v4066, %v4365
    %v4445 = vadd.f32 %v4071, %v4370
    %v4446 = vadd.f32 %v4076, %v4375
    %v4447 = vadd.f32 %v4081, %v4380
    %v4448 = vadd.f32 %v4086, %v4385
    %v4449 = vadd.f32 %v4091, %v4390
    %v4450 = vadd.f32 %v4096, %v4395
    %v4451 = vadd.f32 %v4101, %v4400
    %v4452 = vadd.f32 %v4106, %v4405
    %v4453 = vadd.f32 %v4111, %v4410
    %v4454 = vadd.f32 %v4116, %v4415
    %v4455 = vadd.f32 %v4121, %v4420
    %v4456 = vadd.f32 %v4126, %v4425
    %v4457 = vadd.f32 %v4131, %v4430
    %v4458 = vld [vmem:[#allocation3 + $0xf] sm:$0xff]
    %v4459 = vld [vmem:[#allocation3 + $0x17] sm:$0xff]
    %v4460 = vld [vmem:[#allocation3 + $0x1f] sm:$0xff]
    %v4461 = vld [vmem:[#allocation3 + $0x27] sm:$0xff]
    %v4462 = vld [vmem:[#allocation3 + $0x2f] sm:$0xff]
    %v4463 = vld [vmem:[#allocation3 + $0x37] sm:$0xff]
    %v4464 = vld [vmem:[#allocation3 + $0x3f] sm:$0xff]
    %v4465 = vld [vmem:[#allocation3 + $0x47] sm:$0xff]
    %v4466 = vld [vmem:[#allocation3 + $0x4f] sm:$0xff]
    %v4467 = vld [vmem:[#allocation3 + $0x57] sm:$0xff]
    %v4468 = vld [vmem:[#allocation3 + $0x5f] sm:$0xff]
    %v4469 = vld [vmem:[#allocation3 + $0x67] sm:$0xff]
    %v4470 = vld [vmem:[#allocation3 + $0x6f] sm:$0xff]
    %v4471 = vld [vmem:[#allocation3 + $0x77] sm:$0xff]
    %v4472 = vld [vmem:[#allocation3 + $0x7f] sm:$0xff]
    %v4473 = vld [vmem:[#allocation3 + $0x87] sm:$0xff]
    %v4474 = vld [vmem:[#allocation3 + $0x8f] sm:$0xff]
    %v4475 = vld [vmem:[#allocation3 + $0x97] sm:$0xff]
    %v4476 = vld [vmem:[#allocation3 + $0x9f] sm:$0xff]
    %v4477 = vld [vmem:[#allocation3 + $0xa7] sm:$0xff]
    %v4478 = vld [vmem:[#allocation3 + $0xaf] sm:$0xff]
    %v4479 = vld [vmem:[#allocation3 + $0xb7] sm:$0xff]
    %v4480 = vld [vmem:[#allocation3 + $0xbf] sm:$0xff]
    %v4481 = vld [vmem:[#allocation3 + $0xc7] sm:$0xff]
    %v4482 = vld [vmem:[#allocation3 + $0xcf] sm:$0xff]
    %s4483 = scalar_lea.vmem [#allocation6], 192
    %v4484 = vld [vmem:[%s4483] sm:$0xff]
    %v4485 = vld [vmem:[%s4483 + $0x8] sm:$0xff]
    %v4486 = vld [vmem:[%s4483 + $0x10] sm:$0xff]
    %v4487 = vld [vmem:[%s4483 + $0x18] sm:$0xff]
    %v4488 = vld [vmem:[%s4483 + $0x20] sm:$0xff]
    %v4489 = vld [vmem:[%s4483 + $0x28] sm:$0xff]
    %v4490 = vld [vmem:[%s4483 + $0x30] sm:$0xff]
    %v4491 = vld [vmem:[%s4483 + $0x38] sm:$0xff]
    %v4493 = vsel %vm68, %v4458, 0
    %v4496 = vsel %vm68, %v4459, 0
    %v4499 = vsel %vm68, %v4460, 0
    %v4502 = vsel %vm68, %v4461, 0
    %v4505 = vsel %vm68, %v4462, 0
    %v4508 = vsel %vm68, %v4463, 0
    %v4511 = vsel %vm68, %v4464, 0
    %v4514 = vsel %vm68, %v4465, 0
    %v4517 = vsel %vm68, %v4466, 0
    %v4520 = vsel %vm68, %v4467, 0
    %v4523 = vsel %vm68, %v4468, 0
    %v4526 = vsel %vm68, %v4469, 0
    %v4529 = vsel %vm68, %v4470, 0
    %v4532 = vsel %vm68, %v4471, 0
    %v4535 = vsel %vm68, %v4472, 0
    %v4538 = vsel %vm68, %v4473, 0
    %v4541 = vsel %vm68, %v4474, 0
    %v4544 = vsel %vm68, %v4475, 0
    %v4547 = vsel %vm68, %v4476, 0
    %v4550 = vsel %vm68, %v4477, 0
    %v4553 = vsel %vm68, %v4478, 0
    %v4556 = vsel %vm68, %v4479, 0
    %v4559 = vsel %vm68, %v4480, 0
    %v4562 = vsel %vm68, %v4481, 0
    %v4565 = vsel %vm68, %v4482, 0
    %4567 = vmatprep.subr.mxu0 0.0
    %4568 = vmatpush1.msra.mxu0 0.0
    %4569 = vmatprep.subr.mxu0 0.0
    %4570 = vmatpush1.msra.mxu0 0.0
    %4571 = vmatprep.subr.mxu0 0.0
    %4572 = vmatpush1.msra.mxu0 0.0
    %4573 = vmatprep.subr.mxu0 0.0
    %4574 = vmatpush1.msra.mxu0 0.0
    %4575 = vmatprep.subr.mxu0 0.0
    %4576 = vmatpush1.msra.mxu0 0.0
    %4577 = vmatprep.subr.mxu0 0.0
    %4578 = vmatpush1.msra.mxu0 0.0
    %4579 = vmatprep.subr.mxu0 0.0
    %4580 = vmatpush1.msra.mxu0 0.0
    %4581 = vmatprep.subr.mxu0 0.0
    %4582 = vmatpush1.msra.mxu0 0.0
    %4583 = vmatprep.subr.mxu0 0.0
    %4584 = vmatpush1.msra.mxu0 %v4491
    %4585 = vmatprep.subr.mxu0 0.0
    %4586 = vmatpush1.msra.mxu0 %v4490
    %4587 = vmatprep.subr.mxu0 0.0
    %4588 = vmatpush1.msra.mxu0 %v4489
    %4589 = vmatprep.subr.mxu0 0.0
    %4590 = vmatpush1.msra.mxu0 %v4488
    %4591 = vmatprep.subr.mxu0 0.0
    %4592 = vmatpush1.msra.mxu0 %v4487
    %4593 = vmatprep.subr.mxu0 0.0
    %4594 = vmatpush1.msra.mxu0 %v4486
    %4595 = vmatprep.subr.mxu0 0.0
    %4596 = vmatpush1.msra.mxu0 %v4485
    %4597 = vmatprep.subr.mxu0 0.0
    %4598 = vmatpush1.msra.mxu0 %v4484
    %4599 = vmatprep.subr.mxu0 0.0
    %4600 = vmatpush2.msra.mxu0 0.0
    %4601 = vmatprep.subr.mxu0 0.0
    %4602 = vmatpush2.msra.mxu0 0.0
    %4603 = vmatprep.subr.mxu0 0.0
    %4604 = vmatpush2.msra.mxu0 0.0
    %4605 = vmatprep.subr.mxu0 0.0
    %4606 = vmatpush2.msra.mxu0 0.0
    %4607 = vmatprep.subr.mxu0 0.0
    %4608 = vmatpush2.msra.mxu0 0.0
    %4609 = vmatprep.subr.mxu0 0.0
    %4610 = vmatpush2.msra.mxu0 0.0
    %4611 = vmatprep.subr.mxu0 0.0
    %4612 = vmatpush2.msra.mxu0 0.0
    %4613 = vmatprep.subr.mxu0 0.0
    %4614 = vmatpush2.msra.mxu0 0.0
    %4615 = vmatprep.subr.mxu0 0.0
    %4616 = vmatpush2.msra.mxu0 0.0
    %4617 = vmatprep.subr.mxu0 0.0
    %4618 = vmatpush2.msra.mxu0 0.0
    %4619 = vmatprep.subr.mxu0 0.0
    %4620 = vmatpush2.msra.mxu0 0.0
    %4621 = vmatprep.subr.mxu0 0.0
    %4622 = vmatpush2.msra.mxu0 0.0
    %4623 = vmatprep.subr.mxu0 0.0
    %4624 = vmatpush2.msra.mxu0 0.0
    %4625 = vmatprep.subr.mxu0 0.0
    %4626 = vmatpush2.msra.mxu0 0.0
    %4627 = vmatprep.subr.mxu0 0.0
    %4628 = vmatpush2.msra.mxu0 0.0
    %4629 = vmatprep.subr.mxu0 0.0
    %4630 = vmatpush2.msra.mxu0 0.0
    %4631 = vmatprep.mubr.f32.mxu0 0.0
    %4632 = vmatmul.mubr.f32.gmra.mxu0 %v4493
    %v4633 = vpop.f32.mrf.mxu0
    %v4634 = vadd.f32 0.0, %v4633
    %v4635 = vpop.f32.mrf.mxu0
    %4636 = vmatprep.mubr.f32.mxu0 0.0
    %4637 = vmatmul.mubr.f32.gmra.mxu0 %v4496
    %v4638 = vpop.f32.mrf.mxu0
    %v4639 = vadd.f32 0.0, %v4638
    %v4640 = vpop.f32.mrf.mxu0
    %4641 = vmatprep.mubr.f32.mxu0 0.0
    %4642 = vmatmul.mubr.f32.gmra.mxu0 %v4499
    %v4643 = vpop.f32.mrf.mxu0
    %v4644 = vadd.f32 0.0, %v4643
    %v4645 = vpop.f32.mrf.mxu0
    %4646 = vmatprep.mubr.f32.mxu0 0.0
    %4647 = vmatmul.mubr.f32.gmra.mxu0 %v4502
    %v4648 = vpop.f32.mrf.mxu0
    %v4649 = vadd.f32 0.0, %v4648
    %v4650 = vpop.f32.mrf.mxu0
    %4651 = vmatprep.mubr.f32.mxu0 0.0
    %4652 = vmatmul.mubr.f32.gmra.mxu0 %v4505
    %v4653 = vpop.f32.mrf.mxu0
    %v4654 = vadd.f32 0.0, %v4653
    %v4655 = vpop.f32.mrf.mxu0
    %4656 = vmatprep.mubr.f32.mxu0 0.0
    %4657 = vmatmul.mubr.f32.gmra.mxu0 %v4508
    %v4658 = vpop.f32.mrf.mxu0
    %v4659 = vadd.f32 0.0, %v4658
    %v4660 = vpop.f32.mrf.mxu0
    %4661 = vmatprep.mubr.f32.mxu0 0.0
    %4662 = vmatmul.mubr.f32.gmra.mxu0 %v4511
    %v4663 = vpop.f32.mrf.mxu0
    %v4664 = vadd.f32 0.0, %v4663
    %v4665 = vpop.f32.mrf.mxu0
    %4666 = vmatprep.mubr.f32.mxu0 0.0
    %4667 = vmatmul.mubr.f32.gmra.mxu0 %v4514
    %v4668 = vpop.f32.mrf.mxu0
    %v4669 = vadd.f32 0.0, %v4668
    %v4670 = vpop.f32.mrf.mxu0
    %4671 = vmatprep.mubr.f32.mxu0 0.0
    %4672 = vmatmul.mubr.f32.gmra.mxu0 %v4517
    %v4673 = vpop.f32.mrf.mxu0
    %v4674 = vadd.f32 0.0, %v4673
    %v4675 = vpop.f32.mrf.mxu0
    %4676 = vmatprep.mubr.f32.mxu0 0.0
    %4677 = vmatmul.mubr.f32.gmra.mxu0 %v4520
    %v4678 = vpop.f32.mrf.mxu0
    %v4679 = vadd.f32 0.0, %v4678
    %v4680 = vpop.f32.mrf.mxu0
    %4681 = vmatprep.mubr.f32.mxu0 0.0
    %4682 = vmatmul.mubr.f32.gmra.mxu0 %v4523
    %v4683 = vpop.f32.mrf.mxu0
    %v4684 = vadd.f32 0.0, %v4683
    %v4685 = vpop.f32.mrf.mxu0
    %4686 = vmatprep.mubr.f32.mxu0 0.0
    %4687 = vmatmul.mubr.f32.gmra.mxu0 %v4526
    %v4688 = vpop.f32.mrf.mxu0
    %v4689 = vadd.f32 0.0, %v4688
    %v4690 = vpop.f32.mrf.mxu0
    %4691 = vmatprep.mubr.f32.mxu0 0.0
    %4692 = vmatmul.mubr.f32.gmra.mxu0 %v4529
    %v4693 = vpop.f32.mrf.mxu0
    %v4694 = vadd.f32 0.0, %v4693
    %v4695 = vpop.f32.mrf.mxu0
    %4696 = vmatprep.mubr.f32.mxu0 0.0
    %4697 = vmatmul.mubr.f32.gmra.mxu0 %v4532
    %v4698 = vpop.f32.mrf.mxu0
    %v4699 = vadd.f32 0.0, %v4698
    %v4700 = vpop.f32.mrf.mxu0
    %4701 = vmatprep.mubr.f32.mxu0 0.0
    %4702 = vmatmul.mubr.f32.gmra.mxu0 %v4535
    %v4703 = vpop.f32.mrf.mxu0
    %v4704 = vadd.f32 0.0, %v4703
    %v4705 = vpop.f32.mrf.mxu0
    %4706 = vmatprep.mubr.f32.mxu0 0.0
    %4707 = vmatmul.mubr.f32.gmra.mxu0 %v4538
    %v4708 = vpop.f32.mrf.mxu0
    %v4709 = vadd.f32 0.0, %v4708
    %v4710 = vpop.f32.mrf.mxu0
    %4711 = vmatprep.mubr.f32.mxu0 0.0
    %4712 = vmatmul.mubr.f32.gmra.mxu0 %v4541
    %v4713 = vpop.f32.mrf.mxu0
    %v4714 = vadd.f32 0.0, %v4713
    %v4715 = vpop.f32.mrf.mxu0
    %4716 = vmatprep.mubr.f32.mxu0 0.0
    %4717 = vmatmul.mubr.f32.gmra.mxu0 %v4544
    %v4718 = vpop.f32.mrf.mxu0
    %v4719 = vadd.f32 0.0, %v4718
    %v4720 = vpop.f32.mrf.mxu0
    %4721 = vmatprep.mubr.f32.mxu0 0.0
    %4722 = vmatmul.mubr.f32.gmra.mxu0 %v4547
    %v4723 = vpop.f32.mrf.mxu0
    %v4724 = vadd.f32 0.0, %v4723
    %v4725 = vpop.f32.mrf.mxu0
    %4726 = vmatprep.mubr.f32.mxu0 0.0
    %4727 = vmatmul.mubr.f32.gmra.mxu0 %v4550
    %v4728 = vpop.f32.mrf.mxu0
    %v4729 = vadd.f32 0.0, %v4728
    %v4730 = vpop.f32.mrf.mxu0
    %4731 = vmatprep.mubr.f32.mxu0 0.0
    %4732 = vmatmul.mubr.f32.gmra.mxu0 %v4553
    %v4733 = vpop.f32.mrf.mxu0
    %v4734 = vadd.f32 0.0, %v4733
    %v4735 = vpop.f32.mrf.mxu0
    %4736 = vmatprep.mubr.f32.mxu0 0.0
    %4737 = vmatmul.mubr.f32.gmra.mxu0 %v4556
    %v4738 = vpop.f32.mrf.mxu0
    %v4739 = vadd.f32 0.0, %v4738
    %v4740 = vpop.f32.mrf.mxu0
    %4741 = vmatprep.mubr.f32.mxu0 0.0
    %4742 = vmatmul.mubr.f32.gmra.mxu0 %v4559
    %v4743 = vpop.f32.mrf.mxu0
    %v4744 = vadd.f32 0.0, %v4743
    %v4745 = vpop.f32.mrf.mxu0
    %4746 = vmatprep.mubr.f32.mxu0 0.0
    %4747 = vmatmul.mubr.f32.gmra.mxu0 %v4562
    %v4748 = vpop.f32.mrf.mxu0
    %v4749 = vadd.f32 0.0, %v4748
    %v4750 = vpop.f32.mrf.mxu0
    %4751 = vmatprep.mubr.f32.mxu0 0.0
    %4752 = vmatmul.mubr.f32.gmra.mxu0 %v4565
    %v4753 = vpop.f32.mrf.mxu0
    %v4754 = vadd.f32 0.0, %v4753
    %v4755 = vpop.f32.mrf.mxu0
    %4756 = vdwg.mxu0
    %v4757 = vadd.f32 %v4433, %v4634
    %v4758 = vadd.f32 %v4434, %v4639
    %v4759 = vadd.f32 %v4435, %v4644
    %v4760 = vadd.f32 %v4436, %v4649
    %v4761 = vadd.f32 %v4437, %v4654
    %v4762 = vadd.f32 %v4438, %v4659
    %v4763 = vadd.f32 %v4439, %v4664
    %v4764 = vadd.f32 %v4440, %v4669
    %v4765 = vadd.f32 %v4441, %v4674
    %v4766 = vadd.f32 %v4442, %v4679
    %v4767 = vadd.f32 %v4443, %v4684
    %v4768 = vadd.f32 %v4444, %v4689
    %v4769 = vadd.f32 %v4445, %v4694
    %v4770 = vadd.f32 %v4446, %v4699
    %v4771 = vadd.f32 %v4447, %v4704
    %v4772 = vadd.f32 %v4448, %v4709
    %v4773 = vadd.f32 %v4449, %v4714
    %v4774 = vadd.f32 %v4450, %v4719
    %v4775 = vadd.f32 %v4451, %v4724
    %v4776 = vadd.f32 %v4452, %v4729
    %v4777 = vadd.f32 %v4453, %v4734
    %v4778 = vadd.f32 %v4454, %v4739
    %v4779 = vadd.f32 %v4455, %v4744
    %v4780 = vadd.f32 %v4456, %v4749
    %v4781 = vadd.f32 %v4457, %v4754
    %v4782 = vld [vmem:[#allocation3 + $0x10] sm:$0xff]
    %v4783 = vld [vmem:[#allocation3 + $0x18] sm:$0xff]
    %v4784 = vld [vmem:[#allocation3 + $0x20] sm:$0xff]
    %v4785 = vld [vmem:[#allocation3 + $0x28] sm:$0xff]
    %v4786 = vld [vmem:[#allocation3 + $0x30] sm:$0xff]
    %v4787 = vld [vmem:[#allocation3 + $0x38] sm:$0xff]
    %v4788 = vld [vmem:[#allocation3 + $0x40] sm:$0xff]
    %v4789 = vld [vmem:[#allocation3 + $0x48] sm:$0xff]
    %v4790 = vld [vmem:[#allocation3 + $0x50] sm:$0xff]
    %v4791 = vld [vmem:[#allocation3 + $0x58] sm:$0xff]
    %v4792 = vld [vmem:[#allocation3 + $0x60] sm:$0xff]
    %v4793 = vld [vmem:[#allocation3 + $0x68] sm:$0xff]
    %v4794 = vld [vmem:[#allocation3 + $0x70] sm:$0xff]
    %v4795 = vld [vmem:[#allocation3 + $0x78] sm:$0xff]
    %v4796 = vld [vmem:[#allocation3 + $0x80] sm:$0xff]
    %v4797 = vld [vmem:[#allocation3 + $0x88] sm:$0xff]
    %v4798 = vld [vmem:[#allocation3 + $0x90] sm:$0xff]
    %v4799 = vld [vmem:[#allocation3 + $0x98] sm:$0xff]
    %v4800 = vld [vmem:[#allocation3 + $0xa0] sm:$0xff]
    %v4801 = vld [vmem:[#allocation3 + $0xa8] sm:$0xff]
    %v4802 = vld [vmem:[#allocation3 + $0xb0] sm:$0xff]
    %v4803 = vld [vmem:[#allocation3 + $0xb8] sm:$0xff]
    %v4804 = vld [vmem:[#allocation3 + $0xc0] sm:$0xff]
    %v4805 = vld [vmem:[#allocation3 + $0xc8] sm:$0xff]
    %v4806 = vld [vmem:[#allocation3 + $0xd0] sm:$0xff]
    %s4807 = scalar_lea.vmem [#allocation6], 256
    %v4808 = vld [vmem:[%s4807] sm:$0xff]
    %v4809 = vld [vmem:[%s4807 + $0x8] sm:$0xff]
    %v4810 = vld [vmem:[%s4807 + $0x10] sm:$0xff]
    %v4811 = vld [vmem:[%s4807 + $0x18] sm:$0xff]
    %v4812 = vld [vmem:[%s4807 + $0x20] sm:$0xff]
    %v4813 = vld [vmem:[%s4807 + $0x28] sm:$0xff]
    %v4814 = vld [vmem:[%s4807 + $0x30] sm:$0xff]
    %v4815 = vld [vmem:[%s4807 + $0x38] sm:$0xff]
    %v4817 = vsel %vm68, %v4782, 0
    %v4820 = vsel %vm68, %v4783, 0
    %v4823 = vsel %vm68, %v4784, 0
    %v4826 = vsel %vm68, %v4785, 0
    %v4829 = vsel %vm68, %v4786, 0
    %v4832 = vsel %vm68, %v4787, 0
    %v4835 = vsel %vm68, %v4788, 0
    %v4838 = vsel %vm68, %v4789, 0
    %v4841 = vsel %vm68, %v4790, 0
    %v4844 = vsel %vm68, %v4791, 0
    %v4847 = vsel %vm68, %v4792, 0
    %v4850 = vsel %vm68, %v4793, 0
    %v4853 = vsel %vm68, %v4794, 0
    %v4856 = vsel %vm68, %v4795, 0
    %v4859 = vsel %vm68, %v4796, 0
    %v4862 = vsel %vm68, %v4797, 0
    %v4865 = vsel %vm68, %v4798, 0
    %v4868 = vsel %vm68, %v4799, 0
    %v4871 = vsel %vm68, %v4800, 0
    %v4874 = vsel %vm68, %v4801, 0
    %v4877 = vsel %vm68, %v4802, 0
    %v4880 = vsel %vm68, %v4803, 0
    %v4883 = vsel %vm68, %v4804, 0
    %v4886 = vsel %vm68, %v4805, 0
    %v4889 = vsel %vm68, %v4806, 0
    %4891 = vmatprep.subr.mxu0 0.0
    %4892 = vmatpush1.msra.mxu0 0.0
    %4893 = vmatprep.subr.mxu0 0.0
    %4894 = vmatpush1.msra.mxu0 0.0
    %4895 = vmatprep.subr.mxu0 0.0
    %4896 = vmatpush1.msra.mxu0 0.0
    %4897 = vmatprep.subr.mxu0 0.0
    %4898 = vmatpush1.msra.mxu0 0.0
    %4899 = vmatprep.subr.mxu0 0.0
    %4900 = vmatpush1.msra.mxu0 0.0
    %4901 = vmatprep.subr.mxu0 0.0
    %4902 = vmatpush1.msra.mxu0 0.0
    %4903 = vmatprep.subr.mxu0 0.0
    %4904 = vmatpush1.msra.mxu0 0.0
    %4905 = vmatprep.subr.mxu0 0.0
    %4906 = vmatpush1.msra.mxu0 0.0
    %4907 = vmatprep.subr.mxu0 0.0
    %4908 = vmatpush1.msra.mxu0 %v4815
    %4909 = vmatprep.subr.mxu0 0.0
    %4910 = vmatpush1.msra.mxu0 %v4814
    %4911 = vmatprep.subr.mxu0 0.0
    %4912 = vmatpush1.msra.mxu0 %v4813
    %4913 = vmatprep.subr.mxu0 0.0
    %4914 = vmatpush1.msra.mxu0 %v4812
    %4915 = vmatprep.subr.mxu0 0.0
    %4916 = vmatpush1.msra.mxu0 %v4811
    %4917 = vmatprep.subr.mxu0 0.0
    %4918 = vmatpush1.msra.mxu0 %v4810
    %4919 = vmatprep.subr.mxu0 0.0
    %4920 = vmatpush1.msra.mxu0 %v4809
    %4921 = vmatprep.subr.mxu0 0.0
    %4922 = vmatpush1.msra.mxu0 %v4808
    %4923 = vmatprep.subr.mxu0 0.0
    %4924 = vmatpush2.msra.mxu0 0.0
    %4925 = vmatprep.subr.mxu0 0.0
    %4926 = vmatpush2.msra.mxu0 0.0
    %4927 = vmatprep.subr.mxu0 0.0
    %4928 = vmatpush2.msra.mxu0 0.0
    %4929 = vmatprep.subr.mxu0 0.0
    %4930 = vmatpush2.msra.mxu0 0.0
    %4931 = vmatprep.subr.mxu0 0.0
    %4932 = vmatpush2.msra.mxu0 0.0
    %4933 = vmatprep.subr.mxu0 0.0
    %4934 = vmatpush2.msra.mxu0 0.0
    %4935 = vmatprep.subr.mxu0 0.0
    %4936 = vmatpush2.msra.mxu0 0.0
    %4937 = vmatprep.subr.mxu0 0.0
    %4938 = vmatpush2.msra.mxu0 0.0
    %4939 = vmatprep.subr.mxu0 0.0
    %4940 = vmatpush2.msra.mxu0 0.0
    %4941 = vmatprep.subr.mxu0 0.0
    %4942 = vmatpush2.msra.mxu0 0.0
    %4943 = vmatprep.subr.mxu0 0.0
    %4944 = vmatpush2.msra.mxu0 0.0
    %4945 = vmatprep.subr.mxu0 0.0
    %4946 = vmatpush2.msra.mxu0 0.0
    %4947 = vmatprep.subr.mxu0 0.0
    %4948 = vmatpush2.msra.mxu0 0.0
    %4949 = vmatprep.subr.mxu0 0.0
    %4950 = vmatpush2.msra.mxu0 0.0
    %4951 = vmatprep.subr.mxu0 0.0
    %4952 = vmatpush2.msra.mxu0 0.0
    %4953 = vmatprep.subr.mxu0 0.0
    %4954 = vmatpush2.msra.mxu0 0.0
    %4955 = vmatprep.mubr.f32.mxu0 0.0
    %4956 = vmatmul.mubr.f32.gmra.mxu0 %v4817
    %v4957 = vpop.f32.mrf.mxu0
    %v4958 = vadd.f32 0.0, %v4957
    %v4959 = vpop.f32.mrf.mxu0
    %4960 = vmatprep.mubr.f32.mxu0 0.0
    %4961 = vmatmul.mubr.f32.gmra.mxu0 %v4820
    %v4962 = vpop.f32.mrf.mxu0
    %v4963 = vadd.f32 0.0, %v4962
    %v4964 = vpop.f32.mrf.mxu0
    %4965 = vmatprep.mubr.f32.mxu0 0.0
    %4966 = vmatmul.mubr.f32.gmra.mxu0 %v4823
    %v4967 = vpop.f32.mrf.mxu0
    %v4968 = vadd.f32 0.0, %v4967
    %v4969 = vpop.f32.mrf.mxu0
    %4970 = vmatprep.mubr.f32.mxu0 0.0
    %4971 = vmatmul.mubr.f32.gmra.mxu0 %v4826
    %v4972 = vpop.f32.mrf.mxu0
    %v4973 = vadd.f32 0.0, %v4972
    %v4974 = vpop.f32.mrf.mxu0
    %4975 = vmatprep.mubr.f32.mxu0 0.0
    %4976 = vmatmul.mubr.f32.gmra.mxu0 %v4829
    %v4977 = vpop.f32.mrf.mxu0
    %v4978 = vadd.f32 0.0, %v4977
    %v4979 = vpop.f32.mrf.mxu0
    %4980 = vmatprep.mubr.f32.mxu0 0.0
    %4981 = vmatmul.mubr.f32.gmra.mxu0 %v4832
    %v4982 = vpop.f32.mrf.mxu0
    %v4983 = vadd.f32 0.0, %v4982
    %v4984 = vpop.f32.mrf.mxu0
    %4985 = vmatprep.mubr.f32.mxu0 0.0
    %4986 = vmatmul.mubr.f32.gmra.mxu0 %v4835
    %v4987 = vpop.f32.mrf.mxu0
    %v4988 = vadd.f32 0.0, %v4987
    %v4989 = vpop.f32.mrf.mxu0
    %4990 = vmatprep.mubr.f32.mxu0 0.0
    %4991 = vmatmul.mubr.f32.gmra.mxu0 %v4838
    %v4992 = vpop.f32.mrf.mxu0
    %v4993 = vadd.f32 0.0, %v4992
    %v4994 = vpop.f32.mrf.mxu0
    %4995 = vmatprep.mubr.f32.mxu0 0.0
    %4996 = vmatmul.mubr.f32.gmra.mxu0 %v4841
    %v4997 = vpop.f32.mrf.mxu0
    %v4998 = vadd.f32 0.0, %v4997
    %v4999 = vpop.f32.mrf.mxu0
    %5000 = vmatprep.mubr.f32.mxu0 0.0
    %5001 = vmatmul.mubr.f32.gmra.mxu0 %v4844
    %v5002 = vpop.f32.mrf.mxu0
    %v5003 = vadd.f32 0.0, %v5002
    %v5004 = vpop.f32.mrf.mxu0
    %5005 = vmatprep.mubr.f32.mxu0 0.0
    %5006 = vmatmul.mubr.f32.gmra.mxu0 %v4847
    %v5007 = vpop.f32.mrf.mxu0
    %v5008 = vadd.f32 0.0, %v5007
    %v5009 = vpop.f32.mrf.mxu0
    %5010 = vmatprep.mubr.f32.mxu0 0.0
    %5011 = vmatmul.mubr.f32.gmra.mxu0 %v4850
    %v5012 = vpop.f32.mrf.mxu0
    %v5013 = vadd.f32 0.0, %v5012
    %v5014 = vpop.f32.mrf.mxu0
    %5015 = vmatprep.mubr.f32.mxu0 0.0
    %5016 = vmatmul.mubr.f32.gmra.mxu0 %v4853
    %v5017 = vpop.f32.mrf.mxu0
    %v5018 = vadd.f32 0.0, %v5017
    %v5019 = vpop.f32.mrf.mxu0
    %5020 = vmatprep.mubr.f32.mxu0 0.0
    %5021 = vmatmul.mubr.f32.gmra.mxu0 %v4856
    %v5022 = vpop.f32.mrf.mxu0
    %v5023 = vadd.f32 0.0, %v5022
    %v5024 = vpop.f32.mrf.mxu0
    %5025 = vmatprep.mubr.f32.mxu0 0.0
    %5026 = vmatmul.mubr.f32.gmra.mxu0 %v4859
    %v5027 = vpop.f32.mrf.mxu0
    %v5028 = vadd.f32 0.0, %v5027
    %v5029 = vpop.f32.mrf.mxu0
    %5030 = vmatprep.mubr.f32.mxu0 0.0
    %5031 = vmatmul.mubr.f32.gmra.mxu0 %v4862
    %v5032 = vpop.f32.mrf.mxu0
    %v5033 = vadd.f32 0.0, %v5032
    %v5034 = vpop.f32.mrf.mxu0
    %5035 = vmatprep.mubr.f32.mxu0 0.0
    %5036 = vmatmul.mubr.f32.gmra.mxu0 %v4865
    %v5037 = vpop.f32.mrf.mxu0
    %v5038 = vadd.f32 0.0, %v5037
    %v5039 = vpop.f32.mrf.mxu0
    %5040 = vmatprep.mubr.f32.mxu0 0.0
    %5041 = vmatmul.mubr.f32.gmra.mxu0 %v4868
    %v5042 = vpop.f32.mrf.mxu0
    %v5043 = vadd.f32 0.0, %v5042
    %v5044 = vpop.f32.mrf.mxu0
    %5045 = vmatprep.mubr.f32.mxu0 0.0
    %5046 = vmatmul.mubr.f32.gmra.mxu0 %v4871
    %v5047 = vpop.f32.mrf.mxu0
    %v5048 = vadd.f32 0.0, %v5047
    %v5049 = vpop.f32.mrf.mxu0
    %5050 = vmatprep.mubr.f32.mxu0 0.0
    %5051 = vmatmul.mubr.f32.gmra.mxu0 %v4874
    %v5052 = vpop.f32.mrf.mxu0
    %v5053 = vadd.f32 0.0, %v5052
    %v5054 = vpop.f32.mrf.mxu0
    %5055 = vmatprep.mubr.f32.mxu0 0.0
    %5056 = vmatmul.mubr.f32.gmra.mxu0 %v4877
    %v5057 = vpop.f32.mrf.mxu0
    %v5058 = vadd.f32 0.0, %v5057
    %v5059 = vpop.f32.mrf.mxu0
    %5060 = vmatprep.mubr.f32.mxu0 0.0
    %5061 = vmatmul.mubr.f32.gmra.mxu0 %v4880
    %v5062 = vpop.f32.mrf.mxu0
    %v5063 = vadd.f32 0.0, %v5062
    %v5064 = vpop.f32.mrf.mxu0
    %5065 = vmatprep.mubr.f32.mxu0 0.0
    %5066 = vmatmul.mubr.f32.gmra.mxu0 %v4883
    %v5067 = vpop.f32.mrf.mxu0
    %v5068 = vadd.f32 0.0, %v5067
    %v5069 = vpop.f32.mrf.mxu0
    %5070 = vmatprep.mubr.f32.mxu0 0.0
    %5071 = vmatmul.mubr.f32.gmra.mxu0 %v4886
    %v5072 = vpop.f32.mrf.mxu0
    %v5073 = vadd.f32 0.0, %v5072
    %v5074 = vpop.f32.mrf.mxu0
    %5075 = vmatprep.mubr.f32.mxu0 0.0
    %5076 = vmatmul.mubr.f32.gmra.mxu0 %v4889
    %v5077 = vpop.f32.mrf.mxu0
    %v5078 = vadd.f32 0.0, %v5077
    %v5079 = vpop.f32.mrf.mxu0
    %5080 = vdwg.mxu0
    %v5081 = vadd.f32 %v4757, %v4958
    %v5082 = vadd.f32 %v4758, %v4963
    %v5083 = vadd.f32 %v4759, %v4968
    %v5084 = vadd.f32 %v4760, %v4973
    %v5085 = vadd.f32 %v4761, %v4978
    %v5086 = vadd.f32 %v4762, %v4983
    %v5087 = vadd.f32 %v4763, %v4988
    %v5088 = vadd.f32 %v4764, %v4993
    %v5089 = vadd.f32 %v4765, %v4998
    %v5090 = vadd.f32 %v4766, %v5003
    %v5091 = vadd.f32 %v4767, %v5008
    %v5092 = vadd.f32 %v4768, %v5013
    %v5093 = vadd.f32 %v4769, %v5018
    %v5094 = vadd.f32 %v4770, %v5023
    %v5095 = vadd.f32 %v4771, %v5028
    %v5096 = vadd.f32 %v4772, %v5033
    %v5097 = vadd.f32 %v4773, %v5038
    %v5098 = vadd.f32 %v4774, %v5043
    %v5099 = vadd.f32 %v4775, %v5048
    %v5100 = vadd.f32 %v4776, %v5053
    %v5101 = vadd.f32 %v4777, %v5058
    %v5102 = vadd.f32 %v4778, %v5063
    %v5103 = vadd.f32 %v4779, %v5068
    %v5104 = vadd.f32 %v4780, %v5073
    %v5105 = vadd.f32 %v4781, %v5078
    %v5106 = vld [vmem:[#allocation3 + $0x11] sm:$0xff]
    %v5107 = vld [vmem:[#allocation3 + $0x19] sm:$0xff]
    %v5108 = vld [vmem:[#allocation3 + $0x21] sm:$0xff]
    %v5109 = vld [vmem:[#allocation3 + $0x29] sm:$0xff]
    %v5110 = vld [vmem:[#allocation3 + $0x31] sm:$0xff]
    %v5111 = vld [vmem:[#allocation3 + $0x39] sm:$0xff]
    %v5112 = vld [vmem:[#allocation3 + $0x41] sm:$0xff]
    %v5113 = vld [vmem:[#allocation3 + $0x49] sm:$0xff]
    %v5114 = vld [vmem:[#allocation3 + $0x51] sm:$0xff]
    %v5115 = vld [vmem:[#allocation3 + $0x59] sm:$0xff]
    %v5116 = vld [vmem:[#allocation3 + $0x61] sm:$0xff]
    %v5117 = vld [vmem:[#allocation3 + $0x69] sm:$0xff]
    %v5118 = vld [vmem:[#allocation3 + $0x71] sm:$0xff]
    %v5119 = vld [vmem:[#allocation3 + $0x79] sm:$0xff]
    %v5120 = vld [vmem:[#allocation3 + $0x81] sm:$0xff]
    %v5121 = vld [vmem:[#allocation3 + $0x89] sm:$0xff]
    %v5122 = vld [vmem:[#allocation3 + $0x91] sm:$0xff]
    %v5123 = vld [vmem:[#allocation3 + $0x99] sm:$0xff]
    %v5124 = vld [vmem:[#allocation3 + $0xa1] sm:$0xff]
    %v5125 = vld [vmem:[#allocation3 + $0xa9] sm:$0xff]
    %v5126 = vld [vmem:[#allocation3 + $0xb1] sm:$0xff]
    %v5127 = vld [vmem:[#allocation3 + $0xb9] sm:$0xff]
    %v5128 = vld [vmem:[#allocation3 + $0xc1] sm:$0xff]
    %v5129 = vld [vmem:[#allocation3 + $0xc9] sm:$0xff]
    %v5130 = vld [vmem:[#allocation3 + $0xd1] sm:$0xff]
    %s5131 = scalar_lea.vmem [#allocation6], 320
    %v5132 = vld [vmem:[%s5131] sm:$0xff]
    %v5133 = vld [vmem:[%s5131 + $0x8] sm:$0xff]
    %v5134 = vld [vmem:[%s5131 + $0x10] sm:$0xff]
    %v5135 = vld [vmem:[%s5131 + $0x18] sm:$0xff]
    %v5136 = vld [vmem:[%s5131 + $0x20] sm:$0xff]
    %v5137 = vld [vmem:[%s5131 + $0x28] sm:$0xff]
    %v5138 = vld [vmem:[%s5131 + $0x30] sm:$0xff]
    %v5139 = vld [vmem:[%s5131 + $0x38] sm:$0xff]
    %v5141 = vsel %vm68, %v5106, 0
    %v5144 = vsel %vm68, %v5107, 0
    %v5147 = vsel %vm68, %v5108, 0
    %v5150 = vsel %vm68, %v5109, 0
    %v5153 = vsel %vm68, %v5110, 0
    %v5156 = vsel %vm68, %v5111, 0
    %v5159 = vsel %vm68, %v5112, 0
    %v5162 = vsel %vm68, %v5113, 0
    %v5165 = vsel %vm68, %v5114, 0
    %v5168 = vsel %vm68, %v5115, 0
    %v5171 = vsel %vm68, %v5116, 0
    %v5174 = vsel %vm68, %v5117, 0
    %v5177 = vsel %vm68, %v5118, 0
    %v5180 = vsel %vm68, %v5119, 0
    %v5183 = vsel %vm68, %v5120, 0
    %v5186 = vsel %vm68, %v5121, 0
    %v5189 = vsel %vm68, %v5122, 0
    %v5192 = vsel %vm68, %v5123, 0
    %v5195 = vsel %vm68, %v5124, 0
    %v5198 = vsel %vm68, %v5125, 0
    %v5201 = vsel %vm68, %v5126, 0
    %v5204 = vsel %vm68, %v5127, 0
    %v5207 = vsel %vm68, %v5128, 0
    %v5210 = vsel %vm68, %v5129, 0
    %v5213 = vsel %vm68, %v5130, 0
    %5215 = vmatprep.subr.mxu0 0.0
    %5216 = vmatpush1.msra.mxu0 0.0
    %5217 = vmatprep.subr.mxu0 0.0
    %5218 = vmatpush1.msra.mxu0 0.0
    %5219 = vmatprep.subr.mxu0 0.0
    %5220 = vmatpush1.msra.mxu0 0.0
    %5221 = vmatprep.subr.mxu0 0.0
    %5222 = vmatpush1.msra.mxu0 0.0
    %5223 = vmatprep.subr.mxu0 0.0
    %5224 = vmatpush1.msra.mxu0 0.0
    %5225 = vmatprep.subr.mxu0 0.0
    %5226 = vmatpush1.msra.mxu0 0.0
    %5227 = vmatprep.subr.mxu0 0.0
    %5228 = vmatpush1.msra.mxu0 0.0
    %5229 = vmatprep.subr.mxu0 0.0
    %5230 = vmatpush1.msra.mxu0 0.0
    %5231 = vmatprep.subr.mxu0 0.0
    %5232 = vmatpush1.msra.mxu0 %v5139
    %5233 = vmatprep.subr.mxu0 0.0
    %5234 = vmatpush1.msra.mxu0 %v5138
    %5235 = vmatprep.subr.mxu0 0.0
    %5236 = vmatpush1.msra.mxu0 %v5137
    %5237 = vmatprep.subr.mxu0 0.0
    %5238 = vmatpush1.msra.mxu0 %v5136
    %5239 = vmatprep.subr.mxu0 0.0
    %5240 = vmatpush1.msra.mxu0 %v5135
    %5241 = vmatprep.subr.mxu0 0.0
    %5242 = vmatpush1.msra.mxu0 %v5134
    %5243 = vmatprep.subr.mxu0 0.0
    %5244 = vmatpush1.msra.mxu0 %v5133
    %5245 = vmatprep.subr.mxu0 0.0
    %5246 = vmatpush1.msra.mxu0 %v5132
    %5247 = vmatprep.subr.mxu0 0.0
    %5248 = vmatpush2.msra.mxu0 0.0
    %5249 = vmatprep.subr.mxu0 0.0
    %5250 = vmatpush2.msra.mxu0 0.0
    %5251 = vmatprep.subr.mxu0 0.0
    %5252 = vmatpush2.msra.mxu0 0.0
    %5253 = vmatprep.subr.mxu0 0.0
    %5254 = vmatpush2.msra.mxu0 0.0
    %5255 = vmatprep.subr.mxu0 0.0
    %5256 = vmatpush2.msra.mxu0 0.0
    %5257 = vmatprep.subr.mxu0 0.0
    %5258 = vmatpush2.msra.mxu0 0.0
    %5259 = vmatprep.subr.mxu0 0.0
    %5260 = vmatpush2.msra.mxu0 0.0
    %5261 = vmatprep.subr.mxu0 0.0
    %5262 = vmatpush2.msra.mxu0 0.0
    %5263 = vmatprep.subr.mxu0 0.0
    %5264 = vmatpush2.msra.mxu0 0.0
    %5265 = vmatprep.subr.mxu0 0.0
    %5266 = vmatpush2.msra.mxu0 0.0
    %5267 = vmatprep.subr.mxu0 0.0
    %5268 = vmatpush2.msra.mxu0 0.0
    %5269 = vmatprep.subr.mxu0 0.0
    %5270 = vmatpush2.msra.mxu0 0.0
    %5271 = vmatprep.subr.mxu0 0.0
    %5272 = vmatpush2.msra.mxu0 0.0
    %5273 = vmatprep.subr.mxu0 0.0
    %5274 = vmatpush2.msra.mxu0 0.0
    %5275 = vmatprep.subr.mxu0 0.0
    %5276 = vmatpush2.msra.mxu0 0.0
    %5277 = vmatprep.subr.mxu0 0.0
    %5278 = vmatpush2.msra.mxu0 0.0
    %5279 = vmatprep.mubr.f32.mxu0 0.0
    %5280 = vmatmul.mubr.f32.gmra.mxu0 %v5141
    %v5281 = vpop.f32.mrf.mxu0
    %v5282 = vadd.f32 0.0, %v5281
    %v5283 = vpop.f32.mrf.mxu0
    %5284 = vmatprep.mubr.f32.mxu0 0.0
    %5285 = vmatmul.mubr.f32.gmra.mxu0 %v5144
    %v5286 = vpop.f32.mrf.mxu0
    %v5287 = vadd.f32 0.0, %v5286
    %v5288 = vpop.f32.mrf.mxu0
    %5289 = vmatprep.mubr.f32.mxu0 0.0
    %5290 = vmatmul.mubr.f32.gmra.mxu0 %v5147
    %v5291 = vpop.f32.mrf.mxu0
    %v5292 = vadd.f32 0.0, %v5291
    %v5293 = vpop.f32.mrf.mxu0
    %5294 = vmatprep.mubr.f32.mxu0 0.0
    %5295 = vmatmul.mubr.f32.gmra.mxu0 %v5150
    %v5296 = vpop.f32.mrf.mxu0
    %v5297 = vadd.f32 0.0, %v5296
    %v5298 = vpop.f32.mrf.mxu0
    %5299 = vmatprep.mubr.f32.mxu0 0.0
    %5300 = vmatmul.mubr.f32.gmra.mxu0 %v5153
    %v5301 = vpop.f32.mrf.mxu0
    %v5302 = vadd.f32 0.0, %v5301
    %v5303 = vpop.f32.mrf.mxu0
    %5304 = vmatprep.mubr.f32.mxu0 0.0
    %5305 = vmatmul.mubr.f32.gmra.mxu0 %v5156
    %v5306 = vpop.f32.mrf.mxu0
    %v5307 = vadd.f32 0.0, %v5306
    %v5308 = vpop.f32.mrf.mxu0
    %5309 = vmatprep.mubr.f32.mxu0 0.0
    %5310 = vmatmul.mubr.f32.gmra.mxu0 %v5159
    %v5311 = vpop.f32.mrf.mxu0
    %v5312 = vadd.f32 0.0, %v5311
    %v5313 = vpop.f32.mrf.mxu0
    %5314 = vmatprep.mubr.f32.mxu0 0.0
    %5315 = vmatmul.mubr.f32.gmra.mxu0 %v5162
    %v5316 = vpop.f32.mrf.mxu0
    %v5317 = vadd.f32 0.0, %v5316
    %v5318 = vpop.f32.mrf.mxu0
    %5319 = vmatprep.mubr.f32.mxu0 0.0
    %5320 = vmatmul.mubr.f32.gmra.mxu0 %v5165
    %v5321 = vpop.f32.mrf.mxu0
    %v5322 = vadd.f32 0.0, %v5321
    %v5323 = vpop.f32.mrf.mxu0
    %5324 = vmatprep.mubr.f32.mxu0 0.0
    %5325 = vmatmul.mubr.f32.gmra.mxu0 %v5168
    %v5326 = vpop.f32.mrf.mxu0
    %v5327 = vadd.f32 0.0, %v5326
    %v5328 = vpop.f32.mrf.mxu0
    %5329 = vmatprep.mubr.f32.mxu0 0.0
    %5330 = vmatmul.mubr.f32.gmra.mxu0 %v5171
    %v5331 = vpop.f32.mrf.mxu0
    %v5332 = vadd.f32 0.0, %v5331
    %v5333 = vpop.f32.mrf.mxu0
    %5334 = vmatprep.mubr.f32.mxu0 0.0
    %5335 = vmatmul.mubr.f32.gmra.mxu0 %v5174
    %v5336 = vpop.f32.mrf.mxu0
    %v5337 = vadd.f32 0.0, %v5336
    %v5338 = vpop.f32.mrf.mxu0
    %5339 = vmatprep.mubr.f32.mxu0 0.0
    %5340 = vmatmul.mubr.f32.gmra.mxu0 %v5177
    %v5341 = vpop.f32.mrf.mxu0
    %v5342 = vadd.f32 0.0, %v5341
    %v5343 = vpop.f32.mrf.mxu0
    %5344 = vmatprep.mubr.f32.mxu0 0.0
    %5345 = vmatmul.mubr.f32.gmra.mxu0 %v5180
    %v5346 = vpop.f32.mrf.mxu0
    %v5347 = vadd.f32 0.0, %v5346
    %v5348 = vpop.f32.mrf.mxu0
    %5349 = vmatprep.mubr.f32.mxu0 0.0
    %5350 = vmatmul.mubr.f32.gmra.mxu0 %v5183
    %v5351 = vpop.f32.mrf.mxu0
    %v5352 = vadd.f32 0.0, %v5351
    %v5353 = vpop.f32.mrf.mxu0
    %5354 = vmatprep.mubr.f32.mxu0 0.0
    %5355 = vmatmul.mubr.f32.gmra.mxu0 %v5186
    %v5356 = vpop.f32.mrf.mxu0
    %v5357 = vadd.f32 0.0, %v5356
    %v5358 = vpop.f32.mrf.mxu0
    %5359 = vmatprep.mubr.f32.mxu0 0.0
    %5360 = vmatmul.mubr.f32.gmra.mxu0 %v5189
    %v5361 = vpop.f32.mrf.mxu0
    %v5362 = vadd.f32 0.0, %v5361
    %v5363 = vpop.f32.mrf.mxu0
    %5364 = vmatprep.mubr.f32.mxu0 0.0
    %5365 = vmatmul.mubr.f32.gmra.mxu0 %v5192
    %v5366 = vpop.f32.mrf.mxu0
    %v5367 = vadd.f32 0.0, %v5366
    %v5368 = vpop.f32.mrf.mxu0
    %5369 = vmatprep.mubr.f32.mxu0 0.0
    %5370 = vmatmul.mubr.f32.gmra.mxu0 %v5195
    %v5371 = vpop.f32.mrf.mxu0
    %v5372 = vadd.f32 0.0, %v5371
    %v5373 = vpop.f32.mrf.mxu0
    %5374 = vmatprep.mubr.f32.mxu0 0.0
    %5375 = vmatmul.mubr.f32.gmra.mxu0 %v5198
    %v5376 = vpop.f32.mrf.mxu0
    %v5377 = vadd.f32 0.0, %v5376
    %v5378 = vpop.f32.mrf.mxu0
    %5379 = vmatprep.mubr.f32.mxu0 0.0
    %5380 = vmatmul.mubr.f32.gmra.mxu0 %v5201
    %v5381 = vpop.f32.mrf.mxu0
    %v5382 = vadd.f32 0.0, %v5381
    %v5383 = vpop.f32.mrf.mxu0
    %5384 = vmatprep.mubr.f32.mxu0 0.0
    %5385 = vmatmul.mubr.f32.gmra.mxu0 %v5204
    %v5386 = vpop.f32.mrf.mxu0
    %v5387 = vadd.f32 0.0, %v5386
    %v5388 = vpop.f32.mrf.mxu0
    %5389 = vmatprep.mubr.f32.mxu0 0.0
    %5390 = vmatmul.mubr.f32.gmra.mxu0 %v5207
    %v5391 = vpop.f32.mrf.mxu0
    %v5392 = vadd.f32 0.0, %v5391
    %v5393 = vpop.f32.mrf.mxu0
    %5394 = vmatprep.mubr.f32.mxu0 0.0
    %5395 = vmatmul.mubr.f32.gmra.mxu0 %v5210
    %v5396 = vpop.f32.mrf.mxu0
    %v5397 = vadd.f32 0.0, %v5396
    %v5398 = vpop.f32.mrf.mxu0
    %5399 = vmatprep.mubr.f32.mxu0 0.0
    %5400 = vmatmul.mubr.f32.gmra.mxu0 %v5213
    %v5401 = vpop.f32.mrf.mxu0
    %v5402 = vadd.f32 0.0, %v5401
    %v5403 = vpop.f32.mrf.mxu0
    %5404 = vdwg.mxu0
    %v5405 = vadd.f32 %v5081, %v5282
    %v5406 = vadd.f32 %v5082, %v5287
    %v5407 = vadd.f32 %v5083, %v5292
    %v5408 = vadd.f32 %v5084, %v5297
    %v5409 = vadd.f32 %v5085, %v5302
    %v5410 = vadd.f32 %v5086, %v5307
    %v5411 = vadd.f32 %v5087, %v5312
    %v5412 = vadd.f32 %v5088, %v5317
    %v5413 = vadd.f32 %v5089, %v5322
    %v5414 = vadd.f32 %v5090, %v5327
    %v5415 = vadd.f32 %v5091, %v5332
    %v5416 = vadd.f32 %v5092, %v5337
    %v5417 = vadd.f32 %v5093, %v5342
    %v5418 = vadd.f32 %v5094, %v5347
    %v5419 = vadd.f32 %v5095, %v5352
    %v5420 = vadd.f32 %v5096, %v5357
    %v5421 = vadd.f32 %v5097, %v5362
    %v5422 = vadd.f32 %v5098, %v5367
    %v5423 = vadd.f32 %v5099, %v5372
    %v5424 = vadd.f32 %v5100, %v5377
    %v5425 = vadd.f32 %v5101, %v5382
    %v5426 = vadd.f32 %v5102, %v5387
    %v5427 = vadd.f32 %v5103, %v5392
    %v5428 = vadd.f32 %v5104, %v5397
    %v5429 = vadd.f32 %v5105, %v5402
    %v5430 = vld [vmem:[#allocation3 + $0x19] sm:$0xff]
    %v5431 = vld [vmem:[#allocation3 + $0x21] sm:$0xff]
    %v5432 = vld [vmem:[#allocation3 + $0x29] sm:$0xff]
    %v5433 = vld [vmem:[#allocation3 + $0x31] sm:$0xff]
    %v5434 = vld [vmem:[#allocation3 + $0x39] sm:$0xff]
    %v5435 = vld [vmem:[#allocation3 + $0x41] sm:$0xff]
    %v5436 = vld [vmem:[#allocation3 + $0x49] sm:$0xff]
    %v5437 = vld [vmem:[#allocation3 + $0x51] sm:$0xff]
    %v5438 = vld [vmem:[#allocation3 + $0x59] sm:$0xff]
    %v5439 = vld [vmem:[#allocation3 + $0x61] sm:$0xff]
    %v5440 = vld [vmem:[#allocation3 + $0x69] sm:$0xff]
    %v5441 = vld [vmem:[#allocation3 + $0x71] sm:$0xff]
    %v5442 = vld [vmem:[#allocation3 + $0x79] sm:$0xff]
    %v5443 = vld [vmem:[#allocation3 + $0x81] sm:$0xff]
    %v5444 = vld [vmem:[#allocation3 + $0x89] sm:$0xff]
    %v5445 = vld [vmem:[#allocation3 + $0x91] sm:$0xff]
    %v5446 = vld [vmem:[#allocation3 + $0x99] sm:$0xff]
    %v5447 = vld [vmem:[#allocation3 + $0xa1] sm:$0xff]
    %v5448 = vld [vmem:[#allocation3 + $0xa9] sm:$0xff]
    %v5449 = vld [vmem:[#allocation3 + $0xb1] sm:$0xff]
    %v5450 = vld [vmem:[#allocation3 + $0xb9] sm:$0xff]
    %v5451 = vld [vmem:[#allocation3 + $0xc1] sm:$0xff]
    %v5452 = vld [vmem:[#allocation3 + $0xc9] sm:$0xff]
    %v5453 = vld [vmem:[#allocation3 + $0xd1] sm:$0xff]
    %v5454 = vld [vmem:[#allocation3 + $0xd9] sm:$0xff]
    %s5455 = scalar_lea.vmem [#allocation6], 384
    %v5456 = vld [vmem:[%s5455] sm:$0xff]
    %v5457 = vld [vmem:[%s5455 + $0x8] sm:$0xff]
    %v5458 = vld [vmem:[%s5455 + $0x10] sm:$0xff]
    %v5459 = vld [vmem:[%s5455 + $0x18] sm:$0xff]
    %v5460 = vld [vmem:[%s5455 + $0x20] sm:$0xff]
    %v5461 = vld [vmem:[%s5455 + $0x28] sm:$0xff]
    %v5462 = vld [vmem:[%s5455 + $0x30] sm:$0xff]
    %v5463 = vld [vmem:[%s5455 + $0x38] sm:$0xff]
    %v5465 = vsel %vm68, %v5430, 0
    %v5468 = vsel %vm68, %v5431, 0
    %v5471 = vsel %vm68, %v5432, 0
    %v5474 = vsel %vm68, %v5433, 0
    %v5477 = vsel %vm68, %v5434, 0
    %v5480 = vsel %vm68, %v5435, 0
    %v5483 = vsel %vm68, %v5436, 0
    %v5486 = vsel %vm68, %v5437, 0
    %v5489 = vsel %vm68, %v5438, 0
    %v5492 = vsel %vm68, %v5439, 0
    %v5495 = vsel %vm68, %v5440, 0
    %v5498 = vsel %vm68, %v5441, 0
    %v5501 = vsel %vm68, %v5442, 0
    %v5504 = vsel %vm68, %v5443, 0
    %v5507 = vsel %vm68, %v5444, 0
    %v5510 = vsel %vm68, %v5445, 0
    %v5513 = vsel %vm68, %v5446, 0
    %v5516 = vsel %vm68, %v5447, 0
    %v5519 = vsel %vm68, %v5448, 0
    %v5522 = vsel %vm68, %v5449, 0
    %v5525 = vsel %vm68, %v5450, 0
    %v5528 = vsel %vm68, %v5451, 0
    %v5531 = vsel %vm68, %v5452, 0
    %v5534 = vsel %vm68, %v5453, 0
    %v5537 = vsel %vm68, %v5454, 0
    %5539 = vmatprep.subr.mxu0 0.0
    %5540 = vmatpush1.msra.mxu0 0.0
    %5541 = vmatprep.subr.mxu0 0.0
    %5542 = vmatpush1.msra.mxu0 0.0
    %5543 = vmatprep.subr.mxu0 0.0
    %5544 = vmatpush1.msra.mxu0 0.0
    %5545 = vmatprep.subr.mxu0 0.0
    %5546 = vmatpush1.msra.mxu0 0.0
    %5547 = vmatprep.subr.mxu0 0.0
    %5548 = vmatpush1.msra.mxu0 0.0
    %5549 = vmatprep.subr.mxu0 0.0
    %5550 = vmatpush1.msra.mxu0 0.0
    %5551 = vmatprep.subr.mxu0 0.0
    %5552 = vmatpush1.msra.mxu0 0.0
    %5553 = vmatprep.subr.mxu0 0.0
    %5554 = vmatpush1.msra.mxu0 0.0
    %5555 = vmatprep.subr.mxu0 0.0
    %5556 = vmatpush1.msra.mxu0 %v5463
    %5557 = vmatprep.subr.mxu0 0.0
    %5558 = vmatpush1.msra.mxu0 %v5462
    %5559 = vmatprep.subr.mxu0 0.0
    %5560 = vmatpush1.msra.mxu0 %v5461
    %5561 = vmatprep.subr.mxu0 0.0
    %5562 = vmatpush1.msra.mxu0 %v5460
    %5563 = vmatprep.subr.mxu0 0.0
    %5564 = vmatpush1.msra.mxu0 %v5459
    %5565 = vmatprep.subr.mxu0 0.0
    %5566 = vmatpush1.msra.mxu0 %v5458
    %5567 = vmatprep.subr.mxu0 0.0
    %5568 = vmatpush1.msra.mxu0 %v5457
    %5569 = vmatprep.subr.mxu0 0.0
    %5570 = vmatpush1.msra.mxu0 %v5456
    %5571 = vmatprep.subr.mxu0 0.0
    %5572 = vmatpush2.msra.mxu0 0.0
    %5573 = vmatprep.subr.mxu0 0.0
    %5574 = vmatpush2.msra.mxu0 0.0
    %5575 = vmatprep.subr.mxu0 0.0
    %5576 = vmatpush2.msra.mxu0 0.0
    %5577 = vmatprep.subr.mxu0 0.0
    %5578 = vmatpush2.msra.mxu0 0.0
    %5579 = vmatprep.subr.mxu0 0.0
    %5580 = vmatpush2.msra.mxu0 0.0
    %5581 = vmatprep.subr.mxu0 0.0
    %5582 = vmatpush2.msra.mxu0 0.0
    %5583 = vmatprep.subr.mxu0 0.0
    %5584 = vmatpush2.msra.mxu0 0.0
    %5585 = vmatprep.subr.mxu0 0.0
    %5586 = vmatpush2.msra.mxu0 0.0
    %5587 = vmatprep.subr.mxu0 0.0
    %5588 = vmatpush2.msra.mxu0 0.0
    %5589 = vmatprep.subr.mxu0 0.0
    %5590 = vmatpush2.msra.mxu0 0.0
    %5591 = vmatprep.subr.mxu0 0.0
    %5592 = vmatpush2.msra.mxu0 0.0
    %5593 = vmatprep.subr.mxu0 0.0
    %5594 = vmatpush2.msra.mxu0 0.0
    %5595 = vmatprep.subr.mxu0 0.0
    %5596 = vmatpush2.msra.mxu0 0.0
    %5597 = vmatprep.subr.mxu0 0.0
    %5598 = vmatpush2.msra.mxu0 0.0
    %5599 = vmatprep.subr.mxu0 0.0
    %5600 = vmatpush2.msra.mxu0 0.0
    %5601 = vmatprep.subr.mxu0 0.0
    %5602 = vmatpush2.msra.mxu0 0.0
    %5603 = vmatprep.mubr.f32.mxu0 0.0
    %5604 = vmatmul.mubr.f32.gmra.mxu0 %v5465
    %v5605 = vpop.f32.mrf.mxu0
    %v5606 = vadd.f32 0.0, %v5605
    %v5607 = vpop.f32.mrf.mxu0
    %5608 = vmatprep.mubr.f32.mxu0 0.0
    %5609 = vmatmul.mubr.f32.gmra.mxu0 %v5468
    %v5610 = vpop.f32.mrf.mxu0
    %v5611 = vadd.f32 0.0, %v5610
    %v5612 = vpop.f32.mrf.mxu0
    %5613 = vmatprep.mubr.f32.mxu0 0.0
    %5614 = vmatmul.mubr.f32.gmra.mxu0 %v5471
    %v5615 = vpop.f32.mrf.mxu0
    %v5616 = vadd.f32 0.0, %v5615
    %v5617 = vpop.f32.mrf.mxu0
    %5618 = vmatprep.mubr.f32.mxu0 0.0
    %5619 = vmatmul.mubr.f32.gmra.mxu0 %v5474
    %v5620 = vpop.f32.mrf.mxu0
    %v5621 = vadd.f32 0.0, %v5620
    %v5622 = vpop.f32.mrf.mxu0
    %5623 = vmatprep.mubr.f32.mxu0 0.0
    %5624 = vmatmul.mubr.f32.gmra.mxu0 %v5477
    %v5625 = vpop.f32.mrf.mxu0
    %v5626 = vadd.f32 0.0, %v5625
    %v5627 = vpop.f32.mrf.mxu0
    %5628 = vmatprep.mubr.f32.mxu0 0.0
    %5629 = vmatmul.mubr.f32.gmra.mxu0 %v5480
    %v5630 = vpop.f32.mrf.mxu0
    %v5631 = vadd.f32 0.0, %v5630
    %v5632 = vpop.f32.mrf.mxu0
    %5633 = vmatprep.mubr.f32.mxu0 0.0
    %5634 = vmatmul.mubr.f32.gmra.mxu0 %v5483
    %v5635 = vpop.f32.mrf.mxu0
    %v5636 = vadd.f32 0.0, %v5635
    %v5637 = vpop.f32.mrf.mxu0
    %5638 = vmatprep.mubr.f32.mxu0 0.0
    %5639 = vmatmul.mubr.f32.gmra.mxu0 %v5486
    %v5640 = vpop.f32.mrf.mxu0
    %v5641 = vadd.f32 0.0, %v5640
    %v5642 = vpop.f32.mrf.mxu0
    %5643 = vmatprep.mubr.f32.mxu0 0.0
    %5644 = vmatmul.mubr.f32.gmra.mxu0 %v5489
    %v5645 = vpop.f32.mrf.mxu0
    %v5646 = vadd.f32 0.0, %v5645
    %v5647 = vpop.f32.mrf.mxu0
    %5648 = vmatprep.mubr.f32.mxu0 0.0
    %5649 = vmatmul.mubr.f32.gmra.mxu0 %v5492
    %v5650 = vpop.f32.mrf.mxu0
    %v5651 = vadd.f32 0.0, %v5650
    %v5652 = vpop.f32.mrf.mxu0
    %5653 = vmatprep.mubr.f32.mxu0 0.0
    %5654 = vmatmul.mubr.f32.gmra.mxu0 %v5495
    %v5655 = vpop.f32.mrf.mxu0
    %v5656 = vadd.f32 0.0, %v5655
    %v5657 = vpop.f32.mrf.mxu0
    %5658 = vmatprep.mubr.f32.mxu0 0.0
    %5659 = vmatmul.mubr.f32.gmra.mxu0 %v5498
    %v5660 = vpop.f32.mrf.mxu0
    %v5661 = vadd.f32 0.0, %v5660
    %v5662 = vpop.f32.mrf.mxu0
    %5663 = vmatprep.mubr.f32.mxu0 0.0
    %5664 = vmatmul.mubr.f32.gmra.mxu0 %v5501
    %v5665 = vpop.f32.mrf.mxu0
    %v5666 = vadd.f32 0.0, %v5665
    %v5667 = vpop.f32.mrf.mxu0
    %5668 = vmatprep.mubr.f32.mxu0 0.0
    %5669 = vmatmul.mubr.f32.gmra.mxu0 %v5504
    %v5670 = vpop.f32.mrf.mxu0
    %v5671 = vadd.f32 0.0, %v5670
    %v5672 = vpop.f32.mrf.mxu0
    %5673 = vmatprep.mubr.f32.mxu0 0.0
    %5674 = vmatmul.mubr.f32.gmra.mxu0 %v5507
    %v5675 = vpop.f32.mrf.mxu0
    %v5676 = vadd.f32 0.0, %v5675
    %v5677 = vpop.f32.mrf.mxu0
    %5678 = vmatprep.mubr.f32.mxu0 0.0
    %5679 = vmatmul.mubr.f32.gmra.mxu0 %v5510
    %v5680 = vpop.f32.mrf.mxu0
    %v5681 = vadd.f32 0.0, %v5680
    %v5682 = vpop.f32.mrf.mxu0
    %5683 = vmatprep.mubr.f32.mxu0 0.0
    %5684 = vmatmul.mubr.f32.gmra.mxu0 %v5513
    %v5685 = vpop.f32.mrf.mxu0
    %v5686 = vadd.f32 0.0, %v5685
    %v5687 = vpop.f32.mrf.mxu0
    %5688 = vmatprep.mubr.f32.mxu0 0.0
    %5689 = vmatmul.mubr.f32.gmra.mxu0 %v5516
    %v5690 = vpop.f32.mrf.mxu0
    %v5691 = vadd.f32 0.0, %v5690
    %v5692 = vpop.f32.mrf.mxu0
    %5693 = vmatprep.mubr.f32.mxu0 0.0
    %5694 = vmatmul.mubr.f32.gmra.mxu0 %v5519
    %v5695 = vpop.f32.mrf.mxu0
    %v5696 = vadd.f32 0.0, %v5695
    %v5697 = vpop.f32.mrf.mxu0
    %5698 = vmatprep.mubr.f32.mxu0 0.0
    %5699 = vmatmul.mubr.f32.gmra.mxu0 %v5522
    %v5700 = vpop.f32.mrf.mxu0
    %v5701 = vadd.f32 0.0, %v5700
    %v5702 = vpop.f32.mrf.mxu0
    %5703 = vmatprep.mubr.f32.mxu0 0.0
    %5704 = vmatmul.mubr.f32.gmra.mxu0 %v5525
    %v5705 = vpop.f32.mrf.mxu0
    %v5706 = vadd.f32 0.0, %v5705
    %v5707 = vpop.f32.mrf.mxu0
    %5708 = vmatprep.mubr.f32.mxu0 0.0
    %5709 = vmatmul.mubr.f32.gmra.mxu0 %v5528
    %v5710 = vpop.f32.mrf.mxu0
    %v5711 = vadd.f32 0.0, %v5710
    %v5712 = vpop.f32.mrf.mxu0
    %5713 = vmatprep.mubr.f32.mxu0 0.0
    %5714 = vmatmul.mubr.f32.gmra.mxu0 %v5531
    %v5715 = vpop.f32.mrf.mxu0
    %v5716 = vadd.f32 0.0, %v5715
    %v5717 = vpop.f32.mrf.mxu0
    %5718 = vmatprep.mubr.f32.mxu0 0.0
    %5719 = vmatmul.mubr.f32.gmra.mxu0 %v5534
    %v5720 = vpop.f32.mrf.mxu0
    %v5721 = vadd.f32 0.0, %v5720
    %v5722 = vpop.f32.mrf.mxu0
    %5723 = vmatprep.mubr.f32.mxu0 0.0
    %5724 = vmatmul.mubr.f32.gmra.mxu0 %v5537
    %v5725 = vpop.f32.mrf.mxu0
    %v5726 = vadd.f32 0.0, %v5725
    %v5727 = vpop.f32.mrf.mxu0
    %5728 = vdwg.mxu0
    %v5729 = vadd.f32 %v5405, %v5606
    %v5730 = vadd.f32 %v5406, %v5611
    %v5731 = vadd.f32 %v5407, %v5616
    %v5732 = vadd.f32 %v5408, %v5621
    %v5733 = vadd.f32 %v5409, %v5626
    %v5734 = vadd.f32 %v5410, %v5631
    %v5735 = vadd.f32 %v5411, %v5636
    %v5736 = vadd.f32 %v5412, %v5641
    %v5737 = vadd.f32 %v5413, %v5646
    %v5738 = vadd.f32 %v5414, %v5651
    %v5739 = vadd.f32 %v5415, %v5656
    %v5740 = vadd.f32 %v5416, %v5661
    %v5741 = vadd.f32 %v5417, %v5666
    %v5742 = vadd.f32 %v5418, %v5671
    %v5743 = vadd.f32 %v5419, %v5676
    %v5744 = vadd.f32 %v5420, %v5681
    %v5745 = vadd.f32 %v5421, %v5686
    %v5746 = vadd.f32 %v5422, %v5691
    %v5747 = vadd.f32 %v5423, %v5696
    %v5748 = vadd.f32 %v5424, %v5701
    %v5749 = vadd.f32 %v5425, %v5706
    %v5750 = vadd.f32 %v5426, %v5711
    %v5751 = vadd.f32 %v5427, %v5716
    %v5752 = vadd.f32 %v5428, %v5721
    %v5753 = vadd.f32 %v5429, %v5726
    %v5754 = vld [vmem:[#allocation3 + $0x1a] sm:$0xff]
    %v5755 = vld [vmem:[#allocation3 + $0x22] sm:$0xff]
    %v5756 = vld [vmem:[#allocation3 + $0x2a] sm:$0xff]
    %v5757 = vld [vmem:[#allocation3 + $0x32] sm:$0xff]
    %v5758 = vld [vmem:[#allocation3 + $0x3a] sm:$0xff]
    %v5759 = vld [vmem:[#allocation3 + $0x42] sm:$0xff]
    %v5760 = vld [vmem:[#allocation3 + $0x4a] sm:$0xff]
    %v5761 = vld [vmem:[#allocation3 + $0x52] sm:$0xff]
    %v5762 = vld [vmem:[#allocation3 + $0x5a] sm:$0xff]
    %v5763 = vld [vmem:[#allocation3 + $0x62] sm:$0xff]
    %v5764 = vld [vmem:[#allocation3 + $0x6a] sm:$0xff]
    %v5765 = vld [vmem:[#allocation3 + $0x72] sm:$0xff]
    %v5766 = vld [vmem:[#allocation3 + $0x7a] sm:$0xff]
    %v5767 = vld [vmem:[#allocation3 + $0x82] sm:$0xff]
    %v5768 = vld [vmem:[#allocation3 + $0x8a] sm:$0xff]
    %v5769 = vld [vmem:[#allocation3 + $0x92] sm:$0xff]
    %v5770 = vld [vmem:[#allocation3 + $0x9a] sm:$0xff]
    %v5771 = vld [vmem:[#allocation3 + $0xa2] sm:$0xff]
    %v5772 = vld [vmem:[#allocation3 + $0xaa] sm:$0xff]
    %v5773 = vld [vmem:[#allocation3 + $0xb2] sm:$0xff]
    %v5774 = vld [vmem:[#allocation3 + $0xba] sm:$0xff]
    %v5775 = vld [vmem:[#allocation3 + $0xc2] sm:$0xff]
    %v5776 = vld [vmem:[#allocation3 + $0xca] sm:$0xff]
    %v5777 = vld [vmem:[#allocation3 + $0xd2] sm:$0xff]
    %v5778 = vld [vmem:[#allocation3 + $0xda] sm:$0xff]
    %s5779 = scalar_lea.vmem [#allocation6], 448
    %v5780 = vld [vmem:[%s5779] sm:$0xff]
    %v5781 = vld [vmem:[%s5779 + $0x8] sm:$0xff]
    %v5782 = vld [vmem:[%s5779 + $0x10] sm:$0xff]
    %v5783 = vld [vmem:[%s5779 + $0x18] sm:$0xff]
    %v5784 = vld [vmem:[%s5779 + $0x20] sm:$0xff]
    %v5785 = vld [vmem:[%s5779 + $0x28] sm:$0xff]
    %v5786 = vld [vmem:[%s5779 + $0x30] sm:$0xff]
    %v5787 = vld [vmem:[%s5779 + $0x38] sm:$0xff]
    %v5789 = vsel %vm68, %v5754, 0
    %v5792 = vsel %vm68, %v5755, 0
    %v5795 = vsel %vm68, %v5756, 0
    %v5798 = vsel %vm68, %v5757, 0
    %v5801 = vsel %vm68, %v5758, 0
    %v5804 = vsel %vm68, %v5759, 0
    %v5807 = vsel %vm68, %v5760, 0
    %v5810 = vsel %vm68, %v5761, 0
    %v5813 = vsel %vm68, %v5762, 0
    %v5816 = vsel %vm68, %v5763, 0
    %v5819 = vsel %vm68, %v5764, 0
    %v5822 = vsel %vm68, %v5765, 0
    %v5825 = vsel %vm68, %v5766, 0
    %v5828 = vsel %vm68, %v5767, 0
    %v5831 = vsel %vm68, %v5768, 0
    %v5834 = vsel %vm68, %v5769, 0
    %v5837 = vsel %vm68, %v5770, 0
    %v5840 = vsel %vm68, %v5771, 0
    %v5843 = vsel %vm68, %v5772, 0
    %v5846 = vsel %vm68, %v5773, 0
    %v5849 = vsel %vm68, %v5774, 0
    %v5852 = vsel %vm68, %v5775, 0
    %v5855 = vsel %vm68, %v5776, 0
    %v5858 = vsel %vm68, %v5777, 0
    %v5861 = vsel %vm68, %v5778, 0
    %5863 = vmatprep.subr.mxu0 0.0
    %5864 = vmatpush1.msra.mxu0 0.0
    %5865 = vmatprep.subr.mxu0 0.0
    %5866 = vmatpush1.msra.mxu0 0.0
    %5867 = vmatprep.subr.mxu0 0.0
    %5868 = vmatpush1.msra.mxu0 0.0
    %5869 = vmatprep.subr.mxu0 0.0
    %5870 = vmatpush1.msra.mxu0 0.0
    %5871 = vmatprep.subr.mxu0 0.0
    %5872 = vmatpush1.msra.mxu0 0.0
    %5873 = vmatprep.subr.mxu0 0.0
    %5874 = vmatpush1.msra.mxu0 0.0
    %5875 = vmatprep.subr.mxu0 0.0
    %5876 = vmatpush1.msra.mxu0 0.0
    %5877 = vmatprep.subr.mxu0 0.0
    %5878 = vmatpush1.msra.mxu0 0.0
    %5879 = vmatprep.subr.mxu0 0.0
    %5880 = vmatpush1.msra.mxu0 %v5787
    %5881 = vmatprep.subr.mxu0 0.0
    %5882 = vmatpush1.msra.mxu0 %v5786
    %5883 = vmatprep.subr.mxu0 0.0
    %5884 = vmatpush1.msra.mxu0 %v5785
    %5885 = vmatprep.subr.mxu0 0.0
    %5886 = vmatpush1.msra.mxu0 %v5784
    %5887 = vmatprep.subr.mxu0 0.0
    %5888 = vmatpush1.msra.mxu0 %v5783
    %5889 = vmatprep.subr.mxu0 0.0
    %5890 = vmatpush1.msra.mxu0 %v5782
    %5891 = vmatprep.subr.mxu0 0.0
    %5892 = vmatpush1.msra.mxu0 %v5781
    %5893 = vmatprep.subr.mxu0 0.0
    %5894 = vmatpush1.msra.mxu0 %v5780
    %5895 = vmatprep.subr.mxu0 0.0
    %5896 = vmatpush2.msra.mxu0 0.0
    %5897 = vmatprep.subr.mxu0 0.0
    %5898 = vmatpush2.msra.mxu0 0.0
    %5899 = vmatprep.subr.mxu0 0.0
    %5900 = vmatpush2.msra.mxu0 0.0
    %5901 = vmatprep.subr.mxu0 0.0
    %5902 = vmatpush2.msra.mxu0 0.0
    %5903 = vmatprep.subr.mxu0 0.0
    %5904 = vmatpush2.msra.mxu0 0.0
    %5905 = vmatprep.subr.mxu0 0.0
    %5906 = vmatpush2.msra.mxu0 0.0
    %5907 = vmatprep.subr.mxu0 0.0
    %5908 = vmatpush2.msra.mxu0 0.0
    %5909 = vmatprep.subr.mxu0 0.0
    %5910 = vmatpush2.msra.mxu0 0.0
    %5911 = vmatprep.subr.mxu0 0.0
    %5912 = vmatpush2.msra.mxu0 0.0
    %5913 = vmatprep.subr.mxu0 0.0
    %5914 = vmatpush2.msra.mxu0 0.0
    %5915 = vmatprep.subr.mxu0 0.0
    %5916 = vmatpush2.msra.mxu0 0.0
    %5917 = vmatprep.subr.mxu0 0.0
    %5918 = vmatpush2.msra.mxu0 0.0
    %5919 = vmatprep.subr.mxu0 0.0
    %5920 = vmatpush2.msra.mxu0 0.0
    %5921 = vmatprep.subr.mxu0 0.0
    %5922 = vmatpush2.msra.mxu0 0.0
    %5923 = vmatprep.subr.mxu0 0.0
    %5924 = vmatpush2.msra.mxu0 0.0
    %5925 = vmatprep.subr.mxu0 0.0
    %5926 = vmatpush2.msra.mxu0 0.0
    %5927 = vmatprep.mubr.f32.mxu0 0.0
    %5928 = vmatmul.mubr.f32.gmra.mxu0 %v5789
    %v5929 = vpop.f32.mrf.mxu0
    %v5930 = vadd.f32 0.0, %v5929
    %v5931 = vpop.f32.mrf.mxu0
    %5932 = vmatprep.mubr.f32.mxu0 0.0
    %5933 = vmatmul.mubr.f32.gmra.mxu0 %v5792
    %v5934 = vpop.f32.mrf.mxu0
    %v5935 = vadd.f32 0.0, %v5934
    %v5936 = vpop.f32.mrf.mxu0
    %5937 = vmatprep.mubr.f32.mxu0 0.0
    %5938 = vmatmul.mubr.f32.gmra.mxu0 %v5795
    %v5939 = vpop.f32.mrf.mxu0
    %v5940 = vadd.f32 0.0, %v5939
    %v5941 = vpop.f32.mrf.mxu0
    %5942 = vmatprep.mubr.f32.mxu0 0.0
    %5943 = vmatmul.mubr.f32.gmra.mxu0 %v5798
    %v5944 = vpop.f32.mrf.mxu0
    %v5945 = vadd.f32 0.0, %v5944
    %v5946 = vpop.f32.mrf.mxu0
    %5947 = vmatprep.mubr.f32.mxu0 0.0
    %5948 = vmatmul.mubr.f32.gmra.mxu0 %v5801
    %v5949 = vpop.f32.mrf.mxu0
    %v5950 = vadd.f32 0.0, %v5949
    %v5951 = vpop.f32.mrf.mxu0
    %5952 = vmatprep.mubr.f32.mxu0 0.0
    %5953 = vmatmul.mubr.f32.gmra.mxu0 %v5804
    %v5954 = vpop.f32.mrf.mxu0
    %v5955 = vadd.f32 0.0, %v5954
    %v5956 = vpop.f32.mrf.mxu0
    %5957 = vmatprep.mubr.f32.mxu0 0.0
    %5958 = vmatmul.mubr.f32.gmra.mxu0 %v5807
    %v5959 = vpop.f32.mrf.mxu0
    %v5960 = vadd.f32 0.0, %v5959
    %v5961 = vpop.f32.mrf.mxu0
    %5962 = vmatprep.mubr.f32.mxu0 0.0
    %5963 = vmatmul.mubr.f32.gmra.mxu0 %v5810
    %v5964 = vpop.f32.mrf.mxu0
    %v5965 = vadd.f32 0.0, %v5964
    %v5966 = vpop.f32.mrf.mxu0
    %5967 = vmatprep.mubr.f32.mxu0 0.0
    %5968 = vmatmul.mubr.f32.gmra.mxu0 %v5813
    %v5969 = vpop.f32.mrf.mxu0
    %v5970 = vadd.f32 0.0, %v5969
    %v5971 = vpop.f32.mrf.mxu0
    %5972 = vmatprep.mubr.f32.mxu0 0.0
    %5973 = vmatmul.mubr.f32.gmra.mxu0 %v5816
    %v5974 = vpop.f32.mrf.mxu0
    %v5975 = vadd.f32 0.0, %v5974
    %v5976 = vpop.f32.mrf.mxu0
    %5977 = vmatprep.mubr.f32.mxu0 0.0
    %5978 = vmatmul.mubr.f32.gmra.mxu0 %v5819
    %v5979 = vpop.f32.mrf.mxu0
    %v5980 = vadd.f32 0.0, %v5979
    %v5981 = vpop.f32.mrf.mxu0
    %5982 = vmatprep.mubr.f32.mxu0 0.0
    %5983 = vmatmul.mubr.f32.gmra.mxu0 %v5822
    %v5984 = vpop.f32.mrf.mxu0
    %v5985 = vadd.f32 0.0, %v5984
    %v5986 = vpop.f32.mrf.mxu0
    %5987 = vmatprep.mubr.f32.mxu0 0.0
    %5988 = vmatmul.mubr.f32.gmra.mxu0 %v5825
    %v5989 = vpop.f32.mrf.mxu0
    %v5990 = vadd.f32 0.0, %v5989
    %v5991 = vpop.f32.mrf.mxu0
    %5992 = vmatprep.mubr.f32.mxu0 0.0
    %5993 = vmatmul.mubr.f32.gmra.mxu0 %v5828
    %v5994 = vpop.f32.mrf.mxu0
    %v5995 = vadd.f32 0.0, %v5994
    %v5996 = vpop.f32.mrf.mxu0
    %5997 = vmatprep.mubr.f32.mxu0 0.0
    %5998 = vmatmul.mubr.f32.gmra.mxu0 %v5831
    %v5999 = vpop.f32.mrf.mxu0
    %v6000 = vadd.f32 0.0, %v5999
    %v6001 = vpop.f32.mrf.mxu0
    %6002 = vmatprep.mubr.f32.mxu0 0.0
    %6003 = vmatmul.mubr.f32.gmra.mxu0 %v5834
    %v6004 = vpop.f32.mrf.mxu0
    %v6005 = vadd.f32 0.0, %v6004
    %v6006 = vpop.f32.mrf.mxu0
    %6007 = vmatprep.mubr.f32.mxu0 0.0
    %6008 = vmatmul.mubr.f32.gmra.mxu0 %v5837
    %v6009 = vpop.f32.mrf.mxu0
    %v6010 = vadd.f32 0.0, %v6009
    %v6011 = vpop.f32.mrf.mxu0
    %6012 = vmatprep.mubr.f32.mxu0 0.0
    %6013 = vmatmul.mubr.f32.gmra.mxu0 %v5840
    %v6014 = vpop.f32.mrf.mxu0
    %v6015 = vadd.f32 0.0, %v6014
    %v6016 = vpop.f32.mrf.mxu0
    %6017 = vmatprep.mubr.f32.mxu0 0.0
    %6018 = vmatmul.mubr.f32.gmra.mxu0 %v5843
    %v6019 = vpop.f32.mrf.mxu0
    %v6020 = vadd.f32 0.0, %v6019
    %v6021 = vpop.f32.mrf.mxu0
    %6022 = vmatprep.mubr.f32.mxu0 0.0
    %6023 = vmatmul.mubr.f32.gmra.mxu0 %v5846
    %v6024 = vpop.f32.mrf.mxu0
    %v6025 = vadd.f32 0.0, %v6024
    %v6026 = vpop.f32.mrf.mxu0
    %6027 = vmatprep.mubr.f32.mxu0 0.0
    %6028 = vmatmul.mubr.f32.gmra.mxu0 %v5849
    %v6029 = vpop.f32.mrf.mxu0
    %v6030 = vadd.f32 0.0, %v6029
    %v6031 = vpop.f32.mrf.mxu0
    %6032 = vmatprep.mubr.f32.mxu0 0.0
    %6033 = vmatmul.mubr.f32.gmra.mxu0 %v5852
    %v6034 = vpop.f32.mrf.mxu0
    %v6035 = vadd.f32 0.0, %v6034
    %v6036 = vpop.f32.mrf.mxu0
    %6037 = vmatprep.mubr.f32.mxu0 0.0
    %6038 = vmatmul.mubr.f32.gmra.mxu0 %v5855
    %v6039 = vpop.f32.mrf.mxu0
    %v6040 = vadd.f32 0.0, %v6039
    %v6041 = vpop.f32.mrf.mxu0
    %6042 = vmatprep.mubr.f32.mxu0 0.0
    %6043 = vmatmul.mubr.f32.gmra.mxu0 %v5858
    %v6044 = vpop.f32.mrf.mxu0
    %v6045 = vadd.f32 0.0, %v6044
    %v6046 = vpop.f32.mrf.mxu0
    %6047 = vmatprep.mubr.f32.mxu0 0.0
    %6048 = vmatmul.mubr.f32.gmra.mxu0 %v5861
    %v6049 = vpop.f32.mrf.mxu0
    %v6050 = vadd.f32 0.0, %v6049
    %v6051 = vpop.f32.mrf.mxu0
    %6052 = vdwg.mxu0
    %v6053 = vadd.f32 %v5729, %v5930
    %v6054 = vadd.f32 %v5730, %v5935
    %v6055 = vadd.f32 %v5731, %v5940
    %v6056 = vadd.f32 %v5732, %v5945
    %v6057 = vadd.f32 %v5733, %v5950
    %v6058 = vadd.f32 %v5734, %v5955
    %v6059 = vadd.f32 %v5735, %v5960
    %v6060 = vadd.f32 %v5736, %v5965
    %v6061 = vadd.f32 %v5737, %v5970
    %v6062 = vadd.f32 %v5738, %v5975
    %v6063 = vadd.f32 %v5739, %v5980
    %v6064 = vadd.f32 %v5740, %v5985
    %v6065 = vadd.f32 %v5741, %v5990
    %v6066 = vadd.f32 %v5742, %v5995
    %v6067 = vadd.f32 %v5743, %v6000
    %v6068 = vadd.f32 %v5744, %v6005
    %v6069 = vadd.f32 %v5745, %v6010
    %v6070 = vadd.f32 %v5746, %v6015
    %v6071 = vadd.f32 %v5747, %v6020
    %v6072 = vadd.f32 %v5748, %v6025
    %v6073 = vadd.f32 %v5749, %v6030
    %v6074 = vadd.f32 %v5750, %v6035
    %v6075 = vadd.f32 %v5751, %v6040
    %v6076 = vadd.f32 %v5752, %v6045
    %v6077 = vadd.f32 %v5753, %v6050
    %v6078 = vld [vmem:[#allocation3 + $0x1b] sm:$0xff]
    %v6079 = vld [vmem:[#allocation3 + $0x23] sm:$0xff]
    %v6080 = vld [vmem:[#allocation3 + $0x2b] sm:$0xff]
    %v6081 = vld [vmem:[#allocation3 + $0x33] sm:$0xff]
    %v6082 = vld [vmem:[#allocation3 + $0x3b] sm:$0xff]
    %v6083 = vld [vmem:[#allocation3 + $0x43] sm:$0xff]
    %v6084 = vld [vmem:[#allocation3 + $0x4b] sm:$0xff]
    %v6085 = vld [vmem:[#allocation3 + $0x53] sm:$0xff]
    %v6086 = vld [vmem:[#allocation3 + $0x5b] sm:$0xff]
    %v6087 = vld [vmem:[#allocation3 + $0x63] sm:$0xff]
    %v6088 = vld [vmem:[#allocation3 + $0x6b] sm:$0xff]
    %v6089 = vld [vmem:[#allocation3 + $0x73] sm:$0xff]
    %v6090 = vld [vmem:[#allocation3 + $0x7b] sm:$0xff]
    %v6091 = vld [vmem:[#allocation3 + $0x83] sm:$0xff]
    %v6092 = vld [vmem:[#allocation3 + $0x8b] sm:$0xff]
    %v6093 = vld [vmem:[#allocation3 + $0x93] sm:$0xff]
    %v6094 = vld [vmem:[#allocation3 + $0x9b] sm:$0xff]
    %v6095 = vld [vmem:[#allocation3 + $0xa3] sm:$0xff]
    %v6096 = vld [vmem:[#allocation3 + $0xab] sm:$0xff]
    %v6097 = vld [vmem:[#allocation3 + $0xb3] sm:$0xff]
    %v6098 = vld [vmem:[#allocation3 + $0xbb] sm:$0xff]
    %v6099 = vld [vmem:[#allocation3 + $0xc3] sm:$0xff]
    %v6100 = vld [vmem:[#allocation3 + $0xcb] sm:$0xff]
    %v6101 = vld [vmem:[#allocation3 + $0xd3] sm:$0xff]
    %v6102 = vld [vmem:[#allocation3 + $0xdb] sm:$0xff]
    %s6103 = scalar_lea.vmem [#allocation6], 512
    %v6104 = vld [vmem:[%s6103] sm:$0xff]
    %v6105 = vld [vmem:[%s6103 + $0x8] sm:$0xff]
    %v6106 = vld [vmem:[%s6103 + $0x10] sm:$0xff]
    %v6107 = vld [vmem:[%s6103 + $0x18] sm:$0xff]
    %v6108 = vld [vmem:[%s6103 + $0x20] sm:$0xff]
    %v6109 = vld [vmem:[%s6103 + $0x28] sm:$0xff]
    %v6110 = vld [vmem:[%s6103 + $0x30] sm:$0xff]
    %v6111 = vld [vmem:[%s6103 + $0x38] sm:$0xff]
    %v6113 = vsel %vm68, %v6078, 0
    %v6116 = vsel %vm68, %v6079, 0
    %v6119 = vsel %vm68, %v6080, 0
    %v6122 = vsel %vm68, %v6081, 0
    %v6125 = vsel %vm68, %v6082, 0
    %v6128 = vsel %vm68, %v6083, 0
    %v6131 = vsel %vm68, %v6084, 0
    %v6134 = vsel %vm68, %v6085, 0
    %v6137 = vsel %vm68, %v6086, 0
    %v6140 = vsel %vm68, %v6087, 0
    %v6143 = vsel %vm68, %v6088, 0
    %v6146 = vsel %vm68, %v6089, 0
    %v6149 = vsel %vm68, %v6090, 0
    %v6152 = vsel %vm68, %v6091, 0
    %v6155 = vsel %vm68, %v6092, 0
    %v6158 = vsel %vm68, %v6093, 0
    %v6161 = vsel %vm68, %v6094, 0
    %v6164 = vsel %vm68, %v6095, 0
    %v6167 = vsel %vm68, %v6096, 0
    %v6170 = vsel %vm68, %v6097, 0
    %v6173 = vsel %vm68, %v6098, 0
    %v6176 = vsel %vm68, %v6099, 0
    %v6179 = vsel %vm68, %v6100, 0
    %v6182 = vsel %vm68, %v6101, 0
    %v6185 = vsel %vm68, %v6102, 0
    %6187 = vmatprep.subr.mxu0 0.0
    %6188 = vmatpush1.msra.mxu0 0.0
    %6189 = vmatprep.subr.mxu0 0.0
    %6190 = vmatpush1.msra.mxu0 0.0
    %6191 = vmatprep.subr.mxu0 0.0
    %6192 = vmatpush1.msra.mxu0 0.0
    %6193 = vmatprep.subr.mxu0 0.0
    %6194 = vmatpush1.msra.mxu0 0.0
    %6195 = vmatprep.subr.mxu0 0.0
    %6196 = vmatpush1.msra.mxu0 0.0
    %6197 = vmatprep.subr.mxu0 0.0
    %6198 = vmatpush1.msra.mxu0 0.0
    %6199 = vmatprep.subr.mxu0 0.0
    %6200 = vmatpush1.msra.mxu0 0.0
    %6201 = vmatprep.subr.mxu0 0.0
    %6202 = vmatpush1.msra.mxu0 0.0
    %6203 = vmatprep.subr.mxu0 0.0
    %6204 = vmatpush1.msra.mxu0 %v6111
    %6205 = vmatprep.subr.mxu0 0.0
    %6206 = vmatpush1.msra.mxu0 %v6110
    %6207 = vmatprep.subr.mxu0 0.0
    %6208 = vmatpush1.msra.mxu0 %v6109
    %6209 = vmatprep.subr.mxu0 0.0
    %6210 = vmatpush1.msra.mxu0 %v6108
    %6211 = vmatprep.subr.mxu0 0.0
    %6212 = vmatpush1.msra.mxu0 %v6107
    %6213 = vmatprep.subr.mxu0 0.0
    %6214 = vmatpush1.msra.mxu0 %v6106
    %6215 = vmatprep.subr.mxu0 0.0
    %6216 = vmatpush1.msra.mxu0 %v6105
    %6217 = vmatprep.subr.mxu0 0.0
    %6218 = vmatpush1.msra.mxu0 %v6104
    %6219 = vmatprep.subr.mxu0 0.0
    %6220 = vmatpush2.msra.mxu0 0.0
    %6221 = vmatprep.subr.mxu0 0.0
    %6222 = vmatpush2.msra.mxu0 0.0
    %6223 = vmatprep.subr.mxu0 0.0
    %6224 = vmatpush2.msra.mxu0 0.0
    %6225 = vmatprep.subr.mxu0 0.0
    %6226 = vmatpush2.msra.mxu0 0.0
    %6227 = vmatprep.subr.mxu0 0.0
    %6228 = vmatpush2.msra.mxu0 0.0
    %6229 = vmatprep.subr.mxu0 0.0
    %6230 = vmatpush2.msra.mxu0 0.0
    %6231 = vmatprep.subr.mxu0 0.0
    %6232 = vmatpush2.msra.mxu0 0.0
    %6233 = vmatprep.subr.mxu0 0.0
    %6234 = vmatpush2.msra.mxu0 0.0
    %6235 = vmatprep.subr.mxu0 0.0
    %6236 = vmatpush2.msra.mxu0 0.0
    %6237 = vmatprep.subr.mxu0 0.0
    %6238 = vmatpush2.msra.mxu0 0.0
    %6239 = vmatprep.subr.mxu0 0.0
    %6240 = vmatpush2.msra.mxu0 0.0
    %6241 = vmatprep.subr.mxu0 0.0
    %6242 = vmatpush2.msra.mxu0 0.0
    %6243 = vmatprep.subr.mxu0 0.0
    %6244 = vmatpush2.msra.mxu0 0.0
    %6245 = vmatprep.subr.mxu0 0.0
    %6246 = vmatpush2.msra.mxu0 0.0
    %6247 = vmatprep.subr.mxu0 0.0
    %6248 = vmatpush2.msra.mxu0 0.0
    %6249 = vmatprep.subr.mxu0 0.0
    %6250 = vmatpush2.msra.mxu0 0.0
    %6251 = vmatprep.mubr.f32.mxu0 0.0
    %6252 = vmatmul.mubr.f32.gmra.mxu0 %v6113
    %v6253 = vpop.f32.mrf.mxu0
    %v6254 = vadd.f32 0.0, %v6253
    %v6255 = vpop.f32.mrf.mxu0
    %6256 = vmatprep.mubr.f32.mxu0 0.0
    %6257 = vmatmul.mubr.f32.gmra.mxu0 %v6116
    %v6258 = vpop.f32.mrf.mxu0
    %v6259 = vadd.f32 0.0, %v6258
    %v6260 = vpop.f32.mrf.mxu0
    %6261 = vmatprep.mubr.f32.mxu0 0.0
    %6262 = vmatmul.mubr.f32.gmra.mxu0 %v6119
    %v6263 = vpop.f32.mrf.mxu0
    %v6264 = vadd.f32 0.0, %v6263
    %v6265 = vpop.f32.mrf.mxu0
    %6266 = vmatprep.mubr.f32.mxu0 0.0
    %6267 = vmatmul.mubr.f32.gmra.mxu0 %v6122
    %v6268 = vpop.f32.mrf.mxu0
    %v6269 = vadd.f32 0.0, %v6268
    %v6270 = vpop.f32.mrf.mxu0
    %6271 = vmatprep.mubr.f32.mxu0 0.0
    %6272 = vmatmul.mubr.f32.gmra.mxu0 %v6125
    %v6273 = vpop.f32.mrf.mxu0
    %v6274 = vadd.f32 0.0, %v6273
    %v6275 = vpop.f32.mrf.mxu0
    %6276 = vmatprep.mubr.f32.mxu0 0.0
    %6277 = vmatmul.mubr.f32.gmra.mxu0 %v6128
    %v6278 = vpop.f32.mrf.mxu0
    %v6279 = vadd.f32 0.0, %v6278
    %v6280 = vpop.f32.mrf.mxu0
    %6281 = vmatprep.mubr.f32.mxu0 0.0
    %6282 = vmatmul.mubr.f32.gmra.mxu0 %v6131
    %v6283 = vpop.f32.mrf.mxu0
    %v6284 = vadd.f32 0.0, %v6283
    %v6285 = vpop.f32.mrf.mxu0
    %6286 = vmatprep.mubr.f32.mxu0 0.0
    %6287 = vmatmul.mubr.f32.gmra.mxu0 %v6134
    %v6288 = vpop.f32.mrf.mxu0
    %v6289 = vadd.f32 0.0, %v6288
    %v6290 = vpop.f32.mrf.mxu0
    %6291 = vmatprep.mubr.f32.mxu0 0.0
    %6292 = vmatmul.mubr.f32.gmra.mxu0 %v6137
    %v6293 = vpop.f32.mrf.mxu0
    %v6294 = vadd.f32 0.0, %v6293
    %v6295 = vpop.f32.mrf.mxu0
    %6296 = vmatprep.mubr.f32.mxu0 0.0
    %6297 = vmatmul.mubr.f32.gmra.mxu0 %v6140
    %v6298 = vpop.f32.mrf.mxu0
    %v6299 = vadd.f32 0.0, %v6298
    %v6300 = vpop.f32.mrf.mxu0
    %6301 = vmatprep.mubr.f32.mxu0 0.0
    %6302 = vmatmul.mubr.f32.gmra.mxu0 %v6143
    %v6303 = vpop.f32.mrf.mxu0
    %v6304 = vadd.f32 0.0, %v6303
    %v6305 = vpop.f32.mrf.mxu0
    %6306 = vmatprep.mubr.f32.mxu0 0.0
    %6307 = vmatmul.mubr.f32.gmra.mxu0 %v6146
    %v6308 = vpop.f32.mrf.mxu0
    %v6309 = vadd.f32 0.0, %v6308
    %v6310 = vpop.f32.mrf.mxu0
    %6311 = vmatprep.mubr.f32.mxu0 0.0
    %6312 = vmatmul.mubr.f32.gmra.mxu0 %v6149
    %v6313 = vpop.f32.mrf.mxu0
    %v6314 = vadd.f32 0.0, %v6313
    %v6315 = vpop.f32.mrf.mxu0
    %6316 = vmatprep.mubr.f32.mxu0 0.0
    %6317 = vmatmul.mubr.f32.gmra.mxu0 %v6152
    %v6318 = vpop.f32.mrf.mxu0
    %v6319 = vadd.f32 0.0, %v6318
    %v6320 = vpop.f32.mrf.mxu0
    %6321 = vmatprep.mubr.f32.mxu0 0.0
    %6322 = vmatmul.mubr.f32.gmra.mxu0 %v6155
    %v6323 = vpop.f32.mrf.mxu0
    %v6324 = vadd.f32 0.0, %v6323
    %v6325 = vpop.f32.mrf.mxu0
    %6326 = vmatprep.mubr.f32.mxu0 0.0
    %6327 = vmatmul.mubr.f32.gmra.mxu0 %v6158
    %v6328 = vpop.f32.mrf.mxu0
    %v6329 = vadd.f32 0.0, %v6328
    %v6330 = vpop.f32.mrf.mxu0
    %6331 = vmatprep.mubr.f32.mxu0 0.0
    %6332 = vmatmul.mubr.f32.gmra.mxu0 %v6161
    %v6333 = vpop.f32.mrf.mxu0
    %v6334 = vadd.f32 0.0, %v6333
    %v6335 = vpop.f32.mrf.mxu0
    %6336 = vmatprep.mubr.f32.mxu0 0.0
    %6337 = vmatmul.mubr.f32.gmra.mxu0 %v6164
    %v6338 = vpop.f32.mrf.mxu0
    %v6339 = vadd.f32 0.0, %v6338
    %v6340 = vpop.f32.mrf.mxu0
    %6341 = vmatprep.mubr.f32.mxu0 0.0
    %6342 = vmatmul.mubr.f32.gmra.mxu0 %v6167
    %v6343 = vpop.f32.mrf.mxu0
    %v6344 = vadd.f32 0.0, %v6343
    %v6345 = vpop.f32.mrf.mxu0
    %6346 = vmatprep.mubr.f32.mxu0 0.0
    %6347 = vmatmul.mubr.f32.gmra.mxu0 %v6170
    %v6348 = vpop.f32.mrf.mxu0
    %v6349 = vadd.f32 0.0, %v6348
    %v6350 = vpop.f32.mrf.mxu0
    %6351 = vmatprep.mubr.f32.mxu0 0.0
    %6352 = vmatmul.mubr.f32.gmra.mxu0 %v6173
    %v6353 = vpop.f32.mrf.mxu0
    %v6354 = vadd.f32 0.0, %v6353
    %v6355 = vpop.f32.mrf.mxu0
    %6356 = vmatprep.mubr.f32.mxu0 0.0
    %6357 = vmatmul.mubr.f32.gmra.mxu0 %v6176
    %v6358 = vpop.f32.mrf.mxu0
    %v6359 = vadd.f32 0.0, %v6358
    %v6360 = vpop.f32.mrf.mxu0
    %6361 = vmatprep.mubr.f32.mxu0 0.0
    %6362 = vmatmul.mubr.f32.gmra.mxu0 %v6179
    %v6363 = vpop.f32.mrf.mxu0
    %v6364 = vadd.f32 0.0, %v6363
    %v6365 = vpop.f32.mrf.mxu0
    %6366 = vmatprep.mubr.f32.mxu0 0.0
    %6367 = vmatmul.mubr.f32.gmra.mxu0 %v6182
    %v6368 = vpop.f32.mrf.mxu0
    %v6369 = vadd.f32 0.0, %v6368
    %v6370 = vpop.f32.mrf.mxu0
    %6371 = vmatprep.mubr.f32.mxu0 0.0
    %6372 = vmatmul.mubr.f32.gmra.mxu0 %v6185
    %v6373 = vpop.f32.mrf.mxu0
    %v6374 = vadd.f32 0.0, %v6373
    %v6375 = vpop.f32.mrf.mxu0
    %6376 = vdwg.mxu0
    %v6377 = vadd.f32 %v6053, %v6254
    %v6378 = vadd.f32 %v6054, %v6259
    %v6379 = vadd.f32 %v6055, %v6264
    %v6380 = vadd.f32 %v6056, %v6269
    %v6381 = vadd.f32 %v6057, %v6274
    %v6382 = vadd.f32 %v6058, %v6279
    %v6383 = vadd.f32 %v6059, %v6284
    %v6384 = vadd.f32 %v6060, %v6289
    %v6385 = vadd.f32 %v6061, %v6294
    %v6386 = vadd.f32 %v6062, %v6299
    %v6387 = vadd.f32 %v6063, %v6304
    %v6388 = vadd.f32 %v6064, %v6309
    %v6389 = vadd.f32 %v6065, %v6314
    %v6390 = vadd.f32 %v6066, %v6319
    %v6391 = vadd.f32 %v6067, %v6324
    %v6392 = vadd.f32 %v6068, %v6329
    %v6393 = vadd.f32 %v6069, %v6334
    %v6394 = vadd.f32 %v6070, %v6339
    %v6395 = vadd.f32 %v6071, %v6344
    %v6396 = vadd.f32 %v6072, %v6349
    %v6397 = vadd.f32 %v6073, %v6354
    %v6398 = vadd.f32 %v6074, %v6359
    %v6399 = vadd.f32 %v6075, %v6364
    %v6400 = vadd.f32 %v6076, %v6369
    %v6401 = vadd.f32 %v6077, %v6374
    %v6402 = vld [vmem:[%s8] sm:$0x1]
    %v6404 = vlaneseq
    %v6405 = vshrl.u32 %v6404, 7
    %v6406 = vsub.s32 0, %v6405
    %v6407 = vrot.slane %v6402, %v6406
    %v6409 = vadd.f32 %v6377, %v6407
    %v6410 = vadd.f32 %v6378, %v6407
    %v6411 = vadd.f32 %v6379, %v6407
    %v6412 = vadd.f32 %v6380, %v6407
    %v6413 = vadd.f32 %v6381, %v6407
    %v6414 = vadd.f32 %v6382, %v6407
    %v6415 = vadd.f32 %v6383, %v6407
    %v6416 = vadd.f32 %v6384, %v6407
    %v6417 = vadd.f32 %v6385, %v6407
    %v6418 = vadd.f32 %v6386, %v6407
    %v6419 = vadd.f32 %v6387, %v6407
    %v6420 = vadd.f32 %v6388, %v6407
    %v6421 = vadd.f32 %v6389, %v6407
    %v6422 = vadd.f32 %v6390, %v6407
    %v6423 = vadd.f32 %v6391, %v6407
    %v6424 = vadd.f32 %v6392, %v6407
    %v6425 = vadd.f32 %v6393, %v6407
    %v6426 = vadd.f32 %v6394, %v6407
    %v6427 = vadd.f32 %v6395, %v6407
    %v6428 = vadd.f32 %v6396, %v6407
    %v6429 = vadd.f32 %v6397, %v6407
    %v6430 = vadd.f32 %v6398, %v6407
    %v6431 = vadd.f32 %v6399, %v6407
    %v6432 = vadd.f32 %v6400, %v6407
    %v6433 = vadd.f32 %v6401, %v6407
    %vm6434 = vcmp.gt.f32.partialorder %v6409, 0.0
    %vm6435 = vcmp.gt.f32.partialorder %v6410, 0.0
    %vm6436 = vcmp.gt.f32.partialorder %v6411, 0.0
    %vm6437 = vcmp.gt.f32.partialorder %v6412, 0.0
    %vm6438 = vcmp.gt.f32.partialorder %v6413, 0.0
    %vm6439 = vcmp.gt.f32.partialorder %v6414, 0.0
    %vm6440 = vcmp.gt.f32.partialorder %v6415, 0.0
    %vm6441 = vcmp.gt.f32.partialorder %v6416, 0.0
    %vm6442 = vcmp.gt.f32.partialorder %v6417, 0.0
    %vm6443 = vcmp.gt.f32.partialorder %v6418, 0.0
    %vm6444 = vcmp.gt.f32.partialorder %v6419, 0.0
    %vm6445 = vcmp.gt.f32.partialorder %v6420, 0.0
    %vm6446 = vcmp.gt.f32.partialorder %v6421, 0.0
    %vm6447 = vcmp.gt.f32.partialorder %v6422, 0.0
    %vm6448 = vcmp.gt.f32.partialorder %v6423, 0.0
    %vm6449 = vcmp.gt.f32.partialorder %v6424, 0.0
    %vm6450 = vcmp.gt.f32.partialorder %v6425, 0.0
    %vm6451 = vcmp.gt.f32.partialorder %v6426, 0.0
    %vm6452 = vcmp.gt.f32.partialorder %v6427, 0.0
    %vm6453 = vcmp.gt.f32.partialorder %v6428, 0.0
    %vm6454 = vcmp.gt.f32.partialorder %v6429, 0.0
    %vm6455 = vcmp.gt.f32.partialorder %v6430, 0.0
    %vm6456 = vcmp.gt.f32.partialorder %v6431, 0.0
    %vm6457 = vcmp.gt.f32.partialorder %v6432, 0.0
    %vm6458 = vcmp.gt.f32.partialorder %v6433, 0.0
    %v6459 = vmul.f32 %v6409, 0.2
    %v6460 = vmul.f32 %v6410, 0.2
    %v6461 = vmul.f32 %v6411, 0.2
    %v6462 = vmul.f32 %v6412, 0.2
    %v6463 = vmul.f32 %v6413, 0.2
    %v6464 = vmul.f32 %v6414, 0.2
    %v6465 = vmul.f32 %v6415, 0.2
    %v6466 = vmul.f32 %v6416, 0.2
    %v6467 = vmul.f32 %v6417, 0.2
    %v6468 = vmul.f32 %v6418, 0.2
    %v6469 = vmul.f32 %v6419, 0.2
    %v6470 = vmul.f32 %v6420, 0.2
    %v6471 = vmul.f32 %v6421, 0.2
    %v6472 = vmul.f32 %v6422, 0.2
    %v6473 = vmul.f32 %v6423, 0.2
    %v6474 = vmul.f32 %v6424, 0.2
    %v6475 = vmul.f32 %v6425, 0.2
    %v6476 = vmul.f32 %v6426, 0.2
    %v6477 = vmul.f32 %v6427, 0.2
    %v6478 = vmul.f32 %v6428, 0.2
    %v6479 = vmul.f32 %v6429, 0.2
    %v6480 = vmul.f32 %v6430, 0.2
    %v6481 = vmul.f32 %v6431, 0.2
    %v6482 = vmul.f32 %v6432, 0.2
    %v6483 = vmul.f32 %v6433, 0.2
    %v6484 = vsel %vm6434, %v6409, %v6459
    %v6485 = vsel %vm6435, %v6410, %v6460
    %v6486 = vsel %vm6436, %v6411, %v6461
    %v6487 = vsel %vm6437, %v6412, %v6462
    %v6488 = vsel %vm6438, %v6413, %v6463
    %v6489 = vsel %vm6439, %v6414, %v6464
    %v6490 = vsel %vm6440, %v6415, %v6465
    %v6491 = vsel %vm6441, %v6416, %v6466
    %v6492 = vsel %vm6442, %v6417, %v6467
    %v6493 = vsel %vm6443, %v6418, %v6468
    %v6494 = vsel %vm6444, %v6419, %v6469
    %v6495 = vsel %vm6445, %v6420, %v6470
    %v6496 = vsel %vm6446, %v6421, %v6471
    %v6497 = vsel %vm6447, %v6422, %v6472
    %v6498 = vsel %vm6448, %v6423, %v6473
    %v6499 = vsel %vm6449, %v6424, %v6474
    %v6500 = vsel %vm6450, %v6425, %v6475
    %v6501 = vsel %vm6451, %v6426, %v6476
    %v6502 = vsel %vm6452, %v6427, %v6477
    %v6503 = vsel %vm6453, %v6428, %v6478
    %v6504 = vsel %vm6454, %v6429, %v6479
    %v6505 = vsel %vm6455, %v6430, %v6480
    %v6506 = vsel %vm6456, %v6431, %v6481
    %v6507 = vsel %vm6457, %v6432, %v6482
    %v6508 = vsel %vm6458, %v6433, %v6483
    %v6509 = vmul.f32 %v6484, %v98
    %v6510 = vmul.f32 %v6485, %v99
    %v6511 = vmul.f32 %v6486, %v100
    %v6512 = vmul.f32 %v6487, %v101
    %v6513 = vmul.f32 %v6488, %v102
    %v6514 = vmul.f32 %v6489, %v103
    %v6515 = vmul.f32 %v6490, %v104
    %v6516 = vmul.f32 %v6491, %v105
    %v6517 = vmul.f32 %v6492, %v106
    %v6518 = vmul.f32 %v6493, %v107
    %v6519 = vmul.f32 %v6494, %v108
    %v6520 = vmul.f32 %v6495, %v109
    %v6521 = vmul.f32 %v6496, %v110
    %v6522 = vmul.f32 %v6497, %v111
    %v6523 = vmul.f32 %v6498, %v112
    %v6524 = vmul.f32 %v6499, %v113
    %v6525 = vmul.f32 %v6500, %v114
    %v6526 = vmul.f32 %v6501, %v115
    %v6527 = vmul.f32 %v6502, %v116
    %v6528 = vmul.f32 %v6503, %v117
    %v6529 = vmul.f32 %v6504, %v118
    %v6530 = vmul.f32 %v6505, %v119
    %v6531 = vmul.f32 %v6506, %v120
    %v6532 = vmul.f32 %v6507, %v121
    %v6533 = vmul.f32 %v6508, %v122
    %v6534 = vld [vmem:[%s9] sm:$0xff]
    %v6535 = vld [vmem:[%s9 + $0x8] sm:$0xff]
    %v6536 = vld [vmem:[%s9 + $0x10] sm:$0xff]
    %v6537 = vld [vmem:[%s9 + $0x18] sm:$0xff]
    %v6538 = vld [vmem:[%s9 + $0x20] sm:$0xff]
    %v6539 = vld [vmem:[%s9 + $0x28] sm:$0xff]
    %v6540 = vld [vmem:[%s9 + $0x30] sm:$0xff]
    %v6541 = vld [vmem:[%s9 + $0x38] sm:$0xff]
    %vm6542 = vcmask 588800
    %v6544 = vsel %vm6542, %v6535, 0
    %v6547 = vsel %vm6542, %v6537, 0
    %v6550 = vsel %vm6542, %v6539, 0
    %v6553 = vsel %vm6542, %v6541, 0
    %6555 = vmatprep.subr.mxu0 0.0
    %6556 = vmatpush1.msra.mxu0 %v6524
    %6557 = vmatprep.subr.mxu0 0.0
    %6558 = vmatpush1.msra.mxu0 %v6523
    %6559 = vmatprep.subr.mxu0 0.0
    %6560 = vmatpush1.msra.mxu0 %v6522
    %6561 = vmatprep.subr.mxu0 0.0
    %6562 = vmatpush1.msra.mxu0 %v6521
    %6563 = vmatprep.subr.mxu0 0.0
    %6564 = vmatpush1.msra.mxu0 %v6520
    %6565 = vmatprep.subr.mxu0 0.0
    %6566 = vmatpush1.msra.mxu0 %v6519
    %6567 = vmatprep.subr.mxu0 0.0
    %6568 = vmatpush1.msra.mxu0 %v6518
    %6569 = vmatprep.subr.mxu0 0.0
    %6570 = vmatpush1.msra.mxu0 %v6517
    %6571 = vmatprep.subr.mxu0 0.0
    %6572 = vmatpush1.msra.mxu0 %v6516
    %6573 = vmatprep.subr.mxu0 0.0
    %6574 = vmatpush1.msra.mxu0 %v6515
    %6575 = vmatprep.subr.mxu0 0.0
    %6576 = vmatpush1.msra.mxu0 %v6514
    %6577 = vmatprep.subr.mxu0 0.0
    %6578 = vmatpush1.msra.mxu0 %v6513
    %6579 = vmatprep.subr.mxu0 0.0
    %6580 = vmatpush1.msra.mxu0 %v6512
    %6581 = vmatprep.subr.mxu0 0.0
    %6582 = vmatpush1.msra.mxu0 %v6511
    %6583 = vmatprep.subr.mxu0 0.0
    %6584 = vmatpush1.msra.mxu0 %v6510
    %6585 = vmatprep.subr.mxu0 0.0
    %6586 = vmatpush1.msra.mxu0 %v6509
    %6587 = vmatprep.subr.mxu0 0.0
    %6588 = vmatpush2.msra.mxu0 0.0
    %6589 = vmatprep.subr.mxu0 0.0
    %6590 = vmatpush2.msra.mxu0 0.0
    %6591 = vmatprep.subr.mxu0 0.0
    %6592 = vmatpush2.msra.mxu0 0.0
    %6593 = vmatprep.subr.mxu0 0.0
    %6594 = vmatpush2.msra.mxu0 0.0
    %6595 = vmatprep.subr.mxu0 0.0
    %6596 = vmatpush2.msra.mxu0 0.0
    %6597 = vmatprep.subr.mxu0 0.0
    %6598 = vmatpush2.msra.mxu0 0.0
    %6599 = vmatprep.subr.mxu0 0.0
    %6600 = vmatpush2.msra.mxu0 0.0
    %6601 = vmatprep.subr.mxu0 0.0
    %6602 = vmatpush2.msra.mxu0 %v6533
    %6603 = vmatprep.subr.mxu0 0.0
    %6604 = vmatpush2.msra.mxu0 %v6532
    %6605 = vmatprep.subr.mxu0 0.0
    %6606 = vmatpush2.msra.mxu0 %v6531
    %6607 = vmatprep.subr.mxu0 0.0
    %6608 = vmatpush2.msra.mxu0 %v6530
    %6609 = vmatprep.subr.mxu0 0.0
    %6610 = vmatpush2.msra.mxu0 %v6529
    %6611 = vmatprep.subr.mxu0 0.0
    %6612 = vmatpush2.msra.mxu0 %v6528
    %6613 = vmatprep.subr.mxu0 0.0
    %6614 = vmatpush2.msra.mxu0 %v6527
    %6615 = vmatprep.subr.mxu0 0.0
    %6616 = vmatpush2.msra.mxu0 %v6526
    %6617 = vmatprep.subr.mxu0 0.0
    %6618 = vmatpush2.msra.mxu0 %v6525
    %6619 = vmatprep.mubr.f32.mxu0 %v6544
    %6620 = vmatmul.mubr.f32.gmra.mxu0 %v6534
    %v6621 = vpop.f32.mrf.mxu0
    %v6622 = vadd.f32 0.0, %v6621
    %v6623 = vpop.f32.mrf.mxu0
    %6624 = vmatprep.mubr.f32.mxu0 %v6547
    %6625 = vmatmul.mubr.f32.gmra.mxu0 %v6536
    %v6626 = vpop.f32.mrf.mxu0
    %v6627 = vadd.f32 0.0, %v6626
    %v6628 = vpop.f32.mrf.mxu0
    %6629 = vmatprep.mubr.f32.mxu0 %v6550
    %6630 = vmatmul.mubr.f32.gmra.mxu0 %v6538
    %v6631 = vpop.f32.mrf.mxu0
    %v6632 = vadd.f32 0.0, %v6631
    %v6633 = vpop.f32.mrf.mxu0
    %6634 = vmatprep.mubr.f32.mxu0 %v6553
    %6635 = vmatmul.mubr.f32.gmra.mxu0 %v6540
    %v6636 = vpop.f32.mrf.mxu0
    %v6637 = vadd.f32 0.0, %v6636
    %v6638 = vpop.f32.mrf.mxu0
    %6639 = vdwg.mxu0
    %6640 = vst.msk [vmem:[%s10] sm:$0xff] %vm68, %v6622
    %6641 = vst.msk [vmem:[%s10 + $0x8] sm:$0xff] %vm68, %v6627
    %6642 = vst.msk [vmem:[%s10 + $0x10] sm:$0xff] %vm68, %v6632
    %6643 = vst.msk [vmem:[%s10 + $0x18] sm:$0xff] %vm68, %v6637
    // Predicated region
    $region50: #{encoder_forward.1} parent=1 // pred_check
      _
    $region51: #{encoder_forward.1} parent=1 // pred_check_branch
      %6645 = sbr.rel (0) target = $region53
    $region52: #{encoder_forward.1} parent=1 // pred_region
      _
    $region53: #{encoder_forward.1} parent=1 // pred_fallthru
      _
    // Predicated region
    $region54: #{encoder_forward.1} parent=1 // pred_check
      _
    $region55: #{encoder_forward.1} parent=1 // pred_check_branch
      %6647 = sbr.rel (0) target = $region57
    $region56: #{encoder_forward.1} parent=1 // pred_region
      _
    $region57: #{encoder_forward.1} parent=1 // pred_fallthru
      _
    %6648 = vsyncpa [#allocation5], 1
    %6649 = vsyncpa [#allocation7], 1

</llo_original>
